<compile_context>
chip_gen: v5e
topology: v5e:2x2
jax: 0.10.0
libtpu: 0.0.40
codegen_flags: <defaults>
</compile_context>

<pallas_src>
import functools

import jax
import jax.numpy as jnp
from jax.experimental import pallas as pl
from jax.experimental.pallas import tpu as pltpu

EPS = 1e-20
LANE = 128
_VMEM = pl.BlockSpec(memory_space=pltpu.MemorySpace.VMEM)


def _round_up(x, m):
    return ((x + m - 1) // m) * m


# ----------------------------- Pallas kernels -----------------------------

def _linear_kernel(x_ref, w_ref, b_ref, o_ref):
    o_ref[...] = (
        jnp.dot(x_ref[...], w_ref[...], preferred_element_type=jnp.float32)
        + b_ref[...]
    )


def linear_pallas(x, w_t, b):
    """x: (N, in), w_t: (in, out_pad), b: (1, out_pad) -> (N, out_pad)."""
    n = x.shape[0]
    n_pad = _round_up(n, 8)
    if n_pad != n:
        x = jnp.pad(x, ((0, n_pad - n), (0, 0)))
    out = pl.pallas_call(
        _linear_kernel,
        out_shape=jax.ShapeDtypeStruct((n_pad, w_t.shape[1]), jnp.float32),
        in_specs=[_VMEM, _VMEM, _VMEM],
        out_specs=_VMEM,
    )(x, w_t, b)
    return out[:n]


def _treelstm_row_kernel(hl_ref, cl_ref, hr_ref, cr_ref,
                         wl_ref, wr_ref, b_ref, q_ref,
                         h_ref, c_ref, s_ref):
    hl = hl_ref[...]
    cl = cl_ref[...]
    hr = hr_ref[...]
    cr = cr_ref[...]
    dp = hl.shape[-1]                                 # padded hidden (mult of 128)
    # cat([hl, hr]) @ W_t  ==  hl @ Wl + hr @ Wr   (gate blocks are DP-wide,
    # so every slice below starts on a 128-lane boundary).
    v = (jnp.dot(hl, wl_ref[...], preferred_element_type=jnp.float32)
         + jnp.dot(hr, wr_ref[...], preferred_element_type=jnp.float32)
         + b_ref[...])                                # (N, 5*DP)
    i_g = v[:, 0 * dp:1 * dp]
    fl = v[:, 1 * dp:2 * dp]
    fr = v[:, 2 * dp:3 * dp]
    u = v[:, 3 * dp:4 * dp]
    o = v[:, 4 * dp:5 * dp]
    c = (cl * jax.nn.sigmoid(fl + 1.0)
         + cr * jax.nn.sigmoid(fr + 1.0)
         + jnp.tanh(u) * jax.nn.sigmoid(i_g))
    h = jax.nn.sigmoid(o) * jnp.tanh(c)
    h_ref[...] = h
    c_ref[...] = c
    # comp_query score via a lane-dense MXU matmul: q_ref is (DP, 128) with the
    # query in column 0 (zeros elsewhere), so lane 0 of the result is the score.
    s_ref[...] = jnp.dot(h, q_ref[...], preferred_element_type=jnp.float32)


def treelstm_row_pallas(hl, cl, hr, cr, wl, wr, b, q, block_rows=128):
    """All split candidates of one chart row in one launch.

    hl/cl/hr/cr: (N, DP) f32 (DP multiple of 128).  wl/wr: (DP, 5*DP).
    b: (1, 5*DP).  q: (DP, 128).  Returns h (N, DP), c (N, DP), score (N,).
    """
    n, dp = hl.shape
    bm = min(block_rows, _round_up(n, 8))
    n_pad = _round_up(n, bm)
    if n_pad != n:
        pad = ((0, n_pad - n), (0, 0))
        hl, cl, hr, cr = (jnp.pad(a, pad) for a in (hl, cl, hr, cr))
    nblk = n_pad // bm

    row_spec = pl.BlockSpec((bm, dp), lambda i: (i, 0))
    const2 = lambda i: (0, 0)

    h_pad, c_pad, s_pad = pl.pallas_call(
        _treelstm_row_kernel,
        out_shape=(
            jax.ShapeDtypeStruct((n_pad, dp), jnp.float32),
            jax.ShapeDtypeStruct((n_pad, dp), jnp.float32),
            jax.ShapeDtypeStruct((n_pad, LANE), jnp.float32),
        ),
        grid_spec=pltpu.PrefetchScalarGridSpec(
            num_scalar_prefetch=0,
            grid=(nblk,),
            in_specs=[
                row_spec, row_spec, row_spec, row_spec,
                pl.BlockSpec((dp, 5 * dp), const2),   # weights stay VMEM-resident
                pl.BlockSpec((dp, 5 * dp), const2),
                pl.BlockSpec((1, 5 * dp), const2),
                pl.BlockSpec((dp, LANE), const2),
            ],
            out_specs=(
                row_spec,
                row_spec,
                pl.BlockSpec((bm, LANE), lambda i: (i, 0)),
            ),
        ),
        compiler_params=pltpu.CompilerParams(
            dimension_semantics=("parallel",)),
    )(hl, cl, hr, cr, wl, wr, b, q)
    return h_pad[:n], c_pad[:n], s_pad[:n, 0]


# ------------------------------ JAX glue ----------------------------------

def gumbel_noise(key, shape):
    u = jax.random.uniform(key, shape, dtype=jnp.float32)
    return -jnp.log(-jnp.log(u + EPS) + EPS)


def st_gumbel_softmax(key, logits, temperature=1.0):
    """Straight-through gumbel softmax (forward values = hard one-hot)."""
    y = jax.nn.softmax((logits + gumbel_noise(key, logits.shape)) / temperature,
                       axis=1)
    w_argmax = jnp.argmax(y, axis=1)
    w_max = jnp.max(y, axis=1)
    y_hard = jax.nn.one_hot(w_argmax, logits.shape[1], dtype=y.dtype)
    # TODO(synk): straight-through estimator only changes gradients; forward
    # values equal y_hard, which is what we return here.
    return y_hard, w_max, w_argmax


def _pad_params(params, d, dp, hidden):
    """Zero-pad low_dim -> dp (multiple of 128) so every gate block is
    lane-aligned.  Padded lanes of h/c stay exactly zero through the chart."""
    reduce_w = jnp.zeros((hidden, dp), jnp.float32).at[:, :d].set(
        params["reduce_w_t"])
    reduce_b = jnp.zeros((1, dp), jnp.float32).at[:, :d].set(params["reduce_b"])
    wl = params["comp_w_t"][:d]
    wr = params["comp_w_t"][d:]
    wl_pad = jnp.zeros((dp, 5 * dp), jnp.float32)
    wr_pad = jnp.zeros((dp, 5 * dp), jnp.float32)
    b_pad = jnp.zeros((1, 5 * dp), jnp.float32)
    for g in range(5):
        wl_pad = wl_pad.at[:d, g * dp:g * dp + d].set(wl[:, g * d:(g + 1) * d])
        wr_pad = wr_pad.at[:d, g * dp:g * dp + d].set(wr[:, g * d:(g + 1) * d])
        b_pad = b_pad.at[:, g * dp:g * dp + d].set(
            params["comp_b"][:, g * d:(g + 1) * d])
    q_col = jnp.zeros((dp, LANE), jnp.float32).at[:d, 0].set(
        params["comp_query"][0])
    return reduce_w, reduce_b, wl_pad, wr_pad, b_pad, q_col


def compute_compositions(h_long, c_long, alpha, wl_pad, wr_pad, b_pad, q_col,
                         key):
    nb, length, dp = h_long.shape
    temperature = 1.0

    chart_h = {(0, col): h_long[:, col, :] for col in range(length)}
    chart_c = {(0, col): c_long[:, col, :] for col in range(length)}
    memory = {}

    for row in range(1, length):
        ncol = length - row
        # Gather every (col, split) candidate of this row into one slab.
        hls, cls_, hrs, crs = [], [], [], []
        for col in range(ncol):
            for i in range(row):
                hls.append(chart_h[(row - i - 1, col)])
                cls_.append(chart_c[(row - i - 1, col)])
                hrs.append(chart_h[(i, row + col - i)])
                crs.append(chart_c[(i, row + col - i)])
        n = ncol * row * nb
        hl = jnp.stack(hls, 0).reshape(n, dp)
        cl = jnp.stack(cls_, 0).reshape(n, dp)
        hr = jnp.stack(hrs, 0).reshape(n, dp)
        cr = jnp.stack(crs, 0).reshape(n, dp)

        h_c, c_c, sc = treelstm_row_pallas(hl, cl, hr, cr,
                                           wl_pad, wr_pad, b_pad, q_col)
        h_cand = h_c.reshape(ncol, row, nb, dp)
        c_cand = c_c.reshape(ncol, row, nb, dp)
        logits = jnp.transpose(sc.reshape(ncol, row, nb),
                               (0, 2, 1)).reshape(ncol * nb, row)

        key, sub = jax.random.split(key)
        w_hard, w_max, w_argmax = st_gumbel_softmax(sub, logits, temperature)
        w_hard = w_hard.reshape(ncol, nb, row)
        alpha = alpha * jnp.prod(w_max.reshape(ncol, nb), axis=0)

        h_new = jnp.einsum("cnr,crnd->cnd", w_hard, h_cand)
        c_new = jnp.einsum("cnr,crnd->cnd", w_hard, c_cand)
        w_argmax = w_argmax.reshape(ncol, nb)
        for col in range(ncol):
            chart_h[(row, col)] = h_new[col]
            chart_c[(row, col)] = c_new[col]
            memory[(row, col)] = w_argmax[col]

    # Transition (shift/reduce) sequence assembly.
    trans = {(0, col): jnp.zeros((nb, 1), jnp.float32) for col in range(length)}
    compose = jnp.ones((nb, 1), jnp.float32)
    for row in range(1, length):
        for col in range(length - row):
            versions = [
                jnp.concatenate(
                    [trans[(row - i - 1, col)], trans[(i, row + col - i)],
                     compose], axis=1)
                for i in range(row)
            ]
            stacked = jnp.stack(versions, 0)              # (row, nb, W)
            idx = memory[(row, col)]
            trans[(row, col)] = stacked[idx, jnp.arange(nb), :]

    return alpha[:, None], trans[(length - 1, 0)]


@functools.partial(jax.jit,
                   static_argnames=("topk", "cp_num", "low_dim",
                                    "use_sentence_pair"))
def _chart_parser_forward_impl(params, inp, length, key, *, topk, cp_num,
                               low_dim, use_sentence_pair):
    b, max_depth, two_h = inp.shape
    hidden = two_h // 2
    d = low_dim
    dp = _round_up(d, LANE)

    (reduce_w_pad, reduce_b_pad,
     wl_pad, wr_pad, b_pad, q_col) = _pad_params(params, d, dp, hidden)

    h_in, c_in = jnp.split(inp, 2, axis=2)
    # Merged reduce_dim: h and c share the same Linear, one launch, one
    # weight DMA, lane-dense (DP-wide) output.
    x_all = jnp.concatenate(
        [h_in.reshape(-1, hidden), c_in.reshape(-1, hidden)], 0)
    hc_low = linear_pallas(x_all, reduce_w_pad, reduce_b_pad)
    h_low = hc_low[:b * max_depth].reshape(b, max_depth, dp)
    c_low = hc_low[b * max_depth:].reshape(b, max_depth, dp)

    # sequence_mask (computed for parity; the reference computes it but never
    # uses it inside compute_compositions).
    _ = jnp.arange(max_depth)[None, :] < length[:, None]

    num = b
    if use_sentence_pair:
        num = num // 2
    if cp_num is not None:
        num = cp_num

    h_long = jnp.concatenate([h_low] * num, 0)
    c_long = jnp.concatenate([c_low] * num, 0)
    alpha = jnp.ones((num * b,), jnp.float32)

    key, k1 = jax.random.split(key)
    alpha_w, transitions = compute_compositions(
        h_long, c_long, alpha, wl_pad, wr_pad, b_pad, q_col, k1)

    alphas = jnp.split(alpha_w, num, axis=0)               # each (B, 1)
    alpha_cat = jnp.concatenate(alphas, axis=1)            # (B, num)
    alpha_max, alpha_argmax = jax.lax.top_k(alpha_cat, topk)

    t = transitions.shape[1]
    parses = jnp.transpose(transitions.reshape(num, b, t), (1, 0, 2))

    binary_parses = []
    for i in range(topk):
        alpha_hard = jax.nn.one_hot(alpha_argmax[:, i], num, dtype=parses.dtype)
        binary_parses.append(jnp.sum(alpha_hard[:, :, None] * parses, axis=1))

    key, k2 = jax.random.split(key)
    alpha_weights = jax.nn.softmax(
        (alpha_max + gumbel_noise(k2, alpha_max.shape)) / 1.0, axis=1)

    return tuple(binary_parses), alpha_weights


def chart_parser_forward(params, inp, length, topk, cp_num, key, *,
                         low_dim, use_sentence_pair=False):
    binary_parses, alpha_weights = _chart_parser_forward_impl(
        params, inp, length, key, topk=topk, cp_num=cp_num,
        low_dim=low_dim, use_sentence_pair=use_sentence_pair)
    temperature_to_display = -1.0
    return list(binary_parses), alpha_weights, temperature_to_display


def init_params(hidden_dim, low_dim, key):
    ks = jax.random.split(key, 5)
    s = 0.1
    return dict(
        # reduce_dim: Linear(hidden_dim, low_dim)  (weight pre-transposed)
        reduce_w_t=s * jax.random.normal(ks[0], (hidden_dim, low_dim),
                                         jnp.float32),
        reduce_b=s * jax.random.normal(ks[1], (1, low_dim), jnp.float32),
        # treelstm comp_linear: Linear(2*low_dim, 5*low_dim)
        comp_w_t=s * jax.random.normal(ks[2], (2 * low_dim, 5 * low_dim),
                                       jnp.float32),
        comp_b=s * jax.random.normal(ks[3], (1, 5 * low_dim), jnp.float32),
        # comp_query: Linear(low_dim, 1) -> only the weight vector is used
        # (bias would be a constant shift that doesn't change argmax/softmax).
        comp_query=s * jax.random.normal(ks[4], (1, low_dim), jnp.float32),
    )


if __name__ == "__main__":
    key = jax.random.PRNGKey(0)
    k_in, k_par, k_fwd = jax.random.split(key, 3)

    B, L, HIDDEN, LOW = 2, 6, 32, 16
    TOPK, CP_NUM = 2, 4

    params = init_params(HIDDEN, LOW, k_par)
    x = jax.random.normal(k_in, (B, L, 2 * HIDDEN), jnp.float32)
    length = jnp.array([L, L - 2], jnp.int32)

    binary_parses, alpha_weights, temp = chart_parser_forward(
        params, x, length, TOPK, CP_NUM, k_fwd,
        low_dim=LOW, use_sentence_pair=False)

    jax.block_until_ready(alpha_weights)
    for p in binary_parses:
        jax.block_until_ready(p)

    assert len(binary_parses) == TOPK
    assert binary_parses[0].shape == (B, 2 * L - 1)
    assert alpha_weights.shape == (B, TOPK)
    assert temp == -1.0
    assert bool(jnp.all(jnp.isfinite(alpha_weights)))
    print("KERNEL_OK")
</pallas_src>

<mosaic_0001>
module attributes {stable_mosaic.version = 11 : i64} {
  func.func @_linear_kernel(%arg0: memref<24x32xf32, #tpu.memory_space<vmem>>, %arg1: memref<32x128xf32, #tpu.memory_space<vmem>>, %arg2: memref<1x128xf32, #tpu.memory_space<vmem>>, %arg3: memref<24x128xf32, #tpu.memory_space<vmem>>) attributes {dimension_semantics = [], scalar_prefetch = 0 : i64, scratch_operands = 0 : i64, tpu.core_type = #tpu.core_type<tc>} {
    %c0 = arith.constant 0 : index
    %c0_0 = arith.constant 0 : index
    %0 = vector.load %arg0[%c0, %c0_0] : memref<24x32xf32, #tpu.memory_space<vmem>>, vector<24x32xf32>
    %c0_1 = arith.constant 0 : index
    %c0_2 = arith.constant 0 : index
    %1 = vector.load %arg1[%c0_1, %c0_2] : memref<32x128xf32, #tpu.memory_space<vmem>>, vector<32x128xf32>
    %cst = arith.constant dense<0.000000e+00> : vector<24x128xf32>
    %2 = tpu.matmul %0, %1, %cst {dimension_numbers = #tpu.dot_dimension_numbers<[1], [0], [0], [1], [0, 0, 1, 1], [], []>} : vector<24x32xf32>, vector<32x128xf32>, vector<24x128xf32> -> vector<24x128xf32>
    %c0_3 = arith.constant 0 : index
    %c0_4 = arith.constant 0 : index
    %3 = vector.load %arg2[%c0_3, %c0_4] : memref<1x128xf32, #tpu.memory_space<vmem>>, vector<1x128xf32>
    %4 = vector.broadcast %3 : vector<1x128xf32> to vector<24x128xf32>
    %5 = arith.addf %2, %4 : vector<24x128xf32>
    %c0_5 = arith.constant 0 : index
    %c0_6 = arith.constant 0 : index
    %6 = vector.load %arg3[%c0_5, %c0_6] : memref<24x128xf32, #tpu.memory_space<vmem>>, vector<24x128xf32>
    tpu.vector_store %arg3[%c0_5, %c0_6], %5 {strides = array<i32>} : memref<24x128xf32, #tpu.memory_space<vmem>>, vector<24x128xf32>,
    return
  }
}

module attributes {stable_mosaic.version = 11 : i64} {
  func.func @_treelstm_row_kernel(%arg0: i32, %arg1: memref<40x128xf32, #tpu.memory_space<vmem>>, %arg2: memref<40x128xf32, #tpu.memory_space<vmem>>, %arg3: memref<40x128xf32, #tpu.memory_space<vmem>>, %arg4: memref<40x128xf32, #tpu.memory_space<vmem>>, %arg5: memref<128x640xf32, #tpu.memory_space<vmem>>, %arg6: memref<128x640xf32, #tpu.memory_space<vmem>>, %arg7: memref<1x640xf32, #tpu.memory_space<vmem>>, %arg8: memref<128x128xf32, #tpu.memory_space<vmem>>, %arg9: memref<40x128xf32, #tpu.memory_space<vmem>>, %arg10: memref<40x128xf32, #tpu.memory_space<vmem>>, %arg11: memref<40x128xf32, #tpu.memory_space<vmem>>) attributes {dimension_semantics = [#tpu.dimension_semantics<parallel>], iteration_bounds = array<i64: 1>, scalar_prefetch = 0 : i64, scratch_operands = 0 : i64, tpu.core_type = #tpu.core_type<tc>, window_params = [{transform_indices = @transform_0, window_bounds = array<i64: 40, 128>}, {transform_indices = @transform_1, window_bounds = array<i64: 40, 128>}, {transform_indices = @transform_2, window_bounds = array<i64: 40, 128>}, {transform_indices = @transform_3, window_bounds = array<i64: 40, 128>}, {pipeline_mode = #tpu.pipeline_mode<synchronous>, transform_indices = @transform_4, window_bounds = array<i64: 128, 640>}, {pipeline_mode = #tpu.pipeline_mode<synchronous>, transform_indices = @transform_5, window_bounds = array<i64: 128, 640>}, {pipeline_mode = #tpu.pipeline_mode<synchronous>, transform_indices = @transform_6, window_bounds = array<i64: 1, 640>}, {pipeline_mode = #tpu.pipeline_mode<synchronous>, transform_indices = @transform_7, window_bounds = array<i64: 128, 128>}, {transform_indices = @transform_8, window_bounds = array<i64: 40, 128>}, {transform_indices = @transform_9, window_bounds = array<i64: 40, 128>}, {transform_indices = @transform_10, window_bounds = array<i64: 40, 128>}]} {
    %c0 = arith.constant 0 : index
    %c0_0 = arith.constant 0 : index
    %0 = vector.load %arg1[%c0, %c0_0] : memref<40x128xf32, #tpu.memory_space<vmem>>, vector<40x128xf32>
    %c0_1 = arith.constant 0 : index
    %c0_2 = arith.constant 0 : index
    %1 = vector.load %arg2[%c0_1, %c0_2] : memref<40x128xf32, #tpu.memory_space<vmem>>, vector<40x128xf32>
    %c0_3 = arith.constant 0 : index
    %c0_4 = arith.constant 0 : index
    %2 = vector.load %arg3[%c0_3, %c0_4] : memref<40x128xf32, #tpu.memory_space<vmem>>, vector<40x128xf32>
    %c0_5 = arith.constant 0 : index
    %c0_6 = arith.constant 0 : index
    %3 = vector.load %arg4[%c0_5, %c0_6] : memref<40x128xf32, #tpu.memory_space<vmem>>, vector<40x128xf32>
    %c0_7 = arith.constant 0 : index
    %c0_8 = arith.constant 0 : index
    %4 = vector.load %arg5[%c0_7, %c0_8] : memref<128x640xf32, #tpu.memory_space<vmem>>, vector<128x640xf32>
    %cst = arith.constant dense<0.000000e+00> : vector<40x640xf32>
    %5 = tpu.matmul %0, %4, %cst {dimension_numbers = #tpu.dot_dimension_numbers<[1], [0], [0], [1], [0, 0, 1, 1], [], []>} : vector<40x128xf32>, vector<128x640xf32>, vector<40x640xf32> -> vector<40x640xf32>
    %c0_9 = arith.constant 0 : index
    %c0_10 = arith.constant 0 : index
    %6 = vector.load %arg6[%c0_9, %c0_10] : memref<128x640xf32, #tpu.memory_space<vmem>>, vector<128x640xf32>
    %cst_11 = arith.constant dense<0.000000e+00> : vector<40x640xf32>
    %7 = tpu.matmul %2, %6, %cst_11 {dimension_numbers = #tpu.dot_dimension_numbers<[1], [0], [0], [1], [0, 0, 1, 1], [], []>} : vector<40x128xf32>, vector<128x640xf32>, vector<40x640xf32> -> vector<40x640xf32>
    %8 = arith.addf %5, %7 : vector<40x640xf32>
    %c0_12 = arith.constant 0 : index
    %c0_13 = arith.constant 0 : index
    %9 = vector.load %arg7[%c0_12, %c0_13] : memref<1x640xf32, #tpu.memory_space<vmem>>, vector<1x640xf32>
    %10 = vector.broadcast %9 : vector<1x640xf32> to vector<40x640xf32>
    %11 = arith.addf %8, %10 : vector<40x640xf32>
    %12 = vector.extract_strided_slice %11 {offsets = [0, 0], sizes = [40, 128], strides = [1, 1]} : vector<40x640xf32> to vector<40x128xf32>
    %13 = vector.extract_strided_slice %11 {offsets = [0, 128], sizes = [40, 128], strides = [1, 1]} : vector<40x640xf32> to vector<40x128xf32>
    %14 = vector.extract_strided_slice %11 {offsets = [0, 256], sizes = [40, 128], strides = [1, 1]} : vector<40x640xf32> to vector<40x128xf32>
    %15 = vector.extract_strided_slice %11 {offsets = [0, 384], sizes = [40, 128], strides = [1, 1]} : vector<40x640xf32> to vector<40x128xf32>
    %16 = vector.extract_strided_slice %11 {offsets = [0, 512], sizes = [40, 128], strides = [1, 1]} : vector<40x640xf32> to vector<40x128xf32>
    %cst_14 = arith.constant 1.000000e+00 : f32
    %17 = vector.broadcast %cst_14 : f32 to vector<40x128xf32>
    %18 = arith.addf %13, %17 : vector<40x128xf32>
    %19 = arith.negf %18 : vector<40x128xf32>
    %20 = math.exp %19 : vector<40x128xf32>
    %cst_15 = arith.constant 1.000000e+00 : f32
    %21 = vector.broadcast %cst_15 : f32 to vector<40x128xf32>
    %22 = arith.addf %21, %20 : vector<40x128xf32>
    %23 = arith.divf %21, %22 : vector<40x128xf32>
    %24 = arith.mulf %1, %23 : vector<40x128xf32>
    %cst_16 = arith.constant 1.000000e+00 : f32
    %25 = vector.broadcast %cst_16 : f32 to vector<40x128xf32>
    %26 = arith.addf %14, %25 : vector<40x128xf32>
    %27 = arith.negf %26 : vector<40x128xf32>
    %28 = math.exp %27 : vector<40x128xf32>
    %cst_17 = arith.constant 1.000000e+00 : f32
    %29 = vector.broadcast %cst_17 : f32 to vector<40x128xf32>
    %30 = arith.addf %29, %28 : vector<40x128xf32>
    %31 = arith.divf %29, %30 : vector<40x128xf32>
    %32 = arith.mulf %3, %31 : vector<40x128xf32>
    %33 = arith.addf %24, %32 : vector<40x128xf32>
    %34 = math.tanh %15 : vector<40x128xf32>
    %35 = arith.negf %12 : vector<40x128xf32>
    %36 = math.exp %35 : vector<40x128xf32>
    %cst_18 = arith.constant 1.000000e+00 : f32
    %37 = vector.broadcast %cst_18 : f32 to vector<40x128xf32>
    %38 = arith.addf %37, %36 : vector<40x128xf32>
    %39 = arith.divf %37, %38 : vector<40x128xf32>
    %40 = arith.mulf %34, %39 : vector<40x128xf32>
    %41 = arith.addf %33, %40 : vector<40x128xf32>
    %42 = arith.negf %16 : vector<40x128xf32>
    %43 = math.exp %42 : vector<40x128xf32>
    %cst_19 = arith.constant 1.000000e+00 : f32
    %44 = vector.broadcast %cst_19 : f32 to vector<40x128xf32>
    %45 = arith.addf %44, %43 : vector<40x128xf32>
    %46 = arith.divf %44, %45 : vector<40x128xf32>
    %47 = math.tanh %41 : vector<40x128xf32>
    %48 = arith.mulf %46, %47 : vector<40x128xf32>
    %c0_20 = arith.constant 0 : index
    %c0_21 = arith.constant 0 : index
    %49 = vector.load %arg9[%c0_20, %c0_21] : memref<40x128xf32, #tpu.memory_space<vmem>>, vector<40x128xf32>
    tpu.vector_store %arg9[%c0_20, %c0_21], %48 {strides = array<i32>} : memref<40x128xf32, #tpu.memory_space<vmem>>, vector<40x128xf32>,
    %c0_22 = arith.constant 0 : index
    %c0_23 = arith.constant 0 : index
    %50 = vector.load %arg10[%c0_22, %c0_23] : memref<40x128xf32, #tpu.memory_space<vmem>>, vector<40x128xf32>
    tpu.vector_store %arg10[%c0_22, %c0_23], %41 {strides = array<i32>} : memref<40x128xf32, #tpu.memory_space<vmem>>, vector<40x128xf32>,
    %c0_24 = arith.constant 0 : index
    %c0_25 = arith.constant 0 : index
    %51 = vector.load %arg8[%c0_24, %c0_25] : memref<128x128xf32, #tpu.memory_space<vmem>>, vector<128x128xf32>
    %cst_26 = arith.constant dense<0.000000e+00> : vector<40x128xf32>
    %52 = tpu.matmul %48, %51, %cst_26 {dimension_numbers = #tpu.dot_dimension_numbers<[1], [0], [0], [1], [0, 0, 1, 1], [], []>} : vector<40x128xf32>, vector<128x128xf32>, vector<40x128xf32> -> vector<40x128xf32>
    %c0_27 = arith.constant 0 : index
    %c0_28 = arith.constant 0 : index
    %53 = vector.load %arg11[%c0_27, %c0_28] : memref<40x128xf32, #tpu.memory_space<vmem>>, vector<40x128xf32>
    tpu.vector_store %arg11[%c0_27, %c0_28], %52 {strides = array<i32>} : memref<40x128xf32, #tpu.memory_space<vmem>>, vector<40x128xf32>,
    return
  }
  func.func @transform_0(%arg0: i32) -> (i32, i32) {
    %c0_i32 = arith.constant 0 : i32
    %c0_i32_0 = arith.constant 0 : i32
    return %arg0, %c0_i32 : i32, i32
  }
  func.func @transform_1(%arg0: i32) -> (i32, i32) {
    %c0_i32 = arith.constant 0 : i32
    %c0_i32_0 = arith.constant 0 : i32
    return %arg0, %c0_i32 : i32, i32
  }
  func.func @transform_2(%arg0: i32) -> (i32, i32) {
    %c0_i32 = arith.constant 0 : i32
    %c0_i32_0 = arith.constant 0 : i32
    return %arg0, %c0_i32 : i32, i32
  }
  func.func @transform_3(%arg0: i32) -> (i32, i32) {
    %c0_i32 = arith.constant 0 : i32
    %c0_i32_0 = arith.constant 0 : i32
    return %arg0, %c0_i32 : i32, i32
  }
  func.func @transform_4(%arg0: i32) -> (i32, i32) {
    %c0_i32 = arith.constant 0 : i32
    %c0_i32_0 = arith.constant 0 : i32
    %c0_i32_1 = arith.constant 0 : i32
    return %c0_i32, %c0_i32_0 : i32, i32
  }
  func.func @transform_5(%arg0: i32) -> (i32, i32) {
    %c0_i32 = arith.constant 0 : i32
    %c0_i32_0 = arith.constant 0 : i32
    %c0_i32_1 = arith.constant 0 : i32
    return %c0_i32, %c0_i32_0 : i32, i32
  }
  func.func @transform_6(%arg0: i32) -> (i32, i32) {
    %c0_i32 = arith.constant 0 : i32
    %c0_i32_0 = arith.constant 0 : i32
    %c0_i32_1 = arith.constant 0 : i32
    return %c0_i32, %c0_i32_0 : i32, i32
  }
  func.func @transform_7(%arg0: i32) -> (i32, i32) {
    %c0_i32 = arith.constant 0 : i32
    %c0_i32_0 = arith.constant 0 : i32
    %c0_i32_1 = arith.constant 0 : i32
    return %c0_i32, %c0_i32_0 : i32, i32
  }
  func.func @transform_8(%arg0: i32) -> (i32, i32) {
    %c0_i32 = arith.constant 0 : i32
    %c0_i32_0 = arith.constant 0 : i32
    return %arg0, %c0_i32 : i32, i32
  }
  func.func @transform_9(%arg0: i32) -> (i32, i32) {
    %c0_i32 = arith.constant 0 : i32
    %c0_i32_0 = arith.constant 0 : i32
    return %arg0, %c0_i32 : i32, i32
  }
  func.func @transform_10(%arg0: i32) -> (i32, i32) {
    %c0_i32 = arith.constant 0 : i32
    %c0_i32_0 = arith.constant 0 : i32
    return %arg0, %c0_i32 : i32, i32
  }
}

module attributes {stable_mosaic.version = 11 : i64} {
  func.func @_treelstm_row_kernel(%arg0: i32, %arg1: memref<64x128xf32, #tpu.memory_space<vmem>>, %arg2: memref<64x128xf32, #tpu.memory_space<vmem>>, %arg3: memref<64x128xf32, #tpu.memory_space<vmem>>, %arg4: memref<64x128xf32, #tpu.memory_space<vmem>>, %arg5: memref<128x640xf32, #tpu.memory_space<vmem>>, %arg6: memref<128x640xf32, #tpu.memory_space<vmem>>, %arg7: memref<1x640xf32, #tpu.memory_space<vmem>>, %arg8: memref<128x128xf32, #tpu.memory_space<vmem>>, %arg9: memref<64x128xf32, #tpu.memory_space<vmem>>, %arg10: memref<64x128xf32, #tpu.memory_space<vmem>>, %arg11: memref<64x128xf32, #tpu.memory_space<vmem>>) attributes {dimension_semantics = [#tpu.dimension_semantics<parallel>], iteration_bounds = array<i64: 1>, scalar_prefetch = 0 : i64, scratch_operands = 0 : i64, tpu.core_type = #tpu.core_type<tc>, window_params = [{transform_indices = @transform_0, window_bounds = array<i64: 64, 128>}, {transform_indices = @transform_1, window_bounds = array<i64: 64, 128>}, {transform_indices = @transform_2, window_bounds = array<i64: 64, 128>}, {transform_indices = @transform_3, window_bounds = array<i64: 64, 128>}, {pipeline_mode = #tpu.pipeline_mode<synchronous>, transform_indices = @transform_4, window_bounds = array<i64: 128, 640>}, {pipeline_mode = #tpu.pipeline_mode<synchronous>, transform_indices = @transform_5, window_bounds = array<i64: 128, 640>}, {pipeline_mode = #tpu.pipeline_mode<synchronous>, transform_indices = @transform_6, window_bounds = array<i64: 1, 640>}, {pipeline_mode = #tpu.pipeline_mode<synchronous>, transform_indices = @transform_7, window_bounds = array<i64: 128, 128>}, {transform_indices = @transform_8, window_bounds = array<i64: 64, 128>}, {transform_indices = @transform_9, window_bounds = array<i64: 64, 128>}, {transform_indices = @transform_10, window_bounds = array<i64: 64, 128>}]} {
    %c0 = arith.constant 0 : index
    %c0_0 = arith.constant 0 : index
    %0 = vector.load %arg1[%c0, %c0_0] : memref<64x128xf32, #tpu.memory_space<vmem>>, vector<64x128xf32>
    %c0_1 = arith.constant 0 : index
    %c0_2 = arith.constant 0 : index
    %1 = vector.load %arg2[%c0_1, %c0_2] : memref<64x128xf32, #tpu.memory_space<vmem>>, vector<64x128xf32>
    %c0_3 = arith.constant 0 : index
    %c0_4 = arith.constant 0 : index
    %2 = vector.load %arg3[%c0_3, %c0_4] : memref<64x128xf32, #tpu.memory_space<vmem>>, vector<64x128xf32>
    %c0_5 = arith.constant 0 : index
    %c0_6 = arith.constant 0 : index
    %3 = vector.load %arg4[%c0_5, %c0_6] : memref<64x128xf32, #tpu.memory_space<vmem>>, vector<64x128xf32>
    %c0_7 = arith.constant 0 : index
    %c0_8 = arith.constant 0 : index
    %4 = vector.load %arg5[%c0_7, %c0_8] : memref<128x640xf32, #tpu.memory_space<vmem>>, vector<128x640xf32>
    %cst = arith.constant dense<0.000000e+00> : vector<64x640xf32>
    %5 = tpu.matmul %0, %4, %cst {dimension_numbers = #tpu.dot_dimension_numbers<[1], [0], [0], [1], [0, 0, 1, 1], [], []>} : vector<64x128xf32>, vector<128x640xf32>, vector<64x640xf32> -> vector<64x640xf32>
    %c0_9 = arith.constant 0 : index
    %c0_10 = arith.constant 0 : index
    %6 = vector.load %arg6[%c0_9, %c0_10] : memref<128x640xf32, #tpu.memory_space<vmem>>, vector<128x640xf32>
    %cst_11 = arith.constant dense<0.000000e+00> : vector<64x640xf32>
    %7 = tpu.matmul %2, %6, %cst_11 {dimension_numbers = #tpu.dot_dimension_numbers<[1], [0], [0], [1], [0, 0, 1, 1], [], []>} : vector<64x128xf32>, vector<128x640xf32>, vector<64x640xf32> -> vector<64x640xf32>
    %8 = arith.addf %5, %7 : vector<64x640xf32>
    %c0_12 = arith.constant 0 : index
    %c0_13 = arith.constant 0 : index
    %9 = vector.load %arg7[%c0_12, %c0_13] : memref<1x640xf32, #tpu.memory_space<vmem>>, vector<1x640xf32>
    %10 = vector.broadcast %9 : vector<1x640xf32> to vector<64x640xf32>
    %11 = arith.addf %8, %10 : vector<64x640xf32>
    %12 = vector.extract_strided_slice %11 {offsets = [0, 0], sizes = [64, 128], strides = [1, 1]} : vector<64x640xf32> to vector<64x128xf32>
    %13 = vector.extract_strided_slice %11 {offsets = [0, 128], sizes = [64, 128], strides = [1, 1]} : vector<64x640xf32> to vector<64x128xf32>
    %14 = vector.extract_strided_slice %11 {offsets = [0, 256], sizes = [64, 128], strides = [1, 1]} : vector<64x640xf32> to vector<64x128xf32>
    %15 = vector.extract_strided_slice %11 {offsets = [0, 384], sizes = [64, 128], strides = [1, 1]} : vector<64x640xf32> to vector<64x128xf32>
    %16 = vector.extract_strided_slice %11 {offsets = [0, 512], sizes = [64, 128], strides = [1, 1]} : vector<64x640xf32> to vector<64x128xf32>
    %cst_14 = arith.constant 1.000000e+00 : f32
    %17 = vector.broadcast %cst_14 : f32 to vector<64x128xf32>
    %18 = arith.addf %13, %17 : vector<64x128xf32>
    %19 = arith.negf %18 : vector<64x128xf32>
    %20 = math.exp %19 : vector<64x128xf32>
    %cst_15 = arith.constant 1.000000e+00 : f32
    %21 = vector.broadcast %cst_15 : f32 to vector<64x128xf32>
    %22 = arith.addf %21, %20 : vector<64x128xf32>
    %23 = arith.divf %21, %22 : vector<64x128xf32>
    %24 = arith.mulf %1, %23 : vector<64x128xf32>
    %cst_16 = arith.constant 1.000000e+00 : f32
    %25 = vector.broadcast %cst_16 : f32 to vector<64x128xf32>
    %26 = arith.addf %14, %25 : vector<64x128xf32>
    %27 = arith.negf %26 : vector<64x128xf32>
    %28 = math.exp %27 : vector<64x128xf32>
    %cst_17 = arith.constant 1.000000e+00 : f32
    %29 = vector.broadcast %cst_17 : f32 to vector<64x128xf32>
    %30 = arith.addf %29, %28 : vector<64x128xf32>
    %31 = arith.divf %29, %30 : vector<64x128xf32>
    %32 = arith.mulf %3, %31 : vector<64x128xf32>
    %33 = arith.addf %24, %32 : vector<64x128xf32>
    %34 = math.tanh %15 : vector<64x128xf32>
    %35 = arith.negf %12 : vector<64x128xf32>
    %36 = math.exp %35 : vector<64x128xf32>
    %cst_18 = arith.constant 1.000000e+00 : f32
    %37 = vector.broadcast %cst_18 : f32 to vector<64x128xf32>
    %38 = arith.addf %37, %36 : vector<64x128xf32>
    %39 = arith.divf %37, %38 : vector<64x128xf32>
    %40 = arith.mulf %34, %39 : vector<64x128xf32>
    %41 = arith.addf %33, %40 : vector<64x128xf32>
    %42 = arith.negf %16 : vector<64x128xf32>
    %43 = math.exp %42 : vector<64x128xf32>
    %cst_19 = arith.constant 1.000000e+00 : f32
    %44 = vector.broadcast %cst_19 : f32 to vector<64x128xf32>
    %45 = arith.addf %44, %43 : vector<64x128xf32>
    %46 = arith.divf %44, %45 : vector<64x128xf32>
    %47 = math.tanh %41 : vector<64x128xf32>
    %48 = arith.mulf %46, %47 : vector<64x128xf32>
    %c0_20 = arith.constant 0 : index
    %c0_21 = arith.constant 0 : index
    %49 = vector.load %arg9[%c0_20, %c0_21] : memref<64x128xf32, #tpu.memory_space<vmem>>, vector<64x128xf32>
    tpu.vector_store %arg9[%c0_20, %c0_21], %48 {strides = array<i32>} : memref<64x128xf32, #tpu.memory_space<vmem>>, vector<64x128xf32>,
    %c0_22 = arith.constant 0 : index
    %c0_23 = arith.constant 0 : index
    %50 = vector.load %arg10[%c0_22, %c0_23] : memref<64x128xf32, #tpu.memory_space<vmem>>, vector<64x128xf32>
    tpu.vector_store %arg10[%c0_22, %c0_23], %41 {strides = array<i32>} : memref<64x128xf32, #tpu.memory_space<vmem>>, vector<64x128xf32>,
    %c0_24 = arith.constant 0 : index
    %c0_25 = arith.constant 0 : index
    %51 = vector.load %arg8[%c0_24, %c0_25] : memref<128x128xf32, #tpu.memory_space<vmem>>, vector<128x128xf32>
    %cst_26 = arith.constant dense<0.000000e+00> : vector<64x128xf32>
    %52 = tpu.matmul %48, %51, %cst_26 {dimension_numbers = #tpu.dot_dimension_numbers<[1], [0], [0], [1], [0, 0, 1, 1], [], []>} : vector<64x128xf32>, vector<128x128xf32>, vector<64x128xf32> -> vector<64x128xf32>
    %c0_27 = arith.constant 0 : index
    %c0_28 = arith.constant 0 : index
    %53 = vector.load %arg11[%c0_27, %c0_28] : memref<64x128xf32, #tpu.memory_space<vmem>>, vector<64x128xf32>
    tpu.vector_store %arg11[%c0_27, %c0_28], %52 {strides = array<i32>} : memref<64x128xf32, #tpu.memory_space<vmem>>, vector<64x128xf32>,
    return
  }
  func.func @transform_0(%arg0: i32) -> (i32, i32) {
    %c0_i32 = arith.constant 0 : i32
    %c0_i32_0 = arith.constant 0 : i32
    return %arg0, %c0_i32 : i32, i32
  }
  func.func @transform_1(%arg0: i32) -> (i32, i32) {
    %c0_i32 = arith.constant 0 : i32
    %c0_i32_0 = arith.constant 0 : i32
    return %arg0, %c0_i32 : i32, i32
  }
  func.func @transform_2(%arg0: i32) -> (i32, i32) {
    %c0_i32 = arith.constant 0 : i32
    %c0_i32_0 = arith.constant 0 : i32
    return %arg0, %c0_i32 : i32, i32
  }
  func.func @transform_3(%arg0: i32) -> (i32, i32) {
    %c0_i32 = arith.constant 0 : i32
    %c0_i32_0 = arith.constant 0 : i32
    return %arg0, %c0_i32 : i32, i32
  }
  func.func @transform_4(%arg0: i32) -> (i32, i32) {
    %c0_i32 = arith.constant 0 : i32
    %c0_i32_0 = arith.constant 0 : i32
    %c0_i32_1 = arith.constant 0 : i32
    return %c0_i32, %c0_i32_0 : i32, i32
  }
  func.func @transform_5(%arg0: i32) -> (i32, i32) {
    %c0_i32 = arith.constant 0 : i32
    %c0_i32_0 = arith.constant 0 : i32
    %c0_i32_1 = arith.constant 0 : i32
    return %c0_i32, %c0_i32_0 : i32, i32
  }
  func.func @transform_6(%arg0: i32) -> (i32, i32) {
    %c0_i32 = arith.constant 0 : i32
    %c0_i32_0 = arith.constant 0 : i32
    %c0_i32_1 = arith.constant 0 : i32
    return %c0_i32, %c0_i32_0 : i32, i32
  }
  func.func @transform_7(%arg0: i32) -> (i32, i32) {
    %c0_i32 = arith.constant 0 : i32
    %c0_i32_0 = arith.constant 0 : i32
    %c0_i32_1 = arith.constant 0 : i32
    return %c0_i32, %c0_i32_0 : i32, i32
  }
  func.func @transform_8(%arg0: i32) -> (i32, i32) {
    %c0_i32 = arith.constant 0 : i32
    %c0_i32_0 = arith.constant 0 : i32
    return %arg0, %c0_i32 : i32, i32
  }
  func.func @transform_9(%arg0: i32) -> (i32, i32) {
    %c0_i32 = arith.constant 0 : i32
    %c0_i32_0 = arith.constant 0 : i32
    return %arg0, %c0_i32 : i32, i32
  }
  func.func @transform_10(%arg0: i32) -> (i32, i32) {
    %c0_i32 = arith.constant 0 : i32
    %c0_i32_0 = arith.constant 0 : i32
    return %arg0, %c0_i32 : i32, i32
  }
}

module attributes {stable_mosaic.version = 11 : i64} {
  func.func @_treelstm_row_kernel(%arg0: i32, %arg1: memref<72x128xf32, #tpu.memory_space<vmem>>, %arg2: memref<72x128xf32, #tpu.memory_space<vmem>>, %arg3: memref<72x128xf32, #tpu.memory_space<vmem>>, %arg4: memref<72x128xf32, #tpu.memory_space<vmem>>, %arg5: memref<128x640xf32, #tpu.memory_space<vmem>>, %arg6: memref<128x640xf32, #tpu.memory_space<vmem>>, %arg7: memref<1x640xf32, #tpu.memory_space<vmem>>, %arg8: memref<128x128xf32, #tpu.memory_space<vmem>>, %arg9: memref<72x128xf32, #tpu.memory_space<vmem>>, %arg10: memref<72x128xf32, #tpu.memory_space<vmem>>, %arg11: memref<72x128xf32, #tpu.memory_space<vmem>>) attributes {dimension_semantics = [#tpu.dimension_semantics<parallel>], iteration_bounds = array<i64: 1>, scalar_prefetch = 0 : i64, scratch_operands = 0 : i64, tpu.core_type = #tpu.core_type<tc>, window_params = [{transform_indices = @transform_0, window_bounds = array<i64: 72, 128>}, {transform_indices = @transform_1, window_bounds = array<i64: 72, 128>}, {transform_indices = @transform_2, window_bounds = array<i64: 72, 128>}, {transform_indices = @transform_3, window_bounds = array<i64: 72, 128>}, {pipeline_mode = #tpu.pipeline_mode<synchronous>, transform_indices = @transform_4, window_bounds = array<i64: 128, 640>}, {pipeline_mode = #tpu.pipeline_mode<synchronous>, transform_indices = @transform_5, window_bounds = array<i64: 128, 640>}, {pipeline_mode = #tpu.pipeline_mode<synchronous>, transform_indices = @transform_6, window_bounds = array<i64: 1, 640>}, {pipeline_mode = #tpu.pipeline_mode<synchronous>, transform_indices = @transform_7, window_bounds = array<i64: 128, 128>}, {transform_indices = @transform_8, window_bounds = array<i64: 72, 128>}, {transform_indices = @transform_9, window_bounds = array<i64: 72, 128>}, {transform_indices = @transform_10, window_bounds = array<i64: 72, 128>}]} {
    %c0 = arith.constant 0 : index
    %c0_0 = arith.constant 0 : index
    %0 = vector.load %arg1[%c0, %c0_0] : memref<72x128xf32, #tpu.memory_space<vmem>>, vector<72x128xf32>
    %c0_1 = arith.constant 0 : index
    %c0_2 = arith.constant 0 : index
    %1 = vector.load %arg2[%c0_1, %c0_2] : memref<72x128xf32, #tpu.memory_space<vmem>>, vector<72x128xf32>
    %c0_3 = arith.constant 0 : index
    %c0_4 = arith.constant 0 : index
    %2 = vector.load %arg3[%c0_3, %c0_4] : memref<72x128xf32, #tpu.memory_space<vmem>>, vector<72x128xf32>
    %c0_5 = arith.constant 0 : index
    %c0_6 = arith.constant 0 : index
    %3 = vector.load %arg4[%c0_5, %c0_6] : memref<72x128xf32, #tpu.memory_space<vmem>>, vector<72x128xf32>
    %c0_7 = arith.constant 0 : index
    %c0_8 = arith.constant 0 : index
    %4 = vector.load %arg5[%c0_7, %c0_8] : memref<128x640xf32, #tpu.memory_space<vmem>>, vector<128x640xf32>
    %cst = arith.constant dense<0.000000e+00> : vector<72x640xf32>
    %5 = tpu.matmul %0, %4, %cst {dimension_numbers = #tpu.dot_dimension_numbers<[1], [0], [0], [1], [0, 0, 1, 1], [], []>} : vector<72x128xf32>, vector<128x640xf32>, vector<72x640xf32> -> vector<72x640xf32>
    %c0_9 = arith.constant 0 : index
    %c0_10 = arith.constant 0 : index
    %6 = vector.load %arg6[%c0_9, %c0_10] : memref<128x640xf32, #tpu.memory_space<vmem>>, vector<128x640xf32>
    %cst_11 = arith.constant dense<0.000000e+00> : vector<72x640xf32>
    %7 = tpu.matmul %2, %6, %cst_11 {dimension_numbers = #tpu.dot_dimension_numbers<[1], [0], [0], [1], [0, 0, 1, 1], [], []>} : vector<72x128xf32>, vector<128x640xf32>, vector<72x640xf32> -> vector<72x640xf32>
    %8 = arith.addf %5, %7 : vector<72x640xf32>
    %c0_12 = arith.constant 0 : index
    %c0_13 = arith.constant 0 : index
    %9 = vector.load %arg7[%c0_12, %c0_13] : memref<1x640xf32, #tpu.memory_space<vmem>>, vector<1x640xf32>
    %10 = vector.broadcast %9 : vector<1x640xf32> to vector<72x640xf32>
    %11 = arith.addf %8, %10 : vector<72x640xf32>
    %12 = vector.extract_strided_slice %11 {offsets = [0, 0], sizes = [72, 128], strides = [1, 1]} : vector<72x640xf32> to vector<72x128xf32>
    %13 = vector.extract_strided_slice %11 {offsets = [0, 128], sizes = [72, 128], strides = [1, 1]} : vector<72x640xf32> to vector<72x128xf32>
    %14 = vector.extract_strided_slice %11 {offsets = [0, 256], sizes = [72, 128], strides = [1, 1]} : vector<72x640xf32> to vector<72x128xf32>
    %15 = vector.extract_strided_slice %11 {offsets = [0, 384], sizes = [72, 128], strides = [1, 1]} : vector<72x640xf32> to vector<72x128xf32>
    %16 = vector.extract_strided_slice %11 {offsets = [0, 512], sizes = [72, 128], strides = [1, 1]} : vector<72x640xf32> to vector<72x128xf32>
    %cst_14 = arith.constant 1.000000e+00 : f32
    %17 = vector.broadcast %cst_14 : f32 to vector<72x128xf32>
    %18 = arith.addf %13, %17 : vector<72x128xf32>
    %19 = arith.negf %18 : vector<72x128xf32>
    %20 = math.exp %19 : vector<72x128xf32>
    %cst_15 = arith.constant 1.000000e+00 : f32
    %21 = vector.broadcast %cst_15 : f32 to vector<72x128xf32>
    %22 = arith.addf %21, %20 : vector<72x128xf32>
    %23 = arith.divf %21, %22 : vector<72x128xf32>
    %24 = arith.mulf %1, %23 : vector<72x128xf32>
    %cst_16 = arith.constant 1.000000e+00 : f32
    %25 = vector.broadcast %cst_16 : f32 to vector<72x128xf32>
    %26 = arith.addf %14, %25 : vector<72x128xf32>
    %27 = arith.negf %26 : vector<72x128xf32>
    %28 = math.exp %27 : vector<72x128xf32>
    %cst_17 = arith.constant 1.000000e+00 : f32
    %29 = vector.broadcast %cst_17 : f32 to vector<72x128xf32>
    %30 = arith.addf %29, %28 : vector<72x128xf32>
    %31 = arith.divf %29, %30 : vector<72x128xf32>
    %32 = arith.mulf %3, %31 : vector<72x128xf32>
    %33 = arith.addf %24, %32 : vector<72x128xf32>
    %34 = math.tanh %15 : vector<72x128xf32>
    %35 = arith.negf %12 : vector<72x128xf32>
    %36 = math.exp %35 : vector<72x128xf32>
    %cst_18 = arith.constant 1.000000e+00 : f32
    %37 = vector.broadcast %cst_18 : f32 to vector<72x128xf32>
    %38 = arith.addf %37, %36 : vector<72x128xf32>
    %39 = arith.divf %37, %38 : vector<72x128xf32>
    %40 = arith.mulf %34, %39 : vector<72x128xf32>
    %41 = arith.addf %33, %40 : vector<72x128xf32>
    %42 = arith.negf %16 : vector<72x128xf32>
    %43 = math.exp %42 : vector<72x128xf32>
    %cst_19 = arith.constant 1.000000e+00 : f32
    %44 = vector.broadcast %cst_19 : f32 to vector<72x128xf32>
    %45 = arith.addf %44, %43 : vector<72x128xf32>
    %46 = arith.divf %44, %45 : vector<72x128xf32>
    %47 = math.tanh %41 : vector<72x128xf32>
    %48 = arith.mulf %46, %47 : vector<72x128xf32>
    %c0_20 = arith.constant 0 : index
    %c0_21 = arith.constant 0 : index
    %49 = vector.load %arg9[%c0_20, %c0_21] : memref<72x128xf32, #tpu.memory_space<vmem>>, vector<72x128xf32>
    tpu.vector_store %arg9[%c0_20, %c0_21], %48 {strides = array<i32>} : memref<72x128xf32, #tpu.memory_space<vmem>>, vector<72x128xf32>,
    %c0_22 = arith.constant 0 : index
    %c0_23 = arith.constant 0 : index
    %50 = vector.load %arg10[%c0_22, %c0_23] : memref<72x128xf32, #tpu.memory_space<vmem>>, vector<72x128xf32>
    tpu.vector_store %arg10[%c0_22, %c0_23], %41 {strides = array<i32>} : memref<72x128xf32, #tpu.memory_space<vmem>>, vector<72x128xf32>,
    %c0_24 = arith.constant 0 : index
    %c0_25 = arith.constant 0 : index
    %51 = vector.load %arg8[%c0_24, %c0_25] : memref<128x128xf32, #tpu.memory_space<vmem>>, vector<128x128xf32>
    %cst_26 = arith.constant dense<0.000000e+00> : vector<72x128xf32>
    %52 = tpu.matmul %48, %51, %cst_26 {dimension_numbers = #tpu.dot_dimension_numbers<[1], [0], [0], [1], [0, 0, 1, 1], [], []>} : vector<72x128xf32>, vector<128x128xf32>, vector<72x128xf32> -> vector<72x128xf32>
    %c0_27 = arith.constant 0 : index
    %c0_28 = arith.constant 0 : index
    %53 = vector.load %arg11[%c0_27, %c0_28] : memref<72x128xf32, #tpu.memory_space<vmem>>, vector<72x128xf32>
    tpu.vector_store %arg11[%c0_27, %c0_28], %52 {strides = array<i32>} : memref<72x128xf32, #tpu.memory_space<vmem>>, vector<72x128xf32>,
    return
  }
  func.func @transform_0(%arg0: i32) -> (i32, i32) {
    %c0_i32 = arith.constant 0 : i32
    %c0_i32_0 = arith.constant 0 : i32
    return %arg0, %c0_i32 : i32, i32
  }
  func.func @transform_1(%arg0: i32) -> (i32, i32) {
    %c0_i32 = arith.constant 0 : i32
    %c0_i32_0 = arith.constant 0 : i32
    return %arg0, %c0_i32 : i32, i32
  }
  func.func @transform_2(%arg0: i32) -> (i32, i32) {
    %c0_i32 = arith.constant 0 : i32
    %c0_i32_0 = arith.constant 0 : i32
    return %arg0, %c0_i32 : i32, i32
  }
  func.func @transform_3(%arg0: i32) -> (i32, i32) {
    %c0_i32 = arith.constant 0 : i32
    %c0_i32_0 = arith.constant 0 : i32
    return %arg0, %c0_i32 : i32, i32
  }
  func.func @transform_4(%arg0: i32) -> (i32, i32) {
    %c0_i32 = arith.constant 0 : i32
    %c0_i32_0 = arith.constant 0 : i32
    %c0_i32_1 = arith.constant 0 : i32
    return %c0_i32, %c0_i32_0 : i32, i32
  }
  func.func @transform_5(%arg0: i32) -> (i32, i32) {
    %c0_i32 = arith.constant 0 : i32
    %c0_i32_0 = arith.constant 0 : i32
    %c0_i32_1 = arith.constant 0 : i32
    return %c0_i32, %c0_i32_0 : i32, i32
  }
  func.func @transform_6(%arg0: i32) -> (i32, i32) {
    %c0_i32 = arith.constant 0 : i32
    %c0_i32_0 = arith.constant 0 : i32
    %c0_i32_1 = arith.constant 0 : i32
    return %c0_i32, %c0_i32_0 : i32, i32
  }
  func.func @transform_7(%arg0: i32) -> (i32, i32) {
    %c0_i32 = arith.constant 0 : i32
    %c0_i32_0 = arith.constant 0 : i32
    %c0_i32_1 = arith.constant 0 : i32
    return %c0_i32, %c0_i32_0 : i32, i32
  }
  func.func @transform_8(%arg0: i32) -> (i32, i32) {
    %c0_i32 = arith.constant 0 : i32
    %c0_i32_0 = arith.constant 0 : i32
    return %arg0, %c0_i32 : i32, i32
  }
  func.func @transform_9(%arg0: i32) -> (i32, i32) {
    %c0_i32 = arith.constant 0 : i32
    %c0_i32_0 = arith.constant 0 : i32
    return %arg0, %c0_i32 : i32, i32
  }
  func.func @transform_10(%arg0: i32) -> (i32, i32) {
    %c0_i32 = arith.constant 0 : i32
    %c0_i32_0 = arith.constant 0 : i32
    return %arg0, %c0_i32 : i32, i32
  }
}

module attributes {stable_mosaic.version = 11 : i64} {
  func.func @_treelstm_row_kernel(%arg0: i32, %arg1: memref<40x128xf32, #tpu.memory_space<vmem>>, %arg2: memref<40x128xf32, #tpu.memory_space<vmem>>, %arg3: memref<40x128xf32, #tpu.memory_space<vmem>>, %arg4: memref<40x128xf32, #tpu.memory_space<vmem>>, %arg5: memref<128x640xf32, #tpu.memory_space<vmem>>, %arg6: memref<128x640xf32, #tpu.memory_space<vmem>>, %arg7: memref<1x640xf32, #tpu.memory_space<vmem>>, %arg8: memref<128x128xf32, #tpu.memory_space<vmem>>, %arg9: memref<40x128xf32, #tpu.memory_space<vmem>>, %arg10: memref<40x128xf32, #tpu.memory_space<vmem>>, %arg11: memref<40x128xf32, #tpu.memory_space<vmem>>) attributes {dimension_semantics = [#tpu.dimension_semantics<parallel>], iteration_bounds = array<i64: 1>, scalar_prefetch = 0 : i64, scratch_operands = 0 : i64, tpu.core_type = #tpu.core_type<tc>, window_params = [{transform_indices = @transform_0, window_bounds = array<i64: 40, 128>}, {transform_indices = @transform_1, window_bounds = array<i64: 40, 128>}, {transform_indices = @transform_2, window_bounds = array<i64: 40, 128>}, {transform_indices = @transform_3, window_bounds = array<i64: 40, 128>}, {pipeline_mode = #tpu.pipeline_mode<synchronous>, transform_indices = @transform_4, window_bounds = array<i64: 128, 640>}, {pipeline_mode = #tpu.pipeline_mode<synchronous>, transform_indices = @transform_5, window_bounds = array<i64: 128, 640>}, {pipeline_mode = #tpu.pipeline_mode<synchronous>, transform_indices = @transform_6, window_bounds = array<i64: 1, 640>}, {pipeline_mode = #tpu.pipeline_mode<synchronous>, transform_indices = @transform_7, window_bounds = array<i64: 128, 128>}, {transform_indices = @transform_8, window_bounds = array<i64: 40, 128>}, {transform_indices = @transform_9, window_bounds = array<i64: 40, 128>}, {transform_indices = @transform_10, window_bounds = array<i64: 40, 128>}]} {
    %c0 = arith.constant 0 : index
    %c0_0 = arith.constant 0 : index
    %0 = vector.load %arg1[%c0, %c0_0] : memref<40x128xf32, #tpu.memory_space<vmem>>, vector<40x128xf32>
    %c0_1 = arith.constant 0 : index
    %c0_2 = arith.constant 0 : index
    %1 = vector.load %arg2[%c0_1, %c0_2] : memref<40x128xf32, #tpu.memory_space<vmem>>, vector<40x128xf32>
    %c0_3 = arith.constant 0 : index
    %c0_4 = arith.constant 0 : index
    %2 = vector.load %arg3[%c0_3, %c0_4] : memref<40x128xf32, #tpu.memory_space<vmem>>, vector<40x128xf32>
    %c0_5 = arith.constant 0 : index
    %c0_6 = arith.constant 0 : index
    %3 = vector.load %arg4[%c0_5, %c0_6] : memref<40x128xf32, #tpu.memory_space<vmem>>, vector<40x128xf32>
    %c0_7 = arith.constant 0 : index
    %c0_8 = arith.constant 0 : index
    %4 = vector.load %arg5[%c0_7, %c0_8] : memref<128x640xf32, #tpu.memory_space<vmem>>, vector<128x640xf32>
    %cst = arith.constant dense<0.000000e+00> : vector<40x640xf32>
    %5 = tpu.matmul %0, %4, %cst {dimension_numbers = #tpu.dot_dimension_numbers<[1], [0], [0], [1], [0, 0, 1, 1], [], []>} : vector<40x128xf32>, vector<128x640xf32>, vector<40x640xf32> -> vector<40x640xf32>
    %c0_9 = arith.constant 0 : index
    %c0_10 = arith.constant 0 : index
    %6 = vector.load %arg6[%c0_9, %c0_10] : memref<128x640xf32, #tpu.memory_space<vmem>>, vector<128x640xf32>
    %cst_11 = arith.constant dense<0.000000e+00> : vector<40x640xf32>
    %7 = tpu.matmul %2, %6, %cst_11 {dimension_numbers = #tpu.dot_dimension_numbers<[1], [0], [0], [1], [0, 0, 1, 1], [], []>} : vector<40x128xf32>, vector<128x640xf32>, vector<40x640xf32> -> vector<40x640xf32>
    %8 = arith.addf %5, %7 : vector<40x640xf32>
    %c0_12 = arith.constant 0 : index
    %c0_13 = arith.constant 0 : index
    %9 = vector.load %arg7[%c0_12, %c0_13] : memref<1x640xf32, #tpu.memory_space<vmem>>, vector<1x640xf32>
    %10 = vector.broadcast %9 : vector<1x640xf32> to vector<40x640xf32>
    %11 = arith.addf %8, %10 : vector<40x640xf32>
    %12 = vector.extract_strided_slice %11 {offsets = [0, 0], sizes = [40, 128], strides = [1, 1]} : vector<40x640xf32> to vector<40x128xf32>
    %13 = vector.extract_strided_slice %11 {offsets = [0, 128], sizes = [40, 128], strides = [1, 1]} : vector<40x640xf32> to vector<40x128xf32>
    %14 = vector.extract_strided_slice %11 {offsets = [0, 256], sizes = [40, 128], strides = [1, 1]} : vector<40x640xf32> to vector<40x128xf32>
    %15 = vector.extract_strided_slice %11 {offsets = [0, 384], sizes = [40, 128], strides = [1, 1]} : vector<40x640xf32> to vector<40x128xf32>
    %16 = vector.extract_strided_slice %11 {offsets = [0, 512], sizes = [40, 128], strides = [1, 1]} : vector<40x640xf32> to vector<40x128xf32>
    %cst_14 = arith.constant 1.000000e+00 : f32
    %17 = vector.broadcast %cst_14 : f32 to vector<40x128xf32>
    %18 = arith.addf %13, %17 : vector<40x128xf32>
    %19 = arith.negf %18 : vector<40x128xf32>
    %20 = math.exp %19 : vector<40x128xf32>
    %cst_15 = arith.constant 1.000000e+00 : f32
    %21 = vector.broadcast %cst_15 : f32 to vector<40x128xf32>
    %22 = arith.addf %21, %20 : vector<40x128xf32>
    %23 = arith.divf %21, %22 : vector<40x128xf32>
    %24 = arith.mulf %1, %23 : vector<40x128xf32>
    %cst_16 = arith.constant 1.000000e+00 : f32
    %25 = vector.broadcast %cst_16 : f32 to vector<40x128xf32>
    %26 = arith.addf %14, %25 : vector<40x128xf32>
    %27 = arith.negf %26 : vector<40x128xf32>
    %28 = math.exp %27 : vector<40x128xf32>
    %cst_17 = arith.constant 1.000000e+00 : f32
    %29 = vector.broadcast %cst_17 : f32 to vector<40x128xf32>
    %30 = arith.addf %29, %28 : vector<40x128xf32>
    %31 = arith.divf %29, %30 : vector<40x128xf32>
    %32 = arith.mulf %3, %31 : vector<40x128xf32>
    %33 = arith.addf %24, %32 : vector<40x128xf32>
    %34 = math.tanh %15 : vector<40x128xf32>
    %35 = arith.negf %12 : vector<40x128xf32>
    %36 = math.exp %35 : vector<40x128xf32>
    %cst_18 = arith.constant 1.000000e+00 : f32
    %37 = vector.broadcast %cst_18 : f32 to vector<40x128xf32>
    %38 = arith.addf %37, %36 : vector<40x128xf32>
    %39 = arith.divf %37, %38 : vector<40x128xf32>
    %40 = arith.mulf %34, %39 : vector<40x128xf32>
    %41 = arith.addf %33, %40 : vector<40x128xf32>
    %42 = arith.negf %16 : vector<40x128xf32>
    %43 = math.exp %42 : vector<40x128xf32>
    %cst_19 = arith.constant 1.000000e+00 : f32
    %44 = vector.broadcast %cst_19 : f32 to vector<40x128xf32>
    %45 = arith.addf %44, %43 : vector<40x128xf32>
    %46 = arith.divf %44, %45 : vector<40x128xf32>
    %47 = math.tanh %41 : vector<40x128xf32>
    %48 = arith.mulf %46, %47 : vector<40x128xf32>
    %c0_20 = arith.constant 0 : index
    %c0_21 = arith.constant 0 : index
    %49 = vector.load %arg9[%c0_20, %c0_21] : memref<40x128xf32, #tpu.memory_space<vmem>>, vector<40x128xf32>
    tpu.vector_store %arg9[%c0_20, %c0_21], %48 {strides = array<i32>} : memref<40x128xf32, #tpu.memory_space<vmem>>, vector<40x128xf32>,
    %c0_22 = arith.constant 0 : index
    %c0_23 = arith.constant 0 : index
    %50 = vector.load %arg10[%c0_22, %c0_23] : memref<40x128xf32, #tpu.memory_space<vmem>>, vector<40x128xf32>
    tpu.vector_store %arg10[%c0_22, %c0_23], %41 {strides = array<i32>} : memref<40x128xf32, #tpu.memory_space<vmem>>, vector<40x128xf32>,
    %c0_24 = arith.constant 0 : index
    %c0_25 = arith.constant 0 : index
    %51 = vector.load %arg8[%c0_24, %c0_25] : memref<128x128xf32, #tpu.memory_space<vmem>>, vector<128x128xf32>
    %cst_26 = arith.constant dense<0.000000e+00> : vector<40x128xf32>
    %52 = tpu.matmul %48, %51, %cst_26 {dimension_numbers = #tpu.dot_dimension_numbers<[1], [0], [0], [1], [0, 0, 1, 1], [], []>} : vector<40x128xf32>, vector<128x128xf32>, vector<40x128xf32> -> vector<40x128xf32>
    %c0_27 = arith.constant 0 : index
    %c0_28 = arith.constant 0 : index
    %53 = vector.load %arg11[%c0_27, %c0_28] : memref<40x128xf32, #tpu.memory_space<vmem>>, vector<40x128xf32>
    tpu.vector_store %arg11[%c0_27, %c0_28], %52 {strides = array<i32>} : memref<40x128xf32, #tpu.memory_space<vmem>>, vector<40x128xf32>,
    return
  }
  func.func @transform_0(%arg0: i32) -> (i32, i32) {
    %c0_i32 = arith.constant 0 : i32
    %c0_i32_0 = arith.constant 0 : i32
    return %arg0, %c0_i32 : i32, i32
  }
  func.func @transform_1(%arg0: i32) -> (i32, i32) {
    %c0_i32 = arith.constant 0 : i32
    %c0_i32_0 = arith.constant 0 : i32
    return %arg0, %c0_i32 : i32, i32
  }
  func.func @transform_2(%arg0: i32) -> (i32, i32) {
    %c0_i32 = arith.constant 0 : i32
    %c0_i32_0 = arith.constant 0 : i32
    return %arg0, %c0_i32 : i32, i32
  }
  func.func @transform_3(%arg0: i32) -> (i32, i32) {
    %c0_i32 = arith.constant 0 : i32
    %c0_i32_0 = arith.constant 0 : i32
    return %arg0, %c0_i32 : i32, i32
  }
  func.func @transform_4(%arg0: i32) -> (i32, i32) {
    %c0_i32 = arith.constant 0 : i32
    %c0_i32_0 = arith.constant 0 : i32
    %c0_i32_1 = arith.constant 0 : i32
    return %c0_i32, %c0_i32_0 : i32, i32
  }
  func.func @transform_5(%arg0: i32) -> (i32, i32) {
    %c0_i32 = arith.constant 0 : i32
    %c0_i32_0 = arith.constant 0 : i32
    %c0_i32_1 = arith.constant 0 : i32
    return %c0_i32, %c0_i32_0 : i32, i32
  }
  func.func @transform_6(%arg0: i32) -> (i32, i32) {
    %c0_i32 = arith.constant 0 : i32
    %c0_i32_0 = arith.constant 0 : i32
    %c0_i32_1 = arith.constant 0 : i32
    return %c0_i32, %c0_i32_0 : i32, i32
  }
  func.func @transform_7(%arg0: i32) -> (i32, i32) {
    %c0_i32 = arith.constant 0 : i32
    %c0_i32_0 = arith.constant 0 : i32
    %c0_i32_1 = arith.constant 0 : i32
    return %c0_i32, %c0_i32_0 : i32, i32
  }
  func.func @transform_8(%arg0: i32) -> (i32, i32) {
    %c0_i32 = arith.constant 0 : i32
    %c0_i32_0 = arith.constant 0 : i32
    return %arg0, %c0_i32 : i32, i32
  }
  func.func @transform_9(%arg0: i32) -> (i32, i32) {
    %c0_i32 = arith.constant 0 : i32
    %c0_i32_0 = arith.constant 0 : i32
    return %arg0, %c0_i32 : i32, i32
  }
  func.func @transform_10(%arg0: i32) -> (i32, i32) {
    %c0_i32 = arith.constant 0 : i32
    %c0_i32_0 = arith.constant 0 : i32
    return %arg0, %c0_i32 : i32, i32
  }
}

</mosaic_0001>

<llo_original>
// kernel: _chart_parser_forward_impl.6
$region0: #{_chart_parser_forward_impl.6}
  #allocation0 [shape = 'u32[]', space=smem, size = 0x4, offset = 0x4, fixed_abs, tag = 'smem constant byte address 0x4 - core index']
  #allocation1 [shape = 'u32[72,128]{1,0:T(1,128)}', space=vmem, size = 0x9000, scoped, tag = 'internal scratch']
  %s0 = inlined_call_operand.vmem [shape: f32[24,32], index: 0, kind: input, shape index: {}]
  %s1 = inlined_call_operand.vmem [shape: f32[32,128], index: 1, kind: input, shape index: {}]
  %s2 = inlined_call_operand.vmem [shape: f32[1,128], index: 2, kind: input, shape index: {}]
  %s3 = inlined_call_operand.vmem [shape: f32[24,128], index: 3, kind: output, shape index: {}]
  %s4 = sld [smem:[#allocation0]]
  $region22: #{_chart_parser_forward_impl.6} parent=0
    _
  %s6 = ssub.s32 1, %s4
  %s7 = scalar_select 0, %s6, %s4
  // Predicated region
  $region2: #{_chart_parser_forward_impl.6} parent=0 // pred_check
    _
  $region3: #{_chart_parser_forward_impl.6} parent=0 // pred_check_branch
    %9 = sbr.rel (0) target = $region5
  $region4: #{_chart_parser_forward_impl.6} parent=0 // pred_region
    _
  $region5: #{_chart_parser_forward_impl.6} parent=0 // pred_fallthru
    _
  // Predicated region
  $region6: #{_chart_parser_forward_impl.6} parent=0 // pred_check
    _
  $region7: #{_chart_parser_forward_impl.6} parent=0 // pred_check_branch
    %11 = sbr.rel (0) target = $region9
  $region8: #{_chart_parser_forward_impl.6} parent=0 // pred_region
    _
  $region9: #{_chart_parser_forward_impl.6} parent=0 // pred_fallthru
    _
  // Predicated region
  $region10: #{_chart_parser_forward_impl.6} parent=0 // pred_check
    _
  $region11: #{_chart_parser_forward_impl.6} parent=0 // pred_check_branch
    %13 = sbr.rel (0) target = $region13
  $region12: #{_chart_parser_forward_impl.6} parent=0 // pred_region
    _
  $region13: #{_chart_parser_forward_impl.6} parent=0 // pred_fallthru
    _
  %v14 = vld [vmem:[%s0] sm:$0xff]
  %v15 = vld [vmem:[%s0 + $0x8] sm:$0xff]
  %v16 = vld [vmem:[%s0 + $0x10] sm:$0xff]
  %v17 = vld [vmem:[%s1] sm:$0xff]
  %v18 = vld [vmem:[%s1 + $0x8] sm:$0xff]
  %v19 = vld [vmem:[%s1 + $0x10] sm:$0xff]
  %v20 = vld [vmem:[%s1 + $0x18] sm:$0xff]
  %v21 = vld [vmem:[%s2] sm:$0x1]
  %v23 = vperm.slane %v21, 0
  %vm25 = vcmask 261120
  %v27 = vsel %vm25, %v14, 0
  %v30 = vsel %vm25, %v15, 0
  %v33 = vsel %vm25, %v16, 0
  %35 = vmatpush.msra.mxu0 0.0
  %36 = vmatpush.msra.mxu0 0.0
  %37 = vmatpush.msra.mxu0 0.0
  %38 = vmatpush.msra.mxu0 0.0
  %39 = vmatpush.msra.mxu0 0.0
  %40 = vmatpush.msra.mxu0 0.0
  %41 = vmatpush.msra.mxu0 0.0
  %42 = vmatpush.msra.mxu0 0.0
  %43 = vmatpush.msra.mxu0 0.0
  %44 = vmatpush.msra.mxu0 0.0
  %45 = vmatpush.msra.mxu0 0.0
  %46 = vmatpush.msra.mxu0 0.0
  %47 = vmatpush.msra.mxu0 %v20
  %48 = vmatpush.msra.mxu0 %v19
  %49 = vmatpush.msra.mxu0 %v18
  %50 = vmatpush.msra.mxu0 %v17
  %51 = vmatmul.f32.gmra.mxu0 %v27
  %v52 = vpop.f32.mrf.mxu0
  %v53 = vadd.f32 %v23, %v52
  %54 = vmatmul.f32.gmra.mxu0 %v30
  %v55 = vpop.f32.mrf.mxu0
  %v56 = vadd.f32 %v23, %v55
  %57 = vmatmul.f32.gmra.mxu0 %v33
  %v58 = vpop.f32.mrf.mxu0
  %v59 = vadd.f32 %v23, %v58
  %60 = vdwg.mxu0
  %61 = vst [vmem:[%s3] sm:$0xff] %v53
  %62 = vst [vmem:[%s3 + $0x8] sm:$0xff] %v56
  %63 = vst [vmem:[%s3 + $0x10] sm:$0xff] %v59
  // Predicated region
  $region14: #{_chart_parser_forward_impl.6} parent=0 // pred_check
    _
  $region15: #{_chart_parser_forward_impl.6} parent=0 // pred_check_branch
    %65 = sbr.rel (0) target = $region17
  $region16: #{_chart_parser_forward_impl.6} parent=0 // pred_region
    _
  $region17: #{_chart_parser_forward_impl.6} parent=0 // pred_fallthru
    _
  // Predicated region
  $region18: #{_chart_parser_forward_impl.6} parent=0 // pred_check
    _
  $region19: #{_chart_parser_forward_impl.6} parent=0 // pred_check_branch
    %67 = sbr.rel (0) target = $region21
  $region20: #{_chart_parser_forward_impl.6} parent=0 // pred_region
    _
  $region21: #{_chart_parser_forward_impl.6} parent=0 // pred_fallthru
    _

// kernel: squeeze.167
$region0: #{squeeze.167}
  %s0 = inlined_call_operand.vmem [shape: f32[64], index: 0, kind: input, shape index: {}]
  %s1 = inlined_call_operand.vmem [shape: f32[4,2,8], index: 1, kind: output, shape index: {}]
  $region1: #{squeeze.167} parent=0
    #allocation0 [shape = 'u8[16384]{0}', space=vmem, size = 0x4000, scoped, tag = 'scoped mem for output reshape']
    #allocation1 [shape = 'u8[4096]{0}', space=vmem, size = 0x1000, scoped, tag = 'scoped mem for input reshape']
    %s3 = ssub.s32 2, 1
    %v4 = vld [vmem:[%s0] sm:%s3]
    %5 = vst [vmem:[#allocation1] sm:%s3] %v4
    %v6 = vld [vmem:[#allocation1] sm:$0x1]
    %vm7 = vcmask 64512
    %8 = vst.msk [vmem:[#allocation0] sm:$0x1] %vm7, %v6
    %v9 = vld [vmem:[#allocation1] sm:$0x1]
    %10 = vrot.lane.b32.xlu0 %v9, 120
    %v11 = vpop.permute.xlu0 %10
    %vm12 = vcmask 64512
    %s13 = scalar_lea.vmem [#allocation0], 1
    %14 = vst.msk [vmem:[%s13] sm:$0x1] %vm12, %v11
    %v15 = vld [vmem:[#allocation1] sm:$0x1]
    %16 = vrot.lane.b32.xlu0 %v15, 112
    %v17 = vpop.permute.xlu0 %16
    %vm18 = vcmask 64512
    %s19 = scalar_lea.vmem [#allocation0], 8
    %20 = vst.msk [vmem:[%s19] sm:$0x1] %vm18, %v17
    %v21 = vld [vmem:[#allocation1] sm:$0x1]
    %22 = vrot.lane.b32.xlu0 %v21, 104
    %v23 = vpop.permute.xlu0 %22
    %vm24 = vcmask 64512
    %s25 = scalar_lea.vmem [#allocation0], 9
    %26 = vst.msk [vmem:[%s25] sm:$0x1] %vm24, %v23
    %v27 = vld [vmem:[#allocation1] sm:$0x1]
    %28 = vrot.lane.b32.xlu0 %v27, 96
    %v29 = vpop.permute.xlu0 %28
    %vm30 = vcmask 64512
    %s31 = scalar_lea.vmem [#allocation0], 16
    %32 = vst.msk [vmem:[%s31] sm:$0x1] %vm30, %v29
    %v33 = vld [vmem:[#allocation1] sm:$0x1]
    %34 = vrot.lane.b32.xlu0 %v33, 88
    %v35 = vpop.permute.xlu0 %34
    %vm36 = vcmask 64512
    %s37 = scalar_lea.vmem [#allocation0], 17
    %38 = vst.msk [vmem:[%s37] sm:$0x1] %vm36, %v35
    %v39 = vld [vmem:[#allocation1] sm:$0x1]
    %40 = vrot.lane.b32.xlu0 %v39, 80
    %v41 = vpop.permute.xlu0 %40
    %vm42 = vcmask 64512
    %s43 = scalar_lea.vmem [#allocation0], 24
    %44 = vst.msk [vmem:[%s43] sm:$0x1] %vm42, %v41
    %v45 = vld [vmem:[#allocation1] sm:$0x1]
    %46 = vrot.lane.b32.xlu0 %v45, 72
    %v47 = vpop.permute.xlu0 %46
    %vm48 = vcmask 64512
    %s49 = scalar_lea.vmem [#allocation0], 25
    %50 = vst.msk [vmem:[%s49] sm:$0x1] %vm48, %v47
    %s52 = ssub.s32 4, 1
    %v53 = vld [vmem:[#allocation0] sm:%s52]
    %s55 = ssub.s32 4, 1
    %56 = vst [vmem:[%s1] sm:%s55] %v53
    %s57 = scalar_lea.vmem [#allocation0], 8
    %v58 = vld [vmem:[%s57] sm:%s52]
    %s60 = ssub.s32 4, 1
    %s61 = scalar_lea.vmem %s1, 2
    %62 = vst [vmem:[%s61] sm:%s60] %v58
    %s63 = scalar_lea.vmem [#allocation0], 16
    %v64 = vld [vmem:[%s63] sm:%s52]
    %s66 = ssub.s32 4, 1
    %s67 = scalar_lea.vmem %s1, 4
    %68 = vst [vmem:[%s67] sm:%s66] %v64
    %s69 = scalar_lea.vmem [#allocation0], 24
    %v70 = vld [vmem:[%s69] sm:%s52]
    %s72 = ssub.s32 4, 1
    %s73 = scalar_lea.vmem %s1, 6
    %74 = vst [vmem:[%s73] sm:%s72] %v70

// kernel: div.41
$region0: #{div.41}
  %s0 = inlined_call_operand.vmem [shape: f32[4,8], index: 0, kind: input, shape index: {}]
  %s1 = inlined_call_operand.vmem [shape: f32[32], index: 1, kind: output, shape index: {}]
  $region1: #{div.41} parent=0
    #allocation0 [shape = 'u8[4096]{0}', space=vmem, size = 0x1000, scoped, tag = 'scoped mem for output reshape']
    #allocation1 [shape = 'u8[4096]{0}', space=vmem, size = 0x1000, scoped, tag = 'scoped mem for input reshape']
    %s3 = ssub.s32 16, 1
    %v4 = vld [vmem:[%s0] sm:%s3]
    %5 = vst [vmem:[#allocation1] sm:%s3] %v4
    %v6 = vld [vmem:[#allocation1] sm:$0x1]
    %vm7 = vcmask 64512
    %8 = vst.msk [vmem:[#allocation0] sm:$0x1] %vm7, %v6
    %s9 = scalar_lea.vmem [#allocation1], 3
    %v10 = vld [vmem:[%s9] sm:$0x1]
    %11 = vrot.lane.b32.xlu0 %v10, 24
    %v12 = vpop.permute.xlu0 %11
    %vm13 = vcmask 261312
    %14 = vst.msk [vmem:[#allocation0] sm:$0x1] %vm13, %v12
    %s15 = scalar_lea.vmem [#allocation1], 2
    %v16 = vld [vmem:[%s15] sm:$0x1]
    %17 = vrot.lane.b32.xlu0 %v16, 16
    %v18 = vpop.permute.xlu0 %17
    %vm19 = vcmask 195712
    %20 = vst.msk [vmem:[#allocation0] sm:$0x1] %vm19, %v18
    %s21 = scalar_lea.vmem [#allocation1], 1
    %v22 = vld [vmem:[%s21] sm:$0x1]
    %23 = vrot.lane.b32.xlu0 %v22, 8
    %v24 = vpop.permute.xlu0 %23
    %vm25 = vcmask 130112
    %26 = vst.msk [vmem:[#allocation0] sm:$0x1] %vm25, %v24
    %s28 = ssub.s32 2, 1
    %v29 = vld [vmem:[#allocation0] sm:%s28]
    %s31 = ssub.s32 2, 1
    %32 = vst [vmem:[%s1] sm:%s31] %v29

// kernel: _chart_parser_forward_impl.7
$region0: #{_chart_parser_forward_impl.7}
  #allocation0 [shape = 'u32[]', space=smem, size = 0x4, offset = 0x4, fixed_abs, tag = 'smem constant byte address 0x4 - core index']
  #allocation1 [shape = 'u32[72,128]{1,0:T(1,128)}', space=vmem, size = 0x9000, scoped, tag = 'internal scratch']
  %s0 = inlined_call_operand.vmem [shape: f32[40,128], index: 0, kind: input, shape index: {}]
  %s1 = inlined_call_operand.vmem [shape: f32[40,128], index: 1, kind: input, shape index: {}]
  %s2 = inlined_call_operand.vmem [shape: f32[40,128], index: 2, kind: input, shape index: {}]
  %s3 = inlined_call_operand.vmem [shape: f32[40,128], index: 3, kind: input, shape index: {}]
  %s4 = inlined_call_operand.vmem [shape: f32[128,640], index: 4, kind: input, shape index: {}]
  %s5 = inlined_call_operand.vmem [shape: f32[128,640], index: 5, kind: input, shape index: {}]
  %s6 = inlined_call_operand.vmem [shape: f32[1,640], index: 6, kind: input, shape index: {}]
  %s7 = inlined_call_operand.vmem [shape: f32[128,128], index: 7, kind: input, shape index: {}]
  %s8 = inlined_call_operand.vmem [shape: f32[40,128], index: 8, kind: output, shape index: {0}]
  %s9 = inlined_call_operand.vmem [shape: f32[40,128], index: 9, kind: output, shape index: {1}]
  %s10 = inlined_call_operand.vmem [shape: f32[40,128], index: 10, kind: output, shape index: {2}]
  %11 = xla_tuple %s8, %s9, %s10
  %s12 = sld [smem:[#allocation0]]
  $region58: #{_chart_parser_forward_impl.7} parent=0
    _
  %s14 = ssub.s32 1, %s12
  %s15 = scalar_select 0, %s14, %s12
  // Predicated region
  $region2: #{_chart_parser_forward_impl.7} parent=0 // pred_check
    _
  $region3: #{_chart_parser_forward_impl.7} parent=0 // pred_check_branch
    %17 = sbr.rel (0) target = $region5
  $region4: #{_chart_parser_forward_impl.7} parent=0 // pred_region
    _
  $region5: #{_chart_parser_forward_impl.7} parent=0 // pred_fallthru
    _
  // Predicated region
  $region6: #{_chart_parser_forward_impl.7} parent=0 // pred_check
    _
  $region7: #{_chart_parser_forward_impl.7} parent=0 // pred_check_branch
    %19 = sbr.rel (0) target = $region9
  $region8: #{_chart_parser_forward_impl.7} parent=0 // pred_region
    _
  $region9: #{_chart_parser_forward_impl.7} parent=0 // pred_fallthru
    _
  // Predicated region
  $region10: #{_chart_parser_forward_impl.7} parent=0 // pred_check
    _
  $region11: #{_chart_parser_forward_impl.7} parent=0 // pred_check_branch
    %21 = sbr.rel (0) target = $region13
  $region12: #{_chart_parser_forward_impl.7} parent=0 // pred_region
    _
  $region13: #{_chart_parser_forward_impl.7} parent=0 // pred_fallthru
    _
  // Predicated region
  $region14: #{_chart_parser_forward_impl.7} parent=0 // pred_check
    _
  $region15: #{_chart_parser_forward_impl.7} parent=0 // pred_check_branch
    %23 = sbr.rel (0) target = $region17
  $region16: #{_chart_parser_forward_impl.7} parent=0 // pred_region
    _
  $region17: #{_chart_parser_forward_impl.7} parent=0 // pred_fallthru
    _
  // Predicated region
  $region18: #{_chart_parser_forward_impl.7} parent=0 // pred_check
    _
  $region19: #{_chart_parser_forward_impl.7} parent=0 // pred_check_branch
    %25 = sbr.rel (0) target = $region21
  $region20: #{_chart_parser_forward_impl.7} parent=0 // pred_region
    _
  $region21: #{_chart_parser_forward_impl.7} parent=0 // pred_fallthru
    _
  // Predicated region
  $region22: #{_chart_parser_forward_impl.7} parent=0 // pred_check
    _
  $region23: #{_chart_parser_forward_impl.7} parent=0 // pred_check_branch
    %27 = sbr.rel (0) target = $region25
  $region24: #{_chart_parser_forward_impl.7} parent=0 // pred_region
    _
  $region25: #{_chart_parser_forward_impl.7} parent=0 // pred_fallthru
    _
  // Predicated region
  $region26: #{_chart_parser_forward_impl.7} parent=0 // pred_check
    _
  $region27: #{_chart_parser_forward_impl.7} parent=0 // pred_check_branch
    %29 = sbr.rel (0) target = $region29
  $region28: #{_chart_parser_forward_impl.7} parent=0 // pred_region
    _
  $region29: #{_chart_parser_forward_impl.7} parent=0 // pred_fallthru
    _
  // Predicated region
  $region30: #{_chart_parser_forward_impl.7} parent=0 // pred_check
    _
  $region31: #{_chart_parser_forward_impl.7} parent=0 // pred_check_branch
    %31 = sbr.rel (0) target = $region33
  $region32: #{_chart_parser_forward_impl.7} parent=0 // pred_region
    _
  $region33: #{_chart_parser_forward_impl.7} parent=0 // pred_fallthru
    _
  %v32 = vld [vmem:[%s0] sm:$0xff]
  %v33 = vld [vmem:[%s0 + $0x8] sm:$0xff]
  %v34 = vld [vmem:[%s0 + $0x10] sm:$0xff]
  %v35 = vld [vmem:[%s0 + $0x18] sm:$0xff]
  %v36 = vld [vmem:[%s0 + $0x20] sm:$0xff]
  %v37 = vld [vmem:[%s1] sm:$0xff]
  %v38 = vld [vmem:[%s1 + $0x8] sm:$0xff]
  %v39 = vld [vmem:[%s1 + $0x10] sm:$0xff]
  %v40 = vld [vmem:[%s1 + $0x18] sm:$0xff]
  %v41 = vld [vmem:[%s1 + $0x20] sm:$0xff]
  %v42 = vld [vmem:[%s2] sm:$0xff]
  %v43 = vld [vmem:[%s2 + $0x8] sm:$0xff]
  %v44 = vld [vmem:[%s2 + $0x10] sm:$0xff]
  %v45 = vld [vmem:[%s2 + $0x18] sm:$0xff]
  %v46 = vld [vmem:[%s2 + $0x20] sm:$0xff]
  %v47 = vld [vmem:[%s3] sm:$0xff]
  %v48 = vld [vmem:[%s3 + $0x8] sm:$0xff]
  %v49 = vld [vmem:[%s3 + $0x10] sm:$0xff]
  %v50 = vld [vmem:[%s3 + $0x18] sm:$0xff]
  %v51 = vld [vmem:[%s3 + $0x20] sm:$0xff]
  %v52 = vld [vmem:[%s4] sm:$0xff]
  %v53 = vld [vmem:[%s4 + $0x8] sm:$0xff]
  %v54 = vld [vmem:[%s4 + $0x10] sm:$0xff]
  %v55 = vld [vmem:[%s4 + $0x18] sm:$0xff]
  %v56 = vld [vmem:[%s4 + $0x20] sm:$0xff]
  %v57 = vld [vmem:[%s4 + $0x28] sm:$0xff]
  %v58 = vld [vmem:[%s4 + $0x30] sm:$0xff]
  %v59 = vld [vmem:[%s4 + $0x38] sm:$0xff]
  %v60 = vld [vmem:[%s4 + $0x40] sm:$0xff]
  %v61 = vld [vmem:[%s4 + $0x48] sm:$0xff]
  %v62 = vld [vmem:[%s4 + $0x50] sm:$0xff]
  %v63 = vld [vmem:[%s4 + $0x58] sm:$0xff]
  %v64 = vld [vmem:[%s4 + $0x60] sm:$0xff]
  %v65 = vld [vmem:[%s4 + $0x68] sm:$0xff]
  %v66 = vld [vmem:[%s4 + $0x70] sm:$0xff]
  %v67 = vld [vmem:[%s4 + $0x78] sm:$0xff]
  %v68 = vld [vmem:[%s4 + $0x80] sm:$0xff]
  %v69 = vld [vmem:[%s4 + $0x88] sm:$0xff]
  %v70 = vld [vmem:[%s4 + $0x90] sm:$0xff]
  %v71 = vld [vmem:[%s4 + $0x98] sm:$0xff]
  %v72 = vld [vmem:[%s4 + $0xa0] sm:$0xff]
  %v73 = vld [vmem:[%s4 + $0xa8] sm:$0xff]
  %v74 = vld [vmem:[%s4 + $0xb0] sm:$0xff]
  %v75 = vld [vmem:[%s4 + $0xb8] sm:$0xff]
  %v76 = vld [vmem:[%s4 + $0xc0] sm:$0xff]
  %v77 = vld [vmem:[%s4 + $0xc8] sm:$0xff]
  %v78 = vld [vmem:[%s4 + $0xd0] sm:$0xff]
  %v79 = vld [vmem:[%s4 + $0xd8] sm:$0xff]
  %v80 = vld [vmem:[%s4 + $0xe0] sm:$0xff]
  %v81 = vld [vmem:[%s4 + $0xe8] sm:$0xff]
  %v82 = vld [vmem:[%s4 + $0xf0] sm:$0xff]
  %v83 = vld [vmem:[%s4 + $0xf8] sm:$0xff]
  %v84 = vld [vmem:[%s4 + $0x100] sm:$0xff]
  %v85 = vld [vmem:[%s4 + $0x108] sm:$0xff]
  %v86 = vld [vmem:[%s4 + $0x110] sm:$0xff]
  %v87 = vld [vmem:[%s4 + $0x118] sm:$0xff]
  %v88 = vld [vmem:[%s4 + $0x120] sm:$0xff]
  %v89 = vld [vmem:[%s4 + $0x128] sm:$0xff]
  %v90 = vld [vmem:[%s4 + $0x130] sm:$0xff]
  %v91 = vld [vmem:[%s4 + $0x138] sm:$0xff]
  %v92 = vld [vmem:[%s4 + $0x140] sm:$0xff]
  %v93 = vld [vmem:[%s4 + $0x148] sm:$0xff]
  %v94 = vld [vmem:[%s4 + $0x150] sm:$0xff]
  %v95 = vld [vmem:[%s4 + $0x158] sm:$0xff]
  %v96 = vld [vmem:[%s4 + $0x160] sm:$0xff]
  %v97 = vld [vmem:[%s4 + $0x168] sm:$0xff]
  %v98 = vld [vmem:[%s4 + $0x170] sm:$0xff]
  %v99 = vld [vmem:[%s4 + $0x178] sm:$0xff]
  %v100 = vld [vmem:[%s4 + $0x180] sm:$0xff]
  %v101 = vld [vmem:[%s4 + $0x188] sm:$0xff]
  %v102 = vld [vmem:[%s4 + $0x190] sm:$0xff]
  %v103 = vld [vmem:[%s4 + $0x198] sm:$0xff]
  %v104 = vld [vmem:[%s4 + $0x1a0] sm:$0xff]
  %v105 = vld [vmem:[%s4 + $0x1a8] sm:$0xff]
  %v106 = vld [vmem:[%s4 + $0x1b0] sm:$0xff]
  %v107 = vld [vmem:[%s4 + $0x1b8] sm:$0xff]
  %v108 = vld [vmem:[%s4 + $0x1c0] sm:$0xff]
  %v109 = vld [vmem:[%s4 + $0x1c8] sm:$0xff]
  %v110 = vld [vmem:[%s4 + $0x1d0] sm:$0xff]
  %v111 = vld [vmem:[%s4 + $0x1d8] sm:$0xff]
  %v112 = vld [vmem:[%s4 + $0x1e0] sm:$0xff]
  %v113 = vld [vmem:[%s4 + $0x1e8] sm:$0xff]
  %v114 = vld [vmem:[%s4 + $0x1f0] sm:$0xff]
  %v115 = vld [vmem:[%s4 + $0x1f8] sm:$0xff]
  %v116 = vld [vmem:[%s4 + $0x200] sm:$0xff]
  %v117 = vld [vmem:[%s4 + $0x208] sm:$0xff]
  %v118 = vld [vmem:[%s4 + $0x210] sm:$0xff]
  %v119 = vld [vmem:[%s4 + $0x218] sm:$0xff]
  %v120 = vld [vmem:[%s4 + $0x220] sm:$0xff]
  %v121 = vld [vmem:[%s4 + $0x228] sm:$0xff]
  %v122 = vld [vmem:[%s4 + $0x230] sm:$0xff]
  %v123 = vld [vmem:[%s4 + $0x238] sm:$0xff]
  %v124 = vld [vmem:[%s4 + $0x240] sm:$0xff]
  %v125 = vld [vmem:[%s4 + $0x248] sm:$0xff]
  %v126 = vld [vmem:[%s4 + $0x250] sm:$0xff]
  %v127 = vld [vmem:[%s4 + $0x258] sm:$0xff]
  %v128 = vld [vmem:[%s4 + $0x260] sm:$0xff]
  %v129 = vld [vmem:[%s4 + $0x268] sm:$0xff]
  %v130 = vld [vmem:[%s4 + $0x270] sm:$0xff]
  %v131 = vld [vmem:[%s4 + $0x278] sm:$0xff]
  %v132 = vld [vmem:[%s5] sm:$0xff]
  %v133 = vld [vmem:[%s5 + $0x8] sm:$0xff]
  %v134 = vld [vmem:[%s5 + $0x10] sm:$0xff]
  %v135 = vld [vmem:[%s5 + $0x18] sm:$0xff]
  %v136 = vld [vmem:[%s5 + $0x20] sm:$0xff]
  %v137 = vld [vmem:[%s5 + $0x28] sm:$0xff]
  %v138 = vld [vmem:[%s5 + $0x30] sm:$0xff]
  %v139 = vld [vmem:[%s5 + $0x38] sm:$0xff]
  %v140 = vld [vmem:[%s5 + $0x40] sm:$0xff]
  %v141 = vld [vmem:[%s5 + $0x48] sm:$0xff]
  %v142 = vld [vmem:[%s5 + $0x50] sm:$0xff]
  %v143 = vld [vmem:[%s5 + $0x58] sm:$0xff]
  %v144 = vld [vmem:[%s5 + $0x60] sm:$0xff]
  %v145 = vld [vmem:[%s5 + $0x68] sm:$0xff]
  %v146 = vld [vmem:[%s5 + $0x70] sm:$0xff]
  %v147 = vld [vmem:[%s5 + $0x78] sm:$0xff]
  %v148 = vld [vmem:[%s5 + $0x80] sm:$0xff]
  %v149 = vld [vmem:[%s5 + $0x88] sm:$0xff]
  %v150 = vld [vmem:[%s5 + $0x90] sm:$0xff]
  %v151 = vld [vmem:[%s5 + $0x98] sm:$0xff]
  %v152 = vld [vmem:[%s5 + $0xa0] sm:$0xff]
  %v153 = vld [vmem:[%s5 + $0xa8] sm:$0xff]
  %v154 = vld [vmem:[%s5 + $0xb0] sm:$0xff]
  %v155 = vld [vmem:[%s5 + $0xb8] sm:$0xff]
  %v156 = vld [vmem:[%s5 + $0xc0] sm:$0xff]
  %v157 = vld [vmem:[%s5 + $0xc8] sm:$0xff]
  %v158 = vld [vmem:[%s5 + $0xd0] sm:$0xff]
  %v159 = vld [vmem:[%s5 + $0xd8] sm:$0xff]
  %v160 = vld [vmem:[%s5 + $0xe0] sm:$0xff]
  %v161 = vld [vmem:[%s5 + $0xe8] sm:$0xff]
  %v162 = vld [vmem:[%s5 + $0xf0] sm:$0xff]
  %v163 = vld [vmem:[%s5 + $0xf8] sm:$0xff]
  %v164 = vld [vmem:[%s5 + $0x100] sm:$0xff]
  %v165 = vld [vmem:[%s5 + $0x108] sm:$0xff]
  %v166 = vld [vmem:[%s5 + $0x110] sm:$0xff]
  %v167 = vld [vmem:[%s5 + $0x118] sm:$0xff]
  %v168 = vld [vmem:[%s5 + $0x120] sm:$0xff]
  %v169 = vld [vmem:[%s5 + $0x128] sm:$0xff]
  %v170 = vld [vmem:[%s5 + $0x130] sm:$0xff]
  %v171 = vld [vmem:[%s5 + $0x138] sm:$0xff]
  %v172 = vld [vmem:[%s5 + $0x140] sm:$0xff]
  %v173 = vld [vmem:[%s5 + $0x148] sm:$0xff]
  %v174 = vld [vmem:[%s5 + $0x150] sm:$0xff]
  %v175 = vld [vmem:[%s5 + $0x158] sm:$0xff]
  %v176 = vld [vmem:[%s5 + $0x160] sm:$0xff]
  %v177 = vld [vmem:[%s5 + $0x168] sm:$0xff]
  %v178 = vld [vmem:[%s5 + $0x170] sm:$0xff]
  %v179 = vld [vmem:[%s5 + $0x178] sm:$0xff]
  %v180 = vld [vmem:[%s5 + $0x180] sm:$0xff]
  %v181 = vld [vmem:[%s5 + $0x188] sm:$0xff]
  %v182 = vld [vmem:[%s5 + $0x190] sm:$0xff]
  %v183 = vld [vmem:[%s5 + $0x198] sm:$0xff]
  %v184 = vld [vmem:[%s5 + $0x1a0] sm:$0xff]
  %v185 = vld [vmem:[%s5 + $0x1a8] sm:$0xff]
  %v186 = vld [vmem:[%s5 + $0x1b0] sm:$0xff]
  %v187 = vld [vmem:[%s5 + $0x1b8] sm:$0xff]
  %v188 = vld [vmem:[%s5 + $0x1c0] sm:$0xff]
  %v189 = vld [vmem:[%s5 + $0x1c8] sm:$0xff]
  %v190 = vld [vmem:[%s5 + $0x1d0] sm:$0xff]
  %v191 = vld [vmem:[%s5 + $0x1d8] sm:$0xff]
  %v192 = vld [vmem:[%s5 + $0x1e0] sm:$0xff]
  %v193 = vld [vmem:[%s5 + $0x1e8] sm:$0xff]
  %v194 = vld [vmem:[%s5 + $0x1f0] sm:$0xff]
  %v195 = vld [vmem:[%s5 + $0x1f8] sm:$0xff]
  %v196 = vld [vmem:[%s5 + $0x200] sm:$0xff]
  %v197 = vld [vmem:[%s5 + $0x208] sm:$0xff]
  %v198 = vld [vmem:[%s5 + $0x210] sm:$0xff]
  %v199 = vld [vmem:[%s5 + $0x218] sm:$0xff]
  %v200 = vld [vmem:[%s5 + $0x220] sm:$0xff]
  %v201 = vld [vmem:[%s5 + $0x228] sm:$0xff]
  %v202 = vld [vmem:[%s5 + $0x230] sm:$0xff]
  %v203 = vld [vmem:[%s5 + $0x238] sm:$0xff]
  %v204 = vld [vmem:[%s5 + $0x240] sm:$0xff]
  %v205 = vld [vmem:[%s5 + $0x248] sm:$0xff]
  %v206 = vld [vmem:[%s5 + $0x250] sm:$0xff]
  %v207 = vld [vmem:[%s5 + $0x258] sm:$0xff]
  %v208 = vld [vmem:[%s5 + $0x260] sm:$0xff]
  %v209 = vld [vmem:[%s5 + $0x268] sm:$0xff]
  %v210 = vld [vmem:[%s5 + $0x270] sm:$0xff]
  %v211 = vld [vmem:[%s5 + $0x278] sm:$0xff]
  %212 = vmatpush.msra.mxu0 %v207
  %213 = vmatpush.msra.mxu0 %v202
  %214 = vmatpush.msra.mxu0 %v197
  %215 = vmatpush.msra.mxu0 %v192
  %216 = vmatpush.msra.mxu0 %v187
  %217 = vmatpush.msra.mxu0 %v182
  %218 = vmatpush.msra.mxu0 %v177
  %219 = vmatpush.msra.mxu0 %v172
  %220 = vmatpush.msra.mxu0 %v167
  %221 = vmatpush.msra.mxu0 %v162
  %222 = vmatpush.msra.mxu0 %v157
  %223 = vmatpush.msra.mxu0 %v152
  %224 = vmatpush.msra.mxu0 %v147
  %225 = vmatpush.msra.mxu0 %v142
  %226 = vmatpush.msra.mxu0 %v137
  %227 = vmatpush.msra.mxu0 %v132
  %228 = vmatmul.f32.gmra.mxu0 %v42
  %v229 = vpop.f32.mrf.mxu0
  %v230 = vadd.f32 0.0, %v229
  %231 = vmatmul.f32.gmra.mxu0 %v43
  %v232 = vpop.f32.mrf.mxu0
  %v233 = vadd.f32 0.0, %v232
  %234 = vmatmul.f32.gmra.mxu0 %v44
  %v235 = vpop.f32.mrf.mxu0
  %v236 = vadd.f32 0.0, %v235
  %237 = vmatmul.f32.gmra.mxu0 %v45
  %v238 = vpop.f32.mrf.mxu0
  %v239 = vadd.f32 0.0, %v238
  %240 = vmatmul.f32.gmra.mxu0 %v46
  %v241 = vpop.f32.mrf.mxu0
  %v242 = vadd.f32 0.0, %v241
  %243 = vdwg.mxu0
  %244 = vmatpush.msra.mxu0 %v208
  %245 = vmatpush.msra.mxu0 %v203
  %246 = vmatpush.msra.mxu0 %v198
  %247 = vmatpush.msra.mxu0 %v193
  %248 = vmatpush.msra.mxu0 %v188
  %249 = vmatpush.msra.mxu0 %v183
  %250 = vmatpush.msra.mxu0 %v178
  %251 = vmatpush.msra.mxu0 %v173
  %252 = vmatpush.msra.mxu0 %v168
  %253 = vmatpush.msra.mxu0 %v163
  %254 = vmatpush.msra.mxu0 %v158
  %255 = vmatpush.msra.mxu0 %v153
  %256 = vmatpush.msra.mxu0 %v148
  %257 = vmatpush.msra.mxu0 %v143
  %258 = vmatpush.msra.mxu0 %v138
  %259 = vmatpush.msra.mxu0 %v133
  %260 = vmatmul.f32.gmra.mxu0 %v42
  %v261 = vpop.f32.mrf.mxu0
  %v262 = vadd.f32 0.0, %v261
  %263 = vmatmul.f32.gmra.mxu0 %v43
  %v264 = vpop.f32.mrf.mxu0
  %v265 = vadd.f32 0.0, %v264
  %266 = vmatmul.f32.gmra.mxu0 %v44
  %v267 = vpop.f32.mrf.mxu0
  %v268 = vadd.f32 0.0, %v267
  %269 = vmatmul.f32.gmra.mxu0 %v45
  %v270 = vpop.f32.mrf.mxu0
  %v271 = vadd.f32 0.0, %v270
  %272 = vmatmul.f32.gmra.mxu0 %v46
  %v273 = vpop.f32.mrf.mxu0
  %v274 = vadd.f32 0.0, %v273
  %275 = vdwg.mxu0
  %276 = vmatpush.msra.mxu0 %v209
  %277 = vmatpush.msra.mxu0 %v204
  %278 = vmatpush.msra.mxu0 %v199
  %279 = vmatpush.msra.mxu0 %v194
  %280 = vmatpush.msra.mxu0 %v189
  %281 = vmatpush.msra.mxu0 %v184
  %282 = vmatpush.msra.mxu0 %v179
  %283 = vmatpush.msra.mxu0 %v174
  %284 = vmatpush.msra.mxu0 %v169
  %285 = vmatpush.msra.mxu0 %v164
  %286 = vmatpush.msra.mxu0 %v159
  %287 = vmatpush.msra.mxu0 %v154
  %288 = vmatpush.msra.mxu0 %v149
  %289 = vmatpush.msra.mxu0 %v144
  %290 = vmatpush.msra.mxu0 %v139
  %291 = vmatpush.msra.mxu0 %v134
  %292 = vmatmul.f32.gmra.mxu0 %v42
  %v293 = vpop.f32.mrf.mxu0
  %v294 = vadd.f32 0.0, %v293
  %295 = vmatmul.f32.gmra.mxu0 %v43
  %v296 = vpop.f32.mrf.mxu0
  %v297 = vadd.f32 0.0, %v296
  %298 = vmatmul.f32.gmra.mxu0 %v44
  %v299 = vpop.f32.mrf.mxu0
  %v300 = vadd.f32 0.0, %v299
  %301 = vmatmul.f32.gmra.mxu0 %v45
  %v302 = vpop.f32.mrf.mxu0
  %v303 = vadd.f32 0.0, %v302
  %304 = vmatmul.f32.gmra.mxu0 %v46
  %v305 = vpop.f32.mrf.mxu0
  %v306 = vadd.f32 0.0, %v305
  %307 = vdwg.mxu0
  %308 = vmatpush.msra.mxu0 %v210
  %309 = vmatpush.msra.mxu0 %v205
  %310 = vmatpush.msra.mxu0 %v200
  %311 = vmatpush.msra.mxu0 %v195
  %312 = vmatpush.msra.mxu0 %v190
  %313 = vmatpush.msra.mxu0 %v185
  %314 = vmatpush.msra.mxu0 %v180
  %315 = vmatpush.msra.mxu0 %v175
  %316 = vmatpush.msra.mxu0 %v170
  %317 = vmatpush.msra.mxu0 %v165
  %318 = vmatpush.msra.mxu0 %v160
  %319 = vmatpush.msra.mxu0 %v155
  %320 = vmatpush.msra.mxu0 %v150
  %321 = vmatpush.msra.mxu0 %v145
  %322 = vmatpush.msra.mxu0 %v140
  %323 = vmatpush.msra.mxu0 %v135
  %324 = vmatmul.f32.gmra.mxu0 %v42
  %v325 = vpop.f32.mrf.mxu0
  %v326 = vadd.f32 0.0, %v325
  %327 = vmatmul.f32.gmra.mxu0 %v43
  %v328 = vpop.f32.mrf.mxu0
  %v329 = vadd.f32 0.0, %v328
  %330 = vmatmul.f32.gmra.mxu0 %v44
  %v331 = vpop.f32.mrf.mxu0
  %v332 = vadd.f32 0.0, %v331
  %333 = vmatmul.f32.gmra.mxu0 %v45
  %v334 = vpop.f32.mrf.mxu0
  %v335 = vadd.f32 0.0, %v334
  %336 = vmatmul.f32.gmra.mxu0 %v46
  %v337 = vpop.f32.mrf.mxu0
  %v338 = vadd.f32 0.0, %v337
  %339 = vdwg.mxu0
  %340 = vmatpush.msra.mxu0 %v211
  %341 = vmatpush.msra.mxu0 %v206
  %342 = vmatpush.msra.mxu0 %v201
  %343 = vmatpush.msra.mxu0 %v196
  %344 = vmatpush.msra.mxu0 %v191
  %345 = vmatpush.msra.mxu0 %v186
  %346 = vmatpush.msra.mxu0 %v181
  %347 = vmatpush.msra.mxu0 %v176
  %348 = vmatpush.msra.mxu0 %v171
  %349 = vmatpush.msra.mxu0 %v166
  %350 = vmatpush.msra.mxu0 %v161
  %351 = vmatpush.msra.mxu0 %v156
  %352 = vmatpush.msra.mxu0 %v151
  %353 = vmatpush.msra.mxu0 %v146
  %354 = vmatpush.msra.mxu0 %v141
  %355 = vmatpush.msra.mxu0 %v136
  %356 = vmatmul.f32.gmra.mxu0 %v42
  %v357 = vpop.f32.mrf.mxu0
  %v358 = vadd.f32 0.0, %v357
  %359 = vmatmul.f32.gmra.mxu0 %v43
  %v360 = vpop.f32.mrf.mxu0
  %v361 = vadd.f32 0.0, %v360
  %362 = vmatmul.f32.gmra.mxu0 %v44
  %v363 = vpop.f32.mrf.mxu0
  %v364 = vadd.f32 0.0, %v363
  %365 = vmatmul.f32.gmra.mxu0 %v45
  %v366 = vpop.f32.mrf.mxu0
  %v367 = vadd.f32 0.0, %v366
  %368 = vmatmul.f32.gmra.mxu0 %v46
  %v369 = vpop.f32.mrf.mxu0
  %v370 = vadd.f32 0.0, %v369
  %371 = vdwg.mxu0
  %372 = vmatpush.msra.mxu0 %v127
  %373 = vmatpush.msra.mxu0 %v122
  %374 = vmatpush.msra.mxu0 %v117
  %375 = vmatpush.msra.mxu0 %v112
  %376 = vmatpush.msra.mxu0 %v107
  %377 = vmatpush.msra.mxu0 %v102
  %378 = vmatpush.msra.mxu0 %v97
  %379 = vmatpush.msra.mxu0 %v92
  %380 = vmatpush.msra.mxu0 %v87
  %381 = vmatpush.msra.mxu0 %v82
  %382 = vmatpush.msra.mxu0 %v77
  %383 = vmatpush.msra.mxu0 %v72
  %384 = vmatpush.msra.mxu0 %v67
  %385 = vmatpush.msra.mxu0 %v62
  %386 = vmatpush.msra.mxu0 %v57
  %387 = vmatpush.msra.mxu0 %v52
  %388 = vmatmul.f32.gmra.mxu0 %v32
  %v389 = vpop.f32.mrf.mxu0
  %v390 = vadd.f32 %v230, %v389
  %391 = vmatmul.f32.gmra.mxu0 %v33
  %v392 = vpop.f32.mrf.mxu0
  %v393 = vadd.f32 %v233, %v392
  %394 = vmatmul.f32.gmra.mxu0 %v34
  %v395 = vpop.f32.mrf.mxu0
  %v396 = vadd.f32 %v236, %v395
  %397 = vmatmul.f32.gmra.mxu0 %v35
  %v398 = vpop.f32.mrf.mxu0
  %v399 = vadd.f32 %v239, %v398
  %400 = vmatmul.f32.gmra.mxu0 %v36
  %v401 = vpop.f32.mrf.mxu0
  %v402 = vadd.f32 %v242, %v401
  %403 = vdwg.mxu0
  %404 = vmatpush.msra.mxu0 %v128
  %405 = vmatpush.msra.mxu0 %v123
  %406 = vmatpush.msra.mxu0 %v118
  %407 = vmatpush.msra.mxu0 %v113
  %408 = vmatpush.msra.mxu0 %v108
  %409 = vmatpush.msra.mxu0 %v103
  %410 = vmatpush.msra.mxu0 %v98
  %411 = vmatpush.msra.mxu0 %v93
  %412 = vmatpush.msra.mxu0 %v88
  %413 = vmatpush.msra.mxu0 %v83
  %414 = vmatpush.msra.mxu0 %v78
  %415 = vmatpush.msra.mxu0 %v73
  %416 = vmatpush.msra.mxu0 %v68
  %417 = vmatpush.msra.mxu0 %v63
  %418 = vmatpush.msra.mxu0 %v58
  %419 = vmatpush.msra.mxu0 %v53
  %420 = vmatmul.f32.gmra.mxu0 %v32
  %v421 = vpop.f32.mrf.mxu0
  %v422 = vadd.f32 %v262, %v421
  %423 = vmatmul.f32.gmra.mxu0 %v33
  %v424 = vpop.f32.mrf.mxu0
  %v425 = vadd.f32 %v265, %v424
  %426 = vmatmul.f32.gmra.mxu0 %v34
  %v427 = vpop.f32.mrf.mxu0
  %v428 = vadd.f32 %v268, %v427
  %429 = vmatmul.f32.gmra.mxu0 %v35
  %v430 = vpop.f32.mrf.mxu0
  %v431 = vadd.f32 %v271, %v430
  %432 = vmatmul.f32.gmra.mxu0 %v36
  %v433 = vpop.f32.mrf.mxu0
  %v434 = vadd.f32 %v274, %v433
  %435 = vdwg.mxu0
  %436 = vmatpush.msra.mxu0 %v129
  %437 = vmatpush.msra.mxu0 %v124
  %438 = vmatpush.msra.mxu0 %v119
  %439 = vmatpush.msra.mxu0 %v114
  %440 = vmatpush.msra.mxu0 %v109
  %441 = vmatpush.msra.mxu0 %v104
  %442 = vmatpush.msra.mxu0 %v99
  %443 = vmatpush.msra.mxu0 %v94
  %444 = vmatpush.msra.mxu0 %v89
  %445 = vmatpush.msra.mxu0 %v84
  %446 = vmatpush.msra.mxu0 %v79
  %447 = vmatpush.msra.mxu0 %v74
  %448 = vmatpush.msra.mxu0 %v69
  %449 = vmatpush.msra.mxu0 %v64
  %450 = vmatpush.msra.mxu0 %v59
  %451 = vmatpush.msra.mxu0 %v54
  %452 = vmatmul.f32.gmra.mxu0 %v32
  %v453 = vpop.f32.mrf.mxu0
  %v454 = vadd.f32 %v294, %v453
  %455 = vmatmul.f32.gmra.mxu0 %v33
  %v456 = vpop.f32.mrf.mxu0
  %v457 = vadd.f32 %v297, %v456
  %458 = vmatmul.f32.gmra.mxu0 %v34
  %v459 = vpop.f32.mrf.mxu0
  %v460 = vadd.f32 %v300, %v459
  %461 = vmatmul.f32.gmra.mxu0 %v35
  %v462 = vpop.f32.mrf.mxu0
  %v463 = vadd.f32 %v303, %v462
  %464 = vmatmul.f32.gmra.mxu0 %v36
  %v465 = vpop.f32.mrf.mxu0
  %v466 = vadd.f32 %v306, %v465
  %467 = vdwg.mxu0
  %468 = vmatpush.msra.mxu0 %v130
  %469 = vmatpush.msra.mxu0 %v125
  %470 = vmatpush.msra.mxu0 %v120
  %471 = vmatpush.msra.mxu0 %v115
  %472 = vmatpush.msra.mxu0 %v110
  %473 = vmatpush.msra.mxu0 %v105
  %474 = vmatpush.msra.mxu0 %v100
  %475 = vmatpush.msra.mxu0 %v95
  %476 = vmatpush.msra.mxu0 %v90
  %477 = vmatpush.msra.mxu0 %v85
  %478 = vmatpush.msra.mxu0 %v80
  %479 = vmatpush.msra.mxu0 %v75
  %480 = vmatpush.msra.mxu0 %v70
  %481 = vmatpush.msra.mxu0 %v65
  %482 = vmatpush.msra.mxu0 %v60
  %483 = vmatpush.msra.mxu0 %v55
  %484 = vmatmul.f32.gmra.mxu0 %v32
  %v485 = vpop.f32.mrf.mxu0
  %v486 = vadd.f32 %v326, %v485
  %487 = vmatmul.f32.gmra.mxu0 %v33
  %v488 = vpop.f32.mrf.mxu0
  %v489 = vadd.f32 %v329, %v488
  %490 = vmatmul.f32.gmra.mxu0 %v34
  %v491 = vpop.f32.mrf.mxu0
  %v492 = vadd.f32 %v332, %v491
  %493 = vmatmul.f32.gmra.mxu0 %v35
  %v494 = vpop.f32.mrf.mxu0
  %v495 = vadd.f32 %v335, %v494
  %496 = vmatmul.f32.gmra.mxu0 %v36
  %v497 = vpop.f32.mrf.mxu0
  %v498 = vadd.f32 %v338, %v497
  %499 = vdwg.mxu0
  %500 = vmatpush.msra.mxu0 %v131
  %501 = vmatpush.msra.mxu0 %v126
  %502 = vmatpush.msra.mxu0 %v121
  %503 = vmatpush.msra.mxu0 %v116
  %504 = vmatpush.msra.mxu0 %v111
  %505 = vmatpush.msra.mxu0 %v106
  %506 = vmatpush.msra.mxu0 %v101
  %507 = vmatpush.msra.mxu0 %v96
  %508 = vmatpush.msra.mxu0 %v91
  %509 = vmatpush.msra.mxu0 %v86
  %510 = vmatpush.msra.mxu0 %v81
  %511 = vmatpush.msra.mxu0 %v76
  %512 = vmatpush.msra.mxu0 %v71
  %513 = vmatpush.msra.mxu0 %v66
  %514 = vmatpush.msra.mxu0 %v61
  %515 = vmatpush.msra.mxu0 %v56
  %516 = vmatmul.f32.gmra.mxu0 %v32
  %v517 = vpop.f32.mrf.mxu0
  %v518 = vadd.f32 %v358, %v517
  %519 = vmatmul.f32.gmra.mxu0 %v33
  %v520 = vpop.f32.mrf.mxu0
  %v521 = vadd.f32 %v361, %v520
  %522 = vmatmul.f32.gmra.mxu0 %v34
  %v523 = vpop.f32.mrf.mxu0
  %v524 = vadd.f32 %v364, %v523
  %525 = vmatmul.f32.gmra.mxu0 %v35
  %v526 = vpop.f32.mrf.mxu0
  %v527 = vadd.f32 %v367, %v526
  %528 = vmatmul.f32.gmra.mxu0 %v36
  %v529 = vpop.f32.mrf.mxu0
  %v530 = vadd.f32 %v370, %v529
  %531 = vdwg.mxu0
  %v532 = vld [vmem:[%s6] sm:$0x1f]
  %v534 = vperm.slane %v532, 0
  %v535 = vperm.slane %v532, 1
  %v536 = vperm.slane %v532, 2
  %v537 = vperm.slane %v532, 3
  %v538 = vperm.slane %v532, 4
  %v544 = vadd.f32 %v390, %v534
  %v545 = vadd.f32 %v422, %v535
  %v546 = vadd.f32 %v454, %v536
  %v547 = vadd.f32 %v486, %v537
  %v548 = vadd.f32 %v518, %v538
  %v549 = vadd.f32 %v393, %v534
  %v550 = vadd.f32 %v425, %v535
  %v551 = vadd.f32 %v457, %v536
  %v552 = vadd.f32 %v489, %v537
  %v553 = vadd.f32 %v521, %v538
  %v554 = vadd.f32 %v396, %v534
  %v555 = vadd.f32 %v428, %v535
  %v556 = vadd.f32 %v460, %v536
  %v557 = vadd.f32 %v492, %v537
  %v558 = vadd.f32 %v524, %v538
  %v559 = vadd.f32 %v399, %v534
  %v560 = vadd.f32 %v431, %v535
  %v561 = vadd.f32 %v463, %v536
  %v562 = vadd.f32 %v495, %v537
  %v563 = vadd.f32 %v527, %v538
  %v564 = vadd.f32 %v402, %v534
  %v565 = vadd.f32 %v434, %v535
  %v566 = vadd.f32 %v466, %v536
  %v567 = vadd.f32 %v498, %v537
  %v568 = vadd.f32 %v530, %v538
  %v569 = vadd.f32 %v545, 1.0
  %v570 = vadd.f32 %v550, 1.0
  %v571 = vadd.f32 %v555, 1.0
  %v572 = vadd.f32 %v560, 1.0
  %v573 = vadd.f32 %v565, 1.0
  %v574 = vxor.u32 %v569, 2147483648
  %v575 = vxor.u32 %v570, 2147483648
  %v576 = vxor.u32 %v571, 2147483648
  %v577 = vxor.u32 %v572, 2147483648
  %v578 = vxor.u32 %v573, 2147483648
  %v579 = vmul.f32 %v574, 1.442695
  %v580 = vpow.pop %v579
  %v581 = vmul.f32 %v575, 1.442695
  %v582 = vpow.pop %v581
  %v583 = vmul.f32 %v576, 1.442695
  %v584 = vpow.pop %v583
  %v585 = vmul.f32 %v577, 1.442695
  %v586 = vpow.pop %v585
  %v587 = vmul.f32 %v578, 1.442695
  %v588 = vpow.pop %v587
  %v589 = vadd.f32 %v580, 1.0
  %v590 = vadd.f32 %v582, 1.0
  %v591 = vadd.f32 %v584, 1.0
  %v592 = vadd.f32 %v586, 1.0
  %v593 = vadd.f32 %v588, 1.0
  %v594 = vrcp.pop %v589
  %v595 = vmul.f32 %v589, %v594
  %v596 = vsub.f32 1.0, %v595
  %v597 = vmul.f32 %v594, %v596
  %v598 = vadd.f32 %v594, %v597
  %vm599 = vweird.f32 %v589
  %vm600 = vweird.f32 %v594
  %vm601 = vmor %vm599, %vm600
  %v602 = vsel %vm601, %v594, %v598
  %v603 = vand.u32 2147483647, %v589
  %vm604 = vcmp.eq.f32.partialorder %v603, 8.507059e+37
  %v605 = vand.u32 %v589, 2147483648
  %v606 = vor.u32 1.1754944e-38, %v605
  %v607 = vsel %vm604, %v606, %v602
  %v608 = vmul.f32 1.0, %v607
  %v609 = vrcp.pop %v590
  %v610 = vmul.f32 %v590, %v609
  %v611 = vsub.f32 1.0, %v610
  %v612 = vmul.f32 %v609, %v611
  %v613 = vadd.f32 %v609, %v612
  %vm614 = vweird.f32 %v590
  %vm615 = vweird.f32 %v609
  %vm616 = vmor %vm614, %vm615
  %v617 = vsel %vm616, %v609, %v613
  %v618 = vand.u32 2147483647, %v590
  %vm619 = vcmp.eq.f32.partialorder %v618, 8.507059e+37
  %v620 = vand.u32 %v590, 2147483648
  %v621 = vor.u32 1.1754944e-38, %v620
  %v622 = vsel %vm619, %v621, %v617
  %v623 = vmul.f32 1.0, %v622
  %v624 = vrcp.pop %v591
  %v625 = vmul.f32 %v591, %v624
  %v626 = vsub.f32 1.0, %v625
  %v627 = vmul.f32 %v624, %v626
  %v628 = vadd.f32 %v624, %v627
  %vm629 = vweird.f32 %v591
  %vm630 = vweird.f32 %v624
  %vm631 = vmor %vm629, %vm630
  %v632 = vsel %vm631, %v624, %v628
  %v633 = vand.u32 2147483647, %v591
  %vm634 = vcmp.eq.f32.partialorder %v633, 8.507059e+37
  %v635 = vand.u32 %v591, 2147483648
  %v636 = vor.u32 1.1754944e-38, %v635
  %v637 = vsel %vm634, %v636, %v632
  %v638 = vmul.f32 1.0, %v637
  %v639 = vrcp.pop %v592
  %v640 = vmul.f32 %v592, %v639
  %v641 = vsub.f32 1.0, %v640
  %v642 = vmul.f32 %v639, %v641
  %v643 = vadd.f32 %v639, %v642
  %vm644 = vweird.f32 %v592
  %vm645 = vweird.f32 %v639
  %vm646 = vmor %vm644, %vm645
  %v647 = vsel %vm646, %v639, %v643
  %v648 = vand.u32 2147483647, %v592
  %vm649 = vcmp.eq.f32.partialorder %v648, 8.507059e+37
  %v650 = vand.u32 %v592, 2147483648
  %v651 = vor.u32 1.1754944e-38, %v650
  %v652 = vsel %vm649, %v651, %v647
  %v653 = vmul.f32 1.0, %v652
  %v654 = vrcp.pop %v593
  %v655 = vmul.f32 %v593, %v654
  %v656 = vsub.f32 1.0, %v655
  %v657 = vmul.f32 %v654, %v656
  %v658 = vadd.f32 %v654, %v657
  %vm659 = vweird.f32 %v593
  %vm660 = vweird.f32 %v654
  %vm661 = vmor %vm659, %vm660
  %v662 = vsel %vm661, %v654, %v658
  %v663 = vand.u32 2147483647, %v593
  %vm664 = vcmp.eq.f32.partialorder %v663, 8.507059e+37
  %v665 = vand.u32 %v593, 2147483648
  %v666 = vor.u32 1.1754944e-38, %v665
  %v667 = vsel %vm664, %v666, %v662
  %v668 = vmul.f32 1.0, %v667
  %v669 = vmul.f32 %v37, %v608
  %v670 = vmul.f32 %v38, %v623
  %v671 = vmul.f32 %v39, %v638
  %v672 = vmul.f32 %v40, %v653
  %v673 = vmul.f32 %v41, %v668
  %v674 = vadd.f32 %v546, 1.0
  %v675 = vadd.f32 %v551, 1.0
  %v676 = vadd.f32 %v556, 1.0
  %v677 = vadd.f32 %v561, 1.0
  %v678 = vadd.f32 %v566, 1.0
  %v679 = vxor.u32 %v674, 2147483648
  %v680 = vxor.u32 %v675, 2147483648
  %v681 = vxor.u32 %v676, 2147483648
  %v682 = vxor.u32 %v677, 2147483648
  %v683 = vxor.u32 %v678, 2147483648
  %v684 = vmul.f32 %v679, 1.442695
  %v685 = vpow.pop %v684
  %v686 = vmul.f32 %v680, 1.442695
  %v687 = vpow.pop %v686
  %v688 = vmul.f32 %v681, 1.442695
  %v689 = vpow.pop %v688
  %v690 = vmul.f32 %v682, 1.442695
  %v691 = vpow.pop %v690
  %v692 = vmul.f32 %v683, 1.442695
  %v693 = vpow.pop %v692
  %v694 = vadd.f32 %v685, 1.0
  %v695 = vadd.f32 %v687, 1.0
  %v696 = vadd.f32 %v689, 1.0
  %v697 = vadd.f32 %v691, 1.0
  %v698 = vadd.f32 %v693, 1.0
  %v699 = vrcp.pop %v694
  %v700 = vmul.f32 %v694, %v699
  %v701 = vsub.f32 1.0, %v700
  %v702 = vmul.f32 %v699, %v701
  %v703 = vadd.f32 %v699, %v702
  %vm704 = vweird.f32 %v694
  %vm705 = vweird.f32 %v699
  %vm706 = vmor %vm704, %vm705
  %v707 = vsel %vm706, %v699, %v703
  %v708 = vand.u32 2147483647, %v694
  %vm709 = vcmp.eq.f32.partialorder %v708, 8.507059e+37
  %v710 = vand.u32 %v694, 2147483648
  %v711 = vor.u32 1.1754944e-38, %v710
  %v712 = vsel %vm709, %v711, %v707
  %v713 = vmul.f32 1.0, %v712
  %v714 = vrcp.pop %v695
  %v715 = vmul.f32 %v695, %v714
  %v716 = vsub.f32 1.0, %v715
  %v717 = vmul.f32 %v714, %v716
  %v718 = vadd.f32 %v714, %v717
  %vm719 = vweird.f32 %v695
  %vm720 = vweird.f32 %v714
  %vm721 = vmor %vm719, %vm720
  %v722 = vsel %vm721, %v714, %v718
  %v723 = vand.u32 2147483647, %v695
  %vm724 = vcmp.eq.f32.partialorder %v723, 8.507059e+37
  %v725 = vand.u32 %v695, 2147483648
  %v726 = vor.u32 1.1754944e-38, %v725
  %v727 = vsel %vm724, %v726, %v722
  %v728 = vmul.f32 1.0, %v727
  %v729 = vrcp.pop %v696
  %v730 = vmul.f32 %v696, %v729
  %v731 = vsub.f32 1.0, %v730
  %v732 = vmul.f32 %v729, %v731
  %v733 = vadd.f32 %v729, %v732
  %vm734 = vweird.f32 %v696
  %vm735 = vweird.f32 %v729
  %vm736 = vmor %vm734, %vm735
  %v737 = vsel %vm736, %v729, %v733
  %v738 = vand.u32 2147483647, %v696
  %vm739 = vcmp.eq.f32.partialorder %v738, 8.507059e+37
  %v740 = vand.u32 %v696, 2147483648
  %v741 = vor.u32 1.1754944e-38, %v740
  %v742 = vsel %vm739, %v741, %v737
  %v743 = vmul.f32 1.0, %v742
  %v744 = vrcp.pop %v697
  %v745 = vmul.f32 %v697, %v744
  %v746 = vsub.f32 1.0, %v745
  %v747 = vmul.f32 %v744, %v746
  %v748 = vadd.f32 %v744, %v747
  %vm749 = vweird.f32 %v697
  %vm750 = vweird.f32 %v744
  %vm751 = vmor %vm749, %vm750
  %v752 = vsel %vm751, %v744, %v748
  %v753 = vand.u32 2147483647, %v697
  %vm754 = vcmp.eq.f32.partialorder %v753, 8.507059e+37
  %v755 = vand.u32 %v697, 2147483648
  %v756 = vor.u32 1.1754944e-38, %v755
  %v757 = vsel %vm754, %v756, %v752
  %v758 = vmul.f32 1.0, %v757
  %v759 = vrcp.pop %v698
  %v760 = vmul.f32 %v698, %v759
  %v761 = vsub.f32 1.0, %v760
  %v762 = vmul.f32 %v759, %v761
  %v763 = vadd.f32 %v759, %v762
  %vm764 = vweird.f32 %v698
  %vm765 = vweird.f32 %v759
  %vm766 = vmor %vm764, %vm765
  %v767 = vsel %vm766, %v759, %v763
  %v768 = vand.u32 2147483647, %v698
  %vm769 = vcmp.eq.f32.partialorder %v768, 8.507059e+37
  %v770 = vand.u32 %v698, 2147483648
  %v771 = vor.u32 1.1754944e-38, %v770
  %v772 = vsel %vm769, %v771, %v767
  %v773 = vmul.f32 1.0, %v772
  %v774 = vmul.f32 %v47, %v713
  %v775 = vmul.f32 %v48, %v728
  %v776 = vmul.f32 %v49, %v743
  %v777 = vmul.f32 %v50, %v758
  %v778 = vmul.f32 %v51, %v773
  %v779 = vadd.f32 %v669, %v774
  %v780 = vadd.f32 %v670, %v775
  %v781 = vadd.f32 %v671, %v776
  %v782 = vadd.f32 %v672, %v777
  %v783 = vadd.f32 %v673, %v778
  %v784 = vtanh.pop %v547
  %v785 = vtanh.pop %v552
  %v786 = vtanh.pop %v557
  %v787 = vtanh.pop %v562
  %v788 = vtanh.pop %v567
  %v789 = vxor.u32 %v544, 2147483648
  %v790 = vxor.u32 %v549, 2147483648
  %v791 = vxor.u32 %v554, 2147483648
  %v792 = vxor.u32 %v559, 2147483648
  %v793 = vxor.u32 %v564, 2147483648
  %v794 = vmul.f32 %v789, 1.442695
  %v795 = vpow.pop %v794
  %v796 = vmul.f32 %v790, 1.442695
  %v797 = vpow.pop %v796
  %v798 = vmul.f32 %v791, 1.442695
  %v799 = vpow.pop %v798
  %v800 = vmul.f32 %v792, 1.442695
  %v801 = vpow.pop %v800
  %v802 = vmul.f32 %v793, 1.442695
  %v803 = vpow.pop %v802
  %v804 = vadd.f32 %v795, 1.0
  %v805 = vadd.f32 %v797, 1.0
  %v806 = vadd.f32 %v799, 1.0
  %v807 = vadd.f32 %v801, 1.0
  %v808 = vadd.f32 %v803, 1.0
  %v809 = vrcp.pop %v804
  %v810 = vmul.f32 %v804, %v809
  %v811 = vsub.f32 1.0, %v810
  %v812 = vmul.f32 %v809, %v811
  %v813 = vadd.f32 %v809, %v812
  %vm814 = vweird.f32 %v804
  %vm815 = vweird.f32 %v809
  %vm816 = vmor %vm814, %vm815
  %v817 = vsel %vm816, %v809, %v813
  %v818 = vand.u32 2147483647, %v804
  %vm819 = vcmp.eq.f32.partialorder %v818, 8.507059e+37
  %v820 = vand.u32 %v804, 2147483648
  %v821 = vor.u32 1.1754944e-38, %v820
  %v822 = vsel %vm819, %v821, %v817
  %v823 = vmul.f32 1.0, %v822
  %v824 = vrcp.pop %v805
  %v825 = vmul.f32 %v805, %v824
  %v826 = vsub.f32 1.0, %v825
  %v827 = vmul.f32 %v824, %v826
  %v828 = vadd.f32 %v824, %v827
  %vm829 = vweird.f32 %v805
  %vm830 = vweird.f32 %v824
  %vm831 = vmor %vm829, %vm830
  %v832 = vsel %vm831, %v824, %v828
  %v833 = vand.u32 2147483647, %v805
  %vm834 = vcmp.eq.f32.partialorder %v833, 8.507059e+37
  %v835 = vand.u32 %v805, 2147483648
  %v836 = vor.u32 1.1754944e-38, %v835
  %v837 = vsel %vm834, %v836, %v832
  %v838 = vmul.f32 1.0, %v837
  %v839 = vrcp.pop %v806
  %v840 = vmul.f32 %v806, %v839
  %v841 = vsub.f32 1.0, %v840
  %v842 = vmul.f32 %v839, %v841
  %v843 = vadd.f32 %v839, %v842
  %vm844 = vweird.f32 %v806
  %vm845 = vweird.f32 %v839
  %vm846 = vmor %vm844, %vm845
  %v847 = vsel %vm846, %v839, %v843
  %v848 = vand.u32 2147483647, %v806
  %vm849 = vcmp.eq.f32.partialorder %v848, 8.507059e+37
  %v850 = vand.u32 %v806, 2147483648
  %v851 = vor.u32 1.1754944e-38, %v850
  %v852 = vsel %vm849, %v851, %v847
  %v853 = vmul.f32 1.0, %v852
  %v854 = vrcp.pop %v807
  %v855 = vmul.f32 %v807, %v854
  %v856 = vsub.f32 1.0, %v855
  %v857 = vmul.f32 %v854, %v856
  %v858 = vadd.f32 %v854, %v857
  %vm859 = vweird.f32 %v807
  %vm860 = vweird.f32 %v854
  %vm861 = vmor %vm859, %vm860
  %v862 = vsel %vm861, %v854, %v858
  %v863 = vand.u32 2147483647, %v807
  %vm864 = vcmp.eq.f32.partialorder %v863, 8.507059e+37
  %v865 = vand.u32 %v807, 2147483648
  %v866 = vor.u32 1.1754944e-38, %v865
  %v867 = vsel %vm864, %v866, %v862
  %v868 = vmul.f32 1.0, %v867
  %v869 = vrcp.pop %v808
  %v870 = vmul.f32 %v808, %v869
  %v871 = vsub.f32 1.0, %v870
  %v872 = vmul.f32 %v869, %v871
  %v873 = vadd.f32 %v869, %v872
  %vm874 = vweird.f32 %v808
  %vm875 = vweird.f32 %v869
  %vm876 = vmor %vm874, %vm875
  %v877 = vsel %vm876, %v869, %v873
  %v878 = vand.u32 2147483647, %v808
  %vm879 = vcmp.eq.f32.partialorder %v878, 8.507059e+37
  %v880 = vand.u32 %v808, 2147483648
  %v881 = vor.u32 1.1754944e-38, %v880
  %v882 = vsel %vm879, %v881, %v877
  %v883 = vmul.f32 1.0, %v882
  %v884 = vmul.f32 %v784, %v823
  %v885 = vmul.f32 %v785, %v838
  %v886 = vmul.f32 %v786, %v853
  %v887 = vmul.f32 %v787, %v868
  %v888 = vmul.f32 %v788, %v883
  %v889 = vadd.f32 %v779, %v884
  %v890 = vadd.f32 %v780, %v885
  %v891 = vadd.f32 %v781, %v886
  %v892 = vadd.f32 %v782, %v887
  %v893 = vadd.f32 %v783, %v888
  %v894 = vxor.u32 %v548, 2147483648
  %v895 = vxor.u32 %v553, 2147483648
  %v896 = vxor.u32 %v558, 2147483648
  %v897 = vxor.u32 %v563, 2147483648
  %v898 = vxor.u32 %v568, 2147483648
  %v899 = vmul.f32 %v894, 1.442695
  %v900 = vpow.pop %v899
  %v901 = vmul.f32 %v895, 1.442695
  %v902 = vpow.pop %v901
  %v903 = vmul.f32 %v896, 1.442695
  %v904 = vpow.pop %v903
  %v905 = vmul.f32 %v897, 1.442695
  %v906 = vpow.pop %v905
  %v907 = vmul.f32 %v898, 1.442695
  %v908 = vpow.pop %v907
  %v909 = vadd.f32 %v900, 1.0
  %v910 = vadd.f32 %v902, 1.0
  %v911 = vadd.f32 %v904, 1.0
  %v912 = vadd.f32 %v906, 1.0
  %v913 = vadd.f32 %v908, 1.0
  %v914 = vrcp.pop %v909
  %v915 = vmul.f32 %v909, %v914
  %v916 = vsub.f32 1.0, %v915
  %v917 = vmul.f32 %v914, %v916
  %v918 = vadd.f32 %v914, %v917
  %vm919 = vweird.f32 %v909
  %vm920 = vweird.f32 %v914
  %vm921 = vmor %vm919, %vm920
  %v922 = vsel %vm921, %v914, %v918
  %v923 = vand.u32 2147483647, %v909
  %vm924 = vcmp.eq.f32.partialorder %v923, 8.507059e+37
  %v925 = vand.u32 %v909, 2147483648
  %v926 = vor.u32 1.1754944e-38, %v925
  %v927 = vsel %vm924, %v926, %v922
  %v928 = vmul.f32 1.0, %v927
  %v929 = vrcp.pop %v910
  %v930 = vmul.f32 %v910, %v929
  %v931 = vsub.f32 1.0, %v930
  %v932 = vmul.f32 %v929, %v931
  %v933 = vadd.f32 %v929, %v932
  %vm934 = vweird.f32 %v910
  %vm935 = vweird.f32 %v929
  %vm936 = vmor %vm934, %vm935
  %v937 = vsel %vm936, %v929, %v933
  %v938 = vand.u32 2147483647, %v910
  %vm939 = vcmp.eq.f32.partialorder %v938, 8.507059e+37
  %v940 = vand.u32 %v910, 2147483648
  %v941 = vor.u32 1.1754944e-38, %v940
  %v942 = vsel %vm939, %v941, %v937
  %v943 = vmul.f32 1.0, %v942
  %v944 = vrcp.pop %v911
  %v945 = vmul.f32 %v911, %v944
  %v946 = vsub.f32 1.0, %v945
  %v947 = vmul.f32 %v944, %v946
  %v948 = vadd.f32 %v944, %v947
  %vm949 = vweird.f32 %v911
  %vm950 = vweird.f32 %v944
  %vm951 = vmor %vm949, %vm950
  %v952 = vsel %vm951, %v944, %v948
  %v953 = vand.u32 2147483647, %v911
  %vm954 = vcmp.eq.f32.partialorder %v953, 8.507059e+37
  %v955 = vand.u32 %v911, 2147483648
  %v956 = vor.u32 1.1754944e-38, %v955
  %v957 = vsel %vm954, %v956, %v952
  %v958 = vmul.f32 1.0, %v957
  %v959 = vrcp.pop %v912
  %v960 = vmul.f32 %v912, %v959
  %v961 = vsub.f32 1.0, %v960
  %v962 = vmul.f32 %v959, %v961
  %v963 = vadd.f32 %v959, %v962
  %vm964 = vweird.f32 %v912
  %vm965 = vweird.f32 %v959
  %vm966 = vmor %vm964, %vm965
  %v967 = vsel %vm966, %v959, %v963
  %v968 = vand.u32 2147483647, %v912
  %vm969 = vcmp.eq.f32.partialorder %v968, 8.507059e+37
  %v970 = vand.u32 %v912, 2147483648
  %v971 = vor.u32 1.1754944e-38, %v970
  %v972 = vsel %vm969, %v971, %v967
  %v973 = vmul.f32 1.0, %v972
  %v974 = vrcp.pop %v913
  %v975 = vmul.f32 %v913, %v974
  %v976 = vsub.f32 1.0, %v975
  %v977 = vmul.f32 %v974, %v976
  %v978 = vadd.f32 %v974, %v977
  %vm979 = vweird.f32 %v913
  %vm980 = vweird.f32 %v974
  %vm981 = vmor %vm979, %vm980
  %v982 = vsel %vm981, %v974, %v978
  %v983 = vand.u32 2147483647, %v913
  %vm984 = vcmp.eq.f32.partialorder %v983, 8.507059e+37
  %v985 = vand.u32 %v913, 2147483648
  %v986 = vor.u32 1.1754944e-38, %v985
  %v987 = vsel %vm984, %v986, %v982
  %v988 = vmul.f32 1.0, %v987
  %v989 = vtanh.pop %v889
  %v990 = vtanh.pop %v890
  %v991 = vtanh.pop %v891
  %v992 = vtanh.pop %v892
  %v993 = vtanh.pop %v893
  %v994 = vmul.f32 %v928, %v989
  %v995 = vmul.f32 %v943, %v990
  %v996 = vmul.f32 %v958, %v991
  %v997 = vmul.f32 %v973, %v992
  %v998 = vmul.f32 %v988, %v993
  %999 = vst [vmem:[%s8] sm:$0xff] %v994
  %1000 = vst [vmem:[%s8 + $0x8] sm:$0xff] %v995
  %1001 = vst [vmem:[%s8 + $0x10] sm:$0xff] %v996
  %1002 = vst [vmem:[%s8 + $0x18] sm:$0xff] %v997
  %1003 = vst [vmem:[%s8 + $0x20] sm:$0xff] %v998
  %1004 = vst [vmem:[%s9] sm:$0xff] %v889
  %1005 = vst [vmem:[%s9 + $0x8] sm:$0xff] %v890
  %1006 = vst [vmem:[%s9 + $0x10] sm:$0xff] %v891
  %1007 = vst [vmem:[%s9 + $0x18] sm:$0xff] %v892
  %1008 = vst [vmem:[%s9 + $0x20] sm:$0xff] %v893
  %v1009 = vld [vmem:[%s7] sm:$0xff]
  %v1010 = vld [vmem:[%s7 + $0x8] sm:$0xff]
  %v1011 = vld [vmem:[%s7 + $0x10] sm:$0xff]
  %v1012 = vld [vmem:[%s7 + $0x18] sm:$0xff]
  %v1013 = vld [vmem:[%s7 + $0x20] sm:$0xff]
  %v1014 = vld [vmem:[%s7 + $0x28] sm:$0xff]
  %v1015 = vld [vmem:[%s7 + $0x30] sm:$0xff]
  %v1016 = vld [vmem:[%s7 + $0x38] sm:$0xff]
  %v1017 = vld [vmem:[%s7 + $0x40] sm:$0xff]
  %v1018 = vld [vmem:[%s7 + $0x48] sm:$0xff]
  %v1019 = vld [vmem:[%s7 + $0x50] sm:$0xff]
  %v1020 = vld [vmem:[%s7 + $0x58] sm:$0xff]
  %v1021 = vld [vmem:[%s7 + $0x60] sm:$0xff]
  %v1022 = vld [vmem:[%s7 + $0x68] sm:$0xff]
  %v1023 = vld [vmem:[%s7 + $0x70] sm:$0xff]
  %v1024 = vld [vmem:[%s7 + $0x78] sm:$0xff]
  %1025 = vmatpush.msra.mxu0 %v1024
  %1026 = vmatpush.msra.mxu0 %v1023
  %1027 = vmatpush.msra.mxu0 %v1022
  %1028 = vmatpush.msra.mxu0 %v1021
  %1029 = vmatpush.msra.mxu0 %v1020
  %1030 = vmatpush.msra.mxu0 %v1019
  %1031 = vmatpush.msra.mxu0 %v1018
  %1032 = vmatpush.msra.mxu0 %v1017
  %1033 = vmatpush.msra.mxu0 %v1016
  %1034 = vmatpush.msra.mxu0 %v1015
  %1035 = vmatpush.msra.mxu0 %v1014
  %1036 = vmatpush.msra.mxu0 %v1013
  %1037 = vmatpush.msra.mxu0 %v1012
  %1038 = vmatpush.msra.mxu0 %v1011
  %1039 = vmatpush.msra.mxu0 %v1010
  %1040 = vmatpush.msra.mxu0 %v1009
  %1041 = vmatmul.f32.gmra.mxu0 %v994
  %v1042 = vpop.f32.mrf.mxu0
  %v1043 = vadd.f32 0.0, %v1042
  %1044 = vmatmul.f32.gmra.mxu0 %v995
  %v1045 = vpop.f32.mrf.mxu0
  %v1046 = vadd.f32 0.0, %v1045
  %1047 = vmatmul.f32.gmra.mxu0 %v996
  %v1048 = vpop.f32.mrf.mxu0
  %v1049 = vadd.f32 0.0, %v1048
  %1050 = vmatmul.f32.gmra.mxu0 %v997
  %v1051 = vpop.f32.mrf.mxu0
  %v1052 = vadd.f32 0.0, %v1051
  %1053 = vmatmul.f32.gmra.mxu0 %v998
  %v1054 = vpop.f32.mrf.mxu0
  %v1055 = vadd.f32 0.0, %v1054
  %1056 = vdwg.mxu0
  %1057 = vst [vmem:[%s10] sm:$0xff] %v1043
  %1058 = vst [vmem:[%s10 + $0x8] sm:$0xff] %v1046
  %1059 = vst [vmem:[%s10 + $0x10] sm:$0xff] %v1049
  %1060 = vst [vmem:[%s10 + $0x18] sm:$0xff] %v1052
  %1061 = vst [vmem:[%s10 + $0x20] sm:$0xff] %v1055
  // Predicated region
  $region34: #{_chart_parser_forward_impl.7} parent=0 // pred_check
    _
  $region35: #{_chart_parser_forward_impl.7} parent=0 // pred_check_branch
    %1063 = sbr.rel (0) target = $region37
  $region36: #{_chart_parser_forward_impl.7} parent=0 // pred_region
    _
  $region37: #{_chart_parser_forward_impl.7} parent=0 // pred_fallthru
    _
  // Predicated region
  $region38: #{_chart_parser_forward_impl.7} parent=0 // pred_check
    _
  $region39: #{_chart_parser_forward_impl.7} parent=0 // pred_check_branch
    %1065 = sbr.rel (0) target = $region41
  $region40: #{_chart_parser_forward_impl.7} parent=0 // pred_region
    _
  $region41: #{_chart_parser_forward_impl.7} parent=0 // pred_fallthru
    _
  // Predicated region
  $region42: #{_chart_parser_forward_impl.7} parent=0 // pred_check
    _
  $region43: #{_chart_parser_forward_impl.7} parent=0 // pred_check_branch
    %1067 = sbr.rel (0) target = $region45
  $region44: #{_chart_parser_forward_impl.7} parent=0 // pred_region
    _
  $region45: #{_chart_parser_forward_impl.7} parent=0 // pred_fallthru
    _
  // Predicated region
  $region46: #{_chart_parser_forward_impl.7} parent=0 // pred_check
    _
  $region47: #{_chart_parser_forward_impl.7} parent=0 // pred_check_branch
    %1069 = sbr.rel (0) target = $region49
  $region48: #{_chart_parser_forward_impl.7} parent=0 // pred_region
    _
  $region49: #{_chart_parser_forward_impl.7} parent=0 // pred_fallthru
    _
  // Predicated region
  $region50: #{_chart_parser_forward_impl.7} parent=0 // pred_check
    _
  $region51: #{_chart_parser_forward_impl.7} parent=0 // pred_check_branch
    %1071 = sbr.rel (0) target = $region53
  $region52: #{_chart_parser_forward_impl.7} parent=0 // pred_region
    _
  $region53: #{_chart_parser_forward_impl.7} parent=0 // pred_fallthru
    _
  // Predicated region
  $region54: #{_chart_parser_forward_impl.7} parent=0 // pred_check
    _
  $region55: #{_chart_parser_forward_impl.7} parent=0 // pred_check_branch
    %1073 = sbr.rel (0) target = $region57
  $region56: #{_chart_parser_forward_impl.7} parent=0 // pred_region
    _
  $region57: #{_chart_parser_forward_impl.7} parent=0 // pred_fallthru
    _

// kernel: _chart_parser_forward_impl.8
$region0: #{_chart_parser_forward_impl.8}
  #allocation0 [shape = 'u32[]', space=smem, size = 0x4, offset = 0x4, fixed_abs, tag = 'smem constant byte address 0x4 - core index']
  #allocation1 [shape = 'u32[72,128]{1,0:T(1,128)}', space=vmem, size = 0x9000, scoped, tag = 'internal scratch']
  %s0 = inlined_call_operand.vmem [shape: f32[64,128], index: 0, kind: input, shape index: {}]
  %s1 = inlined_call_operand.vmem [shape: f32[64,128], index: 1, kind: input, shape index: {}]
  %s2 = inlined_call_operand.vmem [shape: f32[64,128], index: 2, kind: input, shape index: {}]
  %s3 = inlined_call_operand.vmem [shape: f32[64,128], index: 3, kind: input, shape index: {}]
  %s4 = inlined_call_operand.vmem [shape: f32[128,640], index: 4, kind: input, shape index: {}]
  %s5 = inlined_call_operand.vmem [shape: f32[128,640], index: 5, kind: input, shape index: {}]
  %s6 = inlined_call_operand.vmem [shape: f32[1,640], index: 6, kind: input, shape index: {}]
  %s7 = inlined_call_operand.vmem [shape: f32[128,128], index: 7, kind: input, shape index: {}]
  %s8 = inlined_call_operand.vmem [shape: f32[64,128], index: 8, kind: output, shape index: {0}]
  %s9 = inlined_call_operand.vmem [shape: f32[64,128], index: 9, kind: output, shape index: {1}]
  %s10 = inlined_call_operand.vmem [shape: f32[64,128], index: 10, kind: output, shape index: {2}]
  %11 = xla_tuple %s8, %s9, %s10
  %s12 = sld [smem:[#allocation0]]
  $region58: #{_chart_parser_forward_impl.8} parent=0
    _
  %s14 = ssub.s32 1, %s12
  %s15 = scalar_select 0, %s14, %s12
  // Predicated region
  $region2: #{_chart_parser_forward_impl.8} parent=0 // pred_check
    _
  $region3: #{_chart_parser_forward_impl.8} parent=0 // pred_check_branch
    %17 = sbr.rel (0) target = $region5
  $region4: #{_chart_parser_forward_impl.8} parent=0 // pred_region
    _
  $region5: #{_chart_parser_forward_impl.8} parent=0 // pred_fallthru
    _
  // Predicated region
  $region6: #{_chart_parser_forward_impl.8} parent=0 // pred_check
    _
  $region7: #{_chart_parser_forward_impl.8} parent=0 // pred_check_branch
    %19 = sbr.rel (0) target = $region9
  $region8: #{_chart_parser_forward_impl.8} parent=0 // pred_region
    _
  $region9: #{_chart_parser_forward_impl.8} parent=0 // pred_fallthru
    _
  // Predicated region
  $region10: #{_chart_parser_forward_impl.8} parent=0 // pred_check
    _
  $region11: #{_chart_parser_forward_impl.8} parent=0 // pred_check_branch
    %21 = sbr.rel (0) target = $region13
  $region12: #{_chart_parser_forward_impl.8} parent=0 // pred_region
    _
  $region13: #{_chart_parser_forward_impl.8} parent=0 // pred_fallthru
    _
  // Predicated region
  $region14: #{_chart_parser_forward_impl.8} parent=0 // pred_check
    _
  $region15: #{_chart_parser_forward_impl.8} parent=0 // pred_check_branch
    %23 = sbr.rel (0) target = $region17
  $region16: #{_chart_parser_forward_impl.8} parent=0 // pred_region
    _
  $region17: #{_chart_parser_forward_impl.8} parent=0 // pred_fallthru
    _
  // Predicated region
  $region18: #{_chart_parser_forward_impl.8} parent=0 // pred_check
    _
  $region19: #{_chart_parser_forward_impl.8} parent=0 // pred_check_branch
    %25 = sbr.rel (0) target = $region21
  $region20: #{_chart_parser_forward_impl.8} parent=0 // pred_region
    _
  $region21: #{_chart_parser_forward_impl.8} parent=0 // pred_fallthru
    _
  // Predicated region
  $region22: #{_chart_parser_forward_impl.8} parent=0 // pred_check
    _
  $region23: #{_chart_parser_forward_impl.8} parent=0 // pred_check_branch
    %27 = sbr.rel (0) target = $region25
  $region24: #{_chart_parser_forward_impl.8} parent=0 // pred_region
    _
  $region25: #{_chart_parser_forward_impl.8} parent=0 // pred_fallthru
    _
  // Predicated region
  $region26: #{_chart_parser_forward_impl.8} parent=0 // pred_check
    _
  $region27: #{_chart_parser_forward_impl.8} parent=0 // pred_check_branch
    %29 = sbr.rel (0) target = $region29
  $region28: #{_chart_parser_forward_impl.8} parent=0 // pred_region
    _
  $region29: #{_chart_parser_forward_impl.8} parent=0 // pred_fallthru
    _
  // Predicated region
  $region30: #{_chart_parser_forward_impl.8} parent=0 // pred_check
    _
  $region31: #{_chart_parser_forward_impl.8} parent=0 // pred_check_branch
    %31 = sbr.rel (0) target = $region33
  $region32: #{_chart_parser_forward_impl.8} parent=0 // pred_region
    _
  $region33: #{_chart_parser_forward_impl.8} parent=0 // pred_fallthru
    _
  %v32 = vld [vmem:[%s0] sm:$0xff]
  %v33 = vld [vmem:[%s0 + $0x8] sm:$0xff]
  %v34 = vld [vmem:[%s0 + $0x10] sm:$0xff]
  %v35 = vld [vmem:[%s0 + $0x18] sm:$0xff]
  %v36 = vld [vmem:[%s0 + $0x20] sm:$0xff]
  %v37 = vld [vmem:[%s0 + $0x28] sm:$0xff]
  %v38 = vld [vmem:[%s0 + $0x30] sm:$0xff]
  %v39 = vld [vmem:[%s0 + $0x38] sm:$0xff]
  %v40 = vld [vmem:[%s1] sm:$0xff]
  %v41 = vld [vmem:[%s1 + $0x8] sm:$0xff]
  %v42 = vld [vmem:[%s1 + $0x10] sm:$0xff]
  %v43 = vld [vmem:[%s1 + $0x18] sm:$0xff]
  %v44 = vld [vmem:[%s1 + $0x20] sm:$0xff]
  %v45 = vld [vmem:[%s1 + $0x28] sm:$0xff]
  %v46 = vld [vmem:[%s1 + $0x30] sm:$0xff]
  %v47 = vld [vmem:[%s1 + $0x38] sm:$0xff]
  %v48 = vld [vmem:[%s2] sm:$0xff]
  %v49 = vld [vmem:[%s2 + $0x8] sm:$0xff]
  %v50 = vld [vmem:[%s2 + $0x10] sm:$0xff]
  %v51 = vld [vmem:[%s2 + $0x18] sm:$0xff]
  %v52 = vld [vmem:[%s2 + $0x20] sm:$0xff]
  %v53 = vld [vmem:[%s2 + $0x28] sm:$0xff]
  %v54 = vld [vmem:[%s2 + $0x30] sm:$0xff]
  %v55 = vld [vmem:[%s2 + $0x38] sm:$0xff]
  %v56 = vld [vmem:[%s3] sm:$0xff]
  %v57 = vld [vmem:[%s3 + $0x8] sm:$0xff]
  %v58 = vld [vmem:[%s3 + $0x10] sm:$0xff]
  %v59 = vld [vmem:[%s3 + $0x18] sm:$0xff]
  %v60 = vld [vmem:[%s3 + $0x20] sm:$0xff]
  %v61 = vld [vmem:[%s3 + $0x28] sm:$0xff]
  %v62 = vld [vmem:[%s3 + $0x30] sm:$0xff]
  %v63 = vld [vmem:[%s3 + $0x38] sm:$0xff]
  %v64 = vld [vmem:[%s4] sm:$0xff]
  %v65 = vld [vmem:[%s4 + $0x8] sm:$0xff]
  %v66 = vld [vmem:[%s4 + $0x10] sm:$0xff]
  %v67 = vld [vmem:[%s4 + $0x18] sm:$0xff]
  %v68 = vld [vmem:[%s4 + $0x20] sm:$0xff]
  %v69 = vld [vmem:[%s4 + $0x28] sm:$0xff]
  %v70 = vld [vmem:[%s4 + $0x30] sm:$0xff]
  %v71 = vld [vmem:[%s4 + $0x38] sm:$0xff]
  %v72 = vld [vmem:[%s4 + $0x40] sm:$0xff]
  %v73 = vld [vmem:[%s4 + $0x48] sm:$0xff]
  %v74 = vld [vmem:[%s4 + $0x50] sm:$0xff]
  %v75 = vld [vmem:[%s4 + $0x58] sm:$0xff]
  %v76 = vld [vmem:[%s4 + $0x60] sm:$0xff]
  %v77 = vld [vmem:[%s4 + $0x68] sm:$0xff]
  %v78 = vld [vmem:[%s4 + $0x70] sm:$0xff]
  %v79 = vld [vmem:[%s4 + $0x78] sm:$0xff]
  %v80 = vld [vmem:[%s4 + $0x80] sm:$0xff]
  %v81 = vld [vmem:[%s4 + $0x88] sm:$0xff]
  %v82 = vld [vmem:[%s4 + $0x90] sm:$0xff]
  %v83 = vld [vmem:[%s4 + $0x98] sm:$0xff]
  %v84 = vld [vmem:[%s4 + $0xa0] sm:$0xff]
  %v85 = vld [vmem:[%s4 + $0xa8] sm:$0xff]
  %v86 = vld [vmem:[%s4 + $0xb0] sm:$0xff]
  %v87 = vld [vmem:[%s4 + $0xb8] sm:$0xff]
  %v88 = vld [vmem:[%s4 + $0xc0] sm:$0xff]
  %v89 = vld [vmem:[%s4 + $0xc8] sm:$0xff]
  %v90 = vld [vmem:[%s4 + $0xd0] sm:$0xff]
  %v91 = vld [vmem:[%s4 + $0xd8] sm:$0xff]
  %v92 = vld [vmem:[%s4 + $0xe0] sm:$0xff]
  %v93 = vld [vmem:[%s4 + $0xe8] sm:$0xff]
  %v94 = vld [vmem:[%s4 + $0xf0] sm:$0xff]
  %v95 = vld [vmem:[%s4 + $0xf8] sm:$0xff]
  %v96 = vld [vmem:[%s4 + $0x100] sm:$0xff]
  %v97 = vld [vmem:[%s4 + $0x108] sm:$0xff]
  %v98 = vld [vmem:[%s4 + $0x110] sm:$0xff]
  %v99 = vld [vmem:[%s4 + $0x118] sm:$0xff]
  %v100 = vld [vmem:[%s4 + $0x120] sm:$0xff]
  %v101 = vld [vmem:[%s4 + $0x128] sm:$0xff]
  %v102 = vld [vmem:[%s4 + $0x130] sm:$0xff]
  %v103 = vld [vmem:[%s4 + $0x138] sm:$0xff]
  %v104 = vld [vmem:[%s4 + $0x140] sm:$0xff]
  %v105 = vld [vmem:[%s4 + $0x148] sm:$0xff]
  %v106 = vld [vmem:[%s4 + $0x150] sm:$0xff]
  %v107 = vld [vmem:[%s4 + $0x158] sm:$0xff]
  %v108 = vld [vmem:[%s4 + $0x160] sm:$0xff]
  %v109 = vld [vmem:[%s4 + $0x168] sm:$0xff]
  %v110 = vld [vmem:[%s4 + $0x170] sm:$0xff]
  %v111 = vld [vmem:[%s4 + $0x178] sm:$0xff]
  %v112 = vld [vmem:[%s4 + $0x180] sm:$0xff]
  %v113 = vld [vmem:[%s4 + $0x188] sm:$0xff]
  %v114 = vld [vmem:[%s4 + $0x190] sm:$0xff]
  %v115 = vld [vmem:[%s4 + $0x198] sm:$0xff]
  %v116 = vld [vmem:[%s4 + $0x1a0] sm:$0xff]
  %v117 = vld [vmem:[%s4 + $0x1a8] sm:$0xff]
  %v118 = vld [vmem:[%s4 + $0x1b0] sm:$0xff]
  %v119 = vld [vmem:[%s4 + $0x1b8] sm:$0xff]
  %v120 = vld [vmem:[%s4 + $0x1c0] sm:$0xff]
  %v121 = vld [vmem:[%s4 + $0x1c8] sm:$0xff]
  %v122 = vld [vmem:[%s4 + $0x1d0] sm:$0xff]
  %v123 = vld [vmem:[%s4 + $0x1d8] sm:$0xff]
  %v124 = vld [vmem:[%s4 + $0x1e0] sm:$0xff]
  %v125 = vld [vmem:[%s4 + $0x1e8] sm:$0xff]
  %v126 = vld [vmem:[%s4 + $0x1f0] sm:$0xff]
  %v127 = vld [vmem:[%s4 + $0x1f8] sm:$0xff]
  %v128 = vld [vmem:[%s4 + $0x200] sm:$0xff]
  %v129 = vld [vmem:[%s4 + $0x208] sm:$0xff]
  %v130 = vld [vmem:[%s4 + $0x210] sm:$0xff]
  %v131 = vld [vmem:[%s4 + $0x218] sm:$0xff]
  %v132 = vld [vmem:[%s4 + $0x220] sm:$0xff]
  %v133 = vld [vmem:[%s4 + $0x228] sm:$0xff]
  %v134 = vld [vmem:[%s4 + $0x230] sm:$0xff]
  %v135 = vld [vmem:[%s4 + $0x238] sm:$0xff]
  %v136 = vld [vmem:[%s4 + $0x240] sm:$0xff]
  %v137 = vld [vmem:[%s4 + $0x248] sm:$0xff]
  %v138 = vld [vmem:[%s4 + $0x250] sm:$0xff]
  %v139 = vld [vmem:[%s4 + $0x258] sm:$0xff]
  %v140 = vld [vmem:[%s4 + $0x260] sm:$0xff]
  %v141 = vld [vmem:[%s4 + $0x268] sm:$0xff]
  %v142 = vld [vmem:[%s4 + $0x270] sm:$0xff]
  %v143 = vld [vmem:[%s4 + $0x278] sm:$0xff]
  %v144 = vld [vmem:[%s5] sm:$0xff]
  %v145 = vld [vmem:[%s5 + $0x8] sm:$0xff]
  %v146 = vld [vmem:[%s5 + $0x10] sm:$0xff]
  %v147 = vld [vmem:[%s5 + $0x18] sm:$0xff]
  %v148 = vld [vmem:[%s5 + $0x20] sm:$0xff]
  %v149 = vld [vmem:[%s5 + $0x28] sm:$0xff]
  %v150 = vld [vmem:[%s5 + $0x30] sm:$0xff]
  %v151 = vld [vmem:[%s5 + $0x38] sm:$0xff]
  %v152 = vld [vmem:[%s5 + $0x40] sm:$0xff]
  %v153 = vld [vmem:[%s5 + $0x48] sm:$0xff]
  %v154 = vld [vmem:[%s5 + $0x50] sm:$0xff]
  %v155 = vld [vmem:[%s5 + $0x58] sm:$0xff]
  %v156 = vld [vmem:[%s5 + $0x60] sm:$0xff]
  %v157 = vld [vmem:[%s5 + $0x68] sm:$0xff]
  %v158 = vld [vmem:[%s5 + $0x70] sm:$0xff]
  %v159 = vld [vmem:[%s5 + $0x78] sm:$0xff]
  %v160 = vld [vmem:[%s5 + $0x80] sm:$0xff]
  %v161 = vld [vmem:[%s5 + $0x88] sm:$0xff]
  %v162 = vld [vmem:[%s5 + $0x90] sm:$0xff]
  %v163 = vld [vmem:[%s5 + $0x98] sm:$0xff]
  %v164 = vld [vmem:[%s5 + $0xa0] sm:$0xff]
  %v165 = vld [vmem:[%s5 + $0xa8] sm:$0xff]
  %v166 = vld [vmem:[%s5 + $0xb0] sm:$0xff]
  %v167 = vld [vmem:[%s5 + $0xb8] sm:$0xff]
  %v168 = vld [vmem:[%s5 + $0xc0] sm:$0xff]
  %v169 = vld [vmem:[%s5 + $0xc8] sm:$0xff]
  %v170 = vld [vmem:[%s5 + $0xd0] sm:$0xff]
  %v171 = vld [vmem:[%s5 + $0xd8] sm:$0xff]
  %v172 = vld [vmem:[%s5 + $0xe0] sm:$0xff]
  %v173 = vld [vmem:[%s5 + $0xe8] sm:$0xff]
  %v174 = vld [vmem:[%s5 + $0xf0] sm:$0xff]
  %v175 = vld [vmem:[%s5 + $0xf8] sm:$0xff]
  %v176 = vld [vmem:[%s5 + $0x100] sm:$0xff]
  %v177 = vld [vmem:[%s5 + $0x108] sm:$0xff]
  %v178 = vld [vmem:[%s5 + $0x110] sm:$0xff]
  %v179 = vld [vmem:[%s5 + $0x118] sm:$0xff]
  %v180 = vld [vmem:[%s5 + $0x120] sm:$0xff]
  %v181 = vld [vmem:[%s5 + $0x128] sm:$0xff]
  %v182 = vld [vmem:[%s5 + $0x130] sm:$0xff]
  %v183 = vld [vmem:[%s5 + $0x138] sm:$0xff]
  %v184 = vld [vmem:[%s5 + $0x140] sm:$0xff]
  %v185 = vld [vmem:[%s5 + $0x148] sm:$0xff]
  %v186 = vld [vmem:[%s5 + $0x150] sm:$0xff]
  %v187 = vld [vmem:[%s5 + $0x158] sm:$0xff]
  %v188 = vld [vmem:[%s5 + $0x160] sm:$0xff]
  %v189 = vld [vmem:[%s5 + $0x168] sm:$0xff]
  %v190 = vld [vmem:[%s5 + $0x170] sm:$0xff]
  %v191 = vld [vmem:[%s5 + $0x178] sm:$0xff]
  %v192 = vld [vmem:[%s5 + $0x180] sm:$0xff]
  %v193 = vld [vmem:[%s5 + $0x188] sm:$0xff]
  %v194 = vld [vmem:[%s5 + $0x190] sm:$0xff]
  %v195 = vld [vmem:[%s5 + $0x198] sm:$0xff]
  %v196 = vld [vmem:[%s5 + $0x1a0] sm:$0xff]
  %v197 = vld [vmem:[%s5 + $0x1a8] sm:$0xff]
  %v198 = vld [vmem:[%s5 + $0x1b0] sm:$0xff]
  %v199 = vld [vmem:[%s5 + $0x1b8] sm:$0xff]
  %v200 = vld [vmem:[%s5 + $0x1c0] sm:$0xff]
  %v201 = vld [vmem:[%s5 + $0x1c8] sm:$0xff]
  %v202 = vld [vmem:[%s5 + $0x1d0] sm:$0xff]
  %v203 = vld [vmem:[%s5 + $0x1d8] sm:$0xff]
  %v204 = vld [vmem:[%s5 + $0x1e0] sm:$0xff]
  %v205 = vld [vmem:[%s5 + $0x1e8] sm:$0xff]
  %v206 = vld [vmem:[%s5 + $0x1f0] sm:$0xff]
  %v207 = vld [vmem:[%s5 + $0x1f8] sm:$0xff]
  %v208 = vld [vmem:[%s5 + $0x200] sm:$0xff]
  %v209 = vld [vmem:[%s5 + $0x208] sm:$0xff]
  %v210 = vld [vmem:[%s5 + $0x210] sm:$0xff]
  %v211 = vld [vmem:[%s5 + $0x218] sm:$0xff]
  %v212 = vld [vmem:[%s5 + $0x220] sm:$0xff]
  %v213 = vld [vmem:[%s5 + $0x228] sm:$0xff]
  %v214 = vld [vmem:[%s5 + $0x230] sm:$0xff]
  %v215 = vld [vmem:[%s5 + $0x238] sm:$0xff]
  %v216 = vld [vmem:[%s5 + $0x240] sm:$0xff]
  %v217 = vld [vmem:[%s5 + $0x248] sm:$0xff]
  %v218 = vld [vmem:[%s5 + $0x250] sm:$0xff]
  %v219 = vld [vmem:[%s5 + $0x258] sm:$0xff]
  %v220 = vld [vmem:[%s5 + $0x260] sm:$0xff]
  %v221 = vld [vmem:[%s5 + $0x268] sm:$0xff]
  %v222 = vld [vmem:[%s5 + $0x270] sm:$0xff]
  %v223 = vld [vmem:[%s5 + $0x278] sm:$0xff]
  %224 = vmatpush.msra.mxu0 %v219
  %225 = vmatpush.msra.mxu0 %v214
  %226 = vmatpush.msra.mxu0 %v209
  %227 = vmatpush.msra.mxu0 %v204
  %228 = vmatpush.msra.mxu0 %v199
  %229 = vmatpush.msra.mxu0 %v194
  %230 = vmatpush.msra.mxu0 %v189
  %231 = vmatpush.msra.mxu0 %v184
  %232 = vmatpush.msra.mxu0 %v179
  %233 = vmatpush.msra.mxu0 %v174
  %234 = vmatpush.msra.mxu0 %v169
  %235 = vmatpush.msra.mxu0 %v164
  %236 = vmatpush.msra.mxu0 %v159
  %237 = vmatpush.msra.mxu0 %v154
  %238 = vmatpush.msra.mxu0 %v149
  %239 = vmatpush.msra.mxu0 %v144
  %240 = vmatmul.f32.gmra.mxu0 %v48
  %v241 = vpop.f32.mrf.mxu0
  %v242 = vadd.f32 0.0, %v241
  %243 = vmatmul.f32.gmra.mxu0 %v49
  %v244 = vpop.f32.mrf.mxu0
  %v245 = vadd.f32 0.0, %v244
  %246 = vmatmul.f32.gmra.mxu0 %v50
  %v247 = vpop.f32.mrf.mxu0
  %v248 = vadd.f32 0.0, %v247
  %249 = vmatmul.f32.gmra.mxu0 %v51
  %v250 = vpop.f32.mrf.mxu0
  %v251 = vadd.f32 0.0, %v250
  %252 = vmatmul.f32.gmra.mxu0 %v52
  %v253 = vpop.f32.mrf.mxu0
  %v254 = vadd.f32 0.0, %v253
  %255 = vmatmul.f32.gmra.mxu0 %v53
  %v256 = vpop.f32.mrf.mxu0
  %v257 = vadd.f32 0.0, %v256
  %258 = vmatmul.f32.gmra.mxu0 %v54
  %v259 = vpop.f32.mrf.mxu0
  %v260 = vadd.f32 0.0, %v259
  %261 = vmatmul.f32.gmra.mxu0 %v55
  %v262 = vpop.f32.mrf.mxu0
  %v263 = vadd.f32 0.0, %v262
  %264 = vdwg.mxu0
  %265 = vmatpush.msra.mxu0 %v220
  %266 = vmatpush.msra.mxu0 %v215
  %267 = vmatpush.msra.mxu0 %v210
  %268 = vmatpush.msra.mxu0 %v205
  %269 = vmatpush.msra.mxu0 %v200
  %270 = vmatpush.msra.mxu0 %v195
  %271 = vmatpush.msra.mxu0 %v190
  %272 = vmatpush.msra.mxu0 %v185
  %273 = vmatpush.msra.mxu0 %v180
  %274 = vmatpush.msra.mxu0 %v175
  %275 = vmatpush.msra.mxu0 %v170
  %276 = vmatpush.msra.mxu0 %v165
  %277 = vmatpush.msra.mxu0 %v160
  %278 = vmatpush.msra.mxu0 %v155
  %279 = vmatpush.msra.mxu0 %v150
  %280 = vmatpush.msra.mxu0 %v145
  %281 = vmatmul.f32.gmra.mxu0 %v48
  %v282 = vpop.f32.mrf.mxu0
  %v283 = vadd.f32 0.0, %v282
  %284 = vmatmul.f32.gmra.mxu0 %v49
  %v285 = vpop.f32.mrf.mxu0
  %v286 = vadd.f32 0.0, %v285
  %287 = vmatmul.f32.gmra.mxu0 %v50
  %v288 = vpop.f32.mrf.mxu0
  %v289 = vadd.f32 0.0, %v288
  %290 = vmatmul.f32.gmra.mxu0 %v51
  %v291 = vpop.f32.mrf.mxu0
  %v292 = vadd.f32 0.0, %v291
  %293 = vmatmul.f32.gmra.mxu0 %v52
  %v294 = vpop.f32.mrf.mxu0
  %v295 = vadd.f32 0.0, %v294
  %296 = vmatmul.f32.gmra.mxu0 %v53
  %v297 = vpop.f32.mrf.mxu0
  %v298 = vadd.f32 0.0, %v297
  %299 = vmatmul.f32.gmra.mxu0 %v54
  %v300 = vpop.f32.mrf.mxu0
  %v301 = vadd.f32 0.0, %v300
  %302 = vmatmul.f32.gmra.mxu0 %v55
  %v303 = vpop.f32.mrf.mxu0
  %v304 = vadd.f32 0.0, %v303
  %305 = vdwg.mxu0
  %306 = vmatpush.msra.mxu0 %v221
  %307 = vmatpush.msra.mxu0 %v216
  %308 = vmatpush.msra.mxu0 %v211
  %309 = vmatpush.msra.mxu0 %v206
  %310 = vmatpush.msra.mxu0 %v201
  %311 = vmatpush.msra.mxu0 %v196
  %312 = vmatpush.msra.mxu0 %v191
  %313 = vmatpush.msra.mxu0 %v186
  %314 = vmatpush.msra.mxu0 %v181
  %315 = vmatpush.msra.mxu0 %v176
  %316 = vmatpush.msra.mxu0 %v171
  %317 = vmatpush.msra.mxu0 %v166
  %318 = vmatpush.msra.mxu0 %v161
  %319 = vmatpush.msra.mxu0 %v156
  %320 = vmatpush.msra.mxu0 %v151
  %321 = vmatpush.msra.mxu0 %v146
  %322 = vmatmul.f32.gmra.mxu0 %v48
  %v323 = vpop.f32.mrf.mxu0
  %v324 = vadd.f32 0.0, %v323
  %325 = vmatmul.f32.gmra.mxu0 %v49
  %v326 = vpop.f32.mrf.mxu0
  %v327 = vadd.f32 0.0, %v326
  %328 = vmatmul.f32.gmra.mxu0 %v50
  %v329 = vpop.f32.mrf.mxu0
  %v330 = vadd.f32 0.0, %v329
  %331 = vmatmul.f32.gmra.mxu0 %v51
  %v332 = vpop.f32.mrf.mxu0
  %v333 = vadd.f32 0.0, %v332
  %334 = vmatmul.f32.gmra.mxu0 %v52
  %v335 = vpop.f32.mrf.mxu0
  %v336 = vadd.f32 0.0, %v335
  %337 = vmatmul.f32.gmra.mxu0 %v53
  %v338 = vpop.f32.mrf.mxu0
  %v339 = vadd.f32 0.0, %v338
  %340 = vmatmul.f32.gmra.mxu0 %v54
  %v341 = vpop.f32.mrf.mxu0
  %v342 = vadd.f32 0.0, %v341
  %343 = vmatmul.f32.gmra.mxu0 %v55
  %v344 = vpop.f32.mrf.mxu0
  %v345 = vadd.f32 0.0, %v344
  %346 = vdwg.mxu0
  %347 = vmatpush.msra.mxu0 %v222
  %348 = vmatpush.msra.mxu0 %v217
  %349 = vmatpush.msra.mxu0 %v212
  %350 = vmatpush.msra.mxu0 %v207
  %351 = vmatpush.msra.mxu0 %v202
  %352 = vmatpush.msra.mxu0 %v197
  %353 = vmatpush.msra.mxu0 %v192
  %354 = vmatpush.msra.mxu0 %v187
  %355 = vmatpush.msra.mxu0 %v182
  %356 = vmatpush.msra.mxu0 %v177
  %357 = vmatpush.msra.mxu0 %v172
  %358 = vmatpush.msra.mxu0 %v167
  %359 = vmatpush.msra.mxu0 %v162
  %360 = vmatpush.msra.mxu0 %v157
  %361 = vmatpush.msra.mxu0 %v152
  %362 = vmatpush.msra.mxu0 %v147
  %363 = vmatmul.f32.gmra.mxu0 %v48
  %v364 = vpop.f32.mrf.mxu0
  %v365 = vadd.f32 0.0, %v364
  %366 = vmatmul.f32.gmra.mxu0 %v49
  %v367 = vpop.f32.mrf.mxu0
  %v368 = vadd.f32 0.0, %v367
  %369 = vmatmul.f32.gmra.mxu0 %v50
  %v370 = vpop.f32.mrf.mxu0
  %v371 = vadd.f32 0.0, %v370
  %372 = vmatmul.f32.gmra.mxu0 %v51
  %v373 = vpop.f32.mrf.mxu0
  %v374 = vadd.f32 0.0, %v373
  %375 = vmatmul.f32.gmra.mxu0 %v52
  %v376 = vpop.f32.mrf.mxu0
  %v377 = vadd.f32 0.0, %v376
  %378 = vmatmul.f32.gmra.mxu0 %v53
  %v379 = vpop.f32.mrf.mxu0
  %v380 = vadd.f32 0.0, %v379
  %381 = vmatmul.f32.gmra.mxu0 %v54
  %v382 = vpop.f32.mrf.mxu0
  %v383 = vadd.f32 0.0, %v382
  %384 = vmatmul.f32.gmra.mxu0 %v55
  %v385 = vpop.f32.mrf.mxu0
  %v386 = vadd.f32 0.0, %v385
  %387 = vdwg.mxu0
  %388 = vmatpush.msra.mxu0 %v223
  %389 = vmatpush.msra.mxu0 %v218
  %390 = vmatpush.msra.mxu0 %v213
  %391 = vmatpush.msra.mxu0 %v208
  %392 = vmatpush.msra.mxu0 %v203
  %393 = vmatpush.msra.mxu0 %v198
  %394 = vmatpush.msra.mxu0 %v193
  %395 = vmatpush.msra.mxu0 %v188
  %396 = vmatpush.msra.mxu0 %v183
  %397 = vmatpush.msra.mxu0 %v178
  %398 = vmatpush.msra.mxu0 %v173
  %399 = vmatpush.msra.mxu0 %v168
  %400 = vmatpush.msra.mxu0 %v163
  %401 = vmatpush.msra.mxu0 %v158
  %402 = vmatpush.msra.mxu0 %v153
  %403 = vmatpush.msra.mxu0 %v148
  %404 = vmatmul.f32.gmra.mxu0 %v48
  %v405 = vpop.f32.mrf.mxu0
  %v406 = vadd.f32 0.0, %v405
  %407 = vmatmul.f32.gmra.mxu0 %v49
  %v408 = vpop.f32.mrf.mxu0
  %v409 = vadd.f32 0.0, %v408
  %410 = vmatmul.f32.gmra.mxu0 %v50
  %v411 = vpop.f32.mrf.mxu0
  %v412 = vadd.f32 0.0, %v411
  %413 = vmatmul.f32.gmra.mxu0 %v51
  %v414 = vpop.f32.mrf.mxu0
  %v415 = vadd.f32 0.0, %v414
  %416 = vmatmul.f32.gmra.mxu0 %v52
  %v417 = vpop.f32.mrf.mxu0
  %v418 = vadd.f32 0.0, %v417
  %419 = vmatmul.f32.gmra.mxu0 %v53
  %v420 = vpop.f32.mrf.mxu0
  %v421 = vadd.f32 0.0, %v420
  %422 = vmatmul.f32.gmra.mxu0 %v54
  %v423 = vpop.f32.mrf.mxu0
  %v424 = vadd.f32 0.0, %v423
  %425 = vmatmul.f32.gmra.mxu0 %v55
  %v426 = vpop.f32.mrf.mxu0
  %v427 = vadd.f32 0.0, %v426
  %428 = vdwg.mxu0
  %429 = vmatpush.msra.mxu0 %v139
  %430 = vmatpush.msra.mxu0 %v134
  %431 = vmatpush.msra.mxu0 %v129
  %432 = vmatpush.msra.mxu0 %v124
  %433 = vmatpush.msra.mxu0 %v119
  %434 = vmatpush.msra.mxu0 %v114
  %435 = vmatpush.msra.mxu0 %v109
  %436 = vmatpush.msra.mxu0 %v104
  %437 = vmatpush.msra.mxu0 %v99
  %438 = vmatpush.msra.mxu0 %v94
  %439 = vmatpush.msra.mxu0 %v89
  %440 = vmatpush.msra.mxu0 %v84
  %441 = vmatpush.msra.mxu0 %v79
  %442 = vmatpush.msra.mxu0 %v74
  %443 = vmatpush.msra.mxu0 %v69
  %444 = vmatpush.msra.mxu0 %v64
  %445 = vmatmul.f32.gmra.mxu0 %v32
  %v446 = vpop.f32.mrf.mxu0
  %v447 = vadd.f32 %v242, %v446
  %448 = vmatmul.f32.gmra.mxu0 %v33
  %v449 = vpop.f32.mrf.mxu0
  %v450 = vadd.f32 %v245, %v449
  %451 = vmatmul.f32.gmra.mxu0 %v34
  %v452 = vpop.f32.mrf.mxu0
  %v453 = vadd.f32 %v248, %v452
  %454 = vmatmul.f32.gmra.mxu0 %v35
  %v455 = vpop.f32.mrf.mxu0
  %v456 = vadd.f32 %v251, %v455
  %457 = vmatmul.f32.gmra.mxu0 %v36
  %v458 = vpop.f32.mrf.mxu0
  %v459 = vadd.f32 %v254, %v458
  %460 = vmatmul.f32.gmra.mxu0 %v37
  %v461 = vpop.f32.mrf.mxu0
  %v462 = vadd.f32 %v257, %v461
  %463 = vmatmul.f32.gmra.mxu0 %v38
  %v464 = vpop.f32.mrf.mxu0
  %v465 = vadd.f32 %v260, %v464
  %466 = vmatmul.f32.gmra.mxu0 %v39
  %v467 = vpop.f32.mrf.mxu0
  %v468 = vadd.f32 %v263, %v467
  %469 = vdwg.mxu0
  %470 = vmatpush.msra.mxu0 %v140
  %471 = vmatpush.msra.mxu0 %v135
  %472 = vmatpush.msra.mxu0 %v130
  %473 = vmatpush.msra.mxu0 %v125
  %474 = vmatpush.msra.mxu0 %v120
  %475 = vmatpush.msra.mxu0 %v115
  %476 = vmatpush.msra.mxu0 %v110
  %477 = vmatpush.msra.mxu0 %v105
  %478 = vmatpush.msra.mxu0 %v100
  %479 = vmatpush.msra.mxu0 %v95
  %480 = vmatpush.msra.mxu0 %v90
  %481 = vmatpush.msra.mxu0 %v85
  %482 = vmatpush.msra.mxu0 %v80
  %483 = vmatpush.msra.mxu0 %v75
  %484 = vmatpush.msra.mxu0 %v70
  %485 = vmatpush.msra.mxu0 %v65
  %486 = vmatmul.f32.gmra.mxu0 %v32
  %v487 = vpop.f32.mrf.mxu0
  %v488 = vadd.f32 %v283, %v487
  %489 = vmatmul.f32.gmra.mxu0 %v33
  %v490 = vpop.f32.mrf.mxu0
  %v491 = vadd.f32 %v286, %v490
  %492 = vmatmul.f32.gmra.mxu0 %v34
  %v493 = vpop.f32.mrf.mxu0
  %v494 = vadd.f32 %v289, %v493
  %495 = vmatmul.f32.gmra.mxu0 %v35
  %v496 = vpop.f32.mrf.mxu0
  %v497 = vadd.f32 %v292, %v496
  %498 = vmatmul.f32.gmra.mxu0 %v36
  %v499 = vpop.f32.mrf.mxu0
  %v500 = vadd.f32 %v295, %v499
  %501 = vmatmul.f32.gmra.mxu0 %v37
  %v502 = vpop.f32.mrf.mxu0
  %v503 = vadd.f32 %v298, %v502
  %504 = vmatmul.f32.gmra.mxu0 %v38
  %v505 = vpop.f32.mrf.mxu0
  %v506 = vadd.f32 %v301, %v505
  %507 = vmatmul.f32.gmra.mxu0 %v39
  %v508 = vpop.f32.mrf.mxu0
  %v509 = vadd.f32 %v304, %v508
  %510 = vdwg.mxu0
  %511 = vmatpush.msra.mxu0 %v141
  %512 = vmatpush.msra.mxu0 %v136
  %513 = vmatpush.msra.mxu0 %v131
  %514 = vmatpush.msra.mxu0 %v126
  %515 = vmatpush.msra.mxu0 %v121
  %516 = vmatpush.msra.mxu0 %v116
  %517 = vmatpush.msra.mxu0 %v111
  %518 = vmatpush.msra.mxu0 %v106
  %519 = vmatpush.msra.mxu0 %v101
  %520 = vmatpush.msra.mxu0 %v96
  %521 = vmatpush.msra.mxu0 %v91
  %522 = vmatpush.msra.mxu0 %v86
  %523 = vmatpush.msra.mxu0 %v81
  %524 = vmatpush.msra.mxu0 %v76
  %525 = vmatpush.msra.mxu0 %v71
  %526 = vmatpush.msra.mxu0 %v66
  %527 = vmatmul.f32.gmra.mxu0 %v32
  %v528 = vpop.f32.mrf.mxu0
  %v529 = vadd.f32 %v324, %v528
  %530 = vmatmul.f32.gmra.mxu0 %v33
  %v531 = vpop.f32.mrf.mxu0
  %v532 = vadd.f32 %v327, %v531
  %533 = vmatmul.f32.gmra.mxu0 %v34
  %v534 = vpop.f32.mrf.mxu0
  %v535 = vadd.f32 %v330, %v534
  %536 = vmatmul.f32.gmra.mxu0 %v35
  %v537 = vpop.f32.mrf.mxu0
  %v538 = vadd.f32 %v333, %v537
  %539 = vmatmul.f32.gmra.mxu0 %v36
  %v540 = vpop.f32.mrf.mxu0
  %v541 = vadd.f32 %v336, %v540
  %542 = vmatmul.f32.gmra.mxu0 %v37
  %v543 = vpop.f32.mrf.mxu0
  %v544 = vadd.f32 %v339, %v543
  %545 = vmatmul.f32.gmra.mxu0 %v38
  %v546 = vpop.f32.mrf.mxu0
  %v547 = vadd.f32 %v342, %v546
  %548 = vmatmul.f32.gmra.mxu0 %v39
  %v549 = vpop.f32.mrf.mxu0
  %v550 = vadd.f32 %v345, %v549
  %551 = vdwg.mxu0
  %552 = vmatpush.msra.mxu0 %v142
  %553 = vmatpush.msra.mxu0 %v137
  %554 = vmatpush.msra.mxu0 %v132
  %555 = vmatpush.msra.mxu0 %v127
  %556 = vmatpush.msra.mxu0 %v122
  %557 = vmatpush.msra.mxu0 %v117
  %558 = vmatpush.msra.mxu0 %v112
  %559 = vmatpush.msra.mxu0 %v107
  %560 = vmatpush.msra.mxu0 %v102
  %561 = vmatpush.msra.mxu0 %v97
  %562 = vmatpush.msra.mxu0 %v92
  %563 = vmatpush.msra.mxu0 %v87
  %564 = vmatpush.msra.mxu0 %v82
  %565 = vmatpush.msra.mxu0 %v77
  %566 = vmatpush.msra.mxu0 %v72
  %567 = vmatpush.msra.mxu0 %v67
  %568 = vmatmul.f32.gmra.mxu0 %v32
  %v569 = vpop.f32.mrf.mxu0
  %v570 = vadd.f32 %v365, %v569
  %571 = vmatmul.f32.gmra.mxu0 %v33
  %v572 = vpop.f32.mrf.mxu0
  %v573 = vadd.f32 %v368, %v572
  %574 = vmatmul.f32.gmra.mxu0 %v34
  %v575 = vpop.f32.mrf.mxu0
  %v576 = vadd.f32 %v371, %v575
  %577 = vmatmul.f32.gmra.mxu0 %v35
  %v578 = vpop.f32.mrf.mxu0
  %v579 = vadd.f32 %v374, %v578
  %580 = vmatmul.f32.gmra.mxu0 %v36
  %v581 = vpop.f32.mrf.mxu0
  %v582 = vadd.f32 %v377, %v581
  %583 = vmatmul.f32.gmra.mxu0 %v37
  %v584 = vpop.f32.mrf.mxu0
  %v585 = vadd.f32 %v380, %v584
  %586 = vmatmul.f32.gmra.mxu0 %v38
  %v587 = vpop.f32.mrf.mxu0
  %v588 = vadd.f32 %v383, %v587
  %589 = vmatmul.f32.gmra.mxu0 %v39
  %v590 = vpop.f32.mrf.mxu0
  %v591 = vadd.f32 %v386, %v590
  %592 = vdwg.mxu0
  %593 = vmatpush.msra.mxu0 %v143
  %594 = vmatpush.msra.mxu0 %v138
  %595 = vmatpush.msra.mxu0 %v133
  %596 = vmatpush.msra.mxu0 %v128
  %597 = vmatpush.msra.mxu0 %v123
  %598 = vmatpush.msra.mxu0 %v118
  %599 = vmatpush.msra.mxu0 %v113
  %600 = vmatpush.msra.mxu0 %v108
  %601 = vmatpush.msra.mxu0 %v103
  %602 = vmatpush.msra.mxu0 %v98
  %603 = vmatpush.msra.mxu0 %v93
  %604 = vmatpush.msra.mxu0 %v88
  %605 = vmatpush.msra.mxu0 %v83
  %606 = vmatpush.msra.mxu0 %v78
  %607 = vmatpush.msra.mxu0 %v73
  %608 = vmatpush.msra.mxu0 %v68
  %609 = vmatmul.f32.gmra.mxu0 %v32
  %v610 = vpop.f32.mrf.mxu0
  %v611 = vadd.f32 %v406, %v610
  %612 = vmatmul.f32.gmra.mxu0 %v33
  %v613 = vpop.f32.mrf.mxu0
  %v614 = vadd.f32 %v409, %v613
  %615 = vmatmul.f32.gmra.mxu0 %v34
  %v616 = vpop.f32.mrf.mxu0
  %v617 = vadd.f32 %v412, %v616
  %618 = vmatmul.f32.gmra.mxu0 %v35
  %v619 = vpop.f32.mrf.mxu0
  %v620 = vadd.f32 %v415, %v619
  %621 = vmatmul.f32.gmra.mxu0 %v36
  %v622 = vpop.f32.mrf.mxu0
  %v623 = vadd.f32 %v418, %v622
  %624 = vmatmul.f32.gmra.mxu0 %v37
  %v625 = vpop.f32.mrf.mxu0
  %v626 = vadd.f32 %v421, %v625
  %627 = vmatmul.f32.gmra.mxu0 %v38
  %v628 = vpop.f32.mrf.mxu0
  %v629 = vadd.f32 %v424, %v628
  %630 = vmatmul.f32.gmra.mxu0 %v39
  %v631 = vpop.f32.mrf.mxu0
  %v632 = vadd.f32 %v427, %v631
  %633 = vdwg.mxu0
  %v634 = vld [vmem:[%s6] sm:$0x1f]
  %v636 = vperm.slane %v634, 0
  %v637 = vperm.slane %v634, 1
  %v638 = vperm.slane %v634, 2
  %v639 = vperm.slane %v634, 3
  %v640 = vperm.slane %v634, 4
  %v646 = vadd.f32 %v447, %v636
  %v647 = vadd.f32 %v488, %v637
  %v648 = vadd.f32 %v529, %v638
  %v649 = vadd.f32 %v570, %v639
  %v650 = vadd.f32 %v611, %v640
  %v651 = vadd.f32 %v450, %v636
  %v652 = vadd.f32 %v491, %v637
  %v653 = vadd.f32 %v532, %v638
  %v654 = vadd.f32 %v573, %v639
  %v655 = vadd.f32 %v614, %v640
  %v656 = vadd.f32 %v453, %v636
  %v657 = vadd.f32 %v494, %v637
  %v658 = vadd.f32 %v535, %v638
  %v659 = vadd.f32 %v576, %v639
  %v660 = vadd.f32 %v617, %v640
  %v661 = vadd.f32 %v456, %v636
  %v662 = vadd.f32 %v497, %v637
  %v663 = vadd.f32 %v538, %v638
  %v664 = vadd.f32 %v579, %v639
  %v665 = vadd.f32 %v620, %v640
  %v666 = vadd.f32 %v459, %v636
  %v667 = vadd.f32 %v500, %v637
  %v668 = vadd.f32 %v541, %v638
  %v669 = vadd.f32 %v582, %v639
  %v670 = vadd.f32 %v623, %v640
  %v671 = vadd.f32 %v462, %v636
  %v672 = vadd.f32 %v503, %v637
  %v673 = vadd.f32 %v544, %v638
  %v674 = vadd.f32 %v585, %v639
  %v675 = vadd.f32 %v626, %v640
  %v676 = vadd.f32 %v465, %v636
  %v677 = vadd.f32 %v506, %v637
  %v678 = vadd.f32 %v547, %v638
  %v679 = vadd.f32 %v588, %v639
  %v680 = vadd.f32 %v629, %v640
  %v681 = vadd.f32 %v468, %v636
  %v682 = vadd.f32 %v509, %v637
  %v683 = vadd.f32 %v550, %v638
  %v684 = vadd.f32 %v591, %v639
  %v685 = vadd.f32 %v632, %v640
  %v686 = vadd.f32 %v647, 1.0
  %v687 = vadd.f32 %v652, 1.0
  %v688 = vadd.f32 %v657, 1.0
  %v689 = vadd.f32 %v662, 1.0
  %v690 = vadd.f32 %v667, 1.0
  %v691 = vadd.f32 %v672, 1.0
  %v692 = vadd.f32 %v677, 1.0
  %v693 = vadd.f32 %v682, 1.0
  %v694 = vxor.u32 %v686, 2147483648
  %v695 = vxor.u32 %v687, 2147483648
  %v696 = vxor.u32 %v688, 2147483648
  %v697 = vxor.u32 %v689, 2147483648
  %v698 = vxor.u32 %v690, 2147483648
  %v699 = vxor.u32 %v691, 2147483648
  %v700 = vxor.u32 %v692, 2147483648
  %v701 = vxor.u32 %v693, 2147483648
  %v702 = vmul.f32 %v694, 1.442695
  %v703 = vpow.pop %v702
  %v704 = vmul.f32 %v695, 1.442695
  %v705 = vpow.pop %v704
  %v706 = vmul.f32 %v696, 1.442695
  %v707 = vpow.pop %v706
  %v708 = vmul.f32 %v697, 1.442695
  %v709 = vpow.pop %v708
  %v710 = vmul.f32 %v698, 1.442695
  %v711 = vpow.pop %v710
  %v712 = vmul.f32 %v699, 1.442695
  %v713 = vpow.pop %v712
  %v714 = vmul.f32 %v700, 1.442695
  %v715 = vpow.pop %v714
  %v716 = vmul.f32 %v701, 1.442695
  %v717 = vpow.pop %v716
  %v718 = vadd.f32 %v703, 1.0
  %v719 = vadd.f32 %v705, 1.0
  %v720 = vadd.f32 %v707, 1.0
  %v721 = vadd.f32 %v709, 1.0
  %v722 = vadd.f32 %v711, 1.0
  %v723 = vadd.f32 %v713, 1.0
  %v724 = vadd.f32 %v715, 1.0
  %v725 = vadd.f32 %v717, 1.0
  %v726 = vrcp.pop %v718
  %v727 = vmul.f32 %v718, %v726
  %v728 = vsub.f32 1.0, %v727
  %v729 = vmul.f32 %v726, %v728
  %v730 = vadd.f32 %v726, %v729
  %vm731 = vweird.f32 %v718
  %vm732 = vweird.f32 %v726
  %vm733 = vmor %vm731, %vm732
  %v734 = vsel %vm733, %v726, %v730
  %v735 = vand.u32 2147483647, %v718
  %vm736 = vcmp.eq.f32.partialorder %v735, 8.507059e+37
  %v737 = vand.u32 %v718, 2147483648
  %v738 = vor.u32 1.1754944e-38, %v737
  %v739 = vsel %vm736, %v738, %v734
  %v740 = vmul.f32 1.0, %v739
  %v741 = vrcp.pop %v719
  %v742 = vmul.f32 %v719, %v741
  %v743 = vsub.f32 1.0, %v742
  %v744 = vmul.f32 %v741, %v743
  %v745 = vadd.f32 %v741, %v744
  %vm746 = vweird.f32 %v719
  %vm747 = vweird.f32 %v741
  %vm748 = vmor %vm746, %vm747
  %v749 = vsel %vm748, %v741, %v745
  %v750 = vand.u32 2147483647, %v719
  %vm751 = vcmp.eq.f32.partialorder %v750, 8.507059e+37
  %v752 = vand.u32 %v719, 2147483648
  %v753 = vor.u32 1.1754944e-38, %v752
  %v754 = vsel %vm751, %v753, %v749
  %v755 = vmul.f32 1.0, %v754
  %v756 = vrcp.pop %v720
  %v757 = vmul.f32 %v720, %v756
  %v758 = vsub.f32 1.0, %v757
  %v759 = vmul.f32 %v756, %v758
  %v760 = vadd.f32 %v756, %v759
  %vm761 = vweird.f32 %v720
  %vm762 = vweird.f32 %v756
  %vm763 = vmor %vm761, %vm762
  %v764 = vsel %vm763, %v756, %v760
  %v765 = vand.u32 2147483647, %v720
  %vm766 = vcmp.eq.f32.partialorder %v765, 8.507059e+37
  %v767 = vand.u32 %v720, 2147483648
  %v768 = vor.u32 1.1754944e-38, %v767
  %v769 = vsel %vm766, %v768, %v764
  %v770 = vmul.f32 1.0, %v769
  %v771 = vrcp.pop %v721
  %v772 = vmul.f32 %v721, %v771
  %v773 = vsub.f32 1.0, %v772
  %v774 = vmul.f32 %v771, %v773
  %v775 = vadd.f32 %v771, %v774
  %vm776 = vweird.f32 %v721
  %vm777 = vweird.f32 %v771
  %vm778 = vmor %vm776, %vm777
  %v779 = vsel %vm778, %v771, %v775
  %v780 = vand.u32 2147483647, %v721
  %vm781 = vcmp.eq.f32.partialorder %v780, 8.507059e+37
  %v782 = vand.u32 %v721, 2147483648
  %v783 = vor.u32 1.1754944e-38, %v782
  %v784 = vsel %vm781, %v783, %v779
  %v785 = vmul.f32 1.0, %v784
  %v786 = vrcp.pop %v722
  %v787 = vmul.f32 %v722, %v786
  %v788 = vsub.f32 1.0, %v787
  %v789 = vmul.f32 %v786, %v788
  %v790 = vadd.f32 %v786, %v789
  %vm791 = vweird.f32 %v722
  %vm792 = vweird.f32 %v786
  %vm793 = vmor %vm791, %vm792
  %v794 = vsel %vm793, %v786, %v790
  %v795 = vand.u32 2147483647, %v722
  %vm796 = vcmp.eq.f32.partialorder %v795, 8.507059e+37
  %v797 = vand.u32 %v722, 2147483648
  %v798 = vor.u32 1.1754944e-38, %v797
  %v799 = vsel %vm796, %v798, %v794
  %v800 = vmul.f32 1.0, %v799
  %v801 = vrcp.pop %v723
  %v802 = vmul.f32 %v723, %v801
  %v803 = vsub.f32 1.0, %v802
  %v804 = vmul.f32 %v801, %v803
  %v805 = vadd.f32 %v801, %v804
  %vm806 = vweird.f32 %v723
  %vm807 = vweird.f32 %v801
  %vm808 = vmor %vm806, %vm807
  %v809 = vsel %vm808, %v801, %v805
  %v810 = vand.u32 2147483647, %v723
  %vm811 = vcmp.eq.f32.partialorder %v810, 8.507059e+37
  %v812 = vand.u32 %v723, 2147483648
  %v813 = vor.u32 1.1754944e-38, %v812
  %v814 = vsel %vm811, %v813, %v809
  %v815 = vmul.f32 1.0, %v814
  %v816 = vrcp.pop %v724
  %v817 = vmul.f32 %v724, %v816
  %v818 = vsub.f32 1.0, %v817
  %v819 = vmul.f32 %v816, %v818
  %v820 = vadd.f32 %v816, %v819
  %vm821 = vweird.f32 %v724
  %vm822 = vweird.f32 %v816
  %vm823 = vmor %vm821, %vm822
  %v824 = vsel %vm823, %v816, %v820
  %v825 = vand.u32 2147483647, %v724
  %vm826 = vcmp.eq.f32.partialorder %v825, 8.507059e+37
  %v827 = vand.u32 %v724, 2147483648
  %v828 = vor.u32 1.1754944e-38, %v827
  %v829 = vsel %vm826, %v828, %v824
  %v830 = vmul.f32 1.0, %v829
  %v831 = vrcp.pop %v725
  %v832 = vmul.f32 %v725, %v831
  %v833 = vsub.f32 1.0, %v832
  %v834 = vmul.f32 %v831, %v833
  %v835 = vadd.f32 %v831, %v834
  %vm836 = vweird.f32 %v725
  %vm837 = vweird.f32 %v831
  %vm838 = vmor %vm836, %vm837
  %v839 = vsel %vm838, %v831, %v835
  %v840 = vand.u32 2147483647, %v725
  %vm841 = vcmp.eq.f32.partialorder %v840, 8.507059e+37
  %v842 = vand.u32 %v725, 2147483648
  %v843 = vor.u32 1.1754944e-38, %v842
  %v844 = vsel %vm841, %v843, %v839
  %v845 = vmul.f32 1.0, %v844
  %v846 = vmul.f32 %v40, %v740
  %v847 = vmul.f32 %v41, %v755
  %v848 = vmul.f32 %v42, %v770
  %v849 = vmul.f32 %v43, %v785
  %v850 = vmul.f32 %v44, %v800
  %v851 = vmul.f32 %v45, %v815
  %v852 = vmul.f32 %v46, %v830
  %v853 = vmul.f32 %v47, %v845
  %v854 = vadd.f32 %v648, 1.0
  %v855 = vadd.f32 %v653, 1.0
  %v856 = vadd.f32 %v658, 1.0
  %v857 = vadd.f32 %v663, 1.0
  %v858 = vadd.f32 %v668, 1.0
  %v859 = vadd.f32 %v673, 1.0
  %v860 = vadd.f32 %v678, 1.0
  %v861 = vadd.f32 %v683, 1.0
  %v862 = vxor.u32 %v854, 2147483648
  %v863 = vxor.u32 %v855, 2147483648
  %v864 = vxor.u32 %v856, 2147483648
  %v865 = vxor.u32 %v857, 2147483648
  %v866 = vxor.u32 %v858, 2147483648
  %v867 = vxor.u32 %v859, 2147483648
  %v868 = vxor.u32 %v860, 2147483648
  %v869 = vxor.u32 %v861, 2147483648
  %v870 = vmul.f32 %v862, 1.442695
  %v871 = vpow.pop %v870
  %v872 = vmul.f32 %v863, 1.442695
  %v873 = vpow.pop %v872
  %v874 = vmul.f32 %v864, 1.442695
  %v875 = vpow.pop %v874
  %v876 = vmul.f32 %v865, 1.442695
  %v877 = vpow.pop %v876
  %v878 = vmul.f32 %v866, 1.442695
  %v879 = vpow.pop %v878
  %v880 = vmul.f32 %v867, 1.442695
  %v881 = vpow.pop %v880
  %v882 = vmul.f32 %v868, 1.442695
  %v883 = vpow.pop %v882
  %v884 = vmul.f32 %v869, 1.442695
  %v885 = vpow.pop %v884
  %v886 = vadd.f32 %v871, 1.0
  %v887 = vadd.f32 %v873, 1.0
  %v888 = vadd.f32 %v875, 1.0
  %v889 = vadd.f32 %v877, 1.0
  %v890 = vadd.f32 %v879, 1.0
  %v891 = vadd.f32 %v881, 1.0
  %v892 = vadd.f32 %v883, 1.0
  %v893 = vadd.f32 %v885, 1.0
  %v894 = vrcp.pop %v886
  %v895 = vmul.f32 %v886, %v894
  %v896 = vsub.f32 1.0, %v895
  %v897 = vmul.f32 %v894, %v896
  %v898 = vadd.f32 %v894, %v897
  %vm899 = vweird.f32 %v886
  %vm900 = vweird.f32 %v894
  %vm901 = vmor %vm899, %vm900
  %v902 = vsel %vm901, %v894, %v898
  %v903 = vand.u32 2147483647, %v886
  %vm904 = vcmp.eq.f32.partialorder %v903, 8.507059e+37
  %v905 = vand.u32 %v886, 2147483648
  %v906 = vor.u32 1.1754944e-38, %v905
  %v907 = vsel %vm904, %v906, %v902
  %v908 = vmul.f32 1.0, %v907
  %v909 = vrcp.pop %v887
  %v910 = vmul.f32 %v887, %v909
  %v911 = vsub.f32 1.0, %v910
  %v912 = vmul.f32 %v909, %v911
  %v913 = vadd.f32 %v909, %v912
  %vm914 = vweird.f32 %v887
  %vm915 = vweird.f32 %v909
  %vm916 = vmor %vm914, %vm915
  %v917 = vsel %vm916, %v909, %v913
  %v918 = vand.u32 2147483647, %v887
  %vm919 = vcmp.eq.f32.partialorder %v918, 8.507059e+37
  %v920 = vand.u32 %v887, 2147483648
  %v921 = vor.u32 1.1754944e-38, %v920
  %v922 = vsel %vm919, %v921, %v917
  %v923 = vmul.f32 1.0, %v922
  %v924 = vrcp.pop %v888
  %v925 = vmul.f32 %v888, %v924
  %v926 = vsub.f32 1.0, %v925
  %v927 = vmul.f32 %v924, %v926
  %v928 = vadd.f32 %v924, %v927
  %vm929 = vweird.f32 %v888
  %vm930 = vweird.f32 %v924
  %vm931 = vmor %vm929, %vm930
  %v932 = vsel %vm931, %v924, %v928
  %v933 = vand.u32 2147483647, %v888
  %vm934 = vcmp.eq.f32.partialorder %v933, 8.507059e+37
  %v935 = vand.u32 %v888, 2147483648
  %v936 = vor.u32 1.1754944e-38, %v935
  %v937 = vsel %vm934, %v936, %v932
  %v938 = vmul.f32 1.0, %v937
  %v939 = vrcp.pop %v889
  %v940 = vmul.f32 %v889, %v939
  %v941 = vsub.f32 1.0, %v940
  %v942 = vmul.f32 %v939, %v941
  %v943 = vadd.f32 %v939, %v942
  %vm944 = vweird.f32 %v889
  %vm945 = vweird.f32 %v939
  %vm946 = vmor %vm944, %vm945
  %v947 = vsel %vm946, %v939, %v943
  %v948 = vand.u32 2147483647, %v889
  %vm949 = vcmp.eq.f32.partialorder %v948, 8.507059e+37
  %v950 = vand.u32 %v889, 2147483648
  %v951 = vor.u32 1.1754944e-38, %v950
  %v952 = vsel %vm949, %v951, %v947
  %v953 = vmul.f32 1.0, %v952
  %v954 = vrcp.pop %v890
  %v955 = vmul.f32 %v890, %v954
  %v956 = vsub.f32 1.0, %v955
  %v957 = vmul.f32 %v954, %v956
  %v958 = vadd.f32 %v954, %v957
  %vm959 = vweird.f32 %v890
  %vm960 = vweird.f32 %v954
  %vm961 = vmor %vm959, %vm960
  %v962 = vsel %vm961, %v954, %v958
  %v963 = vand.u32 2147483647, %v890
  %vm964 = vcmp.eq.f32.partialorder %v963, 8.507059e+37
  %v965 = vand.u32 %v890, 2147483648
  %v966 = vor.u32 1.1754944e-38, %v965
  %v967 = vsel %vm964, %v966, %v962
  %v968 = vmul.f32 1.0, %v967
  %v969 = vrcp.pop %v891
  %v970 = vmul.f32 %v891, %v969
  %v971 = vsub.f32 1.0, %v970
  %v972 = vmul.f32 %v969, %v971
  %v973 = vadd.f32 %v969, %v972
  %vm974 = vweird.f32 %v891
  %vm975 = vweird.f32 %v969
  %vm976 = vmor %vm974, %vm975
  %v977 = vsel %vm976, %v969, %v973
  %v978 = vand.u32 2147483647, %v891
  %vm979 = vcmp.eq.f32.partialorder %v978, 8.507059e+37
  %v980 = vand.u32 %v891, 2147483648
  %v981 = vor.u32 1.1754944e-38, %v980
  %v982 = vsel %vm979, %v981, %v977
  %v983 = vmul.f32 1.0, %v982
  %v984 = vrcp.pop %v892
  %v985 = vmul.f32 %v892, %v984
  %v986 = vsub.f32 1.0, %v985
  %v987 = vmul.f32 %v984, %v986
  %v988 = vadd.f32 %v984, %v987
  %vm989 = vweird.f32 %v892
  %vm990 = vweird.f32 %v984
  %vm991 = vmor %vm989, %vm990
  %v992 = vsel %vm991, %v984, %v988
  %v993 = vand.u32 2147483647, %v892
  %vm994 = vcmp.eq.f32.partialorder %v993, 8.507059e+37
  %v995 = vand.u32 %v892, 2147483648
  %v996 = vor.u32 1.1754944e-38, %v995
  %v997 = vsel %vm994, %v996, %v992
  %v998 = vmul.f32 1.0, %v997
  %v999 = vrcp.pop %v893
  %v1000 = vmul.f32 %v893, %v999
  %v1001 = vsub.f32 1.0, %v1000
  %v1002 = vmul.f32 %v999, %v1001
  %v1003 = vadd.f32 %v999, %v1002
  %vm1004 = vweird.f32 %v893
  %vm1005 = vweird.f32 %v999
  %vm1006 = vmor %vm1004, %vm1005
  %v1007 = vsel %vm1006, %v999, %v1003
  %v1008 = vand.u32 2147483647, %v893
  %vm1009 = vcmp.eq.f32.partialorder %v1008, 8.507059e+37
  %v1010 = vand.u32 %v893, 2147483648
  %v1011 = vor.u32 1.1754944e-38, %v1010
  %v1012 = vsel %vm1009, %v1011, %v1007
  %v1013 = vmul.f32 1.0, %v1012
  %v1014 = vmul.f32 %v56, %v908
  %v1015 = vmul.f32 %v57, %v923
  %v1016 = vmul.f32 %v58, %v938
  %v1017 = vmul.f32 %v59, %v953
  %v1018 = vmul.f32 %v60, %v968
  %v1019 = vmul.f32 %v61, %v983
  %v1020 = vmul.f32 %v62, %v998
  %v1021 = vmul.f32 %v63, %v1013
  %v1022 = vadd.f32 %v846, %v1014
  %v1023 = vadd.f32 %v847, %v1015
  %v1024 = vadd.f32 %v848, %v1016
  %v1025 = vadd.f32 %v849, %v1017
  %v1026 = vadd.f32 %v850, %v1018
  %v1027 = vadd.f32 %v851, %v1019
  %v1028 = vadd.f32 %v852, %v1020
  %v1029 = vadd.f32 %v853, %v1021
  %v1030 = vtanh.pop %v649
  %v1031 = vtanh.pop %v654
  %v1032 = vtanh.pop %v659
  %v1033 = vtanh.pop %v664
  %v1034 = vtanh.pop %v669
  %v1035 = vtanh.pop %v674
  %v1036 = vtanh.pop %v679
  %v1037 = vtanh.pop %v684
  %v1038 = vxor.u32 %v646, 2147483648
  %v1039 = vxor.u32 %v651, 2147483648
  %v1040 = vxor.u32 %v656, 2147483648
  %v1041 = vxor.u32 %v661, 2147483648
  %v1042 = vxor.u32 %v666, 2147483648
  %v1043 = vxor.u32 %v671, 2147483648
  %v1044 = vxor.u32 %v676, 2147483648
  %v1045 = vxor.u32 %v681, 2147483648
  %v1046 = vmul.f32 %v1038, 1.442695
  %v1047 = vpow.pop %v1046
  %v1048 = vmul.f32 %v1039, 1.442695
  %v1049 = vpow.pop %v1048
  %v1050 = vmul.f32 %v1040, 1.442695
  %v1051 = vpow.pop %v1050
  %v1052 = vmul.f32 %v1041, 1.442695
  %v1053 = vpow.pop %v1052
  %v1054 = vmul.f32 %v1042, 1.442695
  %v1055 = vpow.pop %v1054
  %v1056 = vmul.f32 %v1043, 1.442695
  %v1057 = vpow.pop %v1056
  %v1058 = vmul.f32 %v1044, 1.442695
  %v1059 = vpow.pop %v1058
  %v1060 = vmul.f32 %v1045, 1.442695
  %v1061 = vpow.pop %v1060
  %v1062 = vadd.f32 %v1047, 1.0
  %v1063 = vadd.f32 %v1049, 1.0
  %v1064 = vadd.f32 %v1051, 1.0
  %v1065 = vadd.f32 %v1053, 1.0
  %v1066 = vadd.f32 %v1055, 1.0
  %v1067 = vadd.f32 %v1057, 1.0
  %v1068 = vadd.f32 %v1059, 1.0
  %v1069 = vadd.f32 %v1061, 1.0
  %v1070 = vrcp.pop %v1062
  %v1071 = vmul.f32 %v1062, %v1070
  %v1072 = vsub.f32 1.0, %v1071
  %v1073 = vmul.f32 %v1070, %v1072
  %v1074 = vadd.f32 %v1070, %v1073
  %vm1075 = vweird.f32 %v1062
  %vm1076 = vweird.f32 %v1070
  %vm1077 = vmor %vm1075, %vm1076
  %v1078 = vsel %vm1077, %v1070, %v1074
  %v1079 = vand.u32 2147483647, %v1062
  %vm1080 = vcmp.eq.f32.partialorder %v1079, 8.507059e+37
  %v1081 = vand.u32 %v1062, 2147483648
  %v1082 = vor.u32 1.1754944e-38, %v1081
  %v1083 = vsel %vm1080, %v1082, %v1078
  %v1084 = vmul.f32 1.0, %v1083
  %v1085 = vrcp.pop %v1063
  %v1086 = vmul.f32 %v1063, %v1085
  %v1087 = vsub.f32 1.0, %v1086
  %v1088 = vmul.f32 %v1085, %v1087
  %v1089 = vadd.f32 %v1085, %v1088
  %vm1090 = vweird.f32 %v1063
  %vm1091 = vweird.f32 %v1085
  %vm1092 = vmor %vm1090, %vm1091
  %v1093 = vsel %vm1092, %v1085, %v1089
  %v1094 = vand.u32 2147483647, %v1063
  %vm1095 = vcmp.eq.f32.partialorder %v1094, 8.507059e+37
  %v1096 = vand.u32 %v1063, 2147483648
  %v1097 = vor.u32 1.1754944e-38, %v1096
  %v1098 = vsel %vm1095, %v1097, %v1093
  %v1099 = vmul.f32 1.0, %v1098
  %v1100 = vrcp.pop %v1064
  %v1101 = vmul.f32 %v1064, %v1100
  %v1102 = vsub.f32 1.0, %v1101
  %v1103 = vmul.f32 %v1100, %v1102
  %v1104 = vadd.f32 %v1100, %v1103
  %vm1105 = vweird.f32 %v1064
  %vm1106 = vweird.f32 %v1100
  %vm1107 = vmor %vm1105, %vm1106
  %v1108 = vsel %vm1107, %v1100, %v1104
  %v1109 = vand.u32 2147483647, %v1064
  %vm1110 = vcmp.eq.f32.partialorder %v1109, 8.507059e+37
  %v1111 = vand.u32 %v1064, 2147483648
  %v1112 = vor.u32 1.1754944e-38, %v1111
  %v1113 = vsel %vm1110, %v1112, %v1108
  %v1114 = vmul.f32 1.0, %v1113
  %v1115 = vrcp.pop %v1065
  %v1116 = vmul.f32 %v1065, %v1115
  %v1117 = vsub.f32 1.0, %v1116
  %v1118 = vmul.f32 %v1115, %v1117
  %v1119 = vadd.f32 %v1115, %v1118
  %vm1120 = vweird.f32 %v1065
  %vm1121 = vweird.f32 %v1115
  %vm1122 = vmor %vm1120, %vm1121
  %v1123 = vsel %vm1122, %v1115, %v1119
  %v1124 = vand.u32 2147483647, %v1065
  %vm1125 = vcmp.eq.f32.partialorder %v1124, 8.507059e+37
  %v1126 = vand.u32 %v1065, 2147483648
  %v1127 = vor.u32 1.1754944e-38, %v1126
  %v1128 = vsel %vm1125, %v1127, %v1123
  %v1129 = vmul.f32 1.0, %v1128
  %v1130 = vrcp.pop %v1066
  %v1131 = vmul.f32 %v1066, %v1130
  %v1132 = vsub.f32 1.0, %v1131
  %v1133 = vmul.f32 %v1130, %v1132
  %v1134 = vadd.f32 %v1130, %v1133
  %vm1135 = vweird.f32 %v1066
  %vm1136 = vweird.f32 %v1130
  %vm1137 = vmor %vm1135, %vm1136
  %v1138 = vsel %vm1137, %v1130, %v1134
  %v1139 = vand.u32 2147483647, %v1066
  %vm1140 = vcmp.eq.f32.partialorder %v1139, 8.507059e+37
  %v1141 = vand.u32 %v1066, 2147483648
  %v1142 = vor.u32 1.1754944e-38, %v1141
  %v1143 = vsel %vm1140, %v1142, %v1138
  %v1144 = vmul.f32 1.0, %v1143
  %v1145 = vrcp.pop %v1067
  %v1146 = vmul.f32 %v1067, %v1145
  %v1147 = vsub.f32 1.0, %v1146
  %v1148 = vmul.f32 %v1145, %v1147
  %v1149 = vadd.f32 %v1145, %v1148
  %vm1150 = vweird.f32 %v1067
  %vm1151 = vweird.f32 %v1145
  %vm1152 = vmor %vm1150, %vm1151
  %v1153 = vsel %vm1152, %v1145, %v1149
  %v1154 = vand.u32 2147483647, %v1067
  %vm1155 = vcmp.eq.f32.partialorder %v1154, 8.507059e+37
  %v1156 = vand.u32 %v1067, 2147483648
  %v1157 = vor.u32 1.1754944e-38, %v1156
  %v1158 = vsel %vm1155, %v1157, %v1153
  %v1159 = vmul.f32 1.0, %v1158
  %v1160 = vrcp.pop %v1068
  %v1161 = vmul.f32 %v1068, %v1160
  %v1162 = vsub.f32 1.0, %v1161
  %v1163 = vmul.f32 %v1160, %v1162
  %v1164 = vadd.f32 %v1160, %v1163
  %vm1165 = vweird.f32 %v1068
  %vm1166 = vweird.f32 %v1160
  %vm1167 = vmor %vm1165, %vm1166
  %v1168 = vsel %vm1167, %v1160, %v1164
  %v1169 = vand.u32 2147483647, %v1068
  %vm1170 = vcmp.eq.f32.partialorder %v1169, 8.507059e+37
  %v1171 = vand.u32 %v1068, 2147483648
  %v1172 = vor.u32 1.1754944e-38, %v1171
  %v1173 = vsel %vm1170, %v1172, %v1168
  %v1174 = vmul.f32 1.0, %v1173
  %v1175 = vrcp.pop %v1069
  %v1176 = vmul.f32 %v1069, %v1175
  %v1177 = vsub.f32 1.0, %v1176
  %v1178 = vmul.f32 %v1175, %v1177
  %v1179 = vadd.f32 %v1175, %v1178
  %vm1180 = vweird.f32 %v1069
  %vm1181 = vweird.f32 %v1175
  %vm1182 = vmor %vm1180, %vm1181
  %v1183 = vsel %vm1182, %v1175, %v1179
  %v1184 = vand.u32 2147483647, %v1069
  %vm1185 = vcmp.eq.f32.partialorder %v1184, 8.507059e+37
  %v1186 = vand.u32 %v1069, 2147483648
  %v1187 = vor.u32 1.1754944e-38, %v1186
  %v1188 = vsel %vm1185, %v1187, %v1183
  %v1189 = vmul.f32 1.0, %v1188
  %v1190 = vmul.f32 %v1030, %v1084
  %v1191 = vmul.f32 %v1031, %v1099
  %v1192 = vmul.f32 %v1032, %v1114
  %v1193 = vmul.f32 %v1033, %v1129
  %v1194 = vmul.f32 %v1034, %v1144
  %v1195 = vmul.f32 %v1035, %v1159
  %v1196 = vmul.f32 %v1036, %v1174
  %v1197 = vmul.f32 %v1037, %v1189
  %v1198 = vadd.f32 %v1022, %v1190
  %v1199 = vadd.f32 %v1023, %v1191
  %v1200 = vadd.f32 %v1024, %v1192
  %v1201 = vadd.f32 %v1025, %v1193
  %v1202 = vadd.f32 %v1026, %v1194
  %v1203 = vadd.f32 %v1027, %v1195
  %v1204 = vadd.f32 %v1028, %v1196
  %v1205 = vadd.f32 %v1029, %v1197
  %v1206 = vxor.u32 %v650, 2147483648
  %v1207 = vxor.u32 %v655, 2147483648
  %v1208 = vxor.u32 %v660, 2147483648
  %v1209 = vxor.u32 %v665, 2147483648
  %v1210 = vxor.u32 %v670, 2147483648
  %v1211 = vxor.u32 %v675, 2147483648
  %v1212 = vxor.u32 %v680, 2147483648
  %v1213 = vxor.u32 %v685, 2147483648
  %v1214 = vmul.f32 %v1206, 1.442695
  %v1215 = vpow.pop %v1214
  %v1216 = vmul.f32 %v1207, 1.442695
  %v1217 = vpow.pop %v1216
  %v1218 = vmul.f32 %v1208, 1.442695
  %v1219 = vpow.pop %v1218
  %v1220 = vmul.f32 %v1209, 1.442695
  %v1221 = vpow.pop %v1220
  %v1222 = vmul.f32 %v1210, 1.442695
  %v1223 = vpow.pop %v1222
  %v1224 = vmul.f32 %v1211, 1.442695
  %v1225 = vpow.pop %v1224
  %v1226 = vmul.f32 %v1212, 1.442695
  %v1227 = vpow.pop %v1226
  %v1228 = vmul.f32 %v1213, 1.442695
  %v1229 = vpow.pop %v1228
  %v1230 = vadd.f32 %v1215, 1.0
  %v1231 = vadd.f32 %v1217, 1.0
  %v1232 = vadd.f32 %v1219, 1.0
  %v1233 = vadd.f32 %v1221, 1.0
  %v1234 = vadd.f32 %v1223, 1.0
  %v1235 = vadd.f32 %v1225, 1.0
  %v1236 = vadd.f32 %v1227, 1.0
  %v1237 = vadd.f32 %v1229, 1.0
  %v1238 = vrcp.pop %v1230
  %v1239 = vmul.f32 %v1230, %v1238
  %v1240 = vsub.f32 1.0, %v1239
  %v1241 = vmul.f32 %v1238, %v1240
  %v1242 = vadd.f32 %v1238, %v1241
  %vm1243 = vweird.f32 %v1230
  %vm1244 = vweird.f32 %v1238
  %vm1245 = vmor %vm1243, %vm1244
  %v1246 = vsel %vm1245, %v1238, %v1242
  %v1247 = vand.u32 2147483647, %v1230
  %vm1248 = vcmp.eq.f32.partialorder %v1247, 8.507059e+37
  %v1249 = vand.u32 %v1230, 2147483648
  %v1250 = vor.u32 1.1754944e-38, %v1249
  %v1251 = vsel %vm1248, %v1250, %v1246
  %v1252 = vmul.f32 1.0, %v1251
  %v1253 = vrcp.pop %v1231
  %v1254 = vmul.f32 %v1231, %v1253
  %v1255 = vsub.f32 1.0, %v1254
  %v1256 = vmul.f32 %v1253, %v1255
  %v1257 = vadd.f32 %v1253, %v1256
  %vm1258 = vweird.f32 %v1231
  %vm1259 = vweird.f32 %v1253
  %vm1260 = vmor %vm1258, %vm1259
  %v1261 = vsel %vm1260, %v1253, %v1257
  %v1262 = vand.u32 2147483647, %v1231
  %vm1263 = vcmp.eq.f32.partialorder %v1262, 8.507059e+37
  %v1264 = vand.u32 %v1231, 2147483648
  %v1265 = vor.u32 1.1754944e-38, %v1264
  %v1266 = vsel %vm1263, %v1265, %v1261
  %v1267 = vmul.f32 1.0, %v1266
  %v1268 = vrcp.pop %v1232
  %v1269 = vmul.f32 %v1232, %v1268
  %v1270 = vsub.f32 1.0, %v1269
  %v1271 = vmul.f32 %v1268, %v1270
  %v1272 = vadd.f32 %v1268, %v1271
  %vm1273 = vweird.f32 %v1232
  %vm1274 = vweird.f32 %v1268
  %vm1275 = vmor %vm1273, %vm1274
  %v1276 = vsel %vm1275, %v1268, %v1272
  %v1277 = vand.u32 2147483647, %v1232
  %vm1278 = vcmp.eq.f32.partialorder %v1277, 8.507059e+37
  %v1279 = vand.u32 %v1232, 2147483648
  %v1280 = vor.u32 1.1754944e-38, %v1279
  %v1281 = vsel %vm1278, %v1280, %v1276
  %v1282 = vmul.f32 1.0, %v1281
  %v1283 = vrcp.pop %v1233
  %v1284 = vmul.f32 %v1233, %v1283
  %v1285 = vsub.f32 1.0, %v1284
  %v1286 = vmul.f32 %v1283, %v1285
  %v1287 = vadd.f32 %v1283, %v1286
  %vm1288 = vweird.f32 %v1233
  %vm1289 = vweird.f32 %v1283
  %vm1290 = vmor %vm1288, %vm1289
  %v1291 = vsel %vm1290, %v1283, %v1287
  %v1292 = vand.u32 2147483647, %v1233
  %vm1293 = vcmp.eq.f32.partialorder %v1292, 8.507059e+37
  %v1294 = vand.u32 %v1233, 2147483648
  %v1295 = vor.u32 1.1754944e-38, %v1294
  %v1296 = vsel %vm1293, %v1295, %v1291
  %v1297 = vmul.f32 1.0, %v1296
  %v1298 = vrcp.pop %v1234
  %v1299 = vmul.f32 %v1234, %v1298
  %v1300 = vsub.f32 1.0, %v1299
  %v1301 = vmul.f32 %v1298, %v1300
  %v1302 = vadd.f32 %v1298, %v1301
  %vm1303 = vweird.f32 %v1234
  %vm1304 = vweird.f32 %v1298
  %vm1305 = vmor %vm1303, %vm1304
  %v1306 = vsel %vm1305, %v1298, %v1302
  %v1307 = vand.u32 2147483647, %v1234
  %vm1308 = vcmp.eq.f32.partialorder %v1307, 8.507059e+37
  %v1309 = vand.u32 %v1234, 2147483648
  %v1310 = vor.u32 1.1754944e-38, %v1309
  %v1311 = vsel %vm1308, %v1310, %v1306
  %v1312 = vmul.f32 1.0, %v1311
  %v1313 = vrcp.pop %v1235
  %v1314 = vmul.f32 %v1235, %v1313
  %v1315 = vsub.f32 1.0, %v1314
  %v1316 = vmul.f32 %v1313, %v1315
  %v1317 = vadd.f32 %v1313, %v1316
  %vm1318 = vweird.f32 %v1235
  %vm1319 = vweird.f32 %v1313
  %vm1320 = vmor %vm1318, %vm1319
  %v1321 = vsel %vm1320, %v1313, %v1317
  %v1322 = vand.u32 2147483647, %v1235
  %vm1323 = vcmp.eq.f32.partialorder %v1322, 8.507059e+37
  %v1324 = vand.u32 %v1235, 2147483648
  %v1325 = vor.u32 1.1754944e-38, %v1324
  %v1326 = vsel %vm1323, %v1325, %v1321
  %v1327 = vmul.f32 1.0, %v1326
  %v1328 = vrcp.pop %v1236
  %v1329 = vmul.f32 %v1236, %v1328
  %v1330 = vsub.f32 1.0, %v1329
  %v1331 = vmul.f32 %v1328, %v1330
  %v1332 = vadd.f32 %v1328, %v1331
  %vm1333 = vweird.f32 %v1236
  %vm1334 = vweird.f32 %v1328
  %vm1335 = vmor %vm1333, %vm1334
  %v1336 = vsel %vm1335, %v1328, %v1332
  %v1337 = vand.u32 2147483647, %v1236
  %vm1338 = vcmp.eq.f32.partialorder %v1337, 8.507059e+37
  %v1339 = vand.u32 %v1236, 2147483648
  %v1340 = vor.u32 1.1754944e-38, %v1339
  %v1341 = vsel %vm1338, %v1340, %v1336
  %v1342 = vmul.f32 1.0, %v1341
  %v1343 = vrcp.pop %v1237
  %v1344 = vmul.f32 %v1237, %v1343
  %v1345 = vsub.f32 1.0, %v1344
  %v1346 = vmul.f32 %v1343, %v1345
  %v1347 = vadd.f32 %v1343, %v1346
  %vm1348 = vweird.f32 %v1237
  %vm1349 = vweird.f32 %v1343
  %vm1350 = vmor %vm1348, %vm1349
  %v1351 = vsel %vm1350, %v1343, %v1347
  %v1352 = vand.u32 2147483647, %v1237
  %vm1353 = vcmp.eq.f32.partialorder %v1352, 8.507059e+37
  %v1354 = vand.u32 %v1237, 2147483648
  %v1355 = vor.u32 1.1754944e-38, %v1354
  %v1356 = vsel %vm1353, %v1355, %v1351
  %v1357 = vmul.f32 1.0, %v1356
  %v1358 = vtanh.pop %v1198
  %v1359 = vtanh.pop %v1199
  %v1360 = vtanh.pop %v1200
  %v1361 = vtanh.pop %v1201
  %v1362 = vtanh.pop %v1202
  %v1363 = vtanh.pop %v1203
  %v1364 = vtanh.pop %v1204
  %v1365 = vtanh.pop %v1205
  %v1366 = vmul.f32 %v1252, %v1358
  %v1367 = vmul.f32 %v1267, %v1359
  %v1368 = vmul.f32 %v1282, %v1360
  %v1369 = vmul.f32 %v1297, %v1361
  %v1370 = vmul.f32 %v1312, %v1362
  %v1371 = vmul.f32 %v1327, %v1363
  %v1372 = vmul.f32 %v1342, %v1364
  %v1373 = vmul.f32 %v1357, %v1365
  %1374 = vst [vmem:[%s8] sm:$0xff] %v1366
  %1375 = vst [vmem:[%s8 + $0x8] sm:$0xff] %v1367
  %1376 = vst [vmem:[%s8 + $0x10] sm:$0xff] %v1368
  %1377 = vst [vmem:[%s8 + $0x18] sm:$0xff] %v1369
  %1378 = vst [vmem:[%s8 + $0x20] sm:$0xff] %v1370
  %1379 = vst [vmem:[%s8 + $0x28] sm:$0xff] %v1371
  %1380 = vst [vmem:[%s8 + $0x30] sm:$0xff] %v1372
  %1381 = vst [vmem:[%s8 + $0x38] sm:$0xff] %v1373
  %1382 = vst [vmem:[%s9] sm:$0xff] %v1198
  %1383 = vst [vmem:[%s9 + $0x8] sm:$0xff] %v1199
  %1384 = vst [vmem:[%s9 + $0x10] sm:$0xff] %v1200
  %1385 = vst [vmem:[%s9 + $0x18] sm:$0xff] %v1201
  %1386 = vst [vmem:[%s9 + $0x20] sm:$0xff] %v1202
  %1387 = vst [vmem:[%s9 + $0x28] sm:$0xff] %v1203
  %1388 = vst [vmem:[%s9 + $0x30] sm:$0xff] %v1204
  %1389 = vst [vmem:[%s9 + $0x38] sm:$0xff] %v1205
  %v1390 = vld [vmem:[%s7] sm:$0xff]
  %v1391 = vld [vmem:[%s7 + $0x8] sm:$0xff]
  %v1392 = vld [vmem:[%s7 + $0x10] sm:$0xff]
  %v1393 = vld [vmem:[%s7 + $0x18] sm:$0xff]
  %v1394 = vld [vmem:[%s7 + $0x20] sm:$0xff]
  %v1395 = vld [vmem:[%s7 + $0x28] sm:$0xff]
  %v1396 = vld [vmem:[%s7 + $0x30] sm:$0xff]
  %v1397 = vld [vmem:[%s7 + $0x38] sm:$0xff]
  %v1398 = vld [vmem:[%s7 + $0x40] sm:$0xff]
  %v1399 = vld [vmem:[%s7 + $0x48] sm:$0xff]
  %v1400 = vld [vmem:[%s7 + $0x50] sm:$0xff]
  %v1401 = vld [vmem:[%s7 + $0x58] sm:$0xff]
  %v1402 = vld [vmem:[%s7 + $0x60] sm:$0xff]
  %v1403 = vld [vmem:[%s7 + $0x68] sm:$0xff]
  %v1404 = vld [vmem:[%s7 + $0x70] sm:$0xff]
  %v1405 = vld [vmem:[%s7 + $0x78] sm:$0xff]
  %1406 = vmatpush.msra.mxu0 %v1405
  %1407 = vmatpush.msra.mxu0 %v1404
  %1408 = vmatpush.msra.mxu0 %v1403
  %1409 = vmatpush.msra.mxu0 %v1402
  %1410 = vmatpush.msra.mxu0 %v1401
  %1411 = vmatpush.msra.mxu0 %v1400
  %1412 = vmatpush.msra.mxu0 %v1399
  %1413 = vmatpush.msra.mxu0 %v1398
  %1414 = vmatpush.msra.mxu0 %v1397
  %1415 = vmatpush.msra.mxu0 %v1396
  %1416 = vmatpush.msra.mxu0 %v1395
  %1417 = vmatpush.msra.mxu0 %v1394
  %1418 = vmatpush.msra.mxu0 %v1393
  %1419 = vmatpush.msra.mxu0 %v1392
  %1420 = vmatpush.msra.mxu0 %v1391
  %1421 = vmatpush.msra.mxu0 %v1390
  %1422 = vmatmul.f32.gmra.mxu0 %v1366
  %v1423 = vpop.f32.mrf.mxu0
  %v1424 = vadd.f32 0.0, %v1423
  %1425 = vmatmul.f32.gmra.mxu0 %v1367
  %v1426 = vpop.f32.mrf.mxu0
  %v1427 = vadd.f32 0.0, %v1426
  %1428 = vmatmul.f32.gmra.mxu0 %v1368
  %v1429 = vpop.f32.mrf.mxu0
  %v1430 = vadd.f32 0.0, %v1429
  %1431 = vmatmul.f32.gmra.mxu0 %v1369
  %v1432 = vpop.f32.mrf.mxu0
  %v1433 = vadd.f32 0.0, %v1432
  %1434 = vmatmul.f32.gmra.mxu0 %v1370
  %v1435 = vpop.f32.mrf.mxu0
  %v1436 = vadd.f32 0.0, %v1435
  %1437 = vmatmul.f32.gmra.mxu0 %v1371
  %v1438 = vpop.f32.mrf.mxu0
  %v1439 = vadd.f32 0.0, %v1438
  %1440 = vmatmul.f32.gmra.mxu0 %v1372
  %v1441 = vpop.f32.mrf.mxu0
  %v1442 = vadd.f32 0.0, %v1441
  %1443 = vmatmul.f32.gmra.mxu0 %v1373
  %v1444 = vpop.f32.mrf.mxu0
  %v1445 = vadd.f32 0.0, %v1444
  %1446 = vdwg.mxu0
  %1447 = vst [vmem:[%s10] sm:$0xff] %v1424
  %1448 = vst [vmem:[%s10 + $0x8] sm:$0xff] %v1427
  %1449 = vst [vmem:[%s10 + $0x10] sm:$0xff] %v1430
  %1450 = vst [vmem:[%s10 + $0x18] sm:$0xff] %v1433
  %1451 = vst [vmem:[%s10 + $0x20] sm:$0xff] %v1436
  %1452 = vst [vmem:[%s10 + $0x28] sm:$0xff] %v1439
  %1453 = vst [vmem:[%s10 + $0x30] sm:$0xff] %v1442
  %1454 = vst [vmem:[%s10 + $0x38] sm:$0xff] %v1445
  // Predicated region
  $region34: #{_chart_parser_forward_impl.8} parent=0 // pred_check
    _
  $region35: #{_chart_parser_forward_impl.8} parent=0 // pred_check_branch
    %1456 = sbr.rel (0) target = $region37
  $region36: #{_chart_parser_forward_impl.8} parent=0 // pred_region
    _
  $region37: #{_chart_parser_forward_impl.8} parent=0 // pred_fallthru
    _
  // Predicated region
  $region38: #{_chart_parser_forward_impl.8} parent=0 // pred_check
    _
  $region39: #{_chart_parser_forward_impl.8} parent=0 // pred_check_branch
    %1458 = sbr.rel (0) target = $region41
  $region40: #{_chart_parser_forward_impl.8} parent=0 // pred_region
    _
  $region41: #{_chart_parser_forward_impl.8} parent=0 // pred_fallthru
    _
  // Predicated region
  $region42: #{_chart_parser_forward_impl.8} parent=0 // pred_check
    _
  $region43: #{_chart_parser_forward_impl.8} parent=0 // pred_check_branch
    %1460 = sbr.rel (0) target = $region45
  $region44: #{_chart_parser_forward_impl.8} parent=0 // pred_region
    _
  $region45: #{_chart_parser_forward_impl.8} parent=0 // pred_fallthru
    _
  // Predicated region
  $region46: #{_chart_parser_forward_impl.8} parent=0 // pred_check
    _
  $region47: #{_chart_parser_forward_impl.8} parent=0 // pred_check_branch
    %1462 = sbr.rel (0) target = $region49
  $region48: #{_chart_parser_forward_impl.8} parent=0 // pred_region
    _
  $region49: #{_chart_parser_forward_impl.8} parent=0 // pred_fallthru
    _
  // Predicated region
  $region50: #{_chart_parser_forward_impl.8} parent=0 // pred_check
    _
  $region51: #{_chart_parser_forward_impl.8} parent=0 // pred_check_branch
    %1464 = sbr.rel (0) target = $region53
  $region52: #{_chart_parser_forward_impl.8} parent=0 // pred_region
    _
  $region53: #{_chart_parser_forward_impl.8} parent=0 // pred_fallthru
    _
  // Predicated region
  $region54: #{_chart_parser_forward_impl.8} parent=0 // pred_check
    _
  $region55: #{_chart_parser_forward_impl.8} parent=0 // pred_check_branch
    %1466 = sbr.rel (0) target = $region57
  $region56: #{_chart_parser_forward_impl.8} parent=0 // pred_region
    _
  $region57: #{_chart_parser_forward_impl.8} parent=0 // pred_fallthru
    _

// kernel: squeeze.186
$region0: #{squeeze.186}
  %s0 = inlined_call_operand.vmem [shape: f32[72], index: 0, kind: input, shape index: {}]
  %s1 = inlined_call_operand.vmem [shape: f32[3,3,8], index: 1, kind: output, shape index: {}]
  $region1: #{squeeze.186} parent=0
    #allocation0 [shape = 'u8[12288]{0}', space=vmem, size = 0x3000, scoped, tag = 'scoped mem for output reshape']
    #allocation1 [shape = 'u8[4096]{0}', space=vmem, size = 0x1000, scoped, tag = 'scoped mem for input reshape']
    %s3 = ssub.s32 2, 1
    %v4 = vld [vmem:[%s0] sm:%s3]
    %5 = vst [vmem:[#allocation1] sm:%s3] %v4
    %v6 = vld [vmem:[#allocation1] sm:$0x1]
    %vm7 = vcmask 64512
    %8 = vst.msk [vmem:[#allocation0] sm:$0x1] %vm7, %v6
    %v9 = vld [vmem:[#allocation1] sm:$0x1]
    %10 = vrot.lane.b32.xlu0 %v9, 120
    %v11 = vpop.permute.xlu0 %10
    %vm12 = vcmask 64512
    %s13 = scalar_lea.vmem [#allocation0], 1
    %14 = vst.msk [vmem:[%s13] sm:$0x1] %vm12, %v11
    %v15 = vld [vmem:[#allocation1] sm:$0x1]
    %16 = vrot.lane.b32.xlu0 %v15, 112
    %v17 = vpop.permute.xlu0 %16
    %vm18 = vcmask 64512
    %s19 = scalar_lea.vmem [#allocation0], 2
    %20 = vst.msk [vmem:[%s19] sm:$0x1] %vm18, %v17
    %v21 = vld [vmem:[#allocation1] sm:$0x1]
    %22 = vrot.lane.b32.xlu0 %v21, 104
    %v23 = vpop.permute.xlu0 %22
    %vm24 = vcmask 64512
    %s25 = scalar_lea.vmem [#allocation0], 8
    %26 = vst.msk [vmem:[%s25] sm:$0x1] %vm24, %v23
    %v27 = vld [vmem:[#allocation1] sm:$0x1]
    %28 = vrot.lane.b32.xlu0 %v27, 96
    %v29 = vpop.permute.xlu0 %28
    %vm30 = vcmask 64512
    %s31 = scalar_lea.vmem [#allocation0], 9
    %32 = vst.msk [vmem:[%s31] sm:$0x1] %vm30, %v29
    %v33 = vld [vmem:[#allocation1] sm:$0x1]
    %34 = vrot.lane.b32.xlu0 %v33, 88
    %v35 = vpop.permute.xlu0 %34
    %vm36 = vcmask 64512
    %s37 = scalar_lea.vmem [#allocation0], 10
    %38 = vst.msk [vmem:[%s37] sm:$0x1] %vm36, %v35
    %v39 = vld [vmem:[#allocation1] sm:$0x1]
    %40 = vrot.lane.b32.xlu0 %v39, 80
    %v41 = vpop.permute.xlu0 %40
    %vm42 = vcmask 64512
    %s43 = scalar_lea.vmem [#allocation0], 16
    %44 = vst.msk [vmem:[%s43] sm:$0x1] %vm42, %v41
    %v45 = vld [vmem:[#allocation1] sm:$0x1]
    %46 = vrot.lane.b32.xlu0 %v45, 72
    %v47 = vpop.permute.xlu0 %46
    %vm48 = vcmask 64512
    %s49 = scalar_lea.vmem [#allocation0], 17
    %50 = vst.msk [vmem:[%s49] sm:$0x1] %vm48, %v47
    %v51 = vld [vmem:[#allocation1] sm:$0x1]
    %52 = vrot.lane.b32.xlu0 %v51, 64
    %v53 = vpop.permute.xlu0 %52
    %vm54 = vcmask 64512
    %s55 = scalar_lea.vmem [#allocation0], 18
    %56 = vst.msk [vmem:[%s55] sm:$0x1] %vm54, %v53
    %s58 = ssub.s32 16, 1
    %v59 = vld [vmem:[#allocation0] sm:%s58]
    %s61 = ssub.s32 16, 1
    %62 = vst [vmem:[%s1] sm:%s61] %v59
    %s63 = scalar_lea.vmem [#allocation0], 8
    %v64 = vld [vmem:[%s63] sm:%s58]
    %s66 = ssub.s32 16, 1
    %s67 = scalar_lea.vmem %s1, 4
    %68 = vst [vmem:[%s67] sm:%s66] %v64
    %s69 = scalar_lea.vmem [#allocation0], 16
    %v70 = vld [vmem:[%s69] sm:%s58]
    %s72 = ssub.s32 16, 1
    %s73 = scalar_lea.vmem %s1, 8
    %74 = vst [vmem:[%s73] sm:%s72] %v70

// kernel: div.46
$region0: #{div.46}
  %s0 = inlined_call_operand.vmem [shape: f32[3,8], index: 0, kind: input, shape index: {}]
  %s1 = inlined_call_operand.vmem [shape: f32[24], index: 1, kind: output, shape index: {}]
  $region1: #{div.46} parent=0
    #allocation0 [shape = 'u8[4096]{0}', space=vmem, size = 0x1000, scoped, tag = 'scoped mem for output reshape']
    #allocation1 [shape = 'u8[4096]{0}', space=vmem, size = 0x1000, scoped, tag = 'scoped mem for input reshape']
    %s3 = ssub.s32 16, 1
    %v4 = vld [vmem:[%s0] sm:%s3]
    %5 = vst [vmem:[#allocation1] sm:%s3] %v4
    %v6 = vld [vmem:[#allocation1] sm:$0x1]
    %vm7 = vcmask 64512
    %8 = vst.msk [vmem:[#allocation0] sm:$0x1] %vm7, %v6
    %s9 = scalar_lea.vmem [#allocation1], 2
    %v10 = vld [vmem:[%s9] sm:$0x1]
    %11 = vrot.lane.b32.xlu0 %v10, 16
    %v12 = vpop.permute.xlu0 %11
    %vm13 = vcmask 195712
    %14 = vst.msk [vmem:[#allocation0] sm:$0x1] %vm13, %v12
    %s15 = scalar_lea.vmem [#allocation1], 1
    %v16 = vld [vmem:[%s15] sm:$0x1]
    %17 = vrot.lane.b32.xlu0 %v16, 8
    %v18 = vpop.permute.xlu0 %17
    %vm19 = vcmask 130112
    %20 = vst.msk [vmem:[#allocation0] sm:$0x1] %vm19, %v18
    %s22 = ssub.s32 2, 1
    %v23 = vld [vmem:[#allocation0] sm:%s22]
    %s25 = ssub.s32 2, 1
    %26 = vst [vmem:[%s1] sm:%s25] %v23

// kernel: squeeze.200
$region0: #{squeeze.200}
  %s0 = inlined_call_operand.vmem [shape: f32[64], index: 0, kind: input, shape index: {}]
  %s1 = inlined_call_operand.vmem [shape: f32[2,4,8], index: 1, kind: output, shape index: {}]
  $region1: #{squeeze.200} parent=0
    #allocation0 [shape = 'u8[8192]{0}', space=vmem, size = 0x2000, scoped, tag = 'scoped mem for output reshape']
    #allocation1 [shape = 'u8[4096]{0}', space=vmem, size = 0x1000, scoped, tag = 'scoped mem for input reshape']
    %s3 = ssub.s32 2, 1
    %v4 = vld [vmem:[%s0] sm:%s3]
    %5 = vst [vmem:[#allocation1] sm:%s3] %v4
    %v6 = vld [vmem:[#allocation1] sm:$0x1]
    %vm7 = vcmask 64512
    %8 = vst.msk [vmem:[#allocation0] sm:$0x1] %vm7, %v6
    %v9 = vld [vmem:[#allocation1] sm:$0x1]
    %10 = vrot.lane.b32.xlu0 %v9, 120
    %v11 = vpop.permute.xlu0 %10
    %vm12 = vcmask 64512
    %s13 = scalar_lea.vmem [#allocation0], 1
    %14 = vst.msk [vmem:[%s13] sm:$0x1] %vm12, %v11
    %v15 = vld [vmem:[#allocation1] sm:$0x1]
    %16 = vrot.lane.b32.xlu0 %v15, 112
    %v17 = vpop.permute.xlu0 %16
    %vm18 = vcmask 64512
    %s19 = scalar_lea.vmem [#allocation0], 2
    %20 = vst.msk [vmem:[%s19] sm:$0x1] %vm18, %v17
    %v21 = vld [vmem:[#allocation1] sm:$0x1]
    %22 = vrot.lane.b32.xlu0 %v21, 104
    %v23 = vpop.permute.xlu0 %22
    %vm24 = vcmask 64512
    %s25 = scalar_lea.vmem [#allocation0], 3
    %26 = vst.msk [vmem:[%s25] sm:$0x1] %vm24, %v23
    %v27 = vld [vmem:[#allocation1] sm:$0x1]
    %28 = vrot.lane.b32.xlu0 %v27, 96
    %v29 = vpop.permute.xlu0 %28
    %vm30 = vcmask 64512
    %s31 = scalar_lea.vmem [#allocation0], 8
    %32 = vst.msk [vmem:[%s31] sm:$0x1] %vm30, %v29
    %v33 = vld [vmem:[#allocation1] sm:$0x1]
    %34 = vrot.lane.b32.xlu0 %v33, 88
    %v35 = vpop.permute.xlu0 %34
    %vm36 = vcmask 64512
    %s37 = scalar_lea.vmem [#allocation0], 9
    %38 = vst.msk [vmem:[%s37] sm:$0x1] %vm36, %v35
    %v39 = vld [vmem:[#allocation1] sm:$0x1]
    %40 = vrot.lane.b32.xlu0 %v39, 80
    %v41 = vpop.permute.xlu0 %40
    %vm42 = vcmask 64512
    %s43 = scalar_lea.vmem [#allocation0], 10
    %44 = vst.msk [vmem:[%s43] sm:$0x1] %vm42, %v41
    %v45 = vld [vmem:[#allocation1] sm:$0x1]
    %46 = vrot.lane.b32.xlu0 %v45, 72
    %v47 = vpop.permute.xlu0 %46
    %vm48 = vcmask 64512
    %s49 = scalar_lea.vmem [#allocation0], 11
    %50 = vst.msk [vmem:[%s49] sm:$0x1] %vm48, %v47
    %s52 = ssub.s32 16, 1
    %v53 = vld [vmem:[#allocation0] sm:%s52]
    %s55 = ssub.s32 16, 1
    %56 = vst [vmem:[%s1] sm:%s55] %v53
    %s57 = scalar_lea.vmem [#allocation0], 8
    %v58 = vld [vmem:[%s57] sm:%s52]
    %s60 = ssub.s32 16, 1
    %s61 = scalar_lea.vmem %s1, 4
    %62 = vst [vmem:[%s61] sm:%s60] %v58

// kernel: div.51
$region0: #{div.51}
  %s0 = inlined_call_operand.vmem [shape: f32[2,8], index: 0, kind: input, shape index: {}]
  %s1 = inlined_call_operand.vmem [shape: f32[16], index: 1, kind: output, shape index: {}]
  $region1: #{div.51} parent=0
    #allocation0 [shape = 'u8[4096]{0}', space=vmem, size = 0x1000, scoped, tag = 'scoped mem for output reshape']
    #allocation1 [shape = 'u8[4096]{0}', space=vmem, size = 0x1000, scoped, tag = 'scoped mem for input reshape']
    %s3 = ssub.s32 4, 1
    %v4 = vld [vmem:[%s0] sm:%s3]
    %5 = vst [vmem:[#allocation1] sm:%s3] %v4
    %v6 = vld [vmem:[#allocation1] sm:$0x1]
    %vm7 = vcmask 64512
    %8 = vst.msk [vmem:[#allocation0] sm:$0x1] %vm7, %v6
    %s9 = scalar_lea.vmem [#allocation1], 1
    %v10 = vld [vmem:[%s9] sm:$0x1]
    %11 = vrot.lane.b32.xlu0 %v10, 8
    %v12 = vpop.permute.xlu0 %11
    %vm13 = vcmask 130112
    %14 = vst.msk [vmem:[#allocation0] sm:$0x1] %vm13, %v12
    %s16 = ssub.s32 2, 1
    %v17 = vld [vmem:[#allocation0] sm:%s16]
    %s19 = ssub.s32 2, 1
    %20 = vst [vmem:[%s1] sm:%s19] %v17

// kernel: _chart_parser_forward_impl.9
$region0: #{_chart_parser_forward_impl.9}
  #allocation0 [shape = 'u32[]', space=smem, size = 0x4, offset = 0x4, fixed_abs, tag = 'smem constant byte address 0x4 - core index']
  #allocation1 [shape = 'u32[72,128]{1,0:T(1,128)}', space=vmem, size = 0x9000, scoped, tag = 'internal scratch']
  %s0 = inlined_call_operand.vmem [shape: f32[72,128], index: 0, kind: input, shape index: {}]
  %s1 = inlined_call_operand.vmem [shape: f32[72,128], index: 1, kind: input, shape index: {}]
  %s2 = inlined_call_operand.vmem [shape: f32[72,128], index: 2, kind: input, shape index: {}]
  %s3 = inlined_call_operand.vmem [shape: f32[72,128], index: 3, kind: input, shape index: {}]
  %s4 = inlined_call_operand.vmem [shape: f32[128,640], index: 4, kind: input, shape index: {}]
  %s5 = inlined_call_operand.vmem [shape: f32[128,640], index: 5, kind: input, shape index: {}]
  %s6 = inlined_call_operand.vmem [shape: f32[1,640], index: 6, kind: input, shape index: {}]
  %s7 = inlined_call_operand.vmem [shape: f32[128,128], index: 7, kind: input, shape index: {}]
  %s8 = inlined_call_operand.vmem [shape: f32[72,128], index: 8, kind: output, shape index: {0}]
  %s9 = inlined_call_operand.vmem [shape: f32[72,128], index: 9, kind: output, shape index: {1}]
  %s10 = inlined_call_operand.vmem [shape: f32[72,128], index: 10, kind: output, shape index: {2}]
  %11 = xla_tuple %s8, %s9, %s10
  %s12 = sld [smem:[#allocation0]]
  $region58: #{_chart_parser_forward_impl.9} parent=0
    _
  %s14 = ssub.s32 1, %s12
  %s15 = scalar_select 0, %s14, %s12
  // Predicated region
  $region2: #{_chart_parser_forward_impl.9} parent=0 // pred_check
    _
  $region3: #{_chart_parser_forward_impl.9} parent=0 // pred_check_branch
    %17 = sbr.rel (0) target = $region5
  $region4: #{_chart_parser_forward_impl.9} parent=0 // pred_region
    _
  $region5: #{_chart_parser_forward_impl.9} parent=0 // pred_fallthru
    _
  // Predicated region
  $region6: #{_chart_parser_forward_impl.9} parent=0 // pred_check
    _
  $region7: #{_chart_parser_forward_impl.9} parent=0 // pred_check_branch
    %19 = sbr.rel (0) target = $region9
  $region8: #{_chart_parser_forward_impl.9} parent=0 // pred_region
    _
  $region9: #{_chart_parser_forward_impl.9} parent=0 // pred_fallthru
    _
  // Predicated region
  $region10: #{_chart_parser_forward_impl.9} parent=0 // pred_check
    _
  $region11: #{_chart_parser_forward_impl.9} parent=0 // pred_check_branch
    %21 = sbr.rel (0) target = $region13
  $region12: #{_chart_parser_forward_impl.9} parent=0 // pred_region
    _
  $region13: #{_chart_parser_forward_impl.9} parent=0 // pred_fallthru
    _
  // Predicated region
  $region14: #{_chart_parser_forward_impl.9} parent=0 // pred_check
    _
  $region15: #{_chart_parser_forward_impl.9} parent=0 // pred_check_branch
    %23 = sbr.rel (0) target = $region17
  $region16: #{_chart_parser_forward_impl.9} parent=0 // pred_region
    _
  $region17: #{_chart_parser_forward_impl.9} parent=0 // pred_fallthru
    _
  // Predicated region
  $region18: #{_chart_parser_forward_impl.9} parent=0 // pred_check
    _
  $region19: #{_chart_parser_forward_impl.9} parent=0 // pred_check_branch
    %25 = sbr.rel (0) target = $region21
  $region20: #{_chart_parser_forward_impl.9} parent=0 // pred_region
    _
  $region21: #{_chart_parser_forward_impl.9} parent=0 // pred_fallthru
    _
  // Predicated region
  $region22: #{_chart_parser_forward_impl.9} parent=0 // pred_check
    _
  $region23: #{_chart_parser_forward_impl.9} parent=0 // pred_check_branch
    %27 = sbr.rel (0) target = $region25
  $region24: #{_chart_parser_forward_impl.9} parent=0 // pred_region
    _
  $region25: #{_chart_parser_forward_impl.9} parent=0 // pred_fallthru
    _
  // Predicated region
  $region26: #{_chart_parser_forward_impl.9} parent=0 // pred_check
    _
  $region27: #{_chart_parser_forward_impl.9} parent=0 // pred_check_branch
    %29 = sbr.rel (0) target = $region29
  $region28: #{_chart_parser_forward_impl.9} parent=0 // pred_region
    _
  $region29: #{_chart_parser_forward_impl.9} parent=0 // pred_fallthru
    _
  // Predicated region
  $region30: #{_chart_parser_forward_impl.9} parent=0 // pred_check
    _
  $region31: #{_chart_parser_forward_impl.9} parent=0 // pred_check_branch
    %31 = sbr.rel (0) target = $region33
  $region32: #{_chart_parser_forward_impl.9} parent=0 // pred_region
    _
  $region33: #{_chart_parser_forward_impl.9} parent=0 // pred_fallthru
    _
  %v32 = vld [vmem:[%s0] sm:$0xff]
  %v33 = vld [vmem:[%s0 + $0x8] sm:$0xff]
  %v34 = vld [vmem:[%s0 + $0x10] sm:$0xff]
  %v35 = vld [vmem:[%s0 + $0x18] sm:$0xff]
  %v36 = vld [vmem:[%s0 + $0x20] sm:$0xff]
  %v37 = vld [vmem:[%s0 + $0x28] sm:$0xff]
  %v38 = vld [vmem:[%s0 + $0x30] sm:$0xff]
  %v39 = vld [vmem:[%s0 + $0x38] sm:$0xff]
  %v40 = vld [vmem:[%s0 + $0x40] sm:$0xff]
  %v41 = vld [vmem:[%s1] sm:$0xff]
  %v42 = vld [vmem:[%s1 + $0x8] sm:$0xff]
  %v43 = vld [vmem:[%s1 + $0x10] sm:$0xff]
  %v44 = vld [vmem:[%s1 + $0x18] sm:$0xff]
  %v45 = vld [vmem:[%s1 + $0x20] sm:$0xff]
  %v46 = vld [vmem:[%s1 + $0x28] sm:$0xff]
  %v47 = vld [vmem:[%s1 + $0x30] sm:$0xff]
  %v48 = vld [vmem:[%s1 + $0x38] sm:$0xff]
  %v49 = vld [vmem:[%s1 + $0x40] sm:$0xff]
  %v50 = vld [vmem:[%s2] sm:$0xff]
  %v51 = vld [vmem:[%s2 + $0x8] sm:$0xff]
  %v52 = vld [vmem:[%s2 + $0x10] sm:$0xff]
  %v53 = vld [vmem:[%s2 + $0x18] sm:$0xff]
  %v54 = vld [vmem:[%s2 + $0x20] sm:$0xff]
  %v55 = vld [vmem:[%s2 + $0x28] sm:$0xff]
  %v56 = vld [vmem:[%s2 + $0x30] sm:$0xff]
  %v57 = vld [vmem:[%s2 + $0x38] sm:$0xff]
  %v58 = vld [vmem:[%s2 + $0x40] sm:$0xff]
  %v59 = vld [vmem:[%s3] sm:$0xff]
  %v60 = vld [vmem:[%s3 + $0x8] sm:$0xff]
  %v61 = vld [vmem:[%s3 + $0x10] sm:$0xff]
  %v62 = vld [vmem:[%s3 + $0x18] sm:$0xff]
  %v63 = vld [vmem:[%s3 + $0x20] sm:$0xff]
  %v64 = vld [vmem:[%s3 + $0x28] sm:$0xff]
  %v65 = vld [vmem:[%s3 + $0x30] sm:$0xff]
  %v66 = vld [vmem:[%s3 + $0x38] sm:$0xff]
  %v67 = vld [vmem:[%s3 + $0x40] sm:$0xff]
  %v68 = vld [vmem:[%s4] sm:$0xff]
  %v69 = vld [vmem:[%s4 + $0x8] sm:$0xff]
  %v70 = vld [vmem:[%s4 + $0x10] sm:$0xff]
  %v71 = vld [vmem:[%s4 + $0x18] sm:$0xff]
  %v72 = vld [vmem:[%s4 + $0x20] sm:$0xff]
  %v73 = vld [vmem:[%s4 + $0x28] sm:$0xff]
  %v74 = vld [vmem:[%s4 + $0x30] sm:$0xff]
  %v75 = vld [vmem:[%s4 + $0x38] sm:$0xff]
  %v76 = vld [vmem:[%s4 + $0x40] sm:$0xff]
  %v77 = vld [vmem:[%s4 + $0x48] sm:$0xff]
  %v78 = vld [vmem:[%s4 + $0x50] sm:$0xff]
  %v79 = vld [vmem:[%s4 + $0x58] sm:$0xff]
  %v80 = vld [vmem:[%s4 + $0x60] sm:$0xff]
  %v81 = vld [vmem:[%s4 + $0x68] sm:$0xff]
  %v82 = vld [vmem:[%s4 + $0x70] sm:$0xff]
  %v83 = vld [vmem:[%s4 + $0x78] sm:$0xff]
  %v84 = vld [vmem:[%s4 + $0x80] sm:$0xff]
  %v85 = vld [vmem:[%s4 + $0x88] sm:$0xff]
  %v86 = vld [vmem:[%s4 + $0x90] sm:$0xff]
  %v87 = vld [vmem:[%s4 + $0x98] sm:$0xff]
  %v88 = vld [vmem:[%s4 + $0xa0] sm:$0xff]
  %v89 = vld [vmem:[%s4 + $0xa8] sm:$0xff]
  %v90 = vld [vmem:[%s4 + $0xb0] sm:$0xff]
  %v91 = vld [vmem:[%s4 + $0xb8] sm:$0xff]
  %v92 = vld [vmem:[%s4 + $0xc0] sm:$0xff]
  %v93 = vld [vmem:[%s4 + $0xc8] sm:$0xff]
  %v94 = vld [vmem:[%s4 + $0xd0] sm:$0xff]
  %v95 = vld [vmem:[%s4 + $0xd8] sm:$0xff]
  %v96 = vld [vmem:[%s4 + $0xe0] sm:$0xff]
  %v97 = vld [vmem:[%s4 + $0xe8] sm:$0xff]
  %v98 = vld [vmem:[%s4 + $0xf0] sm:$0xff]
  %v99 = vld [vmem:[%s4 + $0xf8] sm:$0xff]
  %v100 = vld [vmem:[%s4 + $0x100] sm:$0xff]
  %v101 = vld [vmem:[%s4 + $0x108] sm:$0xff]
  %v102 = vld [vmem:[%s4 + $0x110] sm:$0xff]
  %v103 = vld [vmem:[%s4 + $0x118] sm:$0xff]
  %v104 = vld [vmem:[%s4 + $0x120] sm:$0xff]
  %v105 = vld [vmem:[%s4 + $0x128] sm:$0xff]
  %v106 = vld [vmem:[%s4 + $0x130] sm:$0xff]
  %v107 = vld [vmem:[%s4 + $0x138] sm:$0xff]
  %v108 = vld [vmem:[%s4 + $0x140] sm:$0xff]
  %v109 = vld [vmem:[%s4 + $0x148] sm:$0xff]
  %v110 = vld [vmem:[%s4 + $0x150] sm:$0xff]
  %v111 = vld [vmem:[%s4 + $0x158] sm:$0xff]
  %v112 = vld [vmem:[%s4 + $0x160] sm:$0xff]
  %v113 = vld [vmem:[%s4 + $0x168] sm:$0xff]
  %v114 = vld [vmem:[%s4 + $0x170] sm:$0xff]
  %v115 = vld [vmem:[%s4 + $0x178] sm:$0xff]
  %v116 = vld [vmem:[%s4 + $0x180] sm:$0xff]
  %v117 = vld [vmem:[%s4 + $0x188] sm:$0xff]
  %v118 = vld [vmem:[%s4 + $0x190] sm:$0xff]
  %v119 = vld [vmem:[%s4 + $0x198] sm:$0xff]
  %v120 = vld [vmem:[%s4 + $0x1a0] sm:$0xff]
  %v121 = vld [vmem:[%s4 + $0x1a8] sm:$0xff]
  %v122 = vld [vmem:[%s4 + $0x1b0] sm:$0xff]
  %v123 = vld [vmem:[%s4 + $0x1b8] sm:$0xff]
  %v124 = vld [vmem:[%s4 + $0x1c0] sm:$0xff]
  %v125 = vld [vmem:[%s4 + $0x1c8] sm:$0xff]
  %v126 = vld [vmem:[%s4 + $0x1d0] sm:$0xff]
  %v127 = vld [vmem:[%s4 + $0x1d8] sm:$0xff]
  %v128 = vld [vmem:[%s4 + $0x1e0] sm:$0xff]
  %v129 = vld [vmem:[%s4 + $0x1e8] sm:$0xff]
  %v130 = vld [vmem:[%s4 + $0x1f0] sm:$0xff]
  %v131 = vld [vmem:[%s4 + $0x1f8] sm:$0xff]
  %v132 = vld [vmem:[%s4 + $0x200] sm:$0xff]
  %v133 = vld [vmem:[%s4 + $0x208] sm:$0xff]
  %v134 = vld [vmem:[%s4 + $0x210] sm:$0xff]
  %v135 = vld [vmem:[%s4 + $0x218] sm:$0xff]
  %v136 = vld [vmem:[%s4 + $0x220] sm:$0xff]
  %v137 = vld [vmem:[%s4 + $0x228] sm:$0xff]
  %v138 = vld [vmem:[%s4 + $0x230] sm:$0xff]
  %v139 = vld [vmem:[%s4 + $0x238] sm:$0xff]
  %v140 = vld [vmem:[%s4 + $0x240] sm:$0xff]
  %v141 = vld [vmem:[%s4 + $0x248] sm:$0xff]
  %v142 = vld [vmem:[%s4 + $0x250] sm:$0xff]
  %v143 = vld [vmem:[%s4 + $0x258] sm:$0xff]
  %v144 = vld [vmem:[%s4 + $0x260] sm:$0xff]
  %v145 = vld [vmem:[%s4 + $0x268] sm:$0xff]
  %v146 = vld [vmem:[%s4 + $0x270] sm:$0xff]
  %v147 = vld [vmem:[%s4 + $0x278] sm:$0xff]
  %v148 = vld [vmem:[%s5] sm:$0xff]
  %v149 = vld [vmem:[%s5 + $0x8] sm:$0xff]
  %v150 = vld [vmem:[%s5 + $0x10] sm:$0xff]
  %v151 = vld [vmem:[%s5 + $0x18] sm:$0xff]
  %v152 = vld [vmem:[%s5 + $0x20] sm:$0xff]
  %v153 = vld [vmem:[%s5 + $0x28] sm:$0xff]
  %v154 = vld [vmem:[%s5 + $0x30] sm:$0xff]
  %v155 = vld [vmem:[%s5 + $0x38] sm:$0xff]
  %v156 = vld [vmem:[%s5 + $0x40] sm:$0xff]
  %v157 = vld [vmem:[%s5 + $0x48] sm:$0xff]
  %v158 = vld [vmem:[%s5 + $0x50] sm:$0xff]
  %v159 = vld [vmem:[%s5 + $0x58] sm:$0xff]
  %v160 = vld [vmem:[%s5 + $0x60] sm:$0xff]
  %v161 = vld [vmem:[%s5 + $0x68] sm:$0xff]
  %v162 = vld [vmem:[%s5 + $0x70] sm:$0xff]
  %v163 = vld [vmem:[%s5 + $0x78] sm:$0xff]
  %v164 = vld [vmem:[%s5 + $0x80] sm:$0xff]
  %v165 = vld [vmem:[%s5 + $0x88] sm:$0xff]
  %v166 = vld [vmem:[%s5 + $0x90] sm:$0xff]
  %v167 = vld [vmem:[%s5 + $0x98] sm:$0xff]
  %v168 = vld [vmem:[%s5 + $0xa0] sm:$0xff]
  %v169 = vld [vmem:[%s5 + $0xa8] sm:$0xff]
  %v170 = vld [vmem:[%s5 + $0xb0] sm:$0xff]
  %v171 = vld [vmem:[%s5 + $0xb8] sm:$0xff]
  %v172 = vld [vmem:[%s5 + $0xc0] sm:$0xff]
  %v173 = vld [vmem:[%s5 + $0xc8] sm:$0xff]
  %v174 = vld [vmem:[%s5 + $0xd0] sm:$0xff]
  %v175 = vld [vmem:[%s5 + $0xd8] sm:$0xff]
  %v176 = vld [vmem:[%s5 + $0xe0] sm:$0xff]
  %v177 = vld [vmem:[%s5 + $0xe8] sm:$0xff]
  %v178 = vld [vmem:[%s5 + $0xf0] sm:$0xff]
  %v179 = vld [vmem:[%s5 + $0xf8] sm:$0xff]
  %v180 = vld [vmem:[%s5 + $0x100] sm:$0xff]
  %v181 = vld [vmem:[%s5 + $0x108] sm:$0xff]
  %v182 = vld [vmem:[%s5 + $0x110] sm:$0xff]
  %v183 = vld [vmem:[%s5 + $0x118] sm:$0xff]
  %v184 = vld [vmem:[%s5 + $0x120] sm:$0xff]
  %v185 = vld [vmem:[%s5 + $0x128] sm:$0xff]
  %v186 = vld [vmem:[%s5 + $0x130] sm:$0xff]
  %v187 = vld [vmem:[%s5 + $0x138] sm:$0xff]
  %v188 = vld [vmem:[%s5 + $0x140] sm:$0xff]
  %v189 = vld [vmem:[%s5 + $0x148] sm:$0xff]
  %v190 = vld [vmem:[%s5 + $0x150] sm:$0xff]
  %v191 = vld [vmem:[%s5 + $0x158] sm:$0xff]
  %v192 = vld [vmem:[%s5 + $0x160] sm:$0xff]
  %v193 = vld [vmem:[%s5 + $0x168] sm:$0xff]
  %v194 = vld [vmem:[%s5 + $0x170] sm:$0xff]
  %v195 = vld [vmem:[%s5 + $0x178] sm:$0xff]
  %v196 = vld [vmem:[%s5 + $0x180] sm:$0xff]
  %v197 = vld [vmem:[%s5 + $0x188] sm:$0xff]
  %v198 = vld [vmem:[%s5 + $0x190] sm:$0xff]
  %v199 = vld [vmem:[%s5 + $0x198] sm:$0xff]
  %v200 = vld [vmem:[%s5 + $0x1a0] sm:$0xff]
  %v201 = vld [vmem:[%s5 + $0x1a8] sm:$0xff]
  %v202 = vld [vmem:[%s5 + $0x1b0] sm:$0xff]
  %v203 = vld [vmem:[%s5 + $0x1b8] sm:$0xff]
  %v204 = vld [vmem:[%s5 + $0x1c0] sm:$0xff]
  %v205 = vld [vmem:[%s5 + $0x1c8] sm:$0xff]
  %v206 = vld [vmem:[%s5 + $0x1d0] sm:$0xff]
  %v207 = vld [vmem:[%s5 + $0x1d8] sm:$0xff]
  %v208 = vld [vmem:[%s5 + $0x1e0] sm:$0xff]
  %v209 = vld [vmem:[%s5 + $0x1e8] sm:$0xff]
  %v210 = vld [vmem:[%s5 + $0x1f0] sm:$0xff]
  %v211 = vld [vmem:[%s5 + $0x1f8] sm:$0xff]
  %v212 = vld [vmem:[%s5 + $0x200] sm:$0xff]
  %v213 = vld [vmem:[%s5 + $0x208] sm:$0xff]
  %v214 = vld [vmem:[%s5 + $0x210] sm:$0xff]
  %v215 = vld [vmem:[%s5 + $0x218] sm:$0xff]
  %v216 = vld [vmem:[%s5 + $0x220] sm:$0xff]
  %v217 = vld [vmem:[%s5 + $0x228] sm:$0xff]
  %v218 = vld [vmem:[%s5 + $0x230] sm:$0xff]
  %v219 = vld [vmem:[%s5 + $0x238] sm:$0xff]
  %v220 = vld [vmem:[%s5 + $0x240] sm:$0xff]
  %v221 = vld [vmem:[%s5 + $0x248] sm:$0xff]
  %v222 = vld [vmem:[%s5 + $0x250] sm:$0xff]
  %v223 = vld [vmem:[%s5 + $0x258] sm:$0xff]
  %v224 = vld [vmem:[%s5 + $0x260] sm:$0xff]
  %v225 = vld [vmem:[%s5 + $0x268] sm:$0xff]
  %v226 = vld [vmem:[%s5 + $0x270] sm:$0xff]
  %v227 = vld [vmem:[%s5 + $0x278] sm:$0xff]
  %228 = vmatpush.msra.mxu0 %v223
  %229 = vmatpush.msra.mxu0 %v218
  %230 = vmatpush.msra.mxu0 %v213
  %231 = vmatpush.msra.mxu0 %v208
  %232 = vmatpush.msra.mxu0 %v203
  %233 = vmatpush.msra.mxu0 %v198
  %234 = vmatpush.msra.mxu0 %v193
  %235 = vmatpush.msra.mxu0 %v188
  %236 = vmatpush.msra.mxu0 %v183
  %237 = vmatpush.msra.mxu0 %v178
  %238 = vmatpush.msra.mxu0 %v173
  %239 = vmatpush.msra.mxu0 %v168
  %240 = vmatpush.msra.mxu0 %v163
  %241 = vmatpush.msra.mxu0 %v158
  %242 = vmatpush.msra.mxu0 %v153
  %243 = vmatpush.msra.mxu0 %v148
  %244 = vmatmul.f32.gmra.mxu0 %v50
  %v245 = vpop.f32.mrf.mxu0
  %v246 = vadd.f32 0.0, %v245
  %247 = vmatmul.f32.gmra.mxu0 %v51
  %v248 = vpop.f32.mrf.mxu0
  %v249 = vadd.f32 0.0, %v248
  %250 = vmatmul.f32.gmra.mxu0 %v52
  %v251 = vpop.f32.mrf.mxu0
  %v252 = vadd.f32 0.0, %v251
  %253 = vmatmul.f32.gmra.mxu0 %v53
  %v254 = vpop.f32.mrf.mxu0
  %v255 = vadd.f32 0.0, %v254
  %256 = vmatmul.f32.gmra.mxu0 %v54
  %v257 = vpop.f32.mrf.mxu0
  %v258 = vadd.f32 0.0, %v257
  %259 = vmatmul.f32.gmra.mxu0 %v55
  %v260 = vpop.f32.mrf.mxu0
  %v261 = vadd.f32 0.0, %v260
  %262 = vmatmul.f32.gmra.mxu0 %v56
  %v263 = vpop.f32.mrf.mxu0
  %v264 = vadd.f32 0.0, %v263
  %265 = vmatmul.f32.gmra.mxu0 %v57
  %v266 = vpop.f32.mrf.mxu0
  %v267 = vadd.f32 0.0, %v266
  %268 = vmatmul.f32.gmra.mxu0 %v58
  %v269 = vpop.f32.mrf.mxu0
  %v270 = vadd.f32 0.0, %v269
  %271 = vdwg.mxu0
  %272 = vmatpush.msra.mxu0 %v224
  %273 = vmatpush.msra.mxu0 %v219
  %274 = vmatpush.msra.mxu0 %v214
  %275 = vmatpush.msra.mxu0 %v209
  %276 = vmatpush.msra.mxu0 %v204
  %277 = vmatpush.msra.mxu0 %v199
  %278 = vmatpush.msra.mxu0 %v194
  %279 = vmatpush.msra.mxu0 %v189
  %280 = vmatpush.msra.mxu0 %v184
  %281 = vmatpush.msra.mxu0 %v179
  %282 = vmatpush.msra.mxu0 %v174
  %283 = vmatpush.msra.mxu0 %v169
  %284 = vmatpush.msra.mxu0 %v164
  %285 = vmatpush.msra.mxu0 %v159
  %286 = vmatpush.msra.mxu0 %v154
  %287 = vmatpush.msra.mxu0 %v149
  %288 = vmatmul.f32.gmra.mxu0 %v50
  %v289 = vpop.f32.mrf.mxu0
  %v290 = vadd.f32 0.0, %v289
  %291 = vmatmul.f32.gmra.mxu0 %v51
  %v292 = vpop.f32.mrf.mxu0
  %v293 = vadd.f32 0.0, %v292
  %294 = vmatmul.f32.gmra.mxu0 %v52
  %v295 = vpop.f32.mrf.mxu0
  %v296 = vadd.f32 0.0, %v295
  %297 = vmatmul.f32.gmra.mxu0 %v53
  %v298 = vpop.f32.mrf.mxu0
  %v299 = vadd.f32 0.0, %v298
  %300 = vmatmul.f32.gmra.mxu0 %v54
  %v301 = vpop.f32.mrf.mxu0
  %v302 = vadd.f32 0.0, %v301
  %303 = vmatmul.f32.gmra.mxu0 %v55
  %v304 = vpop.f32.mrf.mxu0
  %v305 = vadd.f32 0.0, %v304
  %306 = vmatmul.f32.gmra.mxu0 %v56
  %v307 = vpop.f32.mrf.mxu0
  %v308 = vadd.f32 0.0, %v307
  %309 = vmatmul.f32.gmra.mxu0 %v57
  %v310 = vpop.f32.mrf.mxu0
  %v311 = vadd.f32 0.0, %v310
  %312 = vmatmul.f32.gmra.mxu0 %v58
  %v313 = vpop.f32.mrf.mxu0
  %v314 = vadd.f32 0.0, %v313
  %315 = vdwg.mxu0
  %316 = vmatpush.msra.mxu0 %v225
  %317 = vmatpush.msra.mxu0 %v220
  %318 = vmatpush.msra.mxu0 %v215
  %319 = vmatpush.msra.mxu0 %v210
  %320 = vmatpush.msra.mxu0 %v205
  %321 = vmatpush.msra.mxu0 %v200
  %322 = vmatpush.msra.mxu0 %v195
  %323 = vmatpush.msra.mxu0 %v190
  %324 = vmatpush.msra.mxu0 %v185
  %325 = vmatpush.msra.mxu0 %v180
  %326 = vmatpush.msra.mxu0 %v175
  %327 = vmatpush.msra.mxu0 %v170
  %328 = vmatpush.msra.mxu0 %v165
  %329 = vmatpush.msra.mxu0 %v160
  %330 = vmatpush.msra.mxu0 %v155
  %331 = vmatpush.msra.mxu0 %v150
  %332 = vmatmul.f32.gmra.mxu0 %v50
  %v333 = vpop.f32.mrf.mxu0
  %v334 = vadd.f32 0.0, %v333
  %335 = vmatmul.f32.gmra.mxu0 %v51
  %v336 = vpop.f32.mrf.mxu0
  %v337 = vadd.f32 0.0, %v336
  %338 = vmatmul.f32.gmra.mxu0 %v52
  %v339 = vpop.f32.mrf.mxu0
  %v340 = vadd.f32 0.0, %v339
  %341 = vmatmul.f32.gmra.mxu0 %v53
  %v342 = vpop.f32.mrf.mxu0
  %v343 = vadd.f32 0.0, %v342
  %344 = vmatmul.f32.gmra.mxu0 %v54
  %v345 = vpop.f32.mrf.mxu0
  %v346 = vadd.f32 0.0, %v345
  %347 = vmatmul.f32.gmra.mxu0 %v55
  %v348 = vpop.f32.mrf.mxu0
  %v349 = vadd.f32 0.0, %v348
  %350 = vmatmul.f32.gmra.mxu0 %v56
  %v351 = vpop.f32.mrf.mxu0
  %v352 = vadd.f32 0.0, %v351
  %353 = vmatmul.f32.gmra.mxu0 %v57
  %v354 = vpop.f32.mrf.mxu0
  %v355 = vadd.f32 0.0, %v354
  %356 = vmatmul.f32.gmra.mxu0 %v58
  %v357 = vpop.f32.mrf.mxu0
  %v358 = vadd.f32 0.0, %v357
  %359 = vdwg.mxu0
  %360 = vmatpush.msra.mxu0 %v226
  %361 = vmatpush.msra.mxu0 %v221
  %362 = vmatpush.msra.mxu0 %v216
  %363 = vmatpush.msra.mxu0 %v211
  %364 = vmatpush.msra.mxu0 %v206
  %365 = vmatpush.msra.mxu0 %v201
  %366 = vmatpush.msra.mxu0 %v196
  %367 = vmatpush.msra.mxu0 %v191
  %368 = vmatpush.msra.mxu0 %v186
  %369 = vmatpush.msra.mxu0 %v181
  %370 = vmatpush.msra.mxu0 %v176
  %371 = vmatpush.msra.mxu0 %v171
  %372 = vmatpush.msra.mxu0 %v166
  %373 = vmatpush.msra.mxu0 %v161
  %374 = vmatpush.msra.mxu0 %v156
  %375 = vmatpush.msra.mxu0 %v151
  %376 = vmatmul.f32.gmra.mxu0 %v50
  %v377 = vpop.f32.mrf.mxu0
  %v378 = vadd.f32 0.0, %v377
  %379 = vmatmul.f32.gmra.mxu0 %v51
  %v380 = vpop.f32.mrf.mxu0
  %v381 = vadd.f32 0.0, %v380
  %382 = vmatmul.f32.gmra.mxu0 %v52
  %v383 = vpop.f32.mrf.mxu0
  %v384 = vadd.f32 0.0, %v383
  %385 = vmatmul.f32.gmra.mxu0 %v53
  %v386 = vpop.f32.mrf.mxu0
  %v387 = vadd.f32 0.0, %v386
  %388 = vmatmul.f32.gmra.mxu0 %v54
  %v389 = vpop.f32.mrf.mxu0
  %v390 = vadd.f32 0.0, %v389
  %391 = vmatmul.f32.gmra.mxu0 %v55
  %v392 = vpop.f32.mrf.mxu0
  %v393 = vadd.f32 0.0, %v392
  %394 = vmatmul.f32.gmra.mxu0 %v56
  %v395 = vpop.f32.mrf.mxu0
  %v396 = vadd.f32 0.0, %v395
  %397 = vmatmul.f32.gmra.mxu0 %v57
  %v398 = vpop.f32.mrf.mxu0
  %v399 = vadd.f32 0.0, %v398
  %400 = vmatmul.f32.gmra.mxu0 %v58
  %v401 = vpop.f32.mrf.mxu0
  %v402 = vadd.f32 0.0, %v401
  %403 = vdwg.mxu0
  %404 = vmatpush.msra.mxu0 %v227
  %405 = vmatpush.msra.mxu0 %v222
  %406 = vmatpush.msra.mxu0 %v217
  %407 = vmatpush.msra.mxu0 %v212
  %408 = vmatpush.msra.mxu0 %v207
  %409 = vmatpush.msra.mxu0 %v202
  %410 = vmatpush.msra.mxu0 %v197
  %411 = vmatpush.msra.mxu0 %v192
  %412 = vmatpush.msra.mxu0 %v187
  %413 = vmatpush.msra.mxu0 %v182
  %414 = vmatpush.msra.mxu0 %v177
  %415 = vmatpush.msra.mxu0 %v172
  %416 = vmatpush.msra.mxu0 %v167
  %417 = vmatpush.msra.mxu0 %v162
  %418 = vmatpush.msra.mxu0 %v157
  %419 = vmatpush.msra.mxu0 %v152
  %420 = vmatmul.f32.gmra.mxu0 %v50
  %v421 = vpop.f32.mrf.mxu0
  %v422 = vadd.f32 0.0, %v421
  %423 = vmatmul.f32.gmra.mxu0 %v51
  %v424 = vpop.f32.mrf.mxu0
  %v425 = vadd.f32 0.0, %v424
  %426 = vmatmul.f32.gmra.mxu0 %v52
  %v427 = vpop.f32.mrf.mxu0
  %v428 = vadd.f32 0.0, %v427
  %429 = vmatmul.f32.gmra.mxu0 %v53
  %v430 = vpop.f32.mrf.mxu0
  %v431 = vadd.f32 0.0, %v430
  %432 = vmatmul.f32.gmra.mxu0 %v54
  %v433 = vpop.f32.mrf.mxu0
  %v434 = vadd.f32 0.0, %v433
  %435 = vmatmul.f32.gmra.mxu0 %v55
  %v436 = vpop.f32.mrf.mxu0
  %v437 = vadd.f32 0.0, %v436
  %438 = vmatmul.f32.gmra.mxu0 %v56
  %v439 = vpop.f32.mrf.mxu0
  %v440 = vadd.f32 0.0, %v439
  %441 = vmatmul.f32.gmra.mxu0 %v57
  %v442 = vpop.f32.mrf.mxu0
  %v443 = vadd.f32 0.0, %v442
  %444 = vmatmul.f32.gmra.mxu0 %v58
  %v445 = vpop.f32.mrf.mxu0
  %v446 = vadd.f32 0.0, %v445
  %447 = vdwg.mxu0
  %448 = vmatpush.msra.mxu0 %v143
  %449 = vmatpush.msra.mxu0 %v138
  %450 = vmatpush.msra.mxu0 %v133
  %451 = vmatpush.msra.mxu0 %v128
  %452 = vmatpush.msra.mxu0 %v123
  %453 = vmatpush.msra.mxu0 %v118
  %454 = vmatpush.msra.mxu0 %v113
  %455 = vmatpush.msra.mxu0 %v108
  %456 = vmatpush.msra.mxu0 %v103
  %457 = vmatpush.msra.mxu0 %v98
  %458 = vmatpush.msra.mxu0 %v93
  %459 = vmatpush.msra.mxu0 %v88
  %460 = vmatpush.msra.mxu0 %v83
  %461 = vmatpush.msra.mxu0 %v78
  %462 = vmatpush.msra.mxu0 %v73
  %463 = vmatpush.msra.mxu0 %v68
  %464 = vmatmul.f32.gmra.mxu0 %v32
  %v465 = vpop.f32.mrf.mxu0
  %v466 = vadd.f32 %v246, %v465
  %467 = vmatmul.f32.gmra.mxu0 %v33
  %v468 = vpop.f32.mrf.mxu0
  %v469 = vadd.f32 %v249, %v468
  %470 = vmatmul.f32.gmra.mxu0 %v34
  %v471 = vpop.f32.mrf.mxu0
  %v472 = vadd.f32 %v252, %v471
  %473 = vmatmul.f32.gmra.mxu0 %v35
  %v474 = vpop.f32.mrf.mxu0
  %v475 = vadd.f32 %v255, %v474
  %476 = vmatmul.f32.gmra.mxu0 %v36
  %v477 = vpop.f32.mrf.mxu0
  %v478 = vadd.f32 %v258, %v477
  %479 = vmatmul.f32.gmra.mxu0 %v37
  %v480 = vpop.f32.mrf.mxu0
  %v481 = vadd.f32 %v261, %v480
  %482 = vmatmul.f32.gmra.mxu0 %v38
  %v483 = vpop.f32.mrf.mxu0
  %v484 = vadd.f32 %v264, %v483
  %485 = vmatmul.f32.gmra.mxu0 %v39
  %v486 = vpop.f32.mrf.mxu0
  %v487 = vadd.f32 %v267, %v486
  %488 = vmatmul.f32.gmra.mxu0 %v40
  %v489 = vpop.f32.mrf.mxu0
  %v490 = vadd.f32 %v270, %v489
  %491 = vdwg.mxu0
  %492 = vmatpush.msra.mxu0 %v144
  %493 = vmatpush.msra.mxu0 %v139
  %494 = vmatpush.msra.mxu0 %v134
  %495 = vmatpush.msra.mxu0 %v129
  %496 = vmatpush.msra.mxu0 %v124
  %497 = vmatpush.msra.mxu0 %v119
  %498 = vmatpush.msra.mxu0 %v114
  %499 = vmatpush.msra.mxu0 %v109
  %500 = vmatpush.msra.mxu0 %v104
  %501 = vmatpush.msra.mxu0 %v99
  %502 = vmatpush.msra.mxu0 %v94
  %503 = vmatpush.msra.mxu0 %v89
  %504 = vmatpush.msra.mxu0 %v84
  %505 = vmatpush.msra.mxu0 %v79
  %506 = vmatpush.msra.mxu0 %v74
  %507 = vmatpush.msra.mxu0 %v69
  %508 = vmatmul.f32.gmra.mxu0 %v32
  %v509 = vpop.f32.mrf.mxu0
  %v510 = vadd.f32 %v290, %v509
  %511 = vmatmul.f32.gmra.mxu0 %v33
  %v512 = vpop.f32.mrf.mxu0
  %v513 = vadd.f32 %v293, %v512
  %514 = vmatmul.f32.gmra.mxu0 %v34
  %v515 = vpop.f32.mrf.mxu0
  %v516 = vadd.f32 %v296, %v515
  %517 = vmatmul.f32.gmra.mxu0 %v35
  %v518 = vpop.f32.mrf.mxu0
  %v519 = vadd.f32 %v299, %v518
  %520 = vmatmul.f32.gmra.mxu0 %v36
  %v521 = vpop.f32.mrf.mxu0
  %v522 = vadd.f32 %v302, %v521
  %523 = vmatmul.f32.gmra.mxu0 %v37
  %v524 = vpop.f32.mrf.mxu0
  %v525 = vadd.f32 %v305, %v524
  %526 = vmatmul.f32.gmra.mxu0 %v38
  %v527 = vpop.f32.mrf.mxu0
  %v528 = vadd.f32 %v308, %v527
  %529 = vmatmul.f32.gmra.mxu0 %v39
  %v530 = vpop.f32.mrf.mxu0
  %v531 = vadd.f32 %v311, %v530
  %532 = vmatmul.f32.gmra.mxu0 %v40
  %v533 = vpop.f32.mrf.mxu0
  %v534 = vadd.f32 %v314, %v533
  %535 = vdwg.mxu0
  %536 = vmatpush.msra.mxu0 %v145
  %537 = vmatpush.msra.mxu0 %v140
  %538 = vmatpush.msra.mxu0 %v135
  %539 = vmatpush.msra.mxu0 %v130
  %540 = vmatpush.msra.mxu0 %v125
  %541 = vmatpush.msra.mxu0 %v120
  %542 = vmatpush.msra.mxu0 %v115
  %543 = vmatpush.msra.mxu0 %v110
  %544 = vmatpush.msra.mxu0 %v105
  %545 = vmatpush.msra.mxu0 %v100
  %546 = vmatpush.msra.mxu0 %v95
  %547 = vmatpush.msra.mxu0 %v90
  %548 = vmatpush.msra.mxu0 %v85
  %549 = vmatpush.msra.mxu0 %v80
  %550 = vmatpush.msra.mxu0 %v75
  %551 = vmatpush.msra.mxu0 %v70
  %552 = vmatmul.f32.gmra.mxu0 %v32
  %v553 = vpop.f32.mrf.mxu0
  %v554 = vadd.f32 %v334, %v553
  %555 = vmatmul.f32.gmra.mxu0 %v33
  %v556 = vpop.f32.mrf.mxu0
  %v557 = vadd.f32 %v337, %v556
  %558 = vmatmul.f32.gmra.mxu0 %v34
  %v559 = vpop.f32.mrf.mxu0
  %v560 = vadd.f32 %v340, %v559
  %561 = vmatmul.f32.gmra.mxu0 %v35
  %v562 = vpop.f32.mrf.mxu0
  %v563 = vadd.f32 %v343, %v562
  %564 = vmatmul.f32.gmra.mxu0 %v36
  %v565 = vpop.f32.mrf.mxu0
  %v566 = vadd.f32 %v346, %v565
  %567 = vmatmul.f32.gmra.mxu0 %v37
  %v568 = vpop.f32.mrf.mxu0
  %v569 = vadd.f32 %v349, %v568
  %570 = vmatmul.f32.gmra.mxu0 %v38
  %v571 = vpop.f32.mrf.mxu0
  %v572 = vadd.f32 %v352, %v571
  %573 = vmatmul.f32.gmra.mxu0 %v39
  %v574 = vpop.f32.mrf.mxu0
  %v575 = vadd.f32 %v355, %v574
  %576 = vmatmul.f32.gmra.mxu0 %v40
  %v577 = vpop.f32.mrf.mxu0
  %v578 = vadd.f32 %v358, %v577
  %579 = vdwg.mxu0
  %580 = vmatpush.msra.mxu0 %v146
  %581 = vmatpush.msra.mxu0 %v141
  %582 = vmatpush.msra.mxu0 %v136
  %583 = vmatpush.msra.mxu0 %v131
  %584 = vmatpush.msra.mxu0 %v126
  %585 = vmatpush.msra.mxu0 %v121
  %586 = vmatpush.msra.mxu0 %v116
  %587 = vmatpush.msra.mxu0 %v111
  %588 = vmatpush.msra.mxu0 %v106
  %589 = vmatpush.msra.mxu0 %v101
  %590 = vmatpush.msra.mxu0 %v96
  %591 = vmatpush.msra.mxu0 %v91
  %592 = vmatpush.msra.mxu0 %v86
  %593 = vmatpush.msra.mxu0 %v81
  %594 = vmatpush.msra.mxu0 %v76
  %595 = vmatpush.msra.mxu0 %v71
  %596 = vmatmul.f32.gmra.mxu0 %v32
  %v597 = vpop.f32.mrf.mxu0
  %v598 = vadd.f32 %v378, %v597
  %599 = vmatmul.f32.gmra.mxu0 %v33
  %v600 = vpop.f32.mrf.mxu0
  %v601 = vadd.f32 %v381, %v600
  %602 = vmatmul.f32.gmra.mxu0 %v34
  %v603 = vpop.f32.mrf.mxu0
  %v604 = vadd.f32 %v384, %v603
  %605 = vmatmul.f32.gmra.mxu0 %v35
  %v606 = vpop.f32.mrf.mxu0
  %v607 = vadd.f32 %v387, %v606
  %608 = vmatmul.f32.gmra.mxu0 %v36
  %v609 = vpop.f32.mrf.mxu0
  %v610 = vadd.f32 %v390, %v609
  %611 = vmatmul.f32.gmra.mxu0 %v37
  %v612 = vpop.f32.mrf.mxu0
  %v613 = vadd.f32 %v393, %v612
  %614 = vmatmul.f32.gmra.mxu0 %v38
  %v615 = vpop.f32.mrf.mxu0
  %v616 = vadd.f32 %v396, %v615
  %617 = vmatmul.f32.gmra.mxu0 %v39
  %v618 = vpop.f32.mrf.mxu0
  %v619 = vadd.f32 %v399, %v618
  %620 = vmatmul.f32.gmra.mxu0 %v40
  %v621 = vpop.f32.mrf.mxu0
  %v622 = vadd.f32 %v402, %v621
  %623 = vdwg.mxu0
  %624 = vmatpush.msra.mxu0 %v147
  %625 = vmatpush.msra.mxu0 %v142
  %626 = vmatpush.msra.mxu0 %v137
  %627 = vmatpush.msra.mxu0 %v132
  %628 = vmatpush.msra.mxu0 %v127
  %629 = vmatpush.msra.mxu0 %v122
  %630 = vmatpush.msra.mxu0 %v117
  %631 = vmatpush.msra.mxu0 %v112
  %632 = vmatpush.msra.mxu0 %v107
  %633 = vmatpush.msra.mxu0 %v102
  %634 = vmatpush.msra.mxu0 %v97
  %635 = vmatpush.msra.mxu0 %v92
  %636 = vmatpush.msra.mxu0 %v87
  %637 = vmatpush.msra.mxu0 %v82
  %638 = vmatpush.msra.mxu0 %v77
  %639 = vmatpush.msra.mxu0 %v72
  %640 = vmatmul.f32.gmra.mxu0 %v32
  %v641 = vpop.f32.mrf.mxu0
  %v642 = vadd.f32 %v422, %v641
  %643 = vmatmul.f32.gmra.mxu0 %v33
  %v644 = vpop.f32.mrf.mxu0
  %v645 = vadd.f32 %v425, %v644
  %646 = vmatmul.f32.gmra.mxu0 %v34
  %v647 = vpop.f32.mrf.mxu0
  %v648 = vadd.f32 %v428, %v647
  %649 = vmatmul.f32.gmra.mxu0 %v35
  %v650 = vpop.f32.mrf.mxu0
  %v651 = vadd.f32 %v431, %v650
  %652 = vmatmul.f32.gmra.mxu0 %v36
  %v653 = vpop.f32.mrf.mxu0
  %v654 = vadd.f32 %v434, %v653
  %655 = vmatmul.f32.gmra.mxu0 %v37
  %v656 = vpop.f32.mrf.mxu0
  %v657 = vadd.f32 %v437, %v656
  %658 = vmatmul.f32.gmra.mxu0 %v38
  %v659 = vpop.f32.mrf.mxu0
  %v660 = vadd.f32 %v440, %v659
  %661 = vmatmul.f32.gmra.mxu0 %v39
  %v662 = vpop.f32.mrf.mxu0
  %v663 = vadd.f32 %v443, %v662
  %664 = vmatmul.f32.gmra.mxu0 %v40
  %v665 = vpop.f32.mrf.mxu0
  %v666 = vadd.f32 %v446, %v665
  %667 = vdwg.mxu0
  %v668 = vld [vmem:[%s6] sm:$0x1f]
  %v670 = vperm.slane %v668, 0
  %v671 = vperm.slane %v668, 1
  %v672 = vperm.slane %v668, 2
  %v673 = vperm.slane %v668, 3
  %v674 = vperm.slane %v668, 4
  %v680 = vadd.f32 %v466, %v670
  %v681 = vadd.f32 %v510, %v671
  %v682 = vadd.f32 %v554, %v672
  %v683 = vadd.f32 %v598, %v673
  %v684 = vadd.f32 %v642, %v674
  %v685 = vadd.f32 %v469, %v670
  %v686 = vadd.f32 %v513, %v671
  %v687 = vadd.f32 %v557, %v672
  %v688 = vadd.f32 %v601, %v673
  %v689 = vadd.f32 %v645, %v674
  %v690 = vadd.f32 %v472, %v670
  %v691 = vadd.f32 %v516, %v671
  %v692 = vadd.f32 %v560, %v672
  %v693 = vadd.f32 %v604, %v673
  %v694 = vadd.f32 %v648, %v674
  %v695 = vadd.f32 %v475, %v670
  %v696 = vadd.f32 %v519, %v671
  %v697 = vadd.f32 %v563, %v672
  %v698 = vadd.f32 %v607, %v673
  %v699 = vadd.f32 %v651, %v674
  %v700 = vadd.f32 %v478, %v670
  %v701 = vadd.f32 %v522, %v671
  %v702 = vadd.f32 %v566, %v672
  %v703 = vadd.f32 %v610, %v673
  %v704 = vadd.f32 %v654, %v674
  %v705 = vadd.f32 %v481, %v670
  %v706 = vadd.f32 %v525, %v671
  %v707 = vadd.f32 %v569, %v672
  %v708 = vadd.f32 %v613, %v673
  %v709 = vadd.f32 %v657, %v674
  %v710 = vadd.f32 %v484, %v670
  %v711 = vadd.f32 %v528, %v671
  %v712 = vadd.f32 %v572, %v672
  %v713 = vadd.f32 %v616, %v673
  %v714 = vadd.f32 %v660, %v674
  %v715 = vadd.f32 %v487, %v670
  %v716 = vadd.f32 %v531, %v671
  %v717 = vadd.f32 %v575, %v672
  %v718 = vadd.f32 %v619, %v673
  %v719 = vadd.f32 %v663, %v674
  %v720 = vadd.f32 %v490, %v670
  %v721 = vadd.f32 %v534, %v671
  %v722 = vadd.f32 %v578, %v672
  %v723 = vadd.f32 %v622, %v673
  %v724 = vadd.f32 %v666, %v674
  %v725 = vadd.f32 %v681, 1.0
  %v726 = vadd.f32 %v686, 1.0
  %v727 = vadd.f32 %v691, 1.0
  %v728 = vadd.f32 %v696, 1.0
  %v729 = vadd.f32 %v701, 1.0
  %v730 = vadd.f32 %v706, 1.0
  %v731 = vadd.f32 %v711, 1.0
  %v732 = vadd.f32 %v716, 1.0
  %v733 = vadd.f32 %v721, 1.0
  %v734 = vxor.u32 %v725, 2147483648
  %v735 = vxor.u32 %v726, 2147483648
  %v736 = vxor.u32 %v727, 2147483648
  %v737 = vxor.u32 %v728, 2147483648
  %v738 = vxor.u32 %v729, 2147483648
  %v739 = vxor.u32 %v730, 2147483648
  %v740 = vxor.u32 %v731, 2147483648
  %v741 = vxor.u32 %v732, 2147483648
  %v742 = vxor.u32 %v733, 2147483648
  %v743 = vmul.f32 %v734, 1.442695
  %v744 = vpow.pop %v743
  %v745 = vmul.f32 %v735, 1.442695
  %v746 = vpow.pop %v745
  %v747 = vmul.f32 %v736, 1.442695
  %v748 = vpow.pop %v747
  %v749 = vmul.f32 %v737, 1.442695
  %v750 = vpow.pop %v749
  %v751 = vmul.f32 %v738, 1.442695
  %v752 = vpow.pop %v751
  %v753 = vmul.f32 %v739, 1.442695
  %v754 = vpow.pop %v753
  %v755 = vmul.f32 %v740, 1.442695
  %v756 = vpow.pop %v755
  %v757 = vmul.f32 %v741, 1.442695
  %v758 = vpow.pop %v757
  %v759 = vmul.f32 %v742, 1.442695
  %v760 = vpow.pop %v759
  %v761 = vadd.f32 %v744, 1.0
  %v762 = vadd.f32 %v746, 1.0
  %v763 = vadd.f32 %v748, 1.0
  %v764 = vadd.f32 %v750, 1.0
  %v765 = vadd.f32 %v752, 1.0
  %v766 = vadd.f32 %v754, 1.0
  %v767 = vadd.f32 %v756, 1.0
  %v768 = vadd.f32 %v758, 1.0
  %v769 = vadd.f32 %v760, 1.0
  %v770 = vrcp.pop %v761
  %v771 = vmul.f32 %v761, %v770
  %v772 = vsub.f32 1.0, %v771
  %v773 = vmul.f32 %v770, %v772
  %v774 = vadd.f32 %v770, %v773
  %vm775 = vweird.f32 %v761
  %vm776 = vweird.f32 %v770
  %vm777 = vmor %vm775, %vm776
  %v778 = vsel %vm777, %v770, %v774
  %v779 = vand.u32 2147483647, %v761
  %vm780 = vcmp.eq.f32.partialorder %v779, 8.507059e+37
  %v781 = vand.u32 %v761, 2147483648
  %v782 = vor.u32 1.1754944e-38, %v781
  %v783 = vsel %vm780, %v782, %v778
  %v784 = vmul.f32 1.0, %v783
  %v785 = vrcp.pop %v762
  %v786 = vmul.f32 %v762, %v785
  %v787 = vsub.f32 1.0, %v786
  %v788 = vmul.f32 %v785, %v787
  %v789 = vadd.f32 %v785, %v788
  %vm790 = vweird.f32 %v762
  %vm791 = vweird.f32 %v785
  %vm792 = vmor %vm790, %vm791
  %v793 = vsel %vm792, %v785, %v789
  %v794 = vand.u32 2147483647, %v762
  %vm795 = vcmp.eq.f32.partialorder %v794, 8.507059e+37
  %v796 = vand.u32 %v762, 2147483648
  %v797 = vor.u32 1.1754944e-38, %v796
  %v798 = vsel %vm795, %v797, %v793
  %v799 = vmul.f32 1.0, %v798
  %v800 = vrcp.pop %v763
  %v801 = vmul.f32 %v763, %v800
  %v802 = vsub.f32 1.0, %v801
  %v803 = vmul.f32 %v800, %v802
  %v804 = vadd.f32 %v800, %v803
  %vm805 = vweird.f32 %v763
  %vm806 = vweird.f32 %v800
  %vm807 = vmor %vm805, %vm806
  %v808 = vsel %vm807, %v800, %v804
  %v809 = vand.u32 2147483647, %v763
  %vm810 = vcmp.eq.f32.partialorder %v809, 8.507059e+37
  %v811 = vand.u32 %v763, 2147483648
  %v812 = vor.u32 1.1754944e-38, %v811
  %v813 = vsel %vm810, %v812, %v808
  %v814 = vmul.f32 1.0, %v813
  %v815 = vrcp.pop %v764
  %v816 = vmul.f32 %v764, %v815
  %v817 = vsub.f32 1.0, %v816
  %v818 = vmul.f32 %v815, %v817
  %v819 = vadd.f32 %v815, %v818
  %vm820 = vweird.f32 %v764
  %vm821 = vweird.f32 %v815
  %vm822 = vmor %vm820, %vm821
  %v823 = vsel %vm822, %v815, %v819
  %v824 = vand.u32 2147483647, %v764
  %vm825 = vcmp.eq.f32.partialorder %v824, 8.507059e+37
  %v826 = vand.u32 %v764, 2147483648
  %v827 = vor.u32 1.1754944e-38, %v826
  %v828 = vsel %vm825, %v827, %v823
  %v829 = vmul.f32 1.0, %v828
  %v830 = vrcp.pop %v765
  %v831 = vmul.f32 %v765, %v830
  %v832 = vsub.f32 1.0, %v831
  %v833 = vmul.f32 %v830, %v832
  %v834 = vadd.f32 %v830, %v833
  %vm835 = vweird.f32 %v765
  %vm836 = vweird.f32 %v830
  %vm837 = vmor %vm835, %vm836
  %v838 = vsel %vm837, %v830, %v834
  %v839 = vand.u32 2147483647, %v765
  %vm840 = vcmp.eq.f32.partialorder %v839, 8.507059e+37
  %v841 = vand.u32 %v765, 2147483648
  %v842 = vor.u32 1.1754944e-38, %v841
  %v843 = vsel %vm840, %v842, %v838
  %v844 = vmul.f32 1.0, %v843
  %v845 = vrcp.pop %v766
  %v846 = vmul.f32 %v766, %v845
  %v847 = vsub.f32 1.0, %v846
  %v848 = vmul.f32 %v845, %v847
  %v849 = vadd.f32 %v845, %v848
  %vm850 = vweird.f32 %v766
  %vm851 = vweird.f32 %v845
  %vm852 = vmor %vm850, %vm851
  %v853 = vsel %vm852, %v845, %v849
  %v854 = vand.u32 2147483647, %v766
  %vm855 = vcmp.eq.f32.partialorder %v854, 8.507059e+37
  %v856 = vand.u32 %v766, 2147483648
  %v857 = vor.u32 1.1754944e-38, %v856
  %v858 = vsel %vm855, %v857, %v853
  %v859 = vmul.f32 1.0, %v858
  %v860 = vrcp.pop %v767
  %v861 = vmul.f32 %v767, %v860
  %v862 = vsub.f32 1.0, %v861
  %v863 = vmul.f32 %v860, %v862
  %v864 = vadd.f32 %v860, %v863
  %vm865 = vweird.f32 %v767
  %vm866 = vweird.f32 %v860
  %vm867 = vmor %vm865, %vm866
  %v868 = vsel %vm867, %v860, %v864
  %v869 = vand.u32 2147483647, %v767
  %vm870 = vcmp.eq.f32.partialorder %v869, 8.507059e+37
  %v871 = vand.u32 %v767, 2147483648
  %v872 = vor.u32 1.1754944e-38, %v871
  %v873 = vsel %vm870, %v872, %v868
  %v874 = vmul.f32 1.0, %v873
  %v875 = vrcp.pop %v768
  %v876 = vmul.f32 %v768, %v875
  %v877 = vsub.f32 1.0, %v876
  %v878 = vmul.f32 %v875, %v877
  %v879 = vadd.f32 %v875, %v878
  %vm880 = vweird.f32 %v768
  %vm881 = vweird.f32 %v875
  %vm882 = vmor %vm880, %vm881
  %v883 = vsel %vm882, %v875, %v879
  %v884 = vand.u32 2147483647, %v768
  %vm885 = vcmp.eq.f32.partialorder %v884, 8.507059e+37
  %v886 = vand.u32 %v768, 2147483648
  %v887 = vor.u32 1.1754944e-38, %v886
  %v888 = vsel %vm885, %v887, %v883
  %v889 = vmul.f32 1.0, %v888
  %v890 = vrcp.pop %v769
  %v891 = vmul.f32 %v769, %v890
  %v892 = vsub.f32 1.0, %v891
  %v893 = vmul.f32 %v890, %v892
  %v894 = vadd.f32 %v890, %v893
  %vm895 = vweird.f32 %v769
  %vm896 = vweird.f32 %v890
  %vm897 = vmor %vm895, %vm896
  %v898 = vsel %vm897, %v890, %v894
  %v899 = vand.u32 2147483647, %v769
  %vm900 = vcmp.eq.f32.partialorder %v899, 8.507059e+37
  %v901 = vand.u32 %v769, 2147483648
  %v902 = vor.u32 1.1754944e-38, %v901
  %v903 = vsel %vm900, %v902, %v898
  %v904 = vmul.f32 1.0, %v903
  %v905 = vmul.f32 %v41, %v784
  %v906 = vmul.f32 %v42, %v799
  %v907 = vmul.f32 %v43, %v814
  %v908 = vmul.f32 %v44, %v829
  %v909 = vmul.f32 %v45, %v844
  %v910 = vmul.f32 %v46, %v859
  %v911 = vmul.f32 %v47, %v874
  %v912 = vmul.f32 %v48, %v889
  %v913 = vmul.f32 %v49, %v904
  %v914 = vadd.f32 %v682, 1.0
  %v915 = vadd.f32 %v687, 1.0
  %v916 = vadd.f32 %v692, 1.0
  %v917 = vadd.f32 %v697, 1.0
  %v918 = vadd.f32 %v702, 1.0
  %v919 = vadd.f32 %v707, 1.0
  %v920 = vadd.f32 %v712, 1.0
  %v921 = vadd.f32 %v717, 1.0
  %v922 = vadd.f32 %v722, 1.0
  %v923 = vxor.u32 %v914, 2147483648
  %v924 = vxor.u32 %v915, 2147483648
  %v925 = vxor.u32 %v916, 2147483648
  %v926 = vxor.u32 %v917, 2147483648
  %v927 = vxor.u32 %v918, 2147483648
  %v928 = vxor.u32 %v919, 2147483648
  %v929 = vxor.u32 %v920, 2147483648
  %v930 = vxor.u32 %v921, 2147483648
  %v931 = vxor.u32 %v922, 2147483648
  %v932 = vmul.f32 %v923, 1.442695
  %v933 = vpow.pop %v932
  %v934 = vmul.f32 %v924, 1.442695
  %v935 = vpow.pop %v934
  %v936 = vmul.f32 %v925, 1.442695
  %v937 = vpow.pop %v936
  %v938 = vmul.f32 %v926, 1.442695
  %v939 = vpow.pop %v938
  %v940 = vmul.f32 %v927, 1.442695
  %v941 = vpow.pop %v940
  %v942 = vmul.f32 %v928, 1.442695
  %v943 = vpow.pop %v942
  %v944 = vmul.f32 %v929, 1.442695
  %v945 = vpow.pop %v944
  %v946 = vmul.f32 %v930, 1.442695
  %v947 = vpow.pop %v946
  %v948 = vmul.f32 %v931, 1.442695
  %v949 = vpow.pop %v948
  %v950 = vadd.f32 %v933, 1.0
  %v951 = vadd.f32 %v935, 1.0
  %v952 = vadd.f32 %v937, 1.0
  %v953 = vadd.f32 %v939, 1.0
  %v954 = vadd.f32 %v941, 1.0
  %v955 = vadd.f32 %v943, 1.0
  %v956 = vadd.f32 %v945, 1.0
  %v957 = vadd.f32 %v947, 1.0
  %v958 = vadd.f32 %v949, 1.0
  %v959 = vrcp.pop %v950
  %v960 = vmul.f32 %v950, %v959
  %v961 = vsub.f32 1.0, %v960
  %v962 = vmul.f32 %v959, %v961
  %v963 = vadd.f32 %v959, %v962
  %vm964 = vweird.f32 %v950
  %vm965 = vweird.f32 %v959
  %vm966 = vmor %vm964, %vm965
  %v967 = vsel %vm966, %v959, %v963
  %v968 = vand.u32 2147483647, %v950
  %vm969 = vcmp.eq.f32.partialorder %v968, 8.507059e+37
  %v970 = vand.u32 %v950, 2147483648
  %v971 = vor.u32 1.1754944e-38, %v970
  %v972 = vsel %vm969, %v971, %v967
  %v973 = vmul.f32 1.0, %v972
  %v974 = vrcp.pop %v951
  %v975 = vmul.f32 %v951, %v974
  %v976 = vsub.f32 1.0, %v975
  %v977 = vmul.f32 %v974, %v976
  %v978 = vadd.f32 %v974, %v977
  %vm979 = vweird.f32 %v951
  %vm980 = vweird.f32 %v974
  %vm981 = vmor %vm979, %vm980
  %v982 = vsel %vm981, %v974, %v978
  %v983 = vand.u32 2147483647, %v951
  %vm984 = vcmp.eq.f32.partialorder %v983, 8.507059e+37
  %v985 = vand.u32 %v951, 2147483648
  %v986 = vor.u32 1.1754944e-38, %v985
  %v987 = vsel %vm984, %v986, %v982
  %v988 = vmul.f32 1.0, %v987
  %v989 = vrcp.pop %v952
  %v990 = vmul.f32 %v952, %v989
  %v991 = vsub.f32 1.0, %v990
  %v992 = vmul.f32 %v989, %v991
  %v993 = vadd.f32 %v989, %v992
  %vm994 = vweird.f32 %v952
  %vm995 = vweird.f32 %v989
  %vm996 = vmor %vm994, %vm995
  %v997 = vsel %vm996, %v989, %v993
  %v998 = vand.u32 2147483647, %v952
  %vm999 = vcmp.eq.f32.partialorder %v998, 8.507059e+37
  %v1000 = vand.u32 %v952, 2147483648
  %v1001 = vor.u32 1.1754944e-38, %v1000
  %v1002 = vsel %vm999, %v1001, %v997
  %v1003 = vmul.f32 1.0, %v1002
  %v1004 = vrcp.pop %v953
  %v1005 = vmul.f32 %v953, %v1004
  %v1006 = vsub.f32 1.0, %v1005
  %v1007 = vmul.f32 %v1004, %v1006
  %v1008 = vadd.f32 %v1004, %v1007
  %vm1009 = vweird.f32 %v953
  %vm1010 = vweird.f32 %v1004
  %vm1011 = vmor %vm1009, %vm1010
  %v1012 = vsel %vm1011, %v1004, %v1008
  %v1013 = vand.u32 2147483647, %v953
  %vm1014 = vcmp.eq.f32.partialorder %v1013, 8.507059e+37
  %v1015 = vand.u32 %v953, 2147483648
  %v1016 = vor.u32 1.1754944e-38, %v1015
  %v1017 = vsel %vm1014, %v1016, %v1012
  %v1018 = vmul.f32 1.0, %v1017
  %v1019 = vrcp.pop %v954
  %v1020 = vmul.f32 %v954, %v1019
  %v1021 = vsub.f32 1.0, %v1020
  %v1022 = vmul.f32 %v1019, %v1021
  %v1023 = vadd.f32 %v1019, %v1022
  %vm1024 = vweird.f32 %v954
  %vm1025 = vweird.f32 %v1019
  %vm1026 = vmor %vm1024, %vm1025
  %v1027 = vsel %vm1026, %v1019, %v1023
  %v1028 = vand.u32 2147483647, %v954
  %vm1029 = vcmp.eq.f32.partialorder %v1028, 8.507059e+37
  %v1030 = vand.u32 %v954, 2147483648
  %v1031 = vor.u32 1.1754944e-38, %v1030
  %v1032 = vsel %vm1029, %v1031, %v1027
  %v1033 = vmul.f32 1.0, %v1032
  %v1034 = vrcp.pop %v955
  %v1035 = vmul.f32 %v955, %v1034
  %v1036 = vsub.f32 1.0, %v1035
  %v1037 = vmul.f32 %v1034, %v1036
  %v1038 = vadd.f32 %v1034, %v1037
  %vm1039 = vweird.f32 %v955
  %vm1040 = vweird.f32 %v1034
  %vm1041 = vmor %vm1039, %vm1040
  %v1042 = vsel %vm1041, %v1034, %v1038
  %v1043 = vand.u32 2147483647, %v955
  %vm1044 = vcmp.eq.f32.partialorder %v1043, 8.507059e+37
  %v1045 = vand.u32 %v955, 2147483648
  %v1046 = vor.u32 1.1754944e-38, %v1045
  %v1047 = vsel %vm1044, %v1046, %v1042
  %v1048 = vmul.f32 1.0, %v1047
  %v1049 = vrcp.pop %v956
  %v1050 = vmul.f32 %v956, %v1049
  %v1051 = vsub.f32 1.0, %v1050
  %v1052 = vmul.f32 %v1049, %v1051
  %v1053 = vadd.f32 %v1049, %v1052
  %vm1054 = vweird.f32 %v956
  %vm1055 = vweird.f32 %v1049
  %vm1056 = vmor %vm1054, %vm1055
  %v1057 = vsel %vm1056, %v1049, %v1053
  %v1058 = vand.u32 2147483647, %v956
  %vm1059 = vcmp.eq.f32.partialorder %v1058, 8.507059e+37
  %v1060 = vand.u32 %v956, 2147483648
  %v1061 = vor.u32 1.1754944e-38, %v1060
  %v1062 = vsel %vm1059, %v1061, %v1057
  %v1063 = vmul.f32 1.0, %v1062
  %v1064 = vrcp.pop %v957
  %v1065 = vmul.f32 %v957, %v1064
  %v1066 = vsub.f32 1.0, %v1065
  %v1067 = vmul.f32 %v1064, %v1066
  %v1068 = vadd.f32 %v1064, %v1067
  %vm1069 = vweird.f32 %v957
  %vm1070 = vweird.f32 %v1064
  %vm1071 = vmor %vm1069, %vm1070
  %v1072 = vsel %vm1071, %v1064, %v1068
  %v1073 = vand.u32 2147483647, %v957
  %vm1074 = vcmp.eq.f32.partialorder %v1073, 8.507059e+37
  %v1075 = vand.u32 %v957, 2147483648
  %v1076 = vor.u32 1.1754944e-38, %v1075
  %v1077 = vsel %vm1074, %v1076, %v1072
  %v1078 = vmul.f32 1.0, %v1077
  %v1079 = vrcp.pop %v958
  %v1080 = vmul.f32 %v958, %v1079
  %v1081 = vsub.f32 1.0, %v1080
  %v1082 = vmul.f32 %v1079, %v1081
  %v1083 = vadd.f32 %v1079, %v1082
  %vm1084 = vweird.f32 %v958
  %vm1085 = vweird.f32 %v1079
  %vm1086 = vmor %vm1084, %vm1085
  %v1087 = vsel %vm1086, %v1079, %v1083
  %v1088 = vand.u32 2147483647, %v958
  %vm1089 = vcmp.eq.f32.partialorder %v1088, 8.507059e+37
  %v1090 = vand.u32 %v958, 2147483648
  %v1091 = vor.u32 1.1754944e-38, %v1090
  %v1092 = vsel %vm1089, %v1091, %v1087
  %v1093 = vmul.f32 1.0, %v1092
  %v1094 = vmul.f32 %v59, %v973
  %v1095 = vmul.f32 %v60, %v988
  %v1096 = vmul.f32 %v61, %v1003
  %v1097 = vmul.f32 %v62, %v1018
  %v1098 = vmul.f32 %v63, %v1033
  %v1099 = vmul.f32 %v64, %v1048
  %v1100 = vmul.f32 %v65, %v1063
  %v1101 = vmul.f32 %v66, %v1078
  %v1102 = vmul.f32 %v67, %v1093
  %v1103 = vadd.f32 %v905, %v1094
  %v1104 = vadd.f32 %v906, %v1095
  %v1105 = vadd.f32 %v907, %v1096
  %v1106 = vadd.f32 %v908, %v1097
  %v1107 = vadd.f32 %v909, %v1098
  %v1108 = vadd.f32 %v910, %v1099
  %v1109 = vadd.f32 %v911, %v1100
  %v1110 = vadd.f32 %v912, %v1101
  %v1111 = vadd.f32 %v913, %v1102
  %v1112 = vtanh.pop %v683
  %v1113 = vtanh.pop %v688
  %v1114 = vtanh.pop %v693
  %v1115 = vtanh.pop %v698
  %v1116 = vtanh.pop %v703
  %v1117 = vtanh.pop %v708
  %v1118 = vtanh.pop %v713
  %v1119 = vtanh.pop %v718
  %v1120 = vtanh.pop %v723
  %v1121 = vxor.u32 %v680, 2147483648
  %v1122 = vxor.u32 %v685, 2147483648
  %v1123 = vxor.u32 %v690, 2147483648
  %v1124 = vxor.u32 %v695, 2147483648
  %v1125 = vxor.u32 %v700, 2147483648
  %v1126 = vxor.u32 %v705, 2147483648
  %v1127 = vxor.u32 %v710, 2147483648
  %v1128 = vxor.u32 %v715, 2147483648
  %v1129 = vxor.u32 %v720, 2147483648
  %v1130 = vmul.f32 %v1121, 1.442695
  %v1131 = vpow.pop %v1130
  %v1132 = vmul.f32 %v1122, 1.442695
  %v1133 = vpow.pop %v1132
  %v1134 = vmul.f32 %v1123, 1.442695
  %v1135 = vpow.pop %v1134
  %v1136 = vmul.f32 %v1124, 1.442695
  %v1137 = vpow.pop %v1136
  %v1138 = vmul.f32 %v1125, 1.442695
  %v1139 = vpow.pop %v1138
  %v1140 = vmul.f32 %v1126, 1.442695
  %v1141 = vpow.pop %v1140
  %v1142 = vmul.f32 %v1127, 1.442695
  %v1143 = vpow.pop %v1142
  %v1144 = vmul.f32 %v1128, 1.442695
  %v1145 = vpow.pop %v1144
  %v1146 = vmul.f32 %v1129, 1.442695
  %v1147 = vpow.pop %v1146
  %v1148 = vadd.f32 %v1131, 1.0
  %v1149 = vadd.f32 %v1133, 1.0
  %v1150 = vadd.f32 %v1135, 1.0
  %v1151 = vadd.f32 %v1137, 1.0
  %v1152 = vadd.f32 %v1139, 1.0
  %v1153 = vadd.f32 %v1141, 1.0
  %v1154 = vadd.f32 %v1143, 1.0
  %v1155 = vadd.f32 %v1145, 1.0
  %v1156 = vadd.f32 %v1147, 1.0
  %v1157 = vrcp.pop %v1148
  %v1158 = vmul.f32 %v1148, %v1157
  %v1159 = vsub.f32 1.0, %v1158
  %v1160 = vmul.f32 %v1157, %v1159
  %v1161 = vadd.f32 %v1157, %v1160
  %vm1162 = vweird.f32 %v1148
  %vm1163 = vweird.f32 %v1157
  %vm1164 = vmor %vm1162, %vm1163
  %v1165 = vsel %vm1164, %v1157, %v1161
  %v1166 = vand.u32 2147483647, %v1148
  %vm1167 = vcmp.eq.f32.partialorder %v1166, 8.507059e+37
  %v1168 = vand.u32 %v1148, 2147483648
  %v1169 = vor.u32 1.1754944e-38, %v1168
  %v1170 = vsel %vm1167, %v1169, %v1165
  %v1171 = vmul.f32 1.0, %v1170
  %v1172 = vrcp.pop %v1149
  %v1173 = vmul.f32 %v1149, %v1172
  %v1174 = vsub.f32 1.0, %v1173
  %v1175 = vmul.f32 %v1172, %v1174
  %v1176 = vadd.f32 %v1172, %v1175
  %vm1177 = vweird.f32 %v1149
  %vm1178 = vweird.f32 %v1172
  %vm1179 = vmor %vm1177, %vm1178
  %v1180 = vsel %vm1179, %v1172, %v1176
  %v1181 = vand.u32 2147483647, %v1149
  %vm1182 = vcmp.eq.f32.partialorder %v1181, 8.507059e+37
  %v1183 = vand.u32 %v1149, 2147483648
  %v1184 = vor.u32 1.1754944e-38, %v1183
  %v1185 = vsel %vm1182, %v1184, %v1180
  %v1186 = vmul.f32 1.0, %v1185
  %v1187 = vrcp.pop %v1150
  %v1188 = vmul.f32 %v1150, %v1187
  %v1189 = vsub.f32 1.0, %v1188
  %v1190 = vmul.f32 %v1187, %v1189
  %v1191 = vadd.f32 %v1187, %v1190
  %vm1192 = vweird.f32 %v1150
  %vm1193 = vweird.f32 %v1187
  %vm1194 = vmor %vm1192, %vm1193
  %v1195 = vsel %vm1194, %v1187, %v1191
  %v1196 = vand.u32 2147483647, %v1150
  %vm1197 = vcmp.eq.f32.partialorder %v1196, 8.507059e+37
  %v1198 = vand.u32 %v1150, 2147483648
  %v1199 = vor.u32 1.1754944e-38, %v1198
  %v1200 = vsel %vm1197, %v1199, %v1195
  %v1201 = vmul.f32 1.0, %v1200
  %v1202 = vrcp.pop %v1151
  %v1203 = vmul.f32 %v1151, %v1202
  %v1204 = vsub.f32 1.0, %v1203
  %v1205 = vmul.f32 %v1202, %v1204
  %v1206 = vadd.f32 %v1202, %v1205
  %vm1207 = vweird.f32 %v1151
  %vm1208 = vweird.f32 %v1202
  %vm1209 = vmor %vm1207, %vm1208
  %v1210 = vsel %vm1209, %v1202, %v1206
  %v1211 = vand.u32 2147483647, %v1151
  %vm1212 = vcmp.eq.f32.partialorder %v1211, 8.507059e+37
  %v1213 = vand.u32 %v1151, 2147483648
  %v1214 = vor.u32 1.1754944e-38, %v1213
  %v1215 = vsel %vm1212, %v1214, %v1210
  %v1216 = vmul.f32 1.0, %v1215
  %v1217 = vrcp.pop %v1152
  %v1218 = vmul.f32 %v1152, %v1217
  %v1219 = vsub.f32 1.0, %v1218
  %v1220 = vmul.f32 %v1217, %v1219
  %v1221 = vadd.f32 %v1217, %v1220
  %vm1222 = vweird.f32 %v1152
  %vm1223 = vweird.f32 %v1217
  %vm1224 = vmor %vm1222, %vm1223
  %v1225 = vsel %vm1224, %v1217, %v1221
  %v1226 = vand.u32 2147483647, %v1152
  %vm1227 = vcmp.eq.f32.partialorder %v1226, 8.507059e+37
  %v1228 = vand.u32 %v1152, 2147483648
  %v1229 = vor.u32 1.1754944e-38, %v1228
  %v1230 = vsel %vm1227, %v1229, %v1225
  %v1231 = vmul.f32 1.0, %v1230
  %v1232 = vrcp.pop %v1153
  %v1233 = vmul.f32 %v1153, %v1232
  %v1234 = vsub.f32 1.0, %v1233
  %v1235 = vmul.f32 %v1232, %v1234
  %v1236 = vadd.f32 %v1232, %v1235
  %vm1237 = vweird.f32 %v1153
  %vm1238 = vweird.f32 %v1232
  %vm1239 = vmor %vm1237, %vm1238
  %v1240 = vsel %vm1239, %v1232, %v1236
  %v1241 = vand.u32 2147483647, %v1153
  %vm1242 = vcmp.eq.f32.partialorder %v1241, 8.507059e+37
  %v1243 = vand.u32 %v1153, 2147483648
  %v1244 = vor.u32 1.1754944e-38, %v1243
  %v1245 = vsel %vm1242, %v1244, %v1240
  %v1246 = vmul.f32 1.0, %v1245
  %v1247 = vrcp.pop %v1154
  %v1248 = vmul.f32 %v1154, %v1247
  %v1249 = vsub.f32 1.0, %v1248
  %v1250 = vmul.f32 %v1247, %v1249
  %v1251 = vadd.f32 %v1247, %v1250
  %vm1252 = vweird.f32 %v1154
  %vm1253 = vweird.f32 %v1247
  %vm1254 = vmor %vm1252, %vm1253
  %v1255 = vsel %vm1254, %v1247, %v1251
  %v1256 = vand.u32 2147483647, %v1154
  %vm1257 = vcmp.eq.f32.partialorder %v1256, 8.507059e+37
  %v1258 = vand.u32 %v1154, 2147483648
  %v1259 = vor.u32 1.1754944e-38, %v1258
  %v1260 = vsel %vm1257, %v1259, %v1255
  %v1261 = vmul.f32 1.0, %v1260
  %v1262 = vrcp.pop %v1155
  %v1263 = vmul.f32 %v1155, %v1262
  %v1264 = vsub.f32 1.0, %v1263
  %v1265 = vmul.f32 %v1262, %v1264
  %v1266 = vadd.f32 %v1262, %v1265
  %vm1267 = vweird.f32 %v1155
  %vm1268 = vweird.f32 %v1262
  %vm1269 = vmor %vm1267, %vm1268
  %v1270 = vsel %vm1269, %v1262, %v1266
  %v1271 = vand.u32 2147483647, %v1155
  %vm1272 = vcmp.eq.f32.partialorder %v1271, 8.507059e+37
  %v1273 = vand.u32 %v1155, 2147483648
  %v1274 = vor.u32 1.1754944e-38, %v1273
  %v1275 = vsel %vm1272, %v1274, %v1270
  %v1276 = vmul.f32 1.0, %v1275
  %v1277 = vrcp.pop %v1156
  %v1278 = vmul.f32 %v1156, %v1277
  %v1279 = vsub.f32 1.0, %v1278
  %v1280 = vmul.f32 %v1277, %v1279
  %v1281 = vadd.f32 %v1277, %v1280
  %vm1282 = vweird.f32 %v1156
  %vm1283 = vweird.f32 %v1277
  %vm1284 = vmor %vm1282, %vm1283
  %v1285 = vsel %vm1284, %v1277, %v1281
  %v1286 = vand.u32 2147483647, %v1156
  %vm1287 = vcmp.eq.f32.partialorder %v1286, 8.507059e+37
  %v1288 = vand.u32 %v1156, 2147483648
  %v1289 = vor.u32 1.1754944e-38, %v1288
  %v1290 = vsel %vm1287, %v1289, %v1285
  %v1291 = vmul.f32 1.0, %v1290
  %v1292 = vmul.f32 %v1112, %v1171
  %v1293 = vmul.f32 %v1113, %v1186
  %v1294 = vmul.f32 %v1114, %v1201
  %v1295 = vmul.f32 %v1115, %v1216
  %v1296 = vmul.f32 %v1116, %v1231
  %v1297 = vmul.f32 %v1117, %v1246
  %v1298 = vmul.f32 %v1118, %v1261
  %v1299 = vmul.f32 %v1119, %v1276
  %v1300 = vmul.f32 %v1120, %v1291
  %v1301 = vadd.f32 %v1103, %v1292
  %v1302 = vadd.f32 %v1104, %v1293
  %v1303 = vadd.f32 %v1105, %v1294
  %v1304 = vadd.f32 %v1106, %v1295
  %v1305 = vadd.f32 %v1107, %v1296
  %v1306 = vadd.f32 %v1108, %v1297
  %v1307 = vadd.f32 %v1109, %v1298
  %v1308 = vadd.f32 %v1110, %v1299
  %v1309 = vadd.f32 %v1111, %v1300
  %v1310 = vxor.u32 %v684, 2147483648
  %v1311 = vxor.u32 %v689, 2147483648
  %v1312 = vxor.u32 %v694, 2147483648
  %v1313 = vxor.u32 %v699, 2147483648
  %v1314 = vxor.u32 %v704, 2147483648
  %v1315 = vxor.u32 %v709, 2147483648
  %v1316 = vxor.u32 %v714, 2147483648
  %v1317 = vxor.u32 %v719, 2147483648
  %v1318 = vxor.u32 %v724, 2147483648
  %v1319 = vmul.f32 %v1310, 1.442695
  %v1320 = vpow.pop %v1319
  %v1321 = vmul.f32 %v1311, 1.442695
  %v1322 = vpow.pop %v1321
  %v1323 = vmul.f32 %v1312, 1.442695
  %v1324 = vpow.pop %v1323
  %v1325 = vmul.f32 %v1313, 1.442695
  %v1326 = vpow.pop %v1325
  %v1327 = vmul.f32 %v1314, 1.442695
  %v1328 = vpow.pop %v1327
  %v1329 = vmul.f32 %v1315, 1.442695
  %v1330 = vpow.pop %v1329
  %v1331 = vmul.f32 %v1316, 1.442695
  %v1332 = vpow.pop %v1331
  %v1333 = vmul.f32 %v1317, 1.442695
  %v1334 = vpow.pop %v1333
  %v1335 = vmul.f32 %v1318, 1.442695
  %v1336 = vpow.pop %v1335
  %v1337 = vadd.f32 %v1320, 1.0
  %v1338 = vadd.f32 %v1322, 1.0
  %v1339 = vadd.f32 %v1324, 1.0
  %v1340 = vadd.f32 %v1326, 1.0
  %v1341 = vadd.f32 %v1328, 1.0
  %v1342 = vadd.f32 %v1330, 1.0
  %v1343 = vadd.f32 %v1332, 1.0
  %v1344 = vadd.f32 %v1334, 1.0
  %v1345 = vadd.f32 %v1336, 1.0
  %v1346 = vrcp.pop %v1337
  %v1347 = vmul.f32 %v1337, %v1346
  %v1348 = vsub.f32 1.0, %v1347
  %v1349 = vmul.f32 %v1346, %v1348
  %v1350 = vadd.f32 %v1346, %v1349
  %vm1351 = vweird.f32 %v1337
  %vm1352 = vweird.f32 %v1346
  %vm1353 = vmor %vm1351, %vm1352
  %v1354 = vsel %vm1353, %v1346, %v1350
  %v1355 = vand.u32 2147483647, %v1337
  %vm1356 = vcmp.eq.f32.partialorder %v1355, 8.507059e+37
  %v1357 = vand.u32 %v1337, 2147483648
  %v1358 = vor.u32 1.1754944e-38, %v1357
  %v1359 = vsel %vm1356, %v1358, %v1354
  %v1360 = vmul.f32 1.0, %v1359
  %v1361 = vrcp.pop %v1338
  %v1362 = vmul.f32 %v1338, %v1361
  %v1363 = vsub.f32 1.0, %v1362
  %v1364 = vmul.f32 %v1361, %v1363
  %v1365 = vadd.f32 %v1361, %v1364
  %vm1366 = vweird.f32 %v1338
  %vm1367 = vweird.f32 %v1361
  %vm1368 = vmor %vm1366, %vm1367
  %v1369 = vsel %vm1368, %v1361, %v1365
  %v1370 = vand.u32 2147483647, %v1338
  %vm1371 = vcmp.eq.f32.partialorder %v1370, 8.507059e+37
  %v1372 = vand.u32 %v1338, 2147483648
  %v1373 = vor.u32 1.1754944e-38, %v1372
  %v1374 = vsel %vm1371, %v1373, %v1369
  %v1375 = vmul.f32 1.0, %v1374
  %v1376 = vrcp.pop %v1339
  %v1377 = vmul.f32 %v1339, %v1376
  %v1378 = vsub.f32 1.0, %v1377
  %v1379 = vmul.f32 %v1376, %v1378
  %v1380 = vadd.f32 %v1376, %v1379
  %vm1381 = vweird.f32 %v1339
  %vm1382 = vweird.f32 %v1376
  %vm1383 = vmor %vm1381, %vm1382
  %v1384 = vsel %vm1383, %v1376, %v1380
  %v1385 = vand.u32 2147483647, %v1339
  %vm1386 = vcmp.eq.f32.partialorder %v1385, 8.507059e+37
  %v1387 = vand.u32 %v1339, 2147483648
  %v1388 = vor.u32 1.1754944e-38, %v1387
  %v1389 = vsel %vm1386, %v1388, %v1384
  %v1390 = vmul.f32 1.0, %v1389
  %v1391 = vrcp.pop %v1340
  %v1392 = vmul.f32 %v1340, %v1391
  %v1393 = vsub.f32 1.0, %v1392
  %v1394 = vmul.f32 %v1391, %v1393
  %v1395 = vadd.f32 %v1391, %v1394
  %vm1396 = vweird.f32 %v1340
  %vm1397 = vweird.f32 %v1391
  %vm1398 = vmor %vm1396, %vm1397
  %v1399 = vsel %vm1398, %v1391, %v1395
  %v1400 = vand.u32 2147483647, %v1340
  %vm1401 = vcmp.eq.f32.partialorder %v1400, 8.507059e+37
  %v1402 = vand.u32 %v1340, 2147483648
  %v1403 = vor.u32 1.1754944e-38, %v1402
  %v1404 = vsel %vm1401, %v1403, %v1399
  %v1405 = vmul.f32 1.0, %v1404
  %v1406 = vrcp.pop %v1341
  %v1407 = vmul.f32 %v1341, %v1406
  %v1408 = vsub.f32 1.0, %v1407
  %v1409 = vmul.f32 %v1406, %v1408
  %v1410 = vadd.f32 %v1406, %v1409
  %vm1411 = vweird.f32 %v1341
  %vm1412 = vweird.f32 %v1406
  %vm1413 = vmor %vm1411, %vm1412
  %v1414 = vsel %vm1413, %v1406, %v1410
  %v1415 = vand.u32 2147483647, %v1341
  %vm1416 = vcmp.eq.f32.partialorder %v1415, 8.507059e+37
  %v1417 = vand.u32 %v1341, 2147483648
  %v1418 = vor.u32 1.1754944e-38, %v1417
  %v1419 = vsel %vm1416, %v1418, %v1414
  %v1420 = vmul.f32 1.0, %v1419
  %v1421 = vrcp.pop %v1342
  %v1422 = vmul.f32 %v1342, %v1421
  %v1423 = vsub.f32 1.0, %v1422
  %v1424 = vmul.f32 %v1421, %v1423
  %v1425 = vadd.f32 %v1421, %v1424
  %vm1426 = vweird.f32 %v1342
  %vm1427 = vweird.f32 %v1421
  %vm1428 = vmor %vm1426, %vm1427
  %v1429 = vsel %vm1428, %v1421, %v1425
  %v1430 = vand.u32 2147483647, %v1342
  %vm1431 = vcmp.eq.f32.partialorder %v1430, 8.507059e+37
  %v1432 = vand.u32 %v1342, 2147483648
  %v1433 = vor.u32 1.1754944e-38, %v1432
  %v1434 = vsel %vm1431, %v1433, %v1429
  %v1435 = vmul.f32 1.0, %v1434
  %v1436 = vrcp.pop %v1343
  %v1437 = vmul.f32 %v1343, %v1436
  %v1438 = vsub.f32 1.0, %v1437
  %v1439 = vmul.f32 %v1436, %v1438
  %v1440 = vadd.f32 %v1436, %v1439
  %vm1441 = vweird.f32 %v1343
  %vm1442 = vweird.f32 %v1436
  %vm1443 = vmor %vm1441, %vm1442
  %v1444 = vsel %vm1443, %v1436, %v1440
  %v1445 = vand.u32 2147483647, %v1343
  %vm1446 = vcmp.eq.f32.partialorder %v1445, 8.507059e+37
  %v1447 = vand.u32 %v1343, 2147483648
  %v1448 = vor.u32 1.1754944e-38, %v1447
  %v1449 = vsel %vm1446, %v1448, %v1444
  %v1450 = vmul.f32 1.0, %v1449
  %v1451 = vrcp.pop %v1344
  %v1452 = vmul.f32 %v1344, %v1451
  %v1453 = vsub.f32 1.0, %v1452
  %v1454 = vmul.f32 %v1451, %v1453
  %v1455 = vadd.f32 %v1451, %v1454
  %vm1456 = vweird.f32 %v1344
  %vm1457 = vweird.f32 %v1451
  %vm1458 = vmor %vm1456, %vm1457
  %v1459 = vsel %vm1458, %v1451, %v1455
  %v1460 = vand.u32 2147483647, %v1344
  %vm1461 = vcmp.eq.f32.partialorder %v1460, 8.507059e+37
  %v1462 = vand.u32 %v1344, 2147483648
  %v1463 = vor.u32 1.1754944e-38, %v1462
  %v1464 = vsel %vm1461, %v1463, %v1459
  %v1465 = vmul.f32 1.0, %v1464
  %v1466 = vrcp.pop %v1345
  %v1467 = vmul.f32 %v1345, %v1466
  %v1468 = vsub.f32 1.0, %v1467
  %v1469 = vmul.f32 %v1466, %v1468
  %v1470 = vadd.f32 %v1466, %v1469
  %vm1471 = vweird.f32 %v1345
  %vm1472 = vweird.f32 %v1466
  %vm1473 = vmor %vm1471, %vm1472
  %v1474 = vsel %vm1473, %v1466, %v1470
  %v1475 = vand.u32 2147483647, %v1345
  %vm1476 = vcmp.eq.f32.partialorder %v1475, 8.507059e+37
  %v1477 = vand.u32 %v1345, 2147483648
  %v1478 = vor.u32 1.1754944e-38, %v1477
  %v1479 = vsel %vm1476, %v1478, %v1474
  %v1480 = vmul.f32 1.0, %v1479
  %v1481 = vtanh.pop %v1301
  %v1482 = vtanh.pop %v1302
  %v1483 = vtanh.pop %v1303
  %v1484 = vtanh.pop %v1304
  %v1485 = vtanh.pop %v1305
  %v1486 = vtanh.pop %v1306
  %v1487 = vtanh.pop %v1307
  %v1488 = vtanh.pop %v1308
  %v1489 = vtanh.pop %v1309
  %v1490 = vmul.f32 %v1360, %v1481
  %v1491 = vmul.f32 %v1375, %v1482
  %v1492 = vmul.f32 %v1390, %v1483
  %v1493 = vmul.f32 %v1405, %v1484
  %v1494 = vmul.f32 %v1420, %v1485
  %v1495 = vmul.f32 %v1435, %v1486
  %v1496 = vmul.f32 %v1450, %v1487
  %v1497 = vmul.f32 %v1465, %v1488
  %v1498 = vmul.f32 %v1480, %v1489
  %1499 = vst [vmem:[%s8] sm:$0xff] %v1490
  %1500 = vst [vmem:[%s8 + $0x8] sm:$0xff] %v1491
  %1501 = vst [vmem:[%s8 + $0x10] sm:$0xff] %v1492
  %1502 = vst [vmem:[%s8 + $0x18] sm:$0xff] %v1493
  %1503 = vst [vmem:[%s8 + $0x20] sm:$0xff] %v1494
  %1504 = vst [vmem:[%s8 + $0x28] sm:$0xff] %v1495
  %1505 = vst [vmem:[%s8 + $0x30] sm:$0xff] %v1496
  %1506 = vst [vmem:[%s8 + $0x38] sm:$0xff] %v1497
  %1507 = vst [vmem:[%s8 + $0x40] sm:$0xff] %v1498
  %1508 = vst [vmem:[%s9] sm:$0xff] %v1301
  %1509 = vst [vmem:[%s9 + $0x8] sm:$0xff] %v1302
  %1510 = vst [vmem:[%s9 + $0x10] sm:$0xff] %v1303
  %1511 = vst [vmem:[%s9 + $0x18] sm:$0xff] %v1304
  %1512 = vst [vmem:[%s9 + $0x20] sm:$0xff] %v1305
  %1513 = vst [vmem:[%s9 + $0x28] sm:$0xff] %v1306
  %1514 = vst [vmem:[%s9 + $0x30] sm:$0xff] %v1307
  %1515 = vst [vmem:[%s9 + $0x38] sm:$0xff] %v1308
  %1516 = vst [vmem:[%s9 + $0x40] sm:$0xff] %v1309
  %v1517 = vld [vmem:[%s7] sm:$0xff]
  %v1518 = vld [vmem:[%s7 + $0x8] sm:$0xff]
  %v1519 = vld [vmem:[%s7 + $0x10] sm:$0xff]
  %v1520 = vld [vmem:[%s7 + $0x18] sm:$0xff]
  %v1521 = vld [vmem:[%s7 + $0x20] sm:$0xff]
  %v1522 = vld [vmem:[%s7 + $0x28] sm:$0xff]
  %v1523 = vld [vmem:[%s7 + $0x30] sm:$0xff]
  %v1524 = vld [vmem:[%s7 + $0x38] sm:$0xff]
  %v1525 = vld [vmem:[%s7 + $0x40] sm:$0xff]
  %v1526 = vld [vmem:[%s7 + $0x48] sm:$0xff]
  %v1527 = vld [vmem:[%s7 + $0x50] sm:$0xff]
  %v1528 = vld [vmem:[%s7 + $0x58] sm:$0xff]
  %v1529 = vld [vmem:[%s7 + $0x60] sm:$0xff]
  %v1530 = vld [vmem:[%s7 + $0x68] sm:$0xff]
  %v1531 = vld [vmem:[%s7 + $0x70] sm:$0xff]
  %v1532 = vld [vmem:[%s7 + $0x78] sm:$0xff]
  %1533 = vmatpush.msra.mxu0 %v1532
  %1534 = vmatpush.msra.mxu0 %v1531
  %1535 = vmatpush.msra.mxu0 %v1530
  %1536 = vmatpush.msra.mxu0 %v1529
  %1537 = vmatpush.msra.mxu0 %v1528
  %1538 = vmatpush.msra.mxu0 %v1527
  %1539 = vmatpush.msra.mxu0 %v1526
  %1540 = vmatpush.msra.mxu0 %v1525
  %1541 = vmatpush.msra.mxu0 %v1524
  %1542 = vmatpush.msra.mxu0 %v1523
  %1543 = vmatpush.msra.mxu0 %v1522
  %1544 = vmatpush.msra.mxu0 %v1521
  %1545 = vmatpush.msra.mxu0 %v1520
  %1546 = vmatpush.msra.mxu0 %v1519
  %1547 = vmatpush.msra.mxu0 %v1518
  %1548 = vmatpush.msra.mxu0 %v1517
  %1549 = vmatmul.f32.gmra.mxu0 %v1490
  %v1550 = vpop.f32.mrf.mxu0
  %v1551 = vadd.f32 0.0, %v1550
  %1552 = vmatmul.f32.gmra.mxu0 %v1491
  %v1553 = vpop.f32.mrf.mxu0
  %v1554 = vadd.f32 0.0, %v1553
  %1555 = vmatmul.f32.gmra.mxu0 %v1492
  %v1556 = vpop.f32.mrf.mxu0
  %v1557 = vadd.f32 0.0, %v1556
  %1558 = vmatmul.f32.gmra.mxu0 %v1493
  %v1559 = vpop.f32.mrf.mxu0
  %v1560 = vadd.f32 0.0, %v1559
  %1561 = vmatmul.f32.gmra.mxu0 %v1494
  %v1562 = vpop.f32.mrf.mxu0
  %v1563 = vadd.f32 0.0, %v1562
  %1564 = vmatmul.f32.gmra.mxu0 %v1495
  %v1565 = vpop.f32.mrf.mxu0
  %v1566 = vadd.f32 0.0, %v1565
  %1567 = vmatmul.f32.gmra.mxu0 %v1496
  %v1568 = vpop.f32.mrf.mxu0
  %v1569 = vadd.f32 0.0, %v1568
  %1570 = vmatmul.f32.gmra.mxu0 %v1497
  %v1571 = vpop.f32.mrf.mxu0
  %v1572 = vadd.f32 0.0, %v1571
  %1573 = vmatmul.f32.gmra.mxu0 %v1498
  %v1574 = vpop.f32.mrf.mxu0
  %v1575 = vadd.f32 0.0, %v1574
  %1576 = vdwg.mxu0
  %1577 = vst [vmem:[%s10] sm:$0xff] %v1551
  %1578 = vst [vmem:[%s10 + $0x8] sm:$0xff] %v1554
  %1579 = vst [vmem:[%s10 + $0x10] sm:$0xff] %v1557
  %1580 = vst [vmem:[%s10 + $0x18] sm:$0xff] %v1560
  %1581 = vst [vmem:[%s10 + $0x20] sm:$0xff] %v1563
  %1582 = vst [vmem:[%s10 + $0x28] sm:$0xff] %v1566
  %1583 = vst [vmem:[%s10 + $0x30] sm:$0xff] %v1569
  %1584 = vst [vmem:[%s10 + $0x38] sm:$0xff] %v1572
  %1585 = vst [vmem:[%s10 + $0x40] sm:$0xff] %v1575
  // Predicated region
  $region34: #{_chart_parser_forward_impl.9} parent=0 // pred_check
    _
  $region35: #{_chart_parser_forward_impl.9} parent=0 // pred_check_branch
    %1587 = sbr.rel (0) target = $region37
  $region36: #{_chart_parser_forward_impl.9} parent=0 // pred_region
    _
  $region37: #{_chart_parser_forward_impl.9} parent=0 // pred_fallthru
    _
  // Predicated region
  $region38: #{_chart_parser_forward_impl.9} parent=0 // pred_check
    _
  $region39: #{_chart_parser_forward_impl.9} parent=0 // pred_check_branch
    %1589 = sbr.rel (0) target = $region41
  $region40: #{_chart_parser_forward_impl.9} parent=0 // pred_region
    _
  $region41: #{_chart_parser_forward_impl.9} parent=0 // pred_fallthru
    _
  // Predicated region
  $region42: #{_chart_parser_forward_impl.9} parent=0 // pred_check
    _
  $region43: #{_chart_parser_forward_impl.9} parent=0 // pred_check_branch
    %1591 = sbr.rel (0) target = $region45
  $region44: #{_chart_parser_forward_impl.9} parent=0 // pred_region
    _
  $region45: #{_chart_parser_forward_impl.9} parent=0 // pred_fallthru
    _
  // Predicated region
  $region46: #{_chart_parser_forward_impl.9} parent=0 // pred_check
    _
  $region47: #{_chart_parser_forward_impl.9} parent=0 // pred_check_branch
    %1593 = sbr.rel (0) target = $region49
  $region48: #{_chart_parser_forward_impl.9} parent=0 // pred_region
    _
  $region49: #{_chart_parser_forward_impl.9} parent=0 // pred_fallthru
    _
  // Predicated region
  $region50: #{_chart_parser_forward_impl.9} parent=0 // pred_check
    _
  $region51: #{_chart_parser_forward_impl.9} parent=0 // pred_check_branch
    %1595 = sbr.rel (0) target = $region53
  $region52: #{_chart_parser_forward_impl.9} parent=0 // pred_region
    _
  $region53: #{_chart_parser_forward_impl.9} parent=0 // pred_fallthru
    _
  // Predicated region
  $region54: #{_chart_parser_forward_impl.9} parent=0 // pred_check
    _
  $region55: #{_chart_parser_forward_impl.9} parent=0 // pred_check_branch
    %1597 = sbr.rel (0) target = $region57
  $region56: #{_chart_parser_forward_impl.9} parent=0 // pred_region
    _
  $region57: #{_chart_parser_forward_impl.9} parent=0 // pred_fallthru
    _

// kernel: squeeze.209
$region0: #{squeeze.209}
  %s0 = inlined_call_operand.vmem [shape: f32[40], index: 0, kind: input, shape index: {}]
  %s1 = inlined_call_operand.vmem [shape: f32[1,5,8], index: 1, kind: output, shape index: {}]
  $region1: #{squeeze.209} parent=0
    #allocation0 [shape = 'u8[4096]{0}', space=vmem, size = 0x1000, scoped, tag = 'scoped mem for input reshape']
    %s3 = ssub.s32 2, 1
    %v4 = vld [vmem:[%s0] sm:%s3]
    %5 = vst [vmem:[#allocation0] sm:%s3] %v4
    %v6 = vld [vmem:[#allocation0] sm:$0x1]
    %vm7 = vcmask 64512
    %8 = vst.msk [vmem:[%s1] sm:$0x1] %vm7, %v6
    %v9 = vld [vmem:[#allocation0] sm:$0x1]
    %10 = vrot.lane.b32.xlu0 %v9, 120
    %v11 = vpop.permute.xlu0 %10
    %vm12 = vcmask 64512
    %s13 = scalar_lea.vmem %s1, 1
    %14 = vst.msk [vmem:[%s13] sm:$0x1] %vm12, %v11
    %v15 = vld [vmem:[#allocation0] sm:$0x1]
    %16 = vrot.lane.b32.xlu0 %v15, 112
    %v17 = vpop.permute.xlu0 %16
    %vm18 = vcmask 64512
    %s19 = scalar_lea.vmem %s1, 2
    %20 = vst.msk [vmem:[%s19] sm:$0x1] %vm18, %v17
    %v21 = vld [vmem:[#allocation0] sm:$0x1]
    %22 = vrot.lane.b32.xlu0 %v21, 104
    %v23 = vpop.permute.xlu0 %22
    %vm24 = vcmask 64512
    %s25 = scalar_lea.vmem %s1, 3
    %26 = vst.msk [vmem:[%s25] sm:$0x1] %vm24, %v23
    %v27 = vld [vmem:[#allocation0] sm:$0x1]
    %28 = vrot.lane.b32.xlu0 %v27, 96
    %v29 = vpop.permute.xlu0 %28
    %vm30 = vcmask 64512
    %s31 = scalar_lea.vmem %s1, 4
    %32 = vst.msk [vmem:[%s31] sm:$0x1] %vm30, %v29

// kernel: _chart_parser_forward_impl.11
$region0: #{_chart_parser_forward_impl.11}
  #allocation0 [shape = 'u32[]', space=smem, size = 0x4, offset = 0x4, fixed_abs, tag = 'smem constant byte address 0x4 - core index']
  #allocation1 [shape = 'u32[72,128]{1,0:T(1,128)}', space=vmem, size = 0x9000, scoped, tag = 'internal scratch']
  %s0 = inlined_call_operand.vmem [shape: f32[40,128], index: 0, kind: input, shape index: {}]
  %s1 = inlined_call_operand.vmem [shape: f32[40,128], index: 1, kind: input, shape index: {}]
  %s2 = inlined_call_operand.vmem [shape: f32[40,128], index: 2, kind: input, shape index: {}]
  %s3 = inlined_call_operand.vmem [shape: f32[40,128], index: 3, kind: input, shape index: {}]
  %s4 = inlined_call_operand.vmem [shape: f32[128,640], index: 4, kind: input, shape index: {}]
  %s5 = inlined_call_operand.vmem [shape: f32[128,640], index: 5, kind: input, shape index: {}]
  %s6 = inlined_call_operand.vmem [shape: f32[1,640], index: 6, kind: input, shape index: {}]
  %s7 = inlined_call_operand.vmem [shape: f32[128,128], index: 7, kind: input, shape index: {}]
  %s8 = inlined_call_operand.hbm [shape: f32[40,128], index: 8, kind: output, shape index: {0}]
  %s9 = inlined_call_operand.hbm [shape: f32[40,128], index: 9, kind: output, shape index: {1}]
  %s10 = inlined_call_operand.vmem [shape: f32[40,128], index: 10, kind: output, shape index: {2}]
  %11 = xla_tuple %s8, %s9, %s10
  %s12 = sld [smem:[#allocation0]]
  $region58: #{_chart_parser_forward_impl.11} parent=0
    _
  %s14 = ssub.s32 1, %s12
  %s15 = scalar_select 0, %s14, %s12
  $region1: #{_chart_parser_forward_impl.11} parent=0
    #allocation2 [shape = 'u8[20480]{0}', space=vmem, size = 0x5000, scoped, tag = 'output window, operand 0, single buffered']
    #allocation3 [shape = 's32[1]{0}', space=sflag, size = 0x4, scoped, tag = 'scoped memory for _chart_parser_forward_impl.11']
    #allocation4 [shape = 'u8[20480]{0}', space=vmem, size = 0x5000, scoped, tag = 'output window, operand 1, single buffered']
    #allocation5 [shape = 's32[1]{0}', space=sflag, size = 0x4, scoped, tag = 'scoped memory for _chart_parser_forward_impl.11']
    %16 = vsyncpa [#allocation3], 0
    %17 = vsyncpa [#allocation5], 0
    // Predicated region
    $region2: #{_chart_parser_forward_impl.11} parent=1 // pred_check
      _
    $region3: #{_chart_parser_forward_impl.11} parent=1 // pred_check_branch
      %19 = sbr.rel (0) target = $region5
    $region4: #{_chart_parser_forward_impl.11} parent=1 // pred_region
      _
    $region5: #{_chart_parser_forward_impl.11} parent=1 // pred_fallthru
      _
    // Predicated region
    $region6: #{_chart_parser_forward_impl.11} parent=1 // pred_check
      _
    $region7: #{_chart_parser_forward_impl.11} parent=1 // pred_check_branch
      %21 = sbr.rel (0) target = $region9
    $region8: #{_chart_parser_forward_impl.11} parent=1 // pred_region
      _
    $region9: #{_chart_parser_forward_impl.11} parent=1 // pred_fallthru
      _
    // Predicated region
    $region10: #{_chart_parser_forward_impl.11} parent=1 // pred_check
      _
    $region11: #{_chart_parser_forward_impl.11} parent=1 // pred_check_branch
      %23 = sbr.rel (0) target = $region13
    $region12: #{_chart_parser_forward_impl.11} parent=1 // pred_region
      _
    $region13: #{_chart_parser_forward_impl.11} parent=1 // pred_fallthru
      _
    // Predicated region
    $region14: #{_chart_parser_forward_impl.11} parent=1 // pred_check
      _
    $region15: #{_chart_parser_forward_impl.11} parent=1 // pred_check_branch
      %25 = sbr.rel (0) target = $region17
    $region16: #{_chart_parser_forward_impl.11} parent=1 // pred_region
      _
    $region17: #{_chart_parser_forward_impl.11} parent=1 // pred_fallthru
      _
    // Predicated region
    $region18: #{_chart_parser_forward_impl.11} parent=1 // pred_check
      _
    $region19: #{_chart_parser_forward_impl.11} parent=1 // pred_check_branch
      %27 = sbr.rel (0) target = $region21
    $region20: #{_chart_parser_forward_impl.11} parent=1 // pred_region
      _
    $region21: #{_chart_parser_forward_impl.11} parent=1 // pred_fallthru
      _
    // Predicated region
    $region22: #{_chart_parser_forward_impl.11} parent=1 // pred_check
      _
    $region23: #{_chart_parser_forward_impl.11} parent=1 // pred_check_branch
      %29 = sbr.rel (0) target = $region25
    $region24: #{_chart_parser_forward_impl.11} parent=1 // pred_region
      _
    $region25: #{_chart_parser_forward_impl.11} parent=1 // pred_fallthru
      _
    // Predicated region
    $region26: #{_chart_parser_forward_impl.11} parent=1 // pred_check
      _
    $region27: #{_chart_parser_forward_impl.11} parent=1 // pred_check_branch
      %31 = sbr.rel (0) target = $region29
    $region28: #{_chart_parser_forward_impl.11} parent=1 // pred_region
      _
    $region29: #{_chart_parser_forward_impl.11} parent=1 // pred_fallthru
      _
    // Predicated region
    $region30: #{_chart_parser_forward_impl.11} parent=1 // pred_check
      _
    $region31: #{_chart_parser_forward_impl.11} parent=1 // pred_check_branch
      %33 = sbr.rel (0) target = $region33
    $region32: #{_chart_parser_forward_impl.11} parent=1 // pred_region
      _
    $region33: #{_chart_parser_forward_impl.11} parent=1 // pred_fallthru
      _
    %v34 = vld [vmem:[%s0] sm:$0xff]
    %v35 = vld [vmem:[%s0 + $0x8] sm:$0xff]
    %v36 = vld [vmem:[%s0 + $0x10] sm:$0xff]
    %v37 = vld [vmem:[%s0 + $0x18] sm:$0xff]
    %v38 = vld [vmem:[%s0 + $0x20] sm:$0xff]
    %v39 = vld [vmem:[%s1] sm:$0xff]
    %v40 = vld [vmem:[%s1 + $0x8] sm:$0xff]
    %v41 = vld [vmem:[%s1 + $0x10] sm:$0xff]
    %v42 = vld [vmem:[%s1 + $0x18] sm:$0xff]
    %v43 = vld [vmem:[%s1 + $0x20] sm:$0xff]
    %v44 = vld [vmem:[%s2] sm:$0xff]
    %v45 = vld [vmem:[%s2 + $0x8] sm:$0xff]
    %v46 = vld [vmem:[%s2 + $0x10] sm:$0xff]
    %v47 = vld [vmem:[%s2 + $0x18] sm:$0xff]
    %v48 = vld [vmem:[%s2 + $0x20] sm:$0xff]
    %v49 = vld [vmem:[%s3] sm:$0xff]
    %v50 = vld [vmem:[%s3 + $0x8] sm:$0xff]
    %v51 = vld [vmem:[%s3 + $0x10] sm:$0xff]
    %v52 = vld [vmem:[%s3 + $0x18] sm:$0xff]
    %v53 = vld [vmem:[%s3 + $0x20] sm:$0xff]
    %v54 = vld [vmem:[%s4] sm:$0xff]
    %v55 = vld [vmem:[%s4 + $0x8] sm:$0xff]
    %v56 = vld [vmem:[%s4 + $0x10] sm:$0xff]
    %v57 = vld [vmem:[%s4 + $0x18] sm:$0xff]
    %v58 = vld [vmem:[%s4 + $0x20] sm:$0xff]
    %v59 = vld [vmem:[%s4 + $0x28] sm:$0xff]
    %v60 = vld [vmem:[%s4 + $0x30] sm:$0xff]
    %v61 = vld [vmem:[%s4 + $0x38] sm:$0xff]
    %v62 = vld [vmem:[%s4 + $0x40] sm:$0xff]
    %v63 = vld [vmem:[%s4 + $0x48] sm:$0xff]
    %v64 = vld [vmem:[%s4 + $0x50] sm:$0xff]
    %v65 = vld [vmem:[%s4 + $0x58] sm:$0xff]
    %v66 = vld [vmem:[%s4 + $0x60] sm:$0xff]
    %v67 = vld [vmem:[%s4 + $0x68] sm:$0xff]
    %v68 = vld [vmem:[%s4 + $0x70] sm:$0xff]
    %v69 = vld [vmem:[%s4 + $0x78] sm:$0xff]
    %v70 = vld [vmem:[%s4 + $0x80] sm:$0xff]
    %v71 = vld [vmem:[%s4 + $0x88] sm:$0xff]
    %v72 = vld [vmem:[%s4 + $0x90] sm:$0xff]
    %v73 = vld [vmem:[%s4 + $0x98] sm:$0xff]
    %v74 = vld [vmem:[%s4 + $0xa0] sm:$0xff]
    %v75 = vld [vmem:[%s4 + $0xa8] sm:$0xff]
    %v76 = vld [vmem:[%s4 + $0xb0] sm:$0xff]
    %v77 = vld [vmem:[%s4 + $0xb8] sm:$0xff]
    %v78 = vld [vmem:[%s4 + $0xc0] sm:$0xff]
    %v79 = vld [vmem:[%s4 + $0xc8] sm:$0xff]
    %v80 = vld [vmem:[%s4 + $0xd0] sm:$0xff]
    %v81 = vld [vmem:[%s4 + $0xd8] sm:$0xff]
    %v82 = vld [vmem:[%s4 + $0xe0] sm:$0xff]
    %v83 = vld [vmem:[%s4 + $0xe8] sm:$0xff]
    %v84 = vld [vmem:[%s4 + $0xf0] sm:$0xff]
    %v85 = vld [vmem:[%s4 + $0xf8] sm:$0xff]
    %v86 = vld [vmem:[%s4 + $0x100] sm:$0xff]
    %v87 = vld [vmem:[%s4 + $0x108] sm:$0xff]
    %v88 = vld [vmem:[%s4 + $0x110] sm:$0xff]
    %v89 = vld [vmem:[%s4 + $0x118] sm:$0xff]
    %v90 = vld [vmem:[%s4 + $0x120] sm:$0xff]
    %v91 = vld [vmem:[%s4 + $0x128] sm:$0xff]
    %v92 = vld [vmem:[%s4 + $0x130] sm:$0xff]
    %v93 = vld [vmem:[%s4 + $0x138] sm:$0xff]
    %v94 = vld [vmem:[%s4 + $0x140] sm:$0xff]
    %v95 = vld [vmem:[%s4 + $0x148] sm:$0xff]
    %v96 = vld [vmem:[%s4 + $0x150] sm:$0xff]
    %v97 = vld [vmem:[%s4 + $0x158] sm:$0xff]
    %v98 = vld [vmem:[%s4 + $0x160] sm:$0xff]
    %v99 = vld [vmem:[%s4 + $0x168] sm:$0xff]
    %v100 = vld [vmem:[%s4 + $0x170] sm:$0xff]
    %v101 = vld [vmem:[%s4 + $0x178] sm:$0xff]
    %v102 = vld [vmem:[%s4 + $0x180] sm:$0xff]
    %v103 = vld [vmem:[%s4 + $0x188] sm:$0xff]
    %v104 = vld [vmem:[%s4 + $0x190] sm:$0xff]
    %v105 = vld [vmem:[%s4 + $0x198] sm:$0xff]
    %v106 = vld [vmem:[%s4 + $0x1a0] sm:$0xff]
    %v107 = vld [vmem:[%s4 + $0x1a8] sm:$0xff]
    %v108 = vld [vmem:[%s4 + $0x1b0] sm:$0xff]
    %v109 = vld [vmem:[%s4 + $0x1b8] sm:$0xff]
    %v110 = vld [vmem:[%s4 + $0x1c0] sm:$0xff]
    %v111 = vld [vmem:[%s4 + $0x1c8] sm:$0xff]
    %v112 = vld [vmem:[%s4 + $0x1d0] sm:$0xff]
    %v113 = vld [vmem:[%s4 + $0x1d8] sm:$0xff]
    %v114 = vld [vmem:[%s4 + $0x1e0] sm:$0xff]
    %v115 = vld [vmem:[%s4 + $0x1e8] sm:$0xff]
    %v116 = vld [vmem:[%s4 + $0x1f0] sm:$0xff]
    %v117 = vld [vmem:[%s4 + $0x1f8] sm:$0xff]
    %v118 = vld [vmem:[%s4 + $0x200] sm:$0xff]
    %v119 = vld [vmem:[%s4 + $0x208] sm:$0xff]
    %v120 = vld [vmem:[%s4 + $0x210] sm:$0xff]
    %v121 = vld [vmem:[%s4 + $0x218] sm:$0xff]
    %v122 = vld [vmem:[%s4 + $0x220] sm:$0xff]
    %v123 = vld [vmem:[%s4 + $0x228] sm:$0xff]
    %v124 = vld [vmem:[%s4 + $0x230] sm:$0xff]
    %v125 = vld [vmem:[%s4 + $0x238] sm:$0xff]
    %v126 = vld [vmem:[%s4 + $0x240] sm:$0xff]
    %v127 = vld [vmem:[%s4 + $0x248] sm:$0xff]
    %v128 = vld [vmem:[%s4 + $0x250] sm:$0xff]
    %v129 = vld [vmem:[%s4 + $0x258] sm:$0xff]
    %v130 = vld [vmem:[%s4 + $0x260] sm:$0xff]
    %v131 = vld [vmem:[%s4 + $0x268] sm:$0xff]
    %v132 = vld [vmem:[%s4 + $0x270] sm:$0xff]
    %v133 = vld [vmem:[%s4 + $0x278] sm:$0xff]
    %v134 = vld [vmem:[%s5] sm:$0xff]
    %v135 = vld [vmem:[%s5 + $0x8] sm:$0xff]
    %v136 = vld [vmem:[%s5 + $0x10] sm:$0xff]
    %v137 = vld [vmem:[%s5 + $0x18] sm:$0xff]
    %v138 = vld [vmem:[%s5 + $0x20] sm:$0xff]
    %v139 = vld [vmem:[%s5 + $0x28] sm:$0xff]
    %v140 = vld [vmem:[%s5 + $0x30] sm:$0xff]
    %v141 = vld [vmem:[%s5 + $0x38] sm:$0xff]
    %v142 = vld [vmem:[%s5 + $0x40] sm:$0xff]
    %v143 = vld [vmem:[%s5 + $0x48] sm:$0xff]
    %v144 = vld [vmem:[%s5 + $0x50] sm:$0xff]
    %v145 = vld [vmem:[%s5 + $0x58] sm:$0xff]
    %v146 = vld [vmem:[%s5 + $0x60] sm:$0xff]
    %v147 = vld [vmem:[%s5 + $0x68] sm:$0xff]
    %v148 = vld [vmem:[%s5 + $0x70] sm:$0xff]
    %v149 = vld [vmem:[%s5 + $0x78] sm:$0xff]
    %v150 = vld [vmem:[%s5 + $0x80] sm:$0xff]
    %v151 = vld [vmem:[%s5 + $0x88] sm:$0xff]
    %v152 = vld [vmem:[%s5 + $0x90] sm:$0xff]
    %v153 = vld [vmem:[%s5 + $0x98] sm:$0xff]
    %v154 = vld [vmem:[%s5 + $0xa0] sm:$0xff]
    %v155 = vld [vmem:[%s5 + $0xa8] sm:$0xff]
    %v156 = vld [vmem:[%s5 + $0xb0] sm:$0xff]
    %v157 = vld [vmem:[%s5 + $0xb8] sm:$0xff]
    %v158 = vld [vmem:[%s5 + $0xc0] sm:$0xff]
    %v159 = vld [vmem:[%s5 + $0xc8] sm:$0xff]
    %v160 = vld [vmem:[%s5 + $0xd0] sm:$0xff]
    %v161 = vld [vmem:[%s5 + $0xd8] sm:$0xff]
    %v162 = vld [vmem:[%s5 + $0xe0] sm:$0xff]
    %v163 = vld [vmem:[%s5 + $0xe8] sm:$0xff]
    %v164 = vld [vmem:[%s5 + $0xf0] sm:$0xff]
    %v165 = vld [vmem:[%s5 + $0xf8] sm:$0xff]
    %v166 = vld [vmem:[%s5 + $0x100] sm:$0xff]
    %v167 = vld [vmem:[%s5 + $0x108] sm:$0xff]
    %v168 = vld [vmem:[%s5 + $0x110] sm:$0xff]
    %v169 = vld [vmem:[%s5 + $0x118] sm:$0xff]
    %v170 = vld [vmem:[%s5 + $0x120] sm:$0xff]
    %v171 = vld [vmem:[%s5 + $0x128] sm:$0xff]
    %v172 = vld [vmem:[%s5 + $0x130] sm:$0xff]
    %v173 = vld [vmem:[%s5 + $0x138] sm:$0xff]
    %v174 = vld [vmem:[%s5 + $0x140] sm:$0xff]
    %v175 = vld [vmem:[%s5 + $0x148] sm:$0xff]
    %v176 = vld [vmem:[%s5 + $0x150] sm:$0xff]
    %v177 = vld [vmem:[%s5 + $0x158] sm:$0xff]
    %v178 = vld [vmem:[%s5 + $0x160] sm:$0xff]
    %v179 = vld [vmem:[%s5 + $0x168] sm:$0xff]
    %v180 = vld [vmem:[%s5 + $0x170] sm:$0xff]
    %v181 = vld [vmem:[%s5 + $0x178] sm:$0xff]
    %v182 = vld [vmem:[%s5 + $0x180] sm:$0xff]
    %v183 = vld [vmem:[%s5 + $0x188] sm:$0xff]
    %v184 = vld [vmem:[%s5 + $0x190] sm:$0xff]
    %v185 = vld [vmem:[%s5 + $0x198] sm:$0xff]
    %v186 = vld [vmem:[%s5 + $0x1a0] sm:$0xff]
    %v187 = vld [vmem:[%s5 + $0x1a8] sm:$0xff]
    %v188 = vld [vmem:[%s5 + $0x1b0] sm:$0xff]
    %v189 = vld [vmem:[%s5 + $0x1b8] sm:$0xff]
    %v190 = vld [vmem:[%s5 + $0x1c0] sm:$0xff]
    %v191 = vld [vmem:[%s5 + $0x1c8] sm:$0xff]
    %v192 = vld [vmem:[%s5 + $0x1d0] sm:$0xff]
    %v193 = vld [vmem:[%s5 + $0x1d8] sm:$0xff]
    %v194 = vld [vmem:[%s5 + $0x1e0] sm:$0xff]
    %v195 = vld [vmem:[%s5 + $0x1e8] sm:$0xff]
    %v196 = vld [vmem:[%s5 + $0x1f0] sm:$0xff]
    %v197 = vld [vmem:[%s5 + $0x1f8] sm:$0xff]
    %v198 = vld [vmem:[%s5 + $0x200] sm:$0xff]
    %v199 = vld [vmem:[%s5 + $0x208] sm:$0xff]
    %v200 = vld [vmem:[%s5 + $0x210] sm:$0xff]
    %v201 = vld [vmem:[%s5 + $0x218] sm:$0xff]
    %v202 = vld [vmem:[%s5 + $0x220] sm:$0xff]
    %v203 = vld [vmem:[%s5 + $0x228] sm:$0xff]
    %v204 = vld [vmem:[%s5 + $0x230] sm:$0xff]
    %v205 = vld [vmem:[%s5 + $0x238] sm:$0xff]
    %v206 = vld [vmem:[%s5 + $0x240] sm:$0xff]
    %v207 = vld [vmem:[%s5 + $0x248] sm:$0xff]
    %v208 = vld [vmem:[%s5 + $0x250] sm:$0xff]
    %v209 = vld [vmem:[%s5 + $0x258] sm:$0xff]
    %v210 = vld [vmem:[%s5 + $0x260] sm:$0xff]
    %v211 = vld [vmem:[%s5 + $0x268] sm:$0xff]
    %v212 = vld [vmem:[%s5 + $0x270] sm:$0xff]
    %v213 = vld [vmem:[%s5 + $0x278] sm:$0xff]
    %214 = vmatpush.msra.mxu0 %v209
    %215 = vmatpush.msra.mxu0 %v204
    %216 = vmatpush.msra.mxu0 %v199
    %217 = vmatpush.msra.mxu0 %v194
    %218 = vmatpush.msra.mxu0 %v189
    %219 = vmatpush.msra.mxu0 %v184
    %220 = vmatpush.msra.mxu0 %v179
    %221 = vmatpush.msra.mxu0 %v174
    %222 = vmatpush.msra.mxu0 %v169
    %223 = vmatpush.msra.mxu0 %v164
    %224 = vmatpush.msra.mxu0 %v159
    %225 = vmatpush.msra.mxu0 %v154
    %226 = vmatpush.msra.mxu0 %v149
    %227 = vmatpush.msra.mxu0 %v144
    %228 = vmatpush.msra.mxu0 %v139
    %229 = vmatpush.msra.mxu0 %v134
    %230 = vmatmul.f32.gmra.mxu0 %v44
    %v231 = vpop.f32.mrf.mxu0
    %v232 = vadd.f32 0.0, %v231
    %233 = vmatmul.f32.gmra.mxu0 %v45
    %v234 = vpop.f32.mrf.mxu0
    %v235 = vadd.f32 0.0, %v234
    %236 = vmatmul.f32.gmra.mxu0 %v46
    %v237 = vpop.f32.mrf.mxu0
    %v238 = vadd.f32 0.0, %v237
    %239 = vmatmul.f32.gmra.mxu0 %v47
    %v240 = vpop.f32.mrf.mxu0
    %v241 = vadd.f32 0.0, %v240
    %242 = vmatmul.f32.gmra.mxu0 %v48
    %v243 = vpop.f32.mrf.mxu0
    %v244 = vadd.f32 0.0, %v243
    %245 = vdwg.mxu0
    %246 = vmatpush.msra.mxu0 %v210
    %247 = vmatpush.msra.mxu0 %v205
    %248 = vmatpush.msra.mxu0 %v200
    %249 = vmatpush.msra.mxu0 %v195
    %250 = vmatpush.msra.mxu0 %v190
    %251 = vmatpush.msra.mxu0 %v185
    %252 = vmatpush.msra.mxu0 %v180
    %253 = vmatpush.msra.mxu0 %v175
    %254 = vmatpush.msra.mxu0 %v170
    %255 = vmatpush.msra.mxu0 %v165
    %256 = vmatpush.msra.mxu0 %v160
    %257 = vmatpush.msra.mxu0 %v155
    %258 = vmatpush.msra.mxu0 %v150
    %259 = vmatpush.msra.mxu0 %v145
    %260 = vmatpush.msra.mxu0 %v140
    %261 = vmatpush.msra.mxu0 %v135
    %262 = vmatmul.f32.gmra.mxu0 %v44
    %v263 = vpop.f32.mrf.mxu0
    %v264 = vadd.f32 0.0, %v263
    %265 = vmatmul.f32.gmra.mxu0 %v45
    %v266 = vpop.f32.mrf.mxu0
    %v267 = vadd.f32 0.0, %v266
    %268 = vmatmul.f32.gmra.mxu0 %v46
    %v269 = vpop.f32.mrf.mxu0
    %v270 = vadd.f32 0.0, %v269
    %271 = vmatmul.f32.gmra.mxu0 %v47
    %v272 = vpop.f32.mrf.mxu0
    %v273 = vadd.f32 0.0, %v272
    %274 = vmatmul.f32.gmra.mxu0 %v48
    %v275 = vpop.f32.mrf.mxu0
    %v276 = vadd.f32 0.0, %v275
    %277 = vdwg.mxu0
    %278 = vmatpush.msra.mxu0 %v211
    %279 = vmatpush.msra.mxu0 %v206
    %280 = vmatpush.msra.mxu0 %v201
    %281 = vmatpush.msra.mxu0 %v196
    %282 = vmatpush.msra.mxu0 %v191
    %283 = vmatpush.msra.mxu0 %v186
    %284 = vmatpush.msra.mxu0 %v181
    %285 = vmatpush.msra.mxu0 %v176
    %286 = vmatpush.msra.mxu0 %v171
    %287 = vmatpush.msra.mxu0 %v166
    %288 = vmatpush.msra.mxu0 %v161
    %289 = vmatpush.msra.mxu0 %v156
    %290 = vmatpush.msra.mxu0 %v151
    %291 = vmatpush.msra.mxu0 %v146
    %292 = vmatpush.msra.mxu0 %v141
    %293 = vmatpush.msra.mxu0 %v136
    %294 = vmatmul.f32.gmra.mxu0 %v44
    %v295 = vpop.f32.mrf.mxu0
    %v296 = vadd.f32 0.0, %v295
    %297 = vmatmul.f32.gmra.mxu0 %v45
    %v298 = vpop.f32.mrf.mxu0
    %v299 = vadd.f32 0.0, %v298
    %300 = vmatmul.f32.gmra.mxu0 %v46
    %v301 = vpop.f32.mrf.mxu0
    %v302 = vadd.f32 0.0, %v301
    %303 = vmatmul.f32.gmra.mxu0 %v47
    %v304 = vpop.f32.mrf.mxu0
    %v305 = vadd.f32 0.0, %v304
    %306 = vmatmul.f32.gmra.mxu0 %v48
    %v307 = vpop.f32.mrf.mxu0
    %v308 = vadd.f32 0.0, %v307
    %309 = vdwg.mxu0
    %310 = vmatpush.msra.mxu0 %v212
    %311 = vmatpush.msra.mxu0 %v207
    %312 = vmatpush.msra.mxu0 %v202
    %313 = vmatpush.msra.mxu0 %v197
    %314 = vmatpush.msra.mxu0 %v192
    %315 = vmatpush.msra.mxu0 %v187
    %316 = vmatpush.msra.mxu0 %v182
    %317 = vmatpush.msra.mxu0 %v177
    %318 = vmatpush.msra.mxu0 %v172
    %319 = vmatpush.msra.mxu0 %v167
    %320 = vmatpush.msra.mxu0 %v162
    %321 = vmatpush.msra.mxu0 %v157
    %322 = vmatpush.msra.mxu0 %v152
    %323 = vmatpush.msra.mxu0 %v147
    %324 = vmatpush.msra.mxu0 %v142
    %325 = vmatpush.msra.mxu0 %v137
    %326 = vmatmul.f32.gmra.mxu0 %v44
    %v327 = vpop.f32.mrf.mxu0
    %v328 = vadd.f32 0.0, %v327
    %329 = vmatmul.f32.gmra.mxu0 %v45
    %v330 = vpop.f32.mrf.mxu0
    %v331 = vadd.f32 0.0, %v330
    %332 = vmatmul.f32.gmra.mxu0 %v46
    %v333 = vpop.f32.mrf.mxu0
    %v334 = vadd.f32 0.0, %v333
    %335 = vmatmul.f32.gmra.mxu0 %v47
    %v336 = vpop.f32.mrf.mxu0
    %v337 = vadd.f32 0.0, %v336
    %338 = vmatmul.f32.gmra.mxu0 %v48
    %v339 = vpop.f32.mrf.mxu0
    %v340 = vadd.f32 0.0, %v339
    %341 = vdwg.mxu0
    %342 = vmatpush.msra.mxu0 %v213
    %343 = vmatpush.msra.mxu0 %v208
    %344 = vmatpush.msra.mxu0 %v203
    %345 = vmatpush.msra.mxu0 %v198
    %346 = vmatpush.msra.mxu0 %v193
    %347 = vmatpush.msra.mxu0 %v188
    %348 = vmatpush.msra.mxu0 %v183
    %349 = vmatpush.msra.mxu0 %v178
    %350 = vmatpush.msra.mxu0 %v173
    %351 = vmatpush.msra.mxu0 %v168
    %352 = vmatpush.msra.mxu0 %v163
    %353 = vmatpush.msra.mxu0 %v158
    %354 = vmatpush.msra.mxu0 %v153
    %355 = vmatpush.msra.mxu0 %v148
    %356 = vmatpush.msra.mxu0 %v143
    %357 = vmatpush.msra.mxu0 %v138
    %358 = vmatmul.f32.gmra.mxu0 %v44
    %v359 = vpop.f32.mrf.mxu0
    %v360 = vadd.f32 0.0, %v359
    %361 = vmatmul.f32.gmra.mxu0 %v45
    %v362 = vpop.f32.mrf.mxu0
    %v363 = vadd.f32 0.0, %v362
    %364 = vmatmul.f32.gmra.mxu0 %v46
    %v365 = vpop.f32.mrf.mxu0
    %v366 = vadd.f32 0.0, %v365
    %367 = vmatmul.f32.gmra.mxu0 %v47
    %v368 = vpop.f32.mrf.mxu0
    %v369 = vadd.f32 0.0, %v368
    %370 = vmatmul.f32.gmra.mxu0 %v48
    %v371 = vpop.f32.mrf.mxu0
    %v372 = vadd.f32 0.0, %v371
    %373 = vdwg.mxu0
    %374 = vmatpush.msra.mxu0 %v129
    %375 = vmatpush.msra.mxu0 %v124
    %376 = vmatpush.msra.mxu0 %v119
    %377 = vmatpush.msra.mxu0 %v114
    %378 = vmatpush.msra.mxu0 %v109
    %379 = vmatpush.msra.mxu0 %v104
    %380 = vmatpush.msra.mxu0 %v99
    %381 = vmatpush.msra.mxu0 %v94
    %382 = vmatpush.msra.mxu0 %v89
    %383 = vmatpush.msra.mxu0 %v84
    %384 = vmatpush.msra.mxu0 %v79
    %385 = vmatpush.msra.mxu0 %v74
    %386 = vmatpush.msra.mxu0 %v69
    %387 = vmatpush.msra.mxu0 %v64
    %388 = vmatpush.msra.mxu0 %v59
    %389 = vmatpush.msra.mxu0 %v54
    %390 = vmatmul.f32.gmra.mxu0 %v34
    %v391 = vpop.f32.mrf.mxu0
    %v392 = vadd.f32 %v232, %v391
    %393 = vmatmul.f32.gmra.mxu0 %v35
    %v394 = vpop.f32.mrf.mxu0
    %v395 = vadd.f32 %v235, %v394
    %396 = vmatmul.f32.gmra.mxu0 %v36
    %v397 = vpop.f32.mrf.mxu0
    %v398 = vadd.f32 %v238, %v397
    %399 = vmatmul.f32.gmra.mxu0 %v37
    %v400 = vpop.f32.mrf.mxu0
    %v401 = vadd.f32 %v241, %v400
    %402 = vmatmul.f32.gmra.mxu0 %v38
    %v403 = vpop.f32.mrf.mxu0
    %v404 = vadd.f32 %v244, %v403
    %405 = vdwg.mxu0
    %406 = vmatpush.msra.mxu0 %v130
    %407 = vmatpush.msra.mxu0 %v125
    %408 = vmatpush.msra.mxu0 %v120
    %409 = vmatpush.msra.mxu0 %v115
    %410 = vmatpush.msra.mxu0 %v110
    %411 = vmatpush.msra.mxu0 %v105
    %412 = vmatpush.msra.mxu0 %v100
    %413 = vmatpush.msra.mxu0 %v95
    %414 = vmatpush.msra.mxu0 %v90
    %415 = vmatpush.msra.mxu0 %v85
    %416 = vmatpush.msra.mxu0 %v80
    %417 = vmatpush.msra.mxu0 %v75
    %418 = vmatpush.msra.mxu0 %v70
    %419 = vmatpush.msra.mxu0 %v65
    %420 = vmatpush.msra.mxu0 %v60
    %421 = vmatpush.msra.mxu0 %v55
    %422 = vmatmul.f32.gmra.mxu0 %v34
    %v423 = vpop.f32.mrf.mxu0
    %v424 = vadd.f32 %v264, %v423
    %425 = vmatmul.f32.gmra.mxu0 %v35
    %v426 = vpop.f32.mrf.mxu0
    %v427 = vadd.f32 %v267, %v426
    %428 = vmatmul.f32.gmra.mxu0 %v36
    %v429 = vpop.f32.mrf.mxu0
    %v430 = vadd.f32 %v270, %v429
    %431 = vmatmul.f32.gmra.mxu0 %v37
    %v432 = vpop.f32.mrf.mxu0
    %v433 = vadd.f32 %v273, %v432
    %434 = vmatmul.f32.gmra.mxu0 %v38
    %v435 = vpop.f32.mrf.mxu0
    %v436 = vadd.f32 %v276, %v435
    %437 = vdwg.mxu0
    %438 = vmatpush.msra.mxu0 %v131
    %439 = vmatpush.msra.mxu0 %v126
    %440 = vmatpush.msra.mxu0 %v121
    %441 = vmatpush.msra.mxu0 %v116
    %442 = vmatpush.msra.mxu0 %v111
    %443 = vmatpush.msra.mxu0 %v106
    %444 = vmatpush.msra.mxu0 %v101
    %445 = vmatpush.msra.mxu0 %v96
    %446 = vmatpush.msra.mxu0 %v91
    %447 = vmatpush.msra.mxu0 %v86
    %448 = vmatpush.msra.mxu0 %v81
    %449 = vmatpush.msra.mxu0 %v76
    %450 = vmatpush.msra.mxu0 %v71
    %451 = vmatpush.msra.mxu0 %v66
    %452 = vmatpush.msra.mxu0 %v61
    %453 = vmatpush.msra.mxu0 %v56
    %454 = vmatmul.f32.gmra.mxu0 %v34
    %v455 = vpop.f32.mrf.mxu0
    %v456 = vadd.f32 %v296, %v455
    %457 = vmatmul.f32.gmra.mxu0 %v35
    %v458 = vpop.f32.mrf.mxu0
    %v459 = vadd.f32 %v299, %v458
    %460 = vmatmul.f32.gmra.mxu0 %v36
    %v461 = vpop.f32.mrf.mxu0
    %v462 = vadd.f32 %v302, %v461
    %463 = vmatmul.f32.gmra.mxu0 %v37
    %v464 = vpop.f32.mrf.mxu0
    %v465 = vadd.f32 %v305, %v464
    %466 = vmatmul.f32.gmra.mxu0 %v38
    %v467 = vpop.f32.mrf.mxu0
    %v468 = vadd.f32 %v308, %v467
    %469 = vdwg.mxu0
    %470 = vmatpush.msra.mxu0 %v132
    %471 = vmatpush.msra.mxu0 %v127
    %472 = vmatpush.msra.mxu0 %v122
    %473 = vmatpush.msra.mxu0 %v117
    %474 = vmatpush.msra.mxu0 %v112
    %475 = vmatpush.msra.mxu0 %v107
    %476 = vmatpush.msra.mxu0 %v102
    %477 = vmatpush.msra.mxu0 %v97
    %478 = vmatpush.msra.mxu0 %v92
    %479 = vmatpush.msra.mxu0 %v87
    %480 = vmatpush.msra.mxu0 %v82
    %481 = vmatpush.msra.mxu0 %v77
    %482 = vmatpush.msra.mxu0 %v72
    %483 = vmatpush.msra.mxu0 %v67
    %484 = vmatpush.msra.mxu0 %v62
    %485 = vmatpush.msra.mxu0 %v57
    %486 = vmatmul.f32.gmra.mxu0 %v34
    %v487 = vpop.f32.mrf.mxu0
    %v488 = vadd.f32 %v328, %v487
    %489 = vmatmul.f32.gmra.mxu0 %v35
    %v490 = vpop.f32.mrf.mxu0
    %v491 = vadd.f32 %v331, %v490
    %492 = vmatmul.f32.gmra.mxu0 %v36
    %v493 = vpop.f32.mrf.mxu0
    %v494 = vadd.f32 %v334, %v493
    %495 = vmatmul.f32.gmra.mxu0 %v37
    %v496 = vpop.f32.mrf.mxu0
    %v497 = vadd.f32 %v337, %v496
    %498 = vmatmul.f32.gmra.mxu0 %v38
    %v499 = vpop.f32.mrf.mxu0
    %v500 = vadd.f32 %v340, %v499
    %501 = vdwg.mxu0
    %502 = vmatpush.msra.mxu0 %v133
    %503 = vmatpush.msra.mxu0 %v128
    %504 = vmatpush.msra.mxu0 %v123
    %505 = vmatpush.msra.mxu0 %v118
    %506 = vmatpush.msra.mxu0 %v113
    %507 = vmatpush.msra.mxu0 %v108
    %508 = vmatpush.msra.mxu0 %v103
    %509 = vmatpush.msra.mxu0 %v98
    %510 = vmatpush.msra.mxu0 %v93
    %511 = vmatpush.msra.mxu0 %v88
    %512 = vmatpush.msra.mxu0 %v83
    %513 = vmatpush.msra.mxu0 %v78
    %514 = vmatpush.msra.mxu0 %v73
    %515 = vmatpush.msra.mxu0 %v68
    %516 = vmatpush.msra.mxu0 %v63
    %517 = vmatpush.msra.mxu0 %v58
    %518 = vmatmul.f32.gmra.mxu0 %v34
    %v519 = vpop.f32.mrf.mxu0
    %v520 = vadd.f32 %v360, %v519
    %521 = vmatmul.f32.gmra.mxu0 %v35
    %v522 = vpop.f32.mrf.mxu0
    %v523 = vadd.f32 %v363, %v522
    %524 = vmatmul.f32.gmra.mxu0 %v36
    %v525 = vpop.f32.mrf.mxu0
    %v526 = vadd.f32 %v366, %v525
    %527 = vmatmul.f32.gmra.mxu0 %v37
    %v528 = vpop.f32.mrf.mxu0
    %v529 = vadd.f32 %v369, %v528
    %530 = vmatmul.f32.gmra.mxu0 %v38
    %v531 = vpop.f32.mrf.mxu0
    %v532 = vadd.f32 %v372, %v531
    %533 = vdwg.mxu0
    %v534 = vld [vmem:[%s6] sm:$0x1f]
    %v536 = vperm.slane %v534, 0
    %v537 = vperm.slane %v534, 1
    %v538 = vperm.slane %v534, 2
    %v539 = vperm.slane %v534, 3
    %v540 = vperm.slane %v534, 4
    %v546 = vadd.f32 %v392, %v536
    %v547 = vadd.f32 %v424, %v537
    %v548 = vadd.f32 %v456, %v538
    %v549 = vadd.f32 %v488, %v539
    %v550 = vadd.f32 %v520, %v540
    %v551 = vadd.f32 %v395, %v536
    %v552 = vadd.f32 %v427, %v537
    %v553 = vadd.f32 %v459, %v538
    %v554 = vadd.f32 %v491, %v539
    %v555 = vadd.f32 %v523, %v540
    %v556 = vadd.f32 %v398, %v536
    %v557 = vadd.f32 %v430, %v537
    %v558 = vadd.f32 %v462, %v538
    %v559 = vadd.f32 %v494, %v539
    %v560 = vadd.f32 %v526, %v540
    %v561 = vadd.f32 %v401, %v536
    %v562 = vadd.f32 %v433, %v537
    %v563 = vadd.f32 %v465, %v538
    %v564 = vadd.f32 %v497, %v539
    %v565 = vadd.f32 %v529, %v540
    %v566 = vadd.f32 %v404, %v536
    %v567 = vadd.f32 %v436, %v537
    %v568 = vadd.f32 %v468, %v538
    %v569 = vadd.f32 %v500, %v539
    %v570 = vadd.f32 %v532, %v540
    %v571 = vadd.f32 %v547, 1.0
    %v572 = vadd.f32 %v552, 1.0
    %v573 = vadd.f32 %v557, 1.0
    %v574 = vadd.f32 %v562, 1.0
    %v575 = vadd.f32 %v567, 1.0
    %v576 = vxor.u32 %v571, 2147483648
    %v577 = vxor.u32 %v572, 2147483648
    %v578 = vxor.u32 %v573, 2147483648
    %v579 = vxor.u32 %v574, 2147483648
    %v580 = vxor.u32 %v575, 2147483648
    %v581 = vmul.f32 %v576, 1.442695
    %v582 = vpow.pop %v581
    %v583 = vmul.f32 %v577, 1.442695
    %v584 = vpow.pop %v583
    %v585 = vmul.f32 %v578, 1.442695
    %v586 = vpow.pop %v585
    %v587 = vmul.f32 %v579, 1.442695
    %v588 = vpow.pop %v587
    %v589 = vmul.f32 %v580, 1.442695
    %v590 = vpow.pop %v589
    %v591 = vadd.f32 %v582, 1.0
    %v592 = vadd.f32 %v584, 1.0
    %v593 = vadd.f32 %v586, 1.0
    %v594 = vadd.f32 %v588, 1.0
    %v595 = vadd.f32 %v590, 1.0
    %v596 = vrcp.pop %v591
    %v597 = vmul.f32 %v591, %v596
    %v598 = vsub.f32 1.0, %v597
    %v599 = vmul.f32 %v596, %v598
    %v600 = vadd.f32 %v596, %v599
    %vm601 = vweird.f32 %v591
    %vm602 = vweird.f32 %v596
    %vm603 = vmor %vm601, %vm602
    %v604 = vsel %vm603, %v596, %v600
    %v605 = vand.u32 2147483647, %v591
    %vm606 = vcmp.eq.f32.partialorder %v605, 8.507059e+37
    %v607 = vand.u32 %v591, 2147483648
    %v608 = vor.u32 1.1754944e-38, %v607
    %v609 = vsel %vm606, %v608, %v604
    %v610 = vmul.f32 1.0, %v609
    %v611 = vrcp.pop %v592
    %v612 = vmul.f32 %v592, %v611
    %v613 = vsub.f32 1.0, %v612
    %v614 = vmul.f32 %v611, %v613
    %v615 = vadd.f32 %v611, %v614
    %vm616 = vweird.f32 %v592
    %vm617 = vweird.f32 %v611
    %vm618 = vmor %vm616, %vm617
    %v619 = vsel %vm618, %v611, %v615
    %v620 = vand.u32 2147483647, %v592
    %vm621 = vcmp.eq.f32.partialorder %v620, 8.507059e+37
    %v622 = vand.u32 %v592, 2147483648
    %v623 = vor.u32 1.1754944e-38, %v622
    %v624 = vsel %vm621, %v623, %v619
    %v625 = vmul.f32 1.0, %v624
    %v626 = vrcp.pop %v593
    %v627 = vmul.f32 %v593, %v626
    %v628 = vsub.f32 1.0, %v627
    %v629 = vmul.f32 %v626, %v628
    %v630 = vadd.f32 %v626, %v629
    %vm631 = vweird.f32 %v593
    %vm632 = vweird.f32 %v626
    %vm633 = vmor %vm631, %vm632
    %v634 = vsel %vm633, %v626, %v630
    %v635 = vand.u32 2147483647, %v593
    %vm636 = vcmp.eq.f32.partialorder %v635, 8.507059e+37
    %v637 = vand.u32 %v593, 2147483648
    %v638 = vor.u32 1.1754944e-38, %v637
    %v639 = vsel %vm636, %v638, %v634
    %v640 = vmul.f32 1.0, %v639
    %v641 = vrcp.pop %v594
    %v642 = vmul.f32 %v594, %v641
    %v643 = vsub.f32 1.0, %v642
    %v644 = vmul.f32 %v641, %v643
    %v645 = vadd.f32 %v641, %v644
    %vm646 = vweird.f32 %v594
    %vm647 = vweird.f32 %v641
    %vm648 = vmor %vm646, %vm647
    %v649 = vsel %vm648, %v641, %v645
    %v650 = vand.u32 2147483647, %v594
    %vm651 = vcmp.eq.f32.partialorder %v650, 8.507059e+37
    %v652 = vand.u32 %v594, 2147483648
    %v653 = vor.u32 1.1754944e-38, %v652
    %v654 = vsel %vm651, %v653, %v649
    %v655 = vmul.f32 1.0, %v654
    %v656 = vrcp.pop %v595
    %v657 = vmul.f32 %v595, %v656
    %v658 = vsub.f32 1.0, %v657
    %v659 = vmul.f32 %v656, %v658
    %v660 = vadd.f32 %v656, %v659
    %vm661 = vweird.f32 %v595
    %vm662 = vweird.f32 %v656
    %vm663 = vmor %vm661, %vm662
    %v664 = vsel %vm663, %v656, %v660
    %v665 = vand.u32 2147483647, %v595
    %vm666 = vcmp.eq.f32.partialorder %v665, 8.507059e+37
    %v667 = vand.u32 %v595, 2147483648
    %v668 = vor.u32 1.1754944e-38, %v667
    %v669 = vsel %vm666, %v668, %v664
    %v670 = vmul.f32 1.0, %v669
    %v671 = vmul.f32 %v39, %v610
    %v672 = vmul.f32 %v40, %v625
    %v673 = vmul.f32 %v41, %v640
    %v674 = vmul.f32 %v42, %v655
    %v675 = vmul.f32 %v43, %v670
    %v676 = vadd.f32 %v548, 1.0
    %v677 = vadd.f32 %v553, 1.0
    %v678 = vadd.f32 %v558, 1.0
    %v679 = vadd.f32 %v563, 1.0
    %v680 = vadd.f32 %v568, 1.0
    %v681 = vxor.u32 %v676, 2147483648
    %v682 = vxor.u32 %v677, 2147483648
    %v683 = vxor.u32 %v678, 2147483648
    %v684 = vxor.u32 %v679, 2147483648
    %v685 = vxor.u32 %v680, 2147483648
    %v686 = vmul.f32 %v681, 1.442695
    %v687 = vpow.pop %v686
    %v688 = vmul.f32 %v682, 1.442695
    %v689 = vpow.pop %v688
    %v690 = vmul.f32 %v683, 1.442695
    %v691 = vpow.pop %v690
    %v692 = vmul.f32 %v684, 1.442695
    %v693 = vpow.pop %v692
    %v694 = vmul.f32 %v685, 1.442695
    %v695 = vpow.pop %v694
    %v696 = vadd.f32 %v687, 1.0
    %v697 = vadd.f32 %v689, 1.0
    %v698 = vadd.f32 %v691, 1.0
    %v699 = vadd.f32 %v693, 1.0
    %v700 = vadd.f32 %v695, 1.0
    %v701 = vrcp.pop %v696
    %v702 = vmul.f32 %v696, %v701
    %v703 = vsub.f32 1.0, %v702
    %v704 = vmul.f32 %v701, %v703
    %v705 = vadd.f32 %v701, %v704
    %vm706 = vweird.f32 %v696
    %vm707 = vweird.f32 %v701
    %vm708 = vmor %vm706, %vm707
    %v709 = vsel %vm708, %v701, %v705
    %v710 = vand.u32 2147483647, %v696
    %vm711 = vcmp.eq.f32.partialorder %v710, 8.507059e+37
    %v712 = vand.u32 %v696, 2147483648
    %v713 = vor.u32 1.1754944e-38, %v712
    %v714 = vsel %vm711, %v713, %v709
    %v715 = vmul.f32 1.0, %v714
    %v716 = vrcp.pop %v697
    %v717 = vmul.f32 %v697, %v716
    %v718 = vsub.f32 1.0, %v717
    %v719 = vmul.f32 %v716, %v718
    %v720 = vadd.f32 %v716, %v719
    %vm721 = vweird.f32 %v697
    %vm722 = vweird.f32 %v716
    %vm723 = vmor %vm721, %vm722
    %v724 = vsel %vm723, %v716, %v720
    %v725 = vand.u32 2147483647, %v697
    %vm726 = vcmp.eq.f32.partialorder %v725, 8.507059e+37
    %v727 = vand.u32 %v697, 2147483648
    %v728 = vor.u32 1.1754944e-38, %v727
    %v729 = vsel %vm726, %v728, %v724
    %v730 = vmul.f32 1.0, %v729
    %v731 = vrcp.pop %v698
    %v732 = vmul.f32 %v698, %v731
    %v733 = vsub.f32 1.0, %v732
    %v734 = vmul.f32 %v731, %v733
    %v735 = vadd.f32 %v731, %v734
    %vm736 = vweird.f32 %v698
    %vm737 = vweird.f32 %v731
    %vm738 = vmor %vm736, %vm737
    %v739 = vsel %vm738, %v731, %v735
    %v740 = vand.u32 2147483647, %v698
    %vm741 = vcmp.eq.f32.partialorder %v740, 8.507059e+37
    %v742 = vand.u32 %v698, 2147483648
    %v743 = vor.u32 1.1754944e-38, %v742
    %v744 = vsel %vm741, %v743, %v739
    %v745 = vmul.f32 1.0, %v744
    %v746 = vrcp.pop %v699
    %v747 = vmul.f32 %v699, %v746
    %v748 = vsub.f32 1.0, %v747
    %v749 = vmul.f32 %v746, %v748
    %v750 = vadd.f32 %v746, %v749
    %vm751 = vweird.f32 %v699
    %vm752 = vweird.f32 %v746
    %vm753 = vmor %vm751, %vm752
    %v754 = vsel %vm753, %v746, %v750
    %v755 = vand.u32 2147483647, %v699
    %vm756 = vcmp.eq.f32.partialorder %v755, 8.507059e+37
    %v757 = vand.u32 %v699, 2147483648
    %v758 = vor.u32 1.1754944e-38, %v757
    %v759 = vsel %vm756, %v758, %v754
    %v760 = vmul.f32 1.0, %v759
    %v761 = vrcp.pop %v700
    %v762 = vmul.f32 %v700, %v761
    %v763 = vsub.f32 1.0, %v762
    %v764 = vmul.f32 %v761, %v763
    %v765 = vadd.f32 %v761, %v764
    %vm766 = vweird.f32 %v700
    %vm767 = vweird.f32 %v761
    %vm768 = vmor %vm766, %vm767
    %v769 = vsel %vm768, %v761, %v765
    %v770 = vand.u32 2147483647, %v700
    %vm771 = vcmp.eq.f32.partialorder %v770, 8.507059e+37
    %v772 = vand.u32 %v700, 2147483648
    %v773 = vor.u32 1.1754944e-38, %v772
    %v774 = vsel %vm771, %v773, %v769
    %v775 = vmul.f32 1.0, %v774
    %v776 = vmul.f32 %v49, %v715
    %v777 = vmul.f32 %v50, %v730
    %v778 = vmul.f32 %v51, %v745
    %v779 = vmul.f32 %v52, %v760
    %v780 = vmul.f32 %v53, %v775
    %v781 = vadd.f32 %v671, %v776
    %v782 = vadd.f32 %v672, %v777
    %v783 = vadd.f32 %v673, %v778
    %v784 = vadd.f32 %v674, %v779
    %v785 = vadd.f32 %v675, %v780
    %v786 = vtanh.pop %v549
    %v787 = vtanh.pop %v554
    %v788 = vtanh.pop %v559
    %v789 = vtanh.pop %v564
    %v790 = vtanh.pop %v569
    %v791 = vxor.u32 %v546, 2147483648
    %v792 = vxor.u32 %v551, 2147483648
    %v793 = vxor.u32 %v556, 2147483648
    %v794 = vxor.u32 %v561, 2147483648
    %v795 = vxor.u32 %v566, 2147483648
    %v796 = vmul.f32 %v791, 1.442695
    %v797 = vpow.pop %v796
    %v798 = vmul.f32 %v792, 1.442695
    %v799 = vpow.pop %v798
    %v800 = vmul.f32 %v793, 1.442695
    %v801 = vpow.pop %v800
    %v802 = vmul.f32 %v794, 1.442695
    %v803 = vpow.pop %v802
    %v804 = vmul.f32 %v795, 1.442695
    %v805 = vpow.pop %v804
    %v806 = vadd.f32 %v797, 1.0
    %v807 = vadd.f32 %v799, 1.0
    %v808 = vadd.f32 %v801, 1.0
    %v809 = vadd.f32 %v803, 1.0
    %v810 = vadd.f32 %v805, 1.0
    %v811 = vrcp.pop %v806
    %v812 = vmul.f32 %v806, %v811
    %v813 = vsub.f32 1.0, %v812
    %v814 = vmul.f32 %v811, %v813
    %v815 = vadd.f32 %v811, %v814
    %vm816 = vweird.f32 %v806
    %vm817 = vweird.f32 %v811
    %vm818 = vmor %vm816, %vm817
    %v819 = vsel %vm818, %v811, %v815
    %v820 = vand.u32 2147483647, %v806
    %vm821 = vcmp.eq.f32.partialorder %v820, 8.507059e+37
    %v822 = vand.u32 %v806, 2147483648
    %v823 = vor.u32 1.1754944e-38, %v822
    %v824 = vsel %vm821, %v823, %v819
    %v825 = vmul.f32 1.0, %v824
    %v826 = vrcp.pop %v807
    %v827 = vmul.f32 %v807, %v826
    %v828 = vsub.f32 1.0, %v827
    %v829 = vmul.f32 %v826, %v828
    %v830 = vadd.f32 %v826, %v829
    %vm831 = vweird.f32 %v807
    %vm832 = vweird.f32 %v826
    %vm833 = vmor %vm831, %vm832
    %v834 = vsel %vm833, %v826, %v830
    %v835 = vand.u32 2147483647, %v807
    %vm836 = vcmp.eq.f32.partialorder %v835, 8.507059e+37
    %v837 = vand.u32 %v807, 2147483648
    %v838 = vor.u32 1.1754944e-38, %v837
    %v839 = vsel %vm836, %v838, %v834
    %v840 = vmul.f32 1.0, %v839
    %v841 = vrcp.pop %v808
    %v842 = vmul.f32 %v808, %v841
    %v843 = vsub.f32 1.0, %v842
    %v844 = vmul.f32 %v841, %v843
    %v845 = vadd.f32 %v841, %v844
    %vm846 = vweird.f32 %v808
    %vm847 = vweird.f32 %v841
    %vm848 = vmor %vm846, %vm847
    %v849 = vsel %vm848, %v841, %v845
    %v850 = vand.u32 2147483647, %v808
    %vm851 = vcmp.eq.f32.partialorder %v850, 8.507059e+37
    %v852 = vand.u32 %v808, 2147483648
    %v853 = vor.u32 1.1754944e-38, %v852
    %v854 = vsel %vm851, %v853, %v849
    %v855 = vmul.f32 1.0, %v854
    %v856 = vrcp.pop %v809
    %v857 = vmul.f32 %v809, %v856
    %v858 = vsub.f32 1.0, %v857
    %v859 = vmul.f32 %v856, %v858
    %v860 = vadd.f32 %v856, %v859
    %vm861 = vweird.f32 %v809
    %vm862 = vweird.f32 %v856
    %vm863 = vmor %vm861, %vm862
    %v864 = vsel %vm863, %v856, %v860
    %v865 = vand.u32 2147483647, %v809
    %vm866 = vcmp.eq.f32.partialorder %v865, 8.507059e+37
    %v867 = vand.u32 %v809, 2147483648
    %v868 = vor.u32 1.1754944e-38, %v867
    %v869 = vsel %vm866, %v868, %v864
    %v870 = vmul.f32 1.0, %v869
    %v871 = vrcp.pop %v810
    %v872 = vmul.f32 %v810, %v871
    %v873 = vsub.f32 1.0, %v872
    %v874 = vmul.f32 %v871, %v873
    %v875 = vadd.f32 %v871, %v874
    %vm876 = vweird.f32 %v810
    %vm877 = vweird.f32 %v871
    %vm878 = vmor %vm876, %vm877
    %v879 = vsel %vm878, %v871, %v875
    %v880 = vand.u32 2147483647, %v810
    %vm881 = vcmp.eq.f32.partialorder %v880, 8.507059e+37
    %v882 = vand.u32 %v810, 2147483648
    %v883 = vor.u32 1.1754944e-38, %v882
    %v884 = vsel %vm881, %v883, %v879
    %v885 = vmul.f32 1.0, %v884
    %v886 = vmul.f32 %v786, %v825
    %v887 = vmul.f32 %v787, %v840
    %v888 = vmul.f32 %v788, %v855
    %v889 = vmul.f32 %v789, %v870
    %v890 = vmul.f32 %v790, %v885
    %v891 = vadd.f32 %v781, %v886
    %v892 = vadd.f32 %v782, %v887
    %v893 = vadd.f32 %v783, %v888
    %v894 = vadd.f32 %v784, %v889
    %v895 = vadd.f32 %v785, %v890
    %v896 = vxor.u32 %v550, 2147483648
    %v897 = vxor.u32 %v555, 2147483648
    %v898 = vxor.u32 %v560, 2147483648
    %v899 = vxor.u32 %v565, 2147483648
    %v900 = vxor.u32 %v570, 2147483648
    %v901 = vmul.f32 %v896, 1.442695
    %v902 = vpow.pop %v901
    %v903 = vmul.f32 %v897, 1.442695
    %v904 = vpow.pop %v903
    %v905 = vmul.f32 %v898, 1.442695
    %v906 = vpow.pop %v905
    %v907 = vmul.f32 %v899, 1.442695
    %v908 = vpow.pop %v907
    %v909 = vmul.f32 %v900, 1.442695
    %v910 = vpow.pop %v909
    %v911 = vadd.f32 %v902, 1.0
    %v912 = vadd.f32 %v904, 1.0
    %v913 = vadd.f32 %v906, 1.0
    %v914 = vadd.f32 %v908, 1.0
    %v915 = vadd.f32 %v910, 1.0
    %v916 = vrcp.pop %v911
    %v917 = vmul.f32 %v911, %v916
    %v918 = vsub.f32 1.0, %v917
    %v919 = vmul.f32 %v916, %v918
    %v920 = vadd.f32 %v916, %v919
    %vm921 = vweird.f32 %v911
    %vm922 = vweird.f32 %v916
    %vm923 = vmor %vm921, %vm922
    %v924 = vsel %vm923, %v916, %v920
    %v925 = vand.u32 2147483647, %v911
    %vm926 = vcmp.eq.f32.partialorder %v925, 8.507059e+37
    %v927 = vand.u32 %v911, 2147483648
    %v928 = vor.u32 1.1754944e-38, %v927
    %v929 = vsel %vm926, %v928, %v924
    %v930 = vmul.f32 1.0, %v929
    %v931 = vrcp.pop %v912
    %v932 = vmul.f32 %v912, %v931
    %v933 = vsub.f32 1.0, %v932
    %v934 = vmul.f32 %v931, %v933
    %v935 = vadd.f32 %v931, %v934
    %vm936 = vweird.f32 %v912
    %vm937 = vweird.f32 %v931
    %vm938 = vmor %vm936, %vm937
    %v939 = vsel %vm938, %v931, %v935
    %v940 = vand.u32 2147483647, %v912
    %vm941 = vcmp.eq.f32.partialorder %v940, 8.507059e+37
    %v942 = vand.u32 %v912, 2147483648
    %v943 = vor.u32 1.1754944e-38, %v942
    %v944 = vsel %vm941, %v943, %v939
    %v945 = vmul.f32 1.0, %v944
    %v946 = vrcp.pop %v913
    %v947 = vmul.f32 %v913, %v946
    %v948 = vsub.f32 1.0, %v947
    %v949 = vmul.f32 %v946, %v948
    %v950 = vadd.f32 %v946, %v949
    %vm951 = vweird.f32 %v913
    %vm952 = vweird.f32 %v946
    %vm953 = vmor %vm951, %vm952
    %v954 = vsel %vm953, %v946, %v950
    %v955 = vand.u32 2147483647, %v913
    %vm956 = vcmp.eq.f32.partialorder %v955, 8.507059e+37
    %v957 = vand.u32 %v913, 2147483648
    %v958 = vor.u32 1.1754944e-38, %v957
    %v959 = vsel %vm956, %v958, %v954
    %v960 = vmul.f32 1.0, %v959
    %v961 = vrcp.pop %v914
    %v962 = vmul.f32 %v914, %v961
    %v963 = vsub.f32 1.0, %v962
    %v964 = vmul.f32 %v961, %v963
    %v965 = vadd.f32 %v961, %v964
    %vm966 = vweird.f32 %v914
    %vm967 = vweird.f32 %v961
    %vm968 = vmor %vm966, %vm967
    %v969 = vsel %vm968, %v961, %v965
    %v970 = vand.u32 2147483647, %v914
    %vm971 = vcmp.eq.f32.partialorder %v970, 8.507059e+37
    %v972 = vand.u32 %v914, 2147483648
    %v973 = vor.u32 1.1754944e-38, %v972
    %v974 = vsel %vm971, %v973, %v969
    %v975 = vmul.f32 1.0, %v974
    %v976 = vrcp.pop %v915
    %v977 = vmul.f32 %v915, %v976
    %v978 = vsub.f32 1.0, %v977
    %v979 = vmul.f32 %v976, %v978
    %v980 = vadd.f32 %v976, %v979
    %vm981 = vweird.f32 %v915
    %vm982 = vweird.f32 %v976
    %vm983 = vmor %vm981, %vm982
    %v984 = vsel %vm983, %v976, %v980
    %v985 = vand.u32 2147483647, %v915
    %vm986 = vcmp.eq.f32.partialorder %v985, 8.507059e+37
    %v987 = vand.u32 %v915, 2147483648
    %v988 = vor.u32 1.1754944e-38, %v987
    %v989 = vsel %vm986, %v988, %v984
    %v990 = vmul.f32 1.0, %v989
    %v991 = vtanh.pop %v891
    %v992 = vtanh.pop %v892
    %v993 = vtanh.pop %v893
    %v994 = vtanh.pop %v894
    %v995 = vtanh.pop %v895
    %v996 = vmul.f32 %v930, %v991
    %v997 = vmul.f32 %v945, %v992
    %v998 = vmul.f32 %v960, %v993
    %v999 = vmul.f32 %v975, %v994
    %v1000 = vmul.f32 %v990, %v995
    %1001 = vst [vmem:[#allocation2] sm:$0xff] %v996
    %1002 = vst [vmem:[#allocation2 + $0x8] sm:$0xff] %v997
    %1003 = vst [vmem:[#allocation2 + $0x10] sm:$0xff] %v998
    %1004 = vst [vmem:[#allocation2 + $0x18] sm:$0xff] %v999
    %1005 = vst [vmem:[#allocation2 + $0x20] sm:$0xff] %v1000
    %1006 = vst [vmem:[#allocation4] sm:$0xff] %v891
    %1007 = vst [vmem:[#allocation4 + $0x8] sm:$0xff] %v892
    %1008 = vst [vmem:[#allocation4 + $0x10] sm:$0xff] %v893
    %1009 = vst [vmem:[#allocation4 + $0x18] sm:$0xff] %v894
    %1010 = vst [vmem:[#allocation4 + $0x20] sm:$0xff] %v895
    %v1011 = vld [vmem:[%s7] sm:$0xff]
    %v1012 = vld [vmem:[%s7 + $0x8] sm:$0xff]
    %v1013 = vld [vmem:[%s7 + $0x10] sm:$0xff]
    %v1014 = vld [vmem:[%s7 + $0x18] sm:$0xff]
    %v1015 = vld [vmem:[%s7 + $0x20] sm:$0xff]
    %v1016 = vld [vmem:[%s7 + $0x28] sm:$0xff]
    %v1017 = vld [vmem:[%s7 + $0x30] sm:$0xff]
    %v1018 = vld [vmem:[%s7 + $0x38] sm:$0xff]
    %v1019 = vld [vmem:[%s7 + $0x40] sm:$0xff]
    %v1020 = vld [vmem:[%s7 + $0x48] sm:$0xff]
    %v1021 = vld [vmem:[%s7 + $0x50] sm:$0xff]
    %v1022 = vld [vmem:[%s7 + $0x58] sm:$0xff]
    %v1023 = vld [vmem:[%s7 + $0x60] sm:$0xff]
    %v1024 = vld [vmem:[%s7 + $0x68] sm:$0xff]
    %v1025 = vld [vmem:[%s7 + $0x70] sm:$0xff]
    %v1026 = vld [vmem:[%s7 + $0x78] sm:$0xff]
    %1027 = vmatpush.msra.mxu0 %v1026
    %1028 = vmatpush.msra.mxu0 %v1025
    %1029 = vmatpush.msra.mxu0 %v1024
    %1030 = vmatpush.msra.mxu0 %v1023
    %1031 = vmatpush.msra.mxu0 %v1022
    %1032 = vmatpush.msra.mxu0 %v1021
    %1033 = vmatpush.msra.mxu0 %v1020
    %1034 = vmatpush.msra.mxu0 %v1019
    %1035 = vmatpush.msra.mxu0 %v1018
    %1036 = vmatpush.msra.mxu0 %v1017
    %1037 = vmatpush.msra.mxu0 %v1016
    %1038 = vmatpush.msra.mxu0 %v1015
    %1039 = vmatpush.msra.mxu0 %v1014
    %1040 = vmatpush.msra.mxu0 %v1013
    %1041 = vmatpush.msra.mxu0 %v1012
    %1042 = vmatpush.msra.mxu0 %v1011
    %1043 = vmatmul.f32.gmra.mxu0 %v996
    %v1044 = vpop.f32.mrf.mxu0
    %v1045 = vadd.f32 0.0, %v1044
    %1046 = vmatmul.f32.gmra.mxu0 %v997
    %v1047 = vpop.f32.mrf.mxu0
    %v1048 = vadd.f32 0.0, %v1047
    %1049 = vmatmul.f32.gmra.mxu0 %v998
    %v1050 = vpop.f32.mrf.mxu0
    %v1051 = vadd.f32 0.0, %v1050
    %1052 = vmatmul.f32.gmra.mxu0 %v999
    %v1053 = vpop.f32.mrf.mxu0
    %v1054 = vadd.f32 0.0, %v1053
    %1055 = vmatmul.f32.gmra.mxu0 %v1000
    %v1056 = vpop.f32.mrf.mxu0
    %v1057 = vadd.f32 0.0, %v1056
    %1058 = vdwg.mxu0
    %1059 = vst [vmem:[%s10] sm:$0xff] %v1045
    %1060 = vst [vmem:[%s10 + $0x8] sm:$0xff] %v1048
    %1061 = vst [vmem:[%s10 + $0x10] sm:$0xff] %v1051
    %1062 = vst [vmem:[%s10 + $0x18] sm:$0xff] %v1054
    %1063 = vst [vmem:[%s10 + $0x20] sm:$0xff] %v1057
    // Predicated region
    $region34: #{_chart_parser_forward_impl.11} parent=1 // pred_check
      _
    $region35: #{_chart_parser_forward_impl.11} parent=1 // pred_check_branch
      %1065 = sbr.rel (0) target = $region37
    $region36: #{_chart_parser_forward_impl.11} parent=1 // pred_region
      %1067 = vsyncadd [#allocation3], 0
      %s1068 = sshll.u32 [#allocation2], 4
      %s1069 = int_to_ptr.vmem [resolvable:$true] %s1068
      %s1070 = sshll.u32 %s8, 4
      %s1071 = int_to_ptr.hbm [resolvable:$true] %s1070
      %1076 = dma.vmem_to_hbm [thread:$0]  %s1069, 640, %s1071, [#allocation3], 128, 128, 8
    $region37: #{_chart_parser_forward_impl.11} parent=1 // pred_fallthru
      _
    // Predicated region
    $region38: #{_chart_parser_forward_impl.11} parent=1 // pred_check
      _
    $region39: #{_chart_parser_forward_impl.11} parent=1 // pred_check_branch
      %1078 = sbr.rel (0) target = $region41
    $region40: #{_chart_parser_forward_impl.11} parent=1 // pred_region
      %1080 = vsyncadd [#allocation5], 0
      %s1081 = sshll.u32 [#allocation4], 4
      %s1082 = int_to_ptr.vmem [resolvable:$true] %s1081
      %s1083 = sshll.u32 %s9, 4
      %s1084 = int_to_ptr.hbm [resolvable:$true] %s1083
      %1089 = dma.vmem_to_hbm [thread:$0]  %s1082, 640, %s1084, [#allocation5], 128, 128, 8
    $region41: #{_chart_parser_forward_impl.11} parent=1 // pred_fallthru
      _
    // Predicated region
    $region42: #{_chart_parser_forward_impl.11} parent=1 // pred_check
      _
    $region43: #{_chart_parser_forward_impl.11} parent=1 // pred_check_branch
      %1091 = sbr.rel (0) target = $region45
    $region44: #{_chart_parser_forward_impl.11} parent=1 // pred_region
      _
    $region45: #{_chart_parser_forward_impl.11} parent=1 // pred_fallthru
      _
    // Predicated region
    $region46: #{_chart_parser_forward_impl.11} parent=1 // pred_check
      _
    $region47: #{_chart_parser_forward_impl.11} parent=1 // pred_check_branch
      %1093 = sbr.rel (0) target = $region49
    $region48: #{_chart_parser_forward_impl.11} parent=1 // pred_region
      %1095 = dma.done [#allocation3], 640
    $region49: #{_chart_parser_forward_impl.11} parent=1 // pred_fallthru
      _
    // Predicated region
    $region50: #{_chart_parser_forward_impl.11} parent=1 // pred_check
      _
    $region51: #{_chart_parser_forward_impl.11} parent=1 // pred_check_branch
      %1097 = sbr.rel (0) target = $region53
    $region52: #{_chart_parser_forward_impl.11} parent=1 // pred_region
      %1099 = dma.done [#allocation5], 640
    $region53: #{_chart_parser_forward_impl.11} parent=1 // pred_fallthru
      _
    // Predicated region
    $region54: #{_chart_parser_forward_impl.11} parent=1 // pred_check
      _
    $region55: #{_chart_parser_forward_impl.11} parent=1 // pred_check_branch
      %1101 = sbr.rel (0) target = $region57
    $region56: #{_chart_parser_forward_impl.11} parent=1 // pred_region
      _
    $region57: #{_chart_parser_forward_impl.11} parent=1 // pred_fallthru
      _
    %1102 = vsyncpa [#allocation3], 1
    %1103 = vsyncpa [#allocation5], 1

</llo_original>
